<compile_context>
chip_gen: v6e
topology: v6e:2x2x1
jax: 0.10.0
libtpu: 0.0.40
codegen_flags: <defaults>
</compile_context>

<pallas_src>
import jax
import jax.numpy as jnp
from jax.experimental import pallas as pl
from jax.experimental.pallas import tpu as pltpu

LANE = 128  # TPU lane width: the output feature dim is padded to this.


# ----------------------------------------------------------------------------
# Shared helper: pairwise *squared* Euclidean distances (diag == 0 exactly)
# ----------------------------------------------------------------------------
def _pairwise_sq_dists(x):
    # x: (N, C) f32  ->  (N, N) squared distances.
    sq = jnp.sum(x * x, axis=-1, keepdims=True)                      # (N, 1)
    cross = jnp.einsum("nc,mc->nm", x, x,
                       preferred_element_type=jnp.float32,
                       precision=jax.lax.Precision.HIGHEST)          # (N, N)
    return sq + sq.T - 2.0 * cross


# ----------------------------------------------------------------------------
# Pass 1: per-batch max squared pairwise distance (MXU + XLU only, no sqrt)
# ----------------------------------------------------------------------------
def _dist_max_kernel(x_ref, o_ref):
    d2 = _pairwise_sq_dists(x_ref[...])                              # (N, N)
    m = jnp.max(d2, axis=-1, keepdims=True)                          # (N, 1)
    o_ref[...] = jnp.maximum(jnp.max(m, axis=-2, keepdims=True), 0.0)  # (1, 1)


# ----------------------------------------------------------------------------
# Pass 2: fused adjacency construction + 3-layer HGNN + residual
# (one batch element per grid step; thr2 arrives via SMEM scalar prefetch)
# ----------------------------------------------------------------------------
def _hgnn_fused_kernel(thr2_ref, x_ref,
                       w1_ref, b1_ref, g1_ref, be1_ref,
                       w2_ref, b2_ref, g2_ref, be2_ref,
                       w3_ref, b3_ref,
                       o_ref):
    x = x_ref[...]                                   # (N, C) f32
    N, C = x.shape

    # --- adjacency in squared-distance space (never touches HBM) -------------
    #   dist/dist.max() < thr  <=>  d2 < thr^2 * max(d2)  (== thr2, precomputed)
    d2 = _pairwise_sq_dists(x)
    mask = d2 < thr2_ref[0]                          # diag always True (d2_ii == 0)
    adj = mask.astype(jnp.bfloat16)                  # A in {0,1}: lossless bf16
    # G = A + I is never materialised: deg = rowsum(A) + 1, (A+I)@v = A@v + v.
    deg = jnp.sum(mask.astype(jnp.float32), axis=-1, keepdims=True) + 1.0
    d_inv = jax.lax.rsqrt(deg)                       # deg >= 1 -> no inf guard

    def a_plus_i_matmul(s):
        # (A + I) @ s.  A is exactly {0,1}, so splitting the f32 operand into
        # bf16 hi/lo halves keeps ~f32 accuracy while the MXU runs two fast
        # bf16 passes instead of the multi-pass f32 path.
        s_hi = s.astype(jnp.bfloat16)
        s_lo = (s - s_hi.astype(jnp.float32)).astype(jnp.bfloat16)
        return (jnp.dot(adj, s_hi, preferred_element_type=jnp.float32)
                + jnp.dot(adj, s_lo, preferred_element_type=jnp.float32)
                + s)

    def hgc(h, w_ref, b_ref):
        # Gn @ (h @ W + b)  with  Gn @ v == d_inv * ((A + I) @ (d_inv * v)).
        hf = jnp.dot(h, w_ref[...], preferred_element_type=jnp.float32) + b_ref[...]
        s = d_inv * hf
        return d_inv * a_plus_i_matmul(s)

    def ln_relu(h, gamma_ref, beta_ref):
        # nn.LayerNorm over features (biased variance, eps=1e-5), fused stats.
        mu = jnp.mean(h, axis=-1, keepdims=True)
        ms = jnp.mean(h * h, axis=-1, keepdims=True)
        var = jnp.maximum(ms - mu * mu, 0.0)
        hn = (h - mu) * jax.lax.rsqrt(var + 1e-5)
        return jnp.maximum(hn * gamma_ref[...] + beta_ref[...], 0.0)

    h = ln_relu(hgc(x, w1_ref, b1_ref), g1_ref, be1_ref)
    # TODO(synk): F.dropout is identity in eval mode; training-mode stochastic
    # dropout is intentionally not reproduced here.
    h = ln_relu(hgc(h, w2_ref, b2_ref), g2_ref, be2_ref)
    h = hgc(h, w3_ref, b3_ref)                       # (N, Cp); padded lanes == 0

    # Lane-dense 128-wide store, then overwrite the real channels with the
    # residual (input is unpadded so the residual only touches lanes [0, C)).
    o_ref[...] = h.astype(o_ref.dtype)
    o_ref[:, :C] = (h[:, :C] + x).astype(o_ref.dtype)


# ----------------------------------------------------------------------------
# Wrapper: NCHW -> pixels -> two pallas_calls -> NCHW
# ----------------------------------------------------------------------------
def _pad_last(a, target):
    pad = target - a.shape[-1]
    if pad == 0:
        return a
    return jnp.pad(a, [(0, 0)] * (a.ndim - 1) + [(0, pad)])


def _cost_estimate(B, N, C, Cp, Hd):
    flops = 2 * B * (N * N * C                               # pairwise cross terms
                     + N * (C * Hd + Hd * Hd + Hd * Cp)      # feature matmuls
                     + 2 * N * N * (Hd + Hd + Cp))           # (A+I) matmuls (2 bf16 passes)
    transcendentals = B * 3 * N                              # rsqrt: degree + 2 LayerNorms
    param_bytes = 4 * (C * Hd + Hd * Hd + Hd * Cp + 6 * Hd + Cp)
    bytes_accessed = 4 * B * N * (2 * C + Cp) + B * param_bytes
    return pl.CostEstimate(flops=flops, transcendentals=transcendentals,
                           bytes_accessed=bytes_accessed)


@jax.jit
def custom_multiscale_forward(x_nchw, params):
    B, C, H, W = x_nchw.shape
    N = H * W
    Hd = params["w1"].shape[1]
    Cp = ((C + LANE - 1) // LANE) * LANE             # lane-dense OUTPUT feature dim

    # NCHW -> (B, N, C).  The input is NOT padded in HBM (saves 8x input DMA
    # bytes); only the output block is padded to 128 lanes for dense stores.
    x_pix = jnp.transpose(x_nchw.reshape(B, C, N).astype(jnp.float32), (0, 2, 1))

    # Params; w3/b3 padded so the padded output lanes stay exactly zero.
    w1 = params["w1"].astype(jnp.float32)                            # (C, Hd)
    w2 = params["w2"].astype(jnp.float32)                            # (Hd, Hd)
    w3 = _pad_last(params["w3"].astype(jnp.float32), Cp)             # (Hd, Cp)
    b1 = params["b1"].reshape(1, Hd).astype(jnp.float32)
    b2 = params["b2"].reshape(1, Hd).astype(jnp.float32)
    b3 = _pad_last(params["b3"].reshape(1, C).astype(jnp.float32), Cp)
    g1 = params["g1"].reshape(1, Hd).astype(jnp.float32)
    be1 = params["be1"].reshape(1, Hd).astype(jnp.float32)
    g2 = params["g2"].reshape(1, Hd).astype(jnp.float32)
    be2 = params["be2"].reshape(1, Hd).astype(jnp.float32)

    cparams = pltpu.CompilerParams(
        dimension_semantics=("parallel",),           # B steps -> both v7x TCs busy
        vmem_limit_bytes=32 * 1024 * 1024,
    )

    # ---- pass 1: per-batch max squared pairwise distance --------------------
    dmax2 = pl.pallas_call(
        _dist_max_kernel,
        out_shape=jax.ShapeDtypeStruct((B, 1, 1), jnp.float32),
        grid_spec=pltpu.PrefetchScalarGridSpec(
            num_scalar_prefetch=0, grid=(B,),
            in_specs=[pl.BlockSpec((None, N, C), lambda b: (b, 0, 0))],
            out_specs=pl.BlockSpec((None, 1, 1), lambda b: (b, 0, 0))),
        compiler_params=cparams,
    )(x_pix)

    # Global (cross-batch) max, as in the module; threshold folded into one
    # scalar so the kernel needs neither a divide nor a sqrt.
    # NOTE: entries exactly on the boundary may round differently than the
    # reference's sqrt+divide form; same flakiness class as before.
    gmax_d2 = jnp.max(dmax2)
    thr = params["threshold"].astype(jnp.float32)                    # (1,)
    thr2 = thr * thr * gmax_d2                                       # (1,) SMEM scalar

    # ---- pass 2: fused adjacency + 3-layer HGNN + residual ------------------
    # Constant-index weight specs; could be single-buffered with
    # pipeline_mode=pl.Buffered(1) to halve their VMEM on v7x as Hd grows.
    cw = lambda shape: pl.BlockSpec(shape, lambda b, s: (0, 0))
    # TODO(synk): for large N (>= ~1k on v7x's 64 MiB VMEM), add an inner
    # node-row strip pipeline (recompute d2/adjacency per strip, accumulate
    # A@h) instead of holding the full N x N adjacency resident.
    out_pad = pl.pallas_call(
        _hgnn_fused_kernel,
        out_shape=jax.ShapeDtypeStruct((B, N, Cp), jnp.float32),
        grid_spec=pltpu.PrefetchScalarGridSpec(
            num_scalar_prefetch=1,                    # thr2 -> SMEM
            grid=(B,),
            in_specs=[
                pl.BlockSpec((None, N, C), lambda b, s: (b, 0, 0)),   # x (unpadded)
                cw((C, Hd)), cw((1, Hd)), cw((1, Hd)), cw((1, Hd)),   # w1,b1,g1,be1
                cw((Hd, Hd)), cw((1, Hd)), cw((1, Hd)), cw((1, Hd)),  # w2,b2,g2,be2
                cw((Hd, Cp)), cw((1, Cp)),                            # w3,b3
            ],
            out_specs=pl.BlockSpec((None, N, Cp), lambda b, s: (b, 0, 0))),
        compiler_params=cparams,
        cost_estimate=_cost_estimate(B, N, C, Cp, Hd),
    )(thr2, x_pix, w1, b1, g1, be1, w2, b2, g2, be2, w3, b3)

    out = out_pad[..., :C]                                           # (B, N, C)
    return jnp.transpose(out, (0, 2, 1)).reshape(B, C, H, W)


# ----------------------------------------------------------------------------
# Pure-JAX reference (mirrors the PyTorch module in eval mode), full f32 dots
# ----------------------------------------------------------------------------
@jax.jit
def reference_forward(x_nchw, params):
    with jax.default_matmul_precision("float32"):
        B, C, H, W = x_nchw.shape
        N = H * W
        xp = jnp.transpose(x_nchw.reshape(B, C, N).astype(jnp.float32), (0, 2, 1))

        # create_hypergraph_adjacency
        sq = jnp.sum(xp * xp, axis=-1, keepdims=True)
        cross = jnp.einsum("bnc,bmc->bnm", xp, xp)
        dist = jnp.sqrt(jnp.maximum(sq + jnp.swapaxes(sq, -2, -1) - 2.0 * cross, 0.0))
        dist = dist / jnp.max(dist)
        adj = ((dist < params["threshold"][0]).astype(jnp.float32)
               + jnp.eye(N, dtype=jnp.float32)[None])

        # HGNN
        deg = jnp.sum(adj, axis=2, keepdims=True)
        d_inv = jnp.power(deg, -0.5)
        d_inv = jnp.where(jnp.isinf(d_inv), 0.0, d_inv)
        Gn = d_inv * adj * jnp.swapaxes(d_inv, 1, 2)

        def hgc(h, w, b):
            return Gn @ (h @ w + b)

        def ln_relu(h, g, b):
            mu = jnp.mean(h, axis=-1, keepdims=True)
            var = jnp.mean((h - mu) ** 2, axis=-1, keepdims=True)
            return jnp.maximum((h - mu) / jnp.sqrt(var + 1e-5) * g + b, 0.0)

        h = ln_relu(hgc(xp, params["w1"], params["b1"]), params["g1"], params["be1"])
        h = ln_relu(hgc(h, params["w2"], params["b2"]), params["g2"], params["be2"])
        h = hgc(h, params["w3"], params["b3"])
        out = h + xp
        return jnp.transpose(out, (0, 2, 1)).reshape(B, C, H, W)


# ----------------------------------------------------------------------------
# Parameter init (PyTorch uses kaiming weights + zero biases / unit LN gains;
# biases/LN params are randomized slightly so the check exercises everything).
# ----------------------------------------------------------------------------
def init_params(key, in_ch, n_class, n_hid, threshold=0.5):
    assert in_ch == n_class, "residual `out + x_pixels` requires n_class == in_ch"
    ks = jax.random.split(key, 9)

    def kaiming(k, fi, fo):
        bound = (6.0 / fi) ** 0.5        # kaiming_uniform_, fan_in, relu
        return jax.random.uniform(k, (fi, fo), jnp.float32, -bound, bound)

    def small(k, n):
        return 0.1 * jax.random.normal(k, (n,), jnp.float32)

    return {
        "w1": kaiming(ks[0], in_ch, n_hid),
        "b1": small(ks[1], n_hid),
        "g1": 1.0 + small(ks[2], n_hid),
        "be1": small(ks[3], n_hid),
        "w2": kaiming(ks[4], n_hid, n_hid),
        "b2": small(ks[5], n_hid),
        "g2": 1.0 + small(ks[6], n_hid),
        "be2": small(ks[7], n_hid),
        "w3": kaiming(ks[8], n_hid, n_class),
        "b3": jnp.zeros((n_class,), jnp.float32),
        "threshold": jnp.clip(jnp.array([threshold], jnp.float32), 0.01, 1.0),
    }


if __name__ == "__main__":
    B, C, H, W = 2, 16, 16, 16        # N = H*W = 256 nodes (lane/MXU aligned)
    n_hid = 256                        # the module hard-codes n_hid = 256

    key = jax.random.PRNGKey(0)
    kx, kp = jax.random.split(key)

    # Small-integer pixel values keep every pairwise squared distance exactly
    # representable in f32, so the thresholded adjacency is identical between
    # the kernel and the reference (no boundary-flip flakiness).
    x = jax.random.randint(kx, (B, C, H, W), -3, 4).astype(jnp.float32)
    params = init_params(kp, in_ch=C, n_class=C, n_hid=n_hid, threshold=0.5)

    out = custom_multiscale_forward(x, params)      # grid=(2,) "parallel"
    out = jax.block_until_ready(out)

    ref = reference_forward(x, params)
    assert out.shape == (B, C, H, W)
    assert bool(jnp.allclose(out, ref, atol=2e-3, rtol=2e-3)), "mismatch vs reference"

    print("KERNEL_OK")
</pallas_src>

<mosaic_0001>
module attributes {stable_mosaic.version = 11 : i64} {
  func.func @_dist_max_kernel(%arg0: i32, %arg1: memref<1x256x16xf32, #tpu.memory_space<vmem>>, %arg2: memref<1x1x1xf32, #tpu.memory_space<vmem>>) attributes {dimension_semantics = [#tpu.dimension_semantics<parallel>], iteration_bounds = array<i64: 2>, scalar_prefetch = 0 : i64, scratch_operands = 0 : i64, tpu.core_type = #tpu.core_type<tc>, window_params = [{transform_indices = @transform_0, window_bounds = array<i64: 1, 256, 16>}, {transform_indices = @transform_1, window_bounds = array<i64: 1, 1, 1>}]} {
    %c0 = arith.constant 0 : index
    %c0_0 = arith.constant 0 : index
    %c0_1 = arith.constant 0 : index
    %0 = vector.load %arg1[%c0, %c0_0, %c0_1] : memref<1x256x16xf32, #tpu.memory_space<vmem>>, vector<1x256x16xf32>
    %1 = vector.shape_cast %0 : vector<1x256x16xf32> to vector<256x16xf32>
    %2 = arith.mulf %1, %1 : vector<256x16xf32>
    %cst = arith.constant dense<0.000000e+00> : vector<256xf32>
    %3 = vector.multi_reduction <add>, %2, %cst [1] : vector<256x16xf32> to vector<256xf32>
    %4 = vector.shape_cast %3 : vector<256xf32> to vector<256x1xf32>
    "tpu.trace_start"() <{level = 10 : i32, message = "nc,mc->nm"}> : () -> ()
    %cst_2 = arith.constant dense<0.000000e+00> : vector<256x256xf32>
    %5 = tpu.matmul %1, %1, %cst_2 {dimension_numbers = #tpu.dot_dimension_numbers<[1], [1], [0], [0], [0, 0, 1, 0], [], []>, precision = #tpu.contract_precision<fp32>} : vector<256x16xf32>, vector<256x16xf32>, vector<256x256xf32> -> vector<256x256xf32>
    "tpu.trace_stop"() : () -> ()
    %6 = tpu.transpose %4, [1, 0] : vector<256x1xf32> -> vector<1x256xf32>
    %7 = vector.broadcast %4 : vector<256x1xf32> to vector<256x256xf32>
    %8 = vector.broadcast %6 : vector<1x256xf32> to vector<256x256xf32>
    %9 = arith.addf %7, %8 : vector<256x256xf32>
    %cst_3 = arith.constant 2.000000e+00 : f32
    %10 = vector.broadcast %cst_3 : f32 to vector<256x256xf32>
    %11 = arith.mulf %10, %5 : vector<256x256xf32>
    %12 = arith.subf %9, %11 : vector<256x256xf32>
    %cst_4 = arith.constant dense<0xFF800000> : vector<256xf32>
    %13 = vector.multi_reduction <maximumf>, %12, %cst_4 [1] : vector<256x256xf32> to vector<256xf32>
    %14 = vector.shape_cast %13 : vector<256xf32> to vector<256x1xf32>
    %cst_5 = arith.constant dense<0xFF800000> : vector<1xf32>
    %15 = vector.multi_reduction <maximumf>, %14, %cst_5 [0] : vector<256x1xf32> to vector<1xf32>
    %16 = vector.shape_cast %15 : vector<1xf32> to vector<1x1xf32>
    %cst_6 = arith.constant 0.000000e+00 : f32
    %17 = vector.broadcast %cst_6 : f32 to vector<1x1xf32>
    %18 = arith.maximumf %16, %17 : vector<1x1xf32>
    %c0_7 = arith.constant 0 : index
    %c0_8 = arith.constant 0 : index
    %c0_9 = arith.constant 0 : index
    %19 = vector.load %arg2[%c0_7, %c0_8, %c0_9] : memref<1x1x1xf32, #tpu.memory_space<vmem>>, vector<1x1x1xf32>
    %20 = vector.shape_cast %19 : vector<1x1x1xf32> to vector<1x1xf32>
    %21 = vector.shape_cast %18 : vector<1x1xf32> to vector<1x1x1xf32>
    tpu.vector_store %arg2[%c0_7, %c0_8, %c0_9], %21 {strides = array<i32>} : memref<1x1x1xf32, #tpu.memory_space<vmem>>, vector<1x1x1xf32>,
    return
  }
  func.func @transform_0(%arg0: i32) -> (i32, i32, i32) {
    %c0_i32 = arith.constant 0 : i32
    %c0_i32_0 = arith.constant 0 : i32
    %c0_i32_1 = arith.constant 0 : i32
    return %arg0, %c0_i32, %c0_i32_0 : i32, i32, i32
  }
  func.func @transform_1(%arg0: i32) -> (i32, i32, i32) {
    %c0_i32 = arith.constant 0 : i32
    %c0_i32_0 = arith.constant 0 : i32
    %c0_i32_1 = arith.constant 0 : i32
    return %arg0, %c0_i32, %c0_i32_0 : i32, i32, i32
  }
}

module attributes {stable_mosaic.version = 11 : i64} {
  func.func @_hgnn_fused_kernel(%arg0: i32, %arg1: memref<1xf32, #tpu.memory_space<smem>>, %arg2: memref<1x256x16xf32, #tpu.memory_space<vmem>>, %arg3: memref<16x256xf32, #tpu.memory_space<vmem>>, %arg4: memref<1x256xf32, #tpu.memory_space<vmem>>, %arg5: memref<1x256xf32, #tpu.memory_space<vmem>>, %arg6: memref<1x256xf32, #tpu.memory_space<vmem>>, %arg7: memref<256x256xf32, #tpu.memory_space<vmem>>, %arg8: memref<1x256xf32, #tpu.memory_space<vmem>>, %arg9: memref<1x256xf32, #tpu.memory_space<vmem>>, %arg10: memref<1x256xf32, #tpu.memory_space<vmem>>, %arg11: memref<256x128xf32, #tpu.memory_space<vmem>>, %arg12: memref<1x128xf32, #tpu.memory_space<vmem>>, %arg13: memref<1x256x128xf32, #tpu.memory_space<vmem>>) attributes {dimension_semantics = [#tpu.dimension_semantics<parallel>], iteration_bounds = array<i64: 2>, scalar_prefetch = 1 : i64, scratch_operands = 0 : i64, tpu.core_type = #tpu.core_type<tc>, window_params = [{transform_indices = @transform_0, window_bounds = array<i64: 1, 256, 16>}, {pipeline_mode = #tpu.pipeline_mode<synchronous>, transform_indices = @transform_1, window_bounds = array<i64: 16, 256>}, {pipeline_mode = #tpu.pipeline_mode<synchronous>, transform_indices = @transform_2, window_bounds = array<i64: 1, 256>}, {pipeline_mode = #tpu.pipeline_mode<synchronous>, transform_indices = @transform_3, window_bounds = array<i64: 1, 256>}, {pipeline_mode = #tpu.pipeline_mode<synchronous>, transform_indices = @transform_4, window_bounds = array<i64: 1, 256>}, {pipeline_mode = #tpu.pipeline_mode<synchronous>, transform_indices = @transform_5, window_bounds = array<i64: 256, 256>}, {pipeline_mode = #tpu.pipeline_mode<synchronous>, transform_indices = @transform_6, window_bounds = array<i64: 1, 256>}, {pipeline_mode = #tpu.pipeline_mode<synchronous>, transform_indices = @transform_7, window_bounds = array<i64: 1, 256>}, {pipeline_mode = #tpu.pipeline_mode<synchronous>, transform_indices = @transform_8, window_bounds = array<i64: 1, 256>}, {pipeline_mode = #tpu.pipeline_mode<synchronous>, transform_indices = @transform_9, window_bounds = array<i64: 256, 128>}, {pipeline_mode = #tpu.pipeline_mode<synchronous>, transform_indices = @transform_10, window_bounds = array<i64: 1, 128>}, {transform_indices = @transform_11, window_bounds = array<i64: 1, 256, 128>}]} {
    %c0 = arith.constant 0 : index
    %c0_0 = arith.constant 0 : index
    %c0_1 = arith.constant 0 : index
    %0 = vector.load %arg2[%c0, %c0_0, %c0_1] : memref<1x256x16xf32, #tpu.memory_space<vmem>>, vector<1x256x16xf32>
    %1 = vector.shape_cast %0 : vector<1x256x16xf32> to vector<256x16xf32>
    %2 = arith.mulf %1, %1 : vector<256x16xf32>
    %cst = arith.constant dense<0.000000e+00> : vector<256xf32>
    %3 = vector.multi_reduction <add>, %2, %cst [1] : vector<256x16xf32> to vector<256xf32>
    %4 = vector.shape_cast %3 : vector<256xf32> to vector<256x1xf32>
    "tpu.trace_start"() <{level = 10 : i32, message = "nc,mc->nm"}> : () -> ()
    %cst_2 = arith.constant dense<0.000000e+00> : vector<256x256xf32>
    %5 = tpu.matmul %1, %1, %cst_2 {dimension_numbers = #tpu.dot_dimension_numbers<[1], [1], [0], [0], [0, 0, 1, 0], [], []>, precision = #tpu.contract_precision<fp32>} : vector<256x16xf32>, vector<256x16xf32>, vector<256x256xf32> -> vector<256x256xf32>
    "tpu.trace_stop"() : () -> ()
    %6 = tpu.transpose %4, [1, 0] : vector<256x1xf32> -> vector<1x256xf32>
    %7 = vector.broadcast %4 : vector<256x1xf32> to vector<256x256xf32>
    %8 = vector.broadcast %6 : vector<1x256xf32> to vector<256x256xf32>
    %9 = arith.addf %7, %8 : vector<256x256xf32>
    %cst_3 = arith.constant 2.000000e+00 : f32
    %10 = vector.broadcast %cst_3 : f32 to vector<256x256xf32>
    %11 = arith.mulf %10, %5 : vector<256x256xf32>
    %12 = arith.subf %9, %11 : vector<256x256xf32>
    %c0_4 = arith.constant 0 : index
    %13 = memref.load %arg1[%c0_4] : memref<1xf32, #tpu.memory_space<smem>>
    %14 = vector.broadcast %13 : f32 to vector<256x256xf32>
    %15 = arith.cmpf olt, %12, %14 : vector<256x256xf32>
    %16 = arith.extui %15 : vector<256x256xi1> to vector<256x256xi32>
    %17 = arith.sitofp %16 : vector<256x256xi32> to vector<256x256xf32>
    %18 = arith.truncf %17 : vector<256x256xf32> to vector<256x256xbf16>
    %19 = arith.extui %15 : vector<256x256xi1> to vector<256x256xi32>
    %20 = arith.sitofp %19 : vector<256x256xi32> to vector<256x256xf32>
    %cst_5 = arith.constant dense<0.000000e+00> : vector<256xf32>
    %21 = vector.multi_reduction <add>, %20, %cst_5 [1] : vector<256x256xf32> to vector<256xf32>
    %22 = vector.shape_cast %21 : vector<256xf32> to vector<256x1xf32>
    %cst_6 = arith.constant 1.000000e+00 : f32
    %23 = vector.broadcast %cst_6 : f32 to vector<256x1xf32>
    %24 = arith.addf %22, %23 : vector<256x1xf32>
    %25 = math.rsqrt %24 : vector<256x1xf32>
    %c0_7 = arith.constant 0 : index
    %c0_8 = arith.constant 0 : index
    %26 = vector.load %arg3[%c0_7, %c0_8] : memref<16x256xf32, #tpu.memory_space<vmem>>, vector<16x256xf32>
    %cst_9 = arith.constant dense<0.000000e+00> : vector<256x256xf32>
    %27 = tpu.matmul %1, %26, %cst_9 {dimension_numbers = #tpu.dot_dimension_numbers<[1], [0], [0], [1], [0, 0, 1, 1], [], []>} : vector<256x16xf32>, vector<16x256xf32>, vector<256x256xf32> -> vector<256x256xf32>
    %c0_10 = arith.constant 0 : index
    %c0_11 = arith.constant 0 : index
    %28 = vector.load %arg4[%c0_10, %c0_11] : memref<1x256xf32, #tpu.memory_space<vmem>>, vector<1x256xf32>
    %29 = vector.broadcast %28 : vector<1x256xf32> to vector<256x256xf32>
    %30 = arith.addf %27, %29 : vector<256x256xf32>
    %31 = vector.broadcast %25 : vector<256x1xf32> to vector<256x256xf32>
    %32 = arith.mulf %31, %30 : vector<256x256xf32>
    %33 = arith.truncf %32 : vector<256x256xf32> to vector<256x256xbf16>
    %34 = arith.extf %33 : vector<256x256xbf16> to vector<256x256xf32>
    %35 = arith.subf %32, %34 : vector<256x256xf32>
    %36 = arith.truncf %35 : vector<256x256xf32> to vector<256x256xbf16>
    %cst_12 = arith.constant dense<0.000000e+00> : vector<256x256xf32>
    %37 = tpu.matmul %18, %33, %cst_12 {dimension_numbers = #tpu.dot_dimension_numbers<[1], [0], [0], [1], [0, 0, 1, 1], [], []>} : vector<256x256xbf16>, vector<256x256xbf16>, vector<256x256xf32> -> vector<256x256xf32>
    %cst_13 = arith.constant dense<0.000000e+00> : vector<256x256xf32>
    %38 = tpu.matmul %18, %36, %cst_13 {dimension_numbers = #tpu.dot_dimension_numbers<[1], [0], [0], [1], [0, 0, 1, 1], [], []>} : vector<256x256xbf16>, vector<256x256xbf16>, vector<256x256xf32> -> vector<256x256xf32>
    %39 = arith.addf %37, %38 : vector<256x256xf32>
    %40 = arith.addf %39, %32 : vector<256x256xf32>
    %41 = vector.broadcast %25 : vector<256x1xf32> to vector<256x256xf32>
    %42 = arith.mulf %41, %40 : vector<256x256xf32>
    %cst_14 = arith.constant dense<0.000000e+00> : vector<256xf32>
    %43 = vector.multi_reduction <add>, %42, %cst_14 [1] : vector<256x256xf32> to vector<256xf32>
    %44 = vector.shape_cast %43 : vector<256xf32> to vector<256x1xf32>
    %cst_15 = arith.constant 2.560000e+02 : f32
    %45 = vector.broadcast %cst_15 : f32 to vector<256x1xf32>
    %46 = arith.divf %44, %45 : vector<256x1xf32>
    %47 = arith.mulf %42, %42 : vector<256x256xf32>
    %cst_16 = arith.constant dense<0.000000e+00> : vector<256xf32>
    %48 = vector.multi_reduction <add>, %47, %cst_16 [1] : vector<256x256xf32> to vector<256xf32>
    %49 = vector.shape_cast %48 : vector<256xf32> to vector<256x1xf32>
    %cst_17 = arith.constant 2.560000e+02 : f32
    %50 = vector.broadcast %cst_17 : f32 to vector<256x1xf32>
    %51 = arith.divf %49, %50 : vector<256x1xf32>
    %52 = arith.mulf %46, %46 : vector<256x1xf32>
    %53 = arith.subf %51, %52 : vector<256x1xf32>
    %cst_18 = arith.constant 0.000000e+00 : f32
    %54 = vector.broadcast %cst_18 : f32 to vector<256x1xf32>
    %55 = arith.maximumf %53, %54 : vector<256x1xf32>
    %56 = vector.broadcast %46 : vector<256x1xf32> to vector<256x256xf32>
    %57 = arith.subf %42, %56 : vector<256x256xf32>
    %cst_19 = arith.constant 9.99999974E-6 : f32
    %58 = vector.broadcast %cst_19 : f32 to vector<256x1xf32>
    %59 = arith.addf %55, %58 : vector<256x1xf32>
    %60 = math.rsqrt %59 : vector<256x1xf32>
    %61 = vector.broadcast %60 : vector<256x1xf32> to vector<256x256xf32>
    %62 = arith.mulf %57, %61 : vector<256x256xf32>
    %c0_20 = arith.constant 0 : index
    %c0_21 = arith.constant 0 : index
    %63 = vector.load %arg5[%c0_20, %c0_21] : memref<1x256xf32, #tpu.memory_space<vmem>>, vector<1x256xf32>
    %64 = vector.broadcast %63 : vector<1x256xf32> to vector<256x256xf32>
    %65 = arith.mulf %62, %64 : vector<256x256xf32>
    %c0_22 = arith.constant 0 : index
    %c0_23 = arith.constant 0 : index
    %66 = vector.load %arg6[%c0_22, %c0_23] : memref<1x256xf32, #tpu.memory_space<vmem>>, vector<1x256xf32>
    %67 = vector.broadcast %66 : vector<1x256xf32> to vector<256x256xf32>
    %68 = arith.addf %65, %67 : vector<256x256xf32>
    %cst_24 = arith.constant 0.000000e+00 : f32
    %69 = vector.broadcast %cst_24 : f32 to vector<256x256xf32>
    %70 = arith.maximumf %68, %69 : vector<256x256xf32>
    %c0_25 = arith.constant 0 : index
    %c0_26 = arith.constant 0 : index
    %71 = vector.load %arg7[%c0_25, %c0_26] : memref<256x256xf32, #tpu.memory_space<vmem>>, vector<256x256xf32>
    %cst_27 = arith.constant dense<0.000000e+00> : vector<256x256xf32>
    %72 = tpu.matmul %70, %71, %cst_27 {dimension_numbers = #tpu.dot_dimension_numbers<[1], [0], [0], [1], [0, 0, 1, 1], [], []>} : vector<256x256xf32>, vector<256x256xf32>, vector<256x256xf32> -> vector<256x256xf32>
    %c0_28 = arith.constant 0 : index
    %c0_29 = arith.constant 0 : index
    %73 = vector.load %arg8[%c0_28, %c0_29] : memref<1x256xf32, #tpu.memory_space<vmem>>, vector<1x256xf32>
    %74 = vector.broadcast %73 : vector<1x256xf32> to vector<256x256xf32>
    %75 = arith.addf %72, %74 : vector<256x256xf32>
    %76 = vector.broadcast %25 : vector<256x1xf32> to vector<256x256xf32>
    %77 = arith.mulf %76, %75 : vector<256x256xf32>
    %78 = arith.truncf %77 : vector<256x256xf32> to vector<256x256xbf16>
    %79 = arith.extf %78 : vector<256x256xbf16> to vector<256x256xf32>
    %80 = arith.subf %77, %79 : vector<256x256xf32>
    %81 = arith.truncf %80 : vector<256x256xf32> to vector<256x256xbf16>
    %cst_30 = arith.constant dense<0.000000e+00> : vector<256x256xf32>
    %82 = tpu.matmul %18, %78, %cst_30 {dimension_numbers = #tpu.dot_dimension_numbers<[1], [0], [0], [1], [0, 0, 1, 1], [], []>} : vector<256x256xbf16>, vector<256x256xbf16>, vector<256x256xf32> -> vector<256x256xf32>
    %cst_31 = arith.constant dense<0.000000e+00> : vector<256x256xf32>
    %83 = tpu.matmul %18, %81, %cst_31 {dimension_numbers = #tpu.dot_dimension_numbers<[1], [0], [0], [1], [0, 0, 1, 1], [], []>} : vector<256x256xbf16>, vector<256x256xbf16>, vector<256x256xf32> -> vector<256x256xf32>
    %84 = arith.addf %82, %83 : vector<256x256xf32>
    %85 = arith.addf %84, %77 : vector<256x256xf32>
    %86 = vector.broadcast %25 : vector<256x1xf32> to vector<256x256xf32>
    %87 = arith.mulf %86, %85 : vector<256x256xf32>
    %cst_32 = arith.constant dense<0.000000e+00> : vector<256xf32>
    %88 = vector.multi_reduction <add>, %87, %cst_32 [1] : vector<256x256xf32> to vector<256xf32>
    %89 = vector.shape_cast %88 : vector<256xf32> to vector<256x1xf32>
    %cst_33 = arith.constant 2.560000e+02 : f32
    %90 = vector.broadcast %cst_33 : f32 to vector<256x1xf32>
    %91 = arith.divf %89, %90 : vector<256x1xf32>
    %92 = arith.mulf %87, %87 : vector<256x256xf32>
    %cst_34 = arith.constant dense<0.000000e+00> : vector<256xf32>
    %93 = vector.multi_reduction <add>, %92, %cst_34 [1] : vector<256x256xf32> to vector<256xf32>
    %94 = vector.shape_cast %93 : vector<256xf32> to vector<256x1xf32>
    %cst_35 = arith.constant 2.560000e+02 : f32
    %95 = vector.broadcast %cst_35 : f32 to vector<256x1xf32>
    %96 = arith.divf %94, %95 : vector<256x1xf32>
    %97 = arith.mulf %91, %91 : vector<256x1xf32>
    %98 = arith.subf %96, %97 : vector<256x1xf32>
    %cst_36 = arith.constant 0.000000e+00 : f32
    %99 = vector.broadcast %cst_36 : f32 to vector<256x1xf32>
    %100 = arith.maximumf %98, %99 : vector<256x1xf32>
    %101 = vector.broadcast %91 : vector<256x1xf32> to vector<256x256xf32>
    %102 = arith.subf %87, %101 : vector<256x256xf32>
    %cst_37 = arith.constant 9.99999974E-6 : f32
    %103 = vector.broadcast %cst_37 : f32 to vector<256x1xf32>
    %104 = arith.addf %100, %103 : vector<256x1xf32>
    %105 = math.rsqrt %104 : vector<256x1xf32>
    %106 = vector.broadcast %105 : vector<256x1xf32> to vector<256x256xf32>
    %107 = arith.mulf %102, %106 : vector<256x256xf32>
    %c0_38 = arith.constant 0 : index
    %c0_39 = arith.constant 0 : index
    %108 = vector.load %arg9[%c0_38, %c0_39] : memref<1x256xf32, #tpu.memory_space<vmem>>, vector<1x256xf32>
    %109 = vector.broadcast %108 : vector<1x256xf32> to vector<256x256xf32>
    %110 = arith.mulf %107, %109 : vector<256x256xf32>
    %c0_40 = arith.constant 0 : index
    %c0_41 = arith.constant 0 : index
    %111 = vector.load %arg10[%c0_40, %c0_41] : memref<1x256xf32, #tpu.memory_space<vmem>>, vector<1x256xf32>
    %112 = vector.broadcast %111 : vector<1x256xf32> to vector<256x256xf32>
    %113 = arith.addf %110, %112 : vector<256x256xf32>
    %cst_42 = arith.constant 0.000000e+00 : f32
    %114 = vector.broadcast %cst_42 : f32 to vector<256x256xf32>
    %115 = arith.maximumf %113, %114 : vector<256x256xf32>
    %c0_43 = arith.constant 0 : index
    %c0_44 = arith.constant 0 : index
    %116 = vector.load %arg11[%c0_43, %c0_44] : memref<256x128xf32, #tpu.memory_space<vmem>>, vector<256x128xf32>
    %cst_45 = arith.constant dense<0.000000e+00> : vector<256x128xf32>
    %117 = tpu.matmul %115, %116, %cst_45 {dimension_numbers = #tpu.dot_dimension_numbers<[1], [0], [0], [1], [0, 0, 1, 1], [], []>} : vector<256x256xf32>, vector<256x128xf32>, vector<256x128xf32> -> vector<256x128xf32>
    %c0_46 = arith.constant 0 : index
    %c0_47 = arith.constant 0 : index
    %118 = vector.load %arg12[%c0_46, %c0_47] : memref<1x128xf32, #tpu.memory_space<vmem>>, vector<1x128xf32>
    %119 = vector.broadcast %118 : vector<1x128xf32> to vector<256x128xf32>
    %120 = arith.addf %117, %119 : vector<256x128xf32>
    %121 = vector.broadcast %25 : vector<256x1xf32> to vector<256x128xf32>
    %122 = arith.mulf %121, %120 : vector<256x128xf32>
    %123 = arith.truncf %122 : vector<256x128xf32> to vector<256x128xbf16>
    %124 = arith.extf %123 : vector<256x128xbf16> to vector<256x128xf32>
    %125 = arith.subf %122, %124 : vector<256x128xf32>
    %126 = arith.truncf %125 : vector<256x128xf32> to vector<256x128xbf16>
    %cst_48 = arith.constant dense<0.000000e+00> : vector<256x128xf32>
    %127 = tpu.matmul %18, %123, %cst_48 {dimension_numbers = #tpu.dot_dimension_numbers<[1], [0], [0], [1], [0, 0, 1, 1], [], []>} : vector<256x256xbf16>, vector<256x128xbf16>, vector<256x128xf32> -> vector<256x128xf32>
    %cst_49 = arith.constant dense<0.000000e+00> : vector<256x128xf32>
    %128 = tpu.matmul %18, %126, %cst_49 {dimension_numbers = #tpu.dot_dimension_numbers<[1], [0], [0], [1], [0, 0, 1, 1], [], []>} : vector<256x256xbf16>, vector<256x128xbf16>, vector<256x128xf32> -> vector<256x128xf32>
    %129 = arith.addf %127, %128 : vector<256x128xf32>
    %130 = arith.addf %129, %122 : vector<256x128xf32>
    %131 = vector.broadcast %25 : vector<256x1xf32> to vector<256x128xf32>
    %132 = arith.mulf %131, %130 : vector<256x128xf32>
    %c0_50 = arith.constant 0 : index
    %c0_51 = arith.constant 0 : index
    %c0_52 = arith.constant 0 : index
    %133 = vector.load %arg13[%c0_50, %c0_51, %c0_52] : memref<1x256x128xf32, #tpu.memory_space<vmem>>, vector<1x256x128xf32>
    %134 = vector.shape_cast %133 : vector<1x256x128xf32> to vector<256x128xf32>
    %135 = vector.shape_cast %132 : vector<256x128xf32> to vector<1x256x128xf32>
    tpu.vector_store %arg13[%c0_50, %c0_51, %c0_52], %135 {strides = array<i32>} : memref<1x256x128xf32, #tpu.memory_space<vmem>>, vector<1x256x128xf32>,
    %136 = vector.extract_strided_slice %132 {offsets = [0, 0], sizes = [256, 16], strides = [1, 1]} : vector<256x128xf32> to vector<256x16xf32>
    %137 = arith.addf %136, %1 : vector<256x16xf32>
    %c0_53 = arith.constant 0 : index
    %c0_54 = arith.constant 0 : index
    %c0_55 = arith.constant 0 : index
    %138 = vector.load %arg13[%c0_53, %c0_54, %c0_55] : memref<1x256x128xf32, #tpu.memory_space<vmem>>, vector<1x256x16xf32>
    %139 = vector.shape_cast %138 : vector<1x256x16xf32> to vector<256x16xf32>
    %140 = vector.shape_cast %137 : vector<256x16xf32> to vector<1x256x16xf32>
    tpu.vector_store %arg13[%c0_53, %c0_54, %c0_55], %140 {strides = array<i32>} : memref<1x256x128xf32, #tpu.memory_space<vmem>>, vector<1x256x16xf32>,
    return
  }
  func.func @transform_0(%arg0: i32, %arg1: memref<1xf32, #tpu.memory_space<smem>>) -> (i32, i32, i32) {
    %c0_i32 = arith.constant 0 : i32
    %c0_i32_0 = arith.constant 0 : i32
    %c0_i32_1 = arith.constant 0 : i32
    return %arg0, %c0_i32, %c0_i32_0 : i32, i32, i32
  }
  func.func @transform_1(%arg0: i32, %arg1: memref<1xf32, #tpu.memory_space<smem>>) -> (i32, i32) {
    %c0_i32 = arith.constant 0 : i32
    %c0_i32_0 = arith.constant 0 : i32
    %c0_i32_1 = arith.constant 0 : i32
    return %c0_i32, %c0_i32_0 : i32, i32
  }
  func.func @transform_2(%arg0: i32, %arg1: memref<1xf32, #tpu.memory_space<smem>>) -> (i32, i32) {
    %c0_i32 = arith.constant 0 : i32
    %c0_i32_0 = arith.constant 0 : i32
    %c0_i32_1 = arith.constant 0 : i32
    return %c0_i32, %c0_i32_0 : i32, i32
  }
  func.func @transform_3(%arg0: i32, %arg1: memref<1xf32, #tpu.memory_space<smem>>) -> (i32, i32) {
    %c0_i32 = arith.constant 0 : i32
    %c0_i32_0 = arith.constant 0 : i32
    %c0_i32_1 = arith.constant 0 : i32
    return %c0_i32, %c0_i32_0 : i32, i32
  }
  func.func @transform_4(%arg0: i32, %arg1: memref<1xf32, #tpu.memory_space<smem>>) -> (i32, i32) {
    %c0_i32 = arith.constant 0 : i32
    %c0_i32_0 = arith.constant 0 : i32
    %c0_i32_1 = arith.constant 0 : i32
    return %c0_i32, %c0_i32_0 : i32, i32
  }
  func.func @transform_5(%arg0: i32, %arg1: memref<1xf32, #tpu.memory_space<smem>>) -> (i32, i32) {
    %c0_i32 = arith.constant 0 : i32
    %c0_i32_0 = arith.constant 0 : i32
    %c0_i32_1 = arith.constant 0 : i32
    return %c0_i32, %c0_i32_0 : i32, i32
  }
  func.func @transform_6(%arg0: i32, %arg1: memref<1xf32, #tpu.memory_space<smem>>) -> (i32, i32) {
    %c0_i32 = arith.constant 0 : i32
    %c0_i32_0 = arith.constant 0 : i32
    %c0_i32_1 = arith.constant 0 : i32
    return %c0_i32, %c0_i32_0 : i32, i32
  }
  func.func @transform_7(%arg0: i32, %arg1: memref<1xf32, #tpu.memory_space<smem>>) -> (i32, i32) {
    %c0_i32 = arith.constant 0 : i32
    %c0_i32_0 = arith.constant 0 : i32
    %c0_i32_1 = arith.constant 0 : i32
    return %c0_i32, %c0_i32_0 : i32, i32
  }
  func.func @transform_8(%arg0: i32, %arg1: memref<1xf32, #tpu.memory_space<smem>>) -> (i32, i32) {
    %c0_i32 = arith.constant 0 : i32
    %c0_i32_0 = arith.constant 0 : i32
    %c0_i32_1 = arith.constant 0 : i32
    return %c0_i32, %c0_i32_0 : i32, i32
  }
  func.func @transform_9(%arg0: i32, %arg1: memref<1xf32, #tpu.memory_space<smem>>) -> (i32, i32) {
    %c0_i32 = arith.constant 0 : i32
    %c0_i32_0 = arith.constant 0 : i32
    %c0_i32_1 = arith.constant 0 : i32
    return %c0_i32, %c0_i32_0 : i32, i32
  }
  func.func @transform_10(%arg0: i32, %arg1: memref<1xf32, #tpu.memory_space<smem>>) -> (i32, i32) {
    %c0_i32 = arith.constant 0 : i32
    %c0_i32_0 = arith.constant 0 : i32
    %c0_i32_1 = arith.constant 0 : i32
    return %c0_i32, %c0_i32_0 : i32, i32
  }
  func.func @transform_11(%arg0: i32, %arg1: memref<1xf32, #tpu.memory_space<smem>>) -> (i32, i32, i32) {
    %c0_i32 = arith.constant 0 : i32
    %c0_i32_0 = arith.constant 0 : i32
    %c0_i32_1 = arith.constant 0 : i32
    return %arg0, %c0_i32, %c0_i32_0 : i32, i32, i32
  }
}

</mosaic_0001>

<llo_original>
// kernel: custom_multiscale_forward.2
$region0: #{custom_multiscale_forward.2}
  #allocation0 [shape = 'u32[]', space=smem, size = 0x4, offset = 0x4, fixed_abs, tag = 'smem constant byte address 0x4 - core index']
  #allocation1 [shape = 'u32[144,128]{1,0:T(1,128)}', space=vmem, size = 0x12000, scoped, tag = 'internal scratch']
  %s0 = inlined_call_operand.vmem [shape: f32[2,256,16], index: 0, kind: input, shape index: {}]
  %s1 = inlined_call_operand.vmem [shape: f32[2,1,1], index: 1, kind: output, shape index: {}]
  %s2 = sld [smem:[#allocation0]]
  $region37: #{custom_multiscale_forward.2} parent=0
    _
  %s4 = ssub.s32 1, %s2
  %s5 = scalar_select 0, %s4, %s2
  loop: start=0, step=1, limit=4
  $region2: #{custom_multiscale_forward.2} parent=0 // loop_pre_header
    _
  $region3: #{custom_multiscale_forward.2} parent=0 // loop_header
    %s7 = sphi 0, %s11
    %p8 = scmp.ge.s32.totalorder %s7, 4
    %s17 = sphi 0, %s19
    %s20 = sphi 0, %s17
    %s21 = sphi 0, %s20
    %s37 = sphi 0, %s21
    %s43 = sphi 0, %s45
    %s46 = sphi 0, %s43
    %s47 = sphi 0, %s46
    %s63 = sphi 0, %s47
  $region4: #{custom_multiscale_forward.2} parent=0 // loop_header_branch
    %10 = sbr.rel (%p8) target = $region8
  $region5: #{custom_multiscale_forward.2} parent=0 // loop_body
    %s12 = ssub.s32 %s7, 1
    %s13 = ssub.s32 %s7, 2
    %s14 = sadd.s32 %s7, 1
    %s15 = ssub.s32 %s7, %s14
    %p16 = scmp.eq.s32.totalorder %s15, 0
    %s18 = sadd.s32 %s17, 1
    %s19 = scalar_select %p16, %s17, %s18
    %p22 = pneg %p16
    %p23 = scmp.eq.s32.totalorder %s7, 1
    %p24 = por %p22, %p23
    %p25 = scmp.ne.s32.totalorder %s17, %s20
    %p26 = scmp.eq.s32.totalorder %s7, 0
    %p27 = por %p25, %p26
    %p28 = scmp.ne.s32.totalorder %s17, %s20
    %p29 = scmp.eq.s32.totalorder %s12, 1
    %p30 = por %p28, %p29
    %p31 = scmp.ne.s32.totalorder %s20, %s21
    %p32 = scmp.eq.s32.totalorder %s12, 0
    %p33 = por %p31, %p32
    %p34 = scmp.ne.s32.totalorder %s20, %s21
    %p35 = scmp.eq.s32.totalorder %s13, 1
    %p36 = por %p34, %p35
    %p38 = scmp.ne.s32.totalorder %s21, %s37
    %p39 = scmp.eq.s32.totalorder %s13, 0
    %p40 = por %p38, %p39
    %s41 = ssub.s32 %s7, %s14
    %p42 = scmp.eq.s32.totalorder %s41, 0
    %s44 = sadd.s32 %s43, 1
    %s45 = scalar_select %p42, %s43, %s44
    %p48 = pneg %p42
    %p49 = scmp.eq.s32.totalorder %s7, 1
    %p50 = por %p48, %p49
    %p51 = scmp.ne.s32.totalorder %s43, %s46
    %p52 = scmp.eq.s32.totalorder %s7, 0
    %p53 = por %p51, %p52
    %p54 = scmp.ne.s32.totalorder %s43, %s46
    %p55 = scmp.eq.s32.totalorder %s12, 1
    %p56 = por %p54, %p55
    %p57 = scmp.ne.s32.totalorder %s46, %s47
    %p58 = scmp.eq.s32.totalorder %s12, 0
    %p59 = por %p57, %p58
    %p60 = scmp.ne.s32.totalorder %s46, %s47
    %p61 = scmp.eq.s32.totalorder %s13, 1
    %p62 = por %p60, %p61
    %p64 = scmp.ne.s32.totalorder %s47, %s63
    %p65 = scmp.eq.s32.totalorder %s13, 0
    %p66 = por %p64, %p65
    %p67 = scmp.le.s32.totalorder 1, %s7
    %p68 = scmp.lt.s32.totalorder %s7, 3
    %p69 = pnand %p67, %p68
    %p70 = pneg %p69
    // Predicated region
    $region9: #{custom_multiscale_forward.2} parent=5 // pred_check
      _
    $region10: #{custom_multiscale_forward.2} parent=5 // pred_check_branch
      %72 = sbr.rel (%p69) target = $region12
    $region11: #{custom_multiscale_forward.2} parent=5 // pred_region
      %s73 = ssub.s32 %s7, 1
    $region12: #{custom_multiscale_forward.2} parent=5 // pred_fallthru
      _
    %p74 = scmp.lt.s32.totalorder %s7, 2
    // Predicated region
    $region13: #{custom_multiscale_forward.2} parent=5 // pred_check
      %p75 = pneg %p74
    $region14: #{custom_multiscale_forward.2} parent=5 // pred_check_branch
      %77 = sbr.rel (%p75) target = $region16
    $region15: #{custom_multiscale_forward.2} parent=5 // pred_region
      // Predicated region
      $region17: #{custom_multiscale_forward.2} parent=15 // pred_check
        %p78 = pneg %p27
      $region18: #{custom_multiscale_forward.2} parent=15 // pred_check_branch
        %80 = sbr.rel (%p78) target = $region20
      $region19: #{custom_multiscale_forward.2} parent=15 // pred_region
        %p81 = scmp.lt.s32.totalorder %s7, 1
        %s82 = scalar_select %p81, %s7, 1
        %s83 = smul.addr %s82, 32
        %s84 = smul.addr %s83, 8
        %s85 = scalar_lea.vmem %s0, %s84
      $region20: #{custom_multiscale_forward.2} parent=15 // pred_fallthru
        _
    $region16: #{custom_multiscale_forward.2} parent=5 // pred_fallthru
      _
    %p86 = scmp.le.s32.totalorder 1, %s7
    %p87 = scmp.lt.s32.totalorder %s7, 3
    %p88 = pnand %p86, %p87
    %p89 = pneg %p88
    // Predicated region
    $region21: #{custom_multiscale_forward.2} parent=5 // pred_check
      _
    $region22: #{custom_multiscale_forward.2} parent=5 // pred_check_branch
      %91 = sbr.rel (%p88) target = $region24
    $region23: #{custom_multiscale_forward.2} parent=5 // pred_region
      %s92 = ssub.s32 %s7, 1
      %p93 = scmp.lt.s32.totalorder %s12, 1
      %s94 = scalar_select %p93, %s12, 1
      %s95 = smul.addr %s94, 32
      %s96 = smul.addr %s95, 8
      %s97 = scalar_lea.vmem %s0, %s96
      %p98 = pneg %p33
      %p99 = pneg %p30
      %p100 = pneg %p59
      %p101 = pneg %p56
      %p102 = scmp.lt.s32.totalorder %s12, 1
      %s103 = scalar_select %p102, %s12, 1
      %s104 = scalar_lea.vmem %s1, %s103
      %p105 = scmp.lt.s32.totalorder %s12, 1
      %s106 = scalar_select %p105, %s12, 1
      %s107 = smul.addr %s106, 32
      %s108 = smul.addr %s107, 8
      %s109 = scalar_lea.vmem %s0, %s108
      %p110 = scmp.lt.s32.totalorder %s12, 1
      %s111 = scalar_select %p110, %s12, 1
      %s112 = scalar_lea.vmem %s1, %s111
      %v113 = vld [vmem:[%s109] sm:$0xff]
      %v114 = vld [vmem:[%s109 + $0x8] sm:$0xff]
      %v115 = vld [vmem:[%s109 + $0x10] sm:$0xff]
      %v116 = vld [vmem:[%s109 + $0x18] sm:$0xff]
      %v117 = vld [vmem:[%s109 + $0x20] sm:$0xff]
      %v118 = vld [vmem:[%s109 + $0x28] sm:$0xff]
      %v119 = vld [vmem:[%s109 + $0x30] sm:$0xff]
      %v120 = vld [vmem:[%s109 + $0x38] sm:$0xff]
      %v121 = vld [vmem:[%s109 + $0x40] sm:$0xff]
      %v122 = vld [vmem:[%s109 + $0x48] sm:$0xff]
      %v123 = vld [vmem:[%s109 + $0x50] sm:$0xff]
      %v124 = vld [vmem:[%s109 + $0x58] sm:$0xff]
      %v125 = vld [vmem:[%s109 + $0x60] sm:$0xff]
      %v126 = vld [vmem:[%s109 + $0x68] sm:$0xff]
      %v127 = vld [vmem:[%s109 + $0x70] sm:$0xff]
      %v128 = vld [vmem:[%s109 + $0x78] sm:$0xff]
      %v129 = vld [vmem:[%s109 + $0x80] sm:$0xff]
      %v130 = vld [vmem:[%s109 + $0x88] sm:$0xff]
      %v131 = vld [vmem:[%s109 + $0x90] sm:$0xff]
      %v132 = vld [vmem:[%s109 + $0x98] sm:$0xff]
      %v133 = vld [vmem:[%s109 + $0xa0] sm:$0xff]
      %v134 = vld [vmem:[%s109 + $0xa8] sm:$0xff]
      %v135 = vld [vmem:[%s109 + $0xb0] sm:$0xff]
      %v136 = vld [vmem:[%s109 + $0xb8] sm:$0xff]
      %v137 = vld [vmem:[%s109 + $0xc0] sm:$0xff]
      %v138 = vld [vmem:[%s109 + $0xc8] sm:$0xff]
      %v139 = vld [vmem:[%s109 + $0xd0] sm:$0xff]
      %v140 = vld [vmem:[%s109 + $0xd8] sm:$0xff]
      %v141 = vld [vmem:[%s109 + $0xe0] sm:$0xff]
      %v142 = vld [vmem:[%s109 + $0xe8] sm:$0xff]
      %v143 = vld [vmem:[%s109 + $0xf0] sm:$0xff]
      %v144 = vld [vmem:[%s109 + $0xf8] sm:$0xff]
      %v145 = vmul.f32 %v113, %v113
      %v146 = vmul.f32 %v114, %v114
      %v147 = vmul.f32 %v115, %v115
      %v148 = vmul.f32 %v116, %v116
      %v149 = vmul.f32 %v117, %v117
      %v150 = vmul.f32 %v118, %v118
      %v151 = vmul.f32 %v119, %v119
      %v152 = vmul.f32 %v120, %v120
      %v153 = vmul.f32 %v121, %v121
      %v154 = vmul.f32 %v122, %v122
      %v155 = vmul.f32 %v123, %v123
      %v156 = vmul.f32 %v124, %v124
      %v157 = vmul.f32 %v125, %v125
      %v158 = vmul.f32 %v126, %v126
      %v159 = vmul.f32 %v127, %v127
      %v160 = vmul.f32 %v128, %v128
      %v161 = vmul.f32 %v129, %v129
      %v162 = vmul.f32 %v130, %v130
      %v163 = vmul.f32 %v131, %v131
      %v164 = vmul.f32 %v132, %v132
      %v165 = vmul.f32 %v133, %v133
      %v166 = vmul.f32 %v134, %v134
      %v167 = vmul.f32 %v135, %v135
      %v168 = vmul.f32 %v136, %v136
      %v169 = vmul.f32 %v137, %v137
      %v170 = vmul.f32 %v138, %v138
      %v171 = vmul.f32 %v139, %v139
      %v172 = vmul.f32 %v140, %v140
      %v173 = vmul.f32 %v141, %v141
      %v174 = vmul.f32 %v142, %v142
      %v175 = vmul.f32 %v143, %v143
      %v176 = vmul.f32 %v144, %v144
      %vm177 = vcmask 130048
      %v178 = vsel %vm177, %v145, 0.0
      %179 = vadd.xlane.f32.xlu0 %v178
      %v180 = vpop.xlane.xlu0 %179
      %v181 = vsel %vm177, %v146, 0.0
      %182 = vadd.xlane.f32.xlu0 %v181
      %v183 = vpop.xlane.xlu0 %182
      %v184 = vsel %vm177, %v147, 0.0
      %185 = vadd.xlane.f32.xlu0 %v184
      %v186 = vpop.xlane.xlu0 %185
      %v187 = vsel %vm177, %v148, 0.0
      %188 = vadd.xlane.f32.xlu0 %v187
      %v189 = vpop.xlane.xlu0 %188
      %v190 = vsel %vm177, %v149, 0.0
      %191 = vadd.xlane.f32.xlu0 %v190
      %v192 = vpop.xlane.xlu0 %191
      %v193 = vsel %vm177, %v150, 0.0
      %194 = vadd.xlane.f32.xlu0 %v193
      %v195 = vpop.xlane.xlu0 %194
      %v196 = vsel %vm177, %v151, 0.0
      %197 = vadd.xlane.f32.xlu0 %v196
      %v198 = vpop.xlane.xlu0 %197
      %v199 = vsel %vm177, %v152, 0.0
      %200 = vadd.xlane.f32.xlu0 %v199
      %v201 = vpop.xlane.xlu0 %200
      %v202 = vsel %vm177, %v153, 0.0
      %203 = vadd.xlane.f32.xlu0 %v202
      %v204 = vpop.xlane.xlu0 %203
      %v205 = vsel %vm177, %v154, 0.0
      %206 = vadd.xlane.f32.xlu0 %v205
      %v207 = vpop.xlane.xlu0 %206
      %v208 = vsel %vm177, %v155, 0.0
      %209 = vadd.xlane.f32.xlu0 %v208
      %v210 = vpop.xlane.xlu0 %209
      %v211 = vsel %vm177, %v156, 0.0
      %212 = vadd.xlane.f32.xlu0 %v211
      %v213 = vpop.xlane.xlu0 %212
      %v214 = vsel %vm177, %v157, 0.0
      %215 = vadd.xlane.f32.xlu0 %v214
      %v216 = vpop.xlane.xlu0 %215
      %v217 = vsel %vm177, %v158, 0.0
      %218 = vadd.xlane.f32.xlu0 %v217
      %v219 = vpop.xlane.xlu0 %218
      %v220 = vsel %vm177, %v159, 0.0
      %221 = vadd.xlane.f32.xlu0 %v220
      %v222 = vpop.xlane.xlu0 %221
      %v223 = vsel %vm177, %v160, 0.0
      %224 = vadd.xlane.f32.xlu0 %v223
      %v225 = vpop.xlane.xlu0 %224
      %v226 = vsel %vm177, %v161, 0.0
      %227 = vadd.xlane.f32.xlu0 %v226
      %v228 = vpop.xlane.xlu0 %227
      %v229 = vsel %vm177, %v162, 0.0
      %230 = vadd.xlane.f32.xlu0 %v229
      %v231 = vpop.xlane.xlu0 %230
      %v232 = vsel %vm177, %v163, 0.0
      %233 = vadd.xlane.f32.xlu0 %v232
      %v234 = vpop.xlane.xlu0 %233
      %v235 = vsel %vm177, %v164, 0.0
      %236 = vadd.xlane.f32.xlu0 %v235
      %v237 = vpop.xlane.xlu0 %236
      %v238 = vsel %vm177, %v165, 0.0
      %239 = vadd.xlane.f32.xlu0 %v238
      %v240 = vpop.xlane.xlu0 %239
      %v241 = vsel %vm177, %v166, 0.0
      %242 = vadd.xlane.f32.xlu0 %v241
      %v243 = vpop.xlane.xlu0 %242
      %v244 = vsel %vm177, %v167, 0.0
      %245 = vadd.xlane.f32.xlu0 %v244
      %v246 = vpop.xlane.xlu0 %245
      %v247 = vsel %vm177, %v168, 0.0
      %248 = vadd.xlane.f32.xlu0 %v247
      %v249 = vpop.xlane.xlu0 %248
      %v250 = vsel %vm177, %v169, 0.0
      %251 = vadd.xlane.f32.xlu0 %v250
      %v252 = vpop.xlane.xlu0 %251
      %v253 = vsel %vm177, %v170, 0.0
      %254 = vadd.xlane.f32.xlu0 %v253
      %v255 = vpop.xlane.xlu0 %254
      %v256 = vsel %vm177, %v171, 0.0
      %257 = vadd.xlane.f32.xlu0 %v256
      %v258 = vpop.xlane.xlu0 %257
      %v259 = vsel %vm177, %v172, 0.0
      %260 = vadd.xlane.f32.xlu0 %v259
      %v261 = vpop.xlane.xlu0 %260
      %v262 = vsel %vm177, %v173, 0.0
      %263 = vadd.xlane.f32.xlu0 %v262
      %v264 = vpop.xlane.xlu0 %263
      %v265 = vsel %vm177, %v174, 0.0
      %266 = vadd.xlane.f32.xlu0 %v265
      %v267 = vpop.xlane.xlu0 %266
      %v268 = vsel %vm177, %v175, 0.0
      %269 = vadd.xlane.f32.xlu0 %v268
      %v270 = vpop.xlane.xlu0 %269
      %v271 = vsel %vm177, %v176, 0.0
      %272 = vadd.xlane.f32.xlu0 %v271
      %v273 = vpop.xlane.xlu0 %272
      %v275 = vsel %vm177, %v113, 0
      %v278 = vsel %vm177, %v114, 0
      %v281 = vsel %vm177, %v115, 0
      %v284 = vsel %vm177, %v116, 0
      %v287 = vsel %vm177, %v117, 0
      %v290 = vsel %vm177, %v118, 0
      %v293 = vsel %vm177, %v119, 0
      %v296 = vsel %vm177, %v120, 0
      %v299 = vsel %vm177, %v121, 0
      %v302 = vsel %vm177, %v122, 0
      %v305 = vsel %vm177, %v123, 0
      %v308 = vsel %vm177, %v124, 0
      %v311 = vsel %vm177, %v125, 0
      %v314 = vsel %vm177, %v126, 0
      %v317 = vsel %vm177, %v127, 0
      %v320 = vsel %vm177, %v128, 0
      %v323 = vsel %vm177, %v129, 0
      %v326 = vsel %vm177, %v130, 0
      %v329 = vsel %vm177, %v131, 0
      %v332 = vsel %vm177, %v132, 0
      %v335 = vsel %vm177, %v133, 0
      %v338 = vsel %vm177, %v134, 0
      %v341 = vsel %vm177, %v135, 0
      %v344 = vsel %vm177, %v136, 0
      %v347 = vsel %vm177, %v137, 0
      %v350 = vsel %vm177, %v138, 0
      %v353 = vsel %vm177, %v139, 0
      %v356 = vsel %vm177, %v140, 0
      %v359 = vsel %vm177, %v141, 0
      %v362 = vsel %vm177, %v142, 0
      %v365 = vsel %vm177, %v143, 0
      %v368 = vsel %vm177, %v144, 0
      %370 = vmatprep.subr.mxu0 0.0
      %v371 = vand.u32 %v320, 4294901760
      %372 = vmatpush1.xpose.msra.mxu0 %v371
      %373 = vmatprep.subr.mxu0 0.0
      %v374 = vand.u32 %v317, 4294901760
      %375 = vmatpush1.xpose.msra.mxu0 %v374
      %376 = vmatprep.subr.mxu0 0.0
      %v377 = vand.u32 %v314, 4294901760
      %378 = vmatpush1.xpose.msra.mxu0 %v377
      %379 = vmatprep.subr.mxu0 0.0
      %v380 = vand.u32 %v311, 4294901760
      %381 = vmatpush1.xpose.msra.mxu0 %v380
      %382 = vmatprep.subr.mxu0 0.0
      %v383 = vand.u32 %v308, 4294901760
      %384 = vmatpush1.xpose.msra.mxu0 %v383
      %385 = vmatprep.subr.mxu0 0.0
      %v386 = vand.u32 %v305, 4294901760
      %387 = vmatpush1.xpose.msra.mxu0 %v386
      %388 = vmatprep.subr.mxu0 0.0
      %v389 = vand.u32 %v302, 4294901760
      %390 = vmatpush1.xpose.msra.mxu0 %v389
      %391 = vmatprep.subr.mxu0 0.0
      %v392 = vand.u32 %v299, 4294901760
      %393 = vmatpush1.xpose.msra.mxu0 %v392
      %394 = vmatprep.subr.mxu0 0.0
      %v395 = vand.u32 %v296, 4294901760
      %396 = vmatpush1.xpose.msra.mxu0 %v395
      %397 = vmatprep.subr.mxu0 0.0
      %v398 = vand.u32 %v293, 4294901760
      %399 = vmatpush1.xpose.msra.mxu0 %v398
      %400 = vmatprep.subr.mxu0 0.0
      %v401 = vand.u32 %v290, 4294901760
      %402 = vmatpush1.xpose.msra.mxu0 %v401
      %403 = vmatprep.subr.mxu0 0.0
      %v404 = vand.u32 %v287, 4294901760
      %405 = vmatpush1.xpose.msra.mxu0 %v404
      %406 = vmatprep.subr.mxu0 0.0
      %v407 = vand.u32 %v284, 4294901760
      %408 = vmatpush1.xpose.msra.mxu0 %v407
      %409 = vmatprep.subr.mxu0 0.0
      %v410 = vand.u32 %v281, 4294901760
      %411 = vmatpush1.xpose.msra.mxu0 %v410
      %412 = vmatprep.subr.mxu0 0.0
      %v413 = vand.u32 %v278, 4294901760
      %414 = vmatpush1.xpose.msra.mxu0 %v413
      %415 = vmatprep.subr.mxu0 0.0
      %v416 = vand.u32 %v275, 4294901760
      %417 = vmatpush1.xpose.msra.mxu0 %v416
      %418 = vmatprep.subr.mxu0 0.0
      %v419 = vand.u32 %v368, 4294901760
      %420 = vmatpush2.xpose.msra.mxu0 %v419
      %421 = vmatprep.subr.mxu0 0.0
      %v422 = vand.u32 %v365, 4294901760
      %423 = vmatpush2.xpose.msra.mxu0 %v422
      %424 = vmatprep.subr.mxu0 0.0
      %v425 = vand.u32 %v362, 4294901760
      %426 = vmatpush2.xpose.msra.mxu0 %v425
      %427 = vmatprep.subr.mxu0 0.0
      %v428 = vand.u32 %v359, 4294901760
      %429 = vmatpush2.xpose.msra.mxu0 %v428
      %430 = vmatprep.subr.mxu0 0.0
      %v431 = vand.u32 %v356, 4294901760
      %432 = vmatpush2.xpose.msra.mxu0 %v431
      %433 = vmatprep.subr.mxu0 0.0
      %v434 = vand.u32 %v353, 4294901760
      %435 = vmatpush2.xpose.msra.mxu0 %v434
      %436 = vmatprep.subr.mxu0 0.0
      %v437 = vand.u32 %v350, 4294901760
      %438 = vmatpush2.xpose.msra.mxu0 %v437
      %439 = vmatprep.subr.mxu0 0.0
      %v440 = vand.u32 %v347, 4294901760
      %441 = vmatpush2.xpose.msra.mxu0 %v440
      %442 = vmatprep.subr.mxu0 0.0
      %v443 = vand.u32 %v344, 4294901760
      %444 = vmatpush2.xpose.msra.mxu0 %v443
      %445 = vmatprep.subr.mxu0 0.0
      %v446 = vand.u32 %v341, 4294901760
      %447 = vmatpush2.xpose.msra.mxu0 %v446
      %448 = vmatprep.subr.mxu0 0.0
      %v449 = vand.u32 %v338, 4294901760
      %450 = vmatpush2.xpose.msra.mxu0 %v449
      %451 = vmatprep.subr.mxu0 0.0
      %v452 = vand.u32 %v335, 4294901760
      %453 = vmatpush2.xpose.msra.mxu0 %v452
      %454 = vmatprep.subr.mxu0 0.0
      %v455 = vand.u32 %v332, 4294901760
      %456 = vmatpush2.xpose.msra.mxu0 %v455
      %457 = vmatprep.subr.mxu0 0.0
      %v458 = vand.u32 %v329, 4294901760
      %459 = vmatpush2.xpose.msra.mxu0 %v458
      %460 = vmatprep.subr.mxu0 0.0
      %v461 = vand.u32 %v326, 4294901760
      %462 = vmatpush2.xpose.msra.mxu0 %v461
      %463 = vmatprep.subr.mxu0 0.0
      %v464 = vand.u32 %v323, 4294901760
      %465 = vmatpush2.xpose.msra.mxu0 %v464
      %466 = vmatprep.mubr.f32.mxu0 0.0
      %v467 = vand.u32 %v275, 4294901760
      %v468 = vsub.f32 %v275, %v467
      %v469 = vand.u32 %v468, 4294901760
      %v470 = vsub.f32 %v468, %v469
      %v471 = vand.u32 %v470, 4294901760
      %472 = vmatmul.mubr.f32.gmra.mxu0 %v471
      %v473 = vpop.f32.mrf.mxu0
      %v474 = vadd.f32 0.0, %v473
      %v475 = vpop.f32.mrf.mxu0
      %v476 = vadd.f32 0.0, %v475
      %477 = vmatprep.mubr.f32.mxu0 0.0
      %v478 = vand.u32 %v278, 4294901760
      %v479 = vsub.f32 %v278, %v478
      %v480 = vand.u32 %v479, 4294901760
      %v481 = vsub.f32 %v479, %v480
      %v482 = vand.u32 %v481, 4294901760
      %483 = vmatmul.mubr.f32.gmra.mxu0 %v482
      %v484 = vpop.f32.mrf.mxu0
      %v485 = vadd.f32 0.0, %v484
      %v486 = vpop.f32.mrf.mxu0
      %v487 = vadd.f32 0.0, %v486
      %488 = vmatprep.mubr.f32.mxu0 0.0
      %v489 = vand.u32 %v281, 4294901760
      %v490 = vsub.f32 %v281, %v489
      %v491 = vand.u32 %v490, 4294901760
      %v492 = vsub.f32 %v490, %v491
      %v493 = vand.u32 %v492, 4294901760
      %494 = vmatmul.mubr.f32.gmra.mxu0 %v493
      %v495 = vpop.f32.mrf.mxu0
      %v496 = vadd.f32 0.0, %v495
      %v497 = vpop.f32.mrf.mxu0
      %v498 = vadd.f32 0.0, %v497
      %499 = vmatprep.mubr.f32.mxu0 0.0
      %v500 = vand.u32 %v284, 4294901760
      %v501 = vsub.f32 %v284, %v500
      %v502 = vand.u32 %v501, 4294901760
      %v503 = vsub.f32 %v501, %v502
      %v504 = vand.u32 %v503, 4294901760
      %505 = vmatmul.mubr.f32.gmra.mxu0 %v504
      %v506 = vpop.f32.mrf.mxu0
      %v507 = vadd.f32 0.0, %v506
      %v508 = vpop.f32.mrf.mxu0
      %v509 = vadd.f32 0.0, %v508
      %510 = vmatprep.mubr.f32.mxu0 0.0
      %v511 = vand.u32 %v287, 4294901760
      %v512 = vsub.f32 %v287, %v511
      %v513 = vand.u32 %v512, 4294901760
      %v514 = vsub.f32 %v512, %v513
      %v515 = vand.u32 %v514, 4294901760
      %516 = vmatmul.mubr.f32.gmra.mxu0 %v515
      %v517 = vpop.f32.mrf.mxu0
      %v518 = vadd.f32 0.0, %v517
      %v519 = vpop.f32.mrf.mxu0
      %v520 = vadd.f32 0.0, %v519
      %521 = vmatprep.mubr.f32.mxu0 0.0
      %v522 = vand.u32 %v290, 4294901760
      %v523 = vsub.f32 %v290, %v522
      %v524 = vand.u32 %v523, 4294901760
      %v525 = vsub.f32 %v523, %v524
      %v526 = vand.u32 %v525, 4294901760
      %527 = vmatmul.mubr.f32.gmra.mxu0 %v526
      %v528 = vpop.f32.mrf.mxu0
      %v529 = vadd.f32 0.0, %v528
      %v530 = vpop.f32.mrf.mxu0
      %v531 = vadd.f32 0.0, %v530
      %532 = vmatprep.mubr.f32.mxu0 0.0
      %v533 = vand.u32 %v293, 4294901760
      %v534 = vsub.f32 %v293, %v533
      %v535 = vand.u32 %v534, 4294901760
      %v536 = vsub.f32 %v534, %v535
      %v537 = vand.u32 %v536, 4294901760
      %538 = vmatmul.mubr.f32.gmra.mxu0 %v537
      %v539 = vpop.f32.mrf.mxu0
      %v540 = vadd.f32 0.0, %v539
      %v541 = vpop.f32.mrf.mxu0
      %v542 = vadd.f32 0.0, %v541
      %543 = vmatprep.mubr.f32.mxu0 0.0
      %v544 = vand.u32 %v296, 4294901760
      %v545 = vsub.f32 %v296, %v544
      %v546 = vand.u32 %v545, 4294901760
      %v547 = vsub.f32 %v545, %v546
      %v548 = vand.u32 %v547, 4294901760
      %549 = vmatmul.mubr.f32.gmra.mxu0 %v548
      %v550 = vpop.f32.mrf.mxu0
      %v551 = vadd.f32 0.0, %v550
      %v552 = vpop.f32.mrf.mxu0
      %v553 = vadd.f32 0.0, %v552
      %554 = vmatprep.mubr.f32.mxu0 0.0
      %v555 = vand.u32 %v299, 4294901760
      %v556 = vsub.f32 %v299, %v555
      %v557 = vand.u32 %v556, 4294901760
      %v558 = vsub.f32 %v556, %v557
      %v559 = vand.u32 %v558, 4294901760
      %560 = vmatmul.mubr.f32.gmra.mxu0 %v559
      %v561 = vpop.f32.mrf.mxu0
      %v562 = vadd.f32 0.0, %v561
      %v563 = vpop.f32.mrf.mxu0
      %v564 = vadd.f32 0.0, %v563
      %565 = vmatprep.mubr.f32.mxu0 0.0
      %v566 = vand.u32 %v302, 4294901760
      %v567 = vsub.f32 %v302, %v566
      %v568 = vand.u32 %v567, 4294901760
      %v569 = vsub.f32 %v567, %v568
      %v570 = vand.u32 %v569, 4294901760
      %571 = vmatmul.mubr.f32.gmra.mxu0 %v570
      %v572 = vpop.f32.mrf.mxu0
      %v573 = vadd.f32 0.0, %v572
      %v574 = vpop.f32.mrf.mxu0
      %v575 = vadd.f32 0.0, %v574
      %576 = vmatprep.mubr.f32.mxu0 0.0
      %v577 = vand.u32 %v305, 4294901760
      %v578 = vsub.f32 %v305, %v577
      %v579 = vand.u32 %v578, 4294901760
      %v580 = vsub.f32 %v578, %v579
      %v581 = vand.u32 %v580, 4294901760
      %582 = vmatmul.mubr.f32.gmra.mxu0 %v581
      %v583 = vpop.f32.mrf.mxu0
      %v584 = vadd.f32 0.0, %v583
      %v585 = vpop.f32.mrf.mxu0
      %v586 = vadd.f32 0.0, %v585
      %587 = vmatprep.mubr.f32.mxu0 0.0
      %v588 = vand.u32 %v308, 4294901760
      %v589 = vsub.f32 %v308, %v588
      %v590 = vand.u32 %v589, 4294901760
      %v591 = vsub.f32 %v589, %v590
      %v592 = vand.u32 %v591, 4294901760
      %593 = vmatmul.mubr.f32.gmra.mxu0 %v592
      %v594 = vpop.f32.mrf.mxu0
      %v595 = vadd.f32 0.0, %v594
      %v596 = vpop.f32.mrf.mxu0
      %v597 = vadd.f32 0.0, %v596
      %598 = vmatprep.mubr.f32.mxu0 0.0
      %v599 = vand.u32 %v311, 4294901760
      %v600 = vsub.f32 %v311, %v599
      %v601 = vand.u32 %v600, 4294901760
      %v602 = vsub.f32 %v600, %v601
      %v603 = vand.u32 %v602, 4294901760
      %604 = vmatmul.mubr.f32.gmra.mxu0 %v603
      %v605 = vpop.f32.mrf.mxu0
      %v606 = vadd.f32 0.0, %v605
      %v607 = vpop.f32.mrf.mxu0
      %v608 = vadd.f32 0.0, %v607
      %609 = vmatprep.mubr.f32.mxu0 0.0
      %v610 = vand.u32 %v314, 4294901760
      %v611 = vsub.f32 %v314, %v610
      %v612 = vand.u32 %v611, 4294901760
      %v613 = vsub.f32 %v611, %v612
      %v614 = vand.u32 %v613, 4294901760
      %615 = vmatmul.mubr.f32.gmra.mxu0 %v614
      %v616 = vpop.f32.mrf.mxu0
      %v617 = vadd.f32 0.0, %v616
      %v618 = vpop.f32.mrf.mxu0
      %v619 = vadd.f32 0.0, %v618
      %620 = vmatprep.mubr.f32.mxu0 0.0
      %v621 = vand.u32 %v317, 4294901760
      %v622 = vsub.f32 %v317, %v621
      %v623 = vand.u32 %v622, 4294901760
      %v624 = vsub.f32 %v622, %v623
      %v625 = vand.u32 %v624, 4294901760
      %626 = vmatmul.mubr.f32.gmra.mxu0 %v625
      %v627 = vpop.f32.mrf.mxu0
      %v628 = vadd.f32 0.0, %v627
      %v629 = vpop.f32.mrf.mxu0
      %v630 = vadd.f32 0.0, %v629
      %631 = vmatprep.mubr.f32.mxu0 0.0
      %v632 = vand.u32 %v320, 4294901760
      %v633 = vsub.f32 %v320, %v632
      %v634 = vand.u32 %v633, 4294901760
      %v635 = vsub.f32 %v633, %v634
      %v636 = vand.u32 %v635, 4294901760
      %637 = vmatmul.mubr.f32.gmra.mxu0 %v636
      %v638 = vpop.f32.mrf.mxu0
      %v639 = vadd.f32 0.0, %v638
      %v640 = vpop.f32.mrf.mxu0
      %v641 = vadd.f32 0.0, %v640
      %642 = vmatprep.mubr.f32.mxu0 0.0
      %v643 = vand.u32 %v323, 4294901760
      %v644 = vsub.f32 %v323, %v643
      %v645 = vand.u32 %v644, 4294901760
      %v646 = vsub.f32 %v644, %v645
      %v647 = vand.u32 %v646, 4294901760
      %648 = vmatmul.mubr.f32.gmra.mxu0 %v647
      %v649 = vpop.f32.mrf.mxu0
      %v650 = vadd.f32 0.0, %v649
      %v651 = vpop.f32.mrf.mxu0
      %v652 = vadd.f32 0.0, %v651
      %653 = vmatprep.mubr.f32.mxu0 0.0
      %v654 = vand.u32 %v326, 4294901760
      %v655 = vsub.f32 %v326, %v654
      %v656 = vand.u32 %v655, 4294901760
      %v657 = vsub.f32 %v655, %v656
      %v658 = vand.u32 %v657, 4294901760
      %659 = vmatmul.mubr.f32.gmra.mxu0 %v658
      %v660 = vpop.f32.mrf.mxu0
      %v661 = vadd.f32 0.0, %v660
      %v662 = vpop.f32.mrf.mxu0
      %v663 = vadd.f32 0.0, %v662
      %664 = vmatprep.mubr.f32.mxu0 0.0
      %v665 = vand.u32 %v329, 4294901760
      %v666 = vsub.f32 %v329, %v665
      %v667 = vand.u32 %v666, 4294901760
      %v668 = vsub.f32 %v666, %v667
      %v669 = vand.u32 %v668, 4294901760
      %670 = vmatmul.mubr.f32.gmra.mxu0 %v669
      %v671 = vpop.f32.mrf.mxu0
      %v672 = vadd.f32 0.0, %v671
      %v673 = vpop.f32.mrf.mxu0
      %v674 = vadd.f32 0.0, %v673
      %675 = vmatprep.mubr.f32.mxu0 0.0
      %v676 = vand.u32 %v332, 4294901760
      %v677 = vsub.f32 %v332, %v676
      %v678 = vand.u32 %v677, 4294901760
      %v679 = vsub.f32 %v677, %v678
      %v680 = vand.u32 %v679, 4294901760
      %681 = vmatmul.mubr.f32.gmra.mxu0 %v680
      %v682 = vpop.f32.mrf.mxu0
      %v683 = vadd.f32 0.0, %v682
      %v684 = vpop.f32.mrf.mxu0
      %v685 = vadd.f32 0.0, %v684
      %686 = vmatprep.mubr.f32.mxu0 0.0
      %v687 = vand.u32 %v335, 4294901760
      %v688 = vsub.f32 %v335, %v687
      %v689 = vand.u32 %v688, 4294901760
      %v690 = vsub.f32 %v688, %v689
      %v691 = vand.u32 %v690, 4294901760
      %692 = vmatmul.mubr.f32.gmra.mxu0 %v691
      %v693 = vpop.f32.mrf.mxu0
      %v694 = vadd.f32 0.0, %v693
      %v695 = vpop.f32.mrf.mxu0
      %v696 = vadd.f32 0.0, %v695
      %697 = vmatprep.mubr.f32.mxu0 0.0
      %v698 = vand.u32 %v338, 4294901760
      %v699 = vsub.f32 %v338, %v698
      %v700 = vand.u32 %v699, 4294901760
      %v701 = vsub.f32 %v699, %v700
      %v702 = vand.u32 %v701, 4294901760
      %703 = vmatmul.mubr.f32.gmra.mxu0 %v702
      %v704 = vpop.f32.mrf.mxu0
      %v705 = vadd.f32 0.0, %v704
      %v706 = vpop.f32.mrf.mxu0
      %v707 = vadd.f32 0.0, %v706
      %708 = vmatprep.mubr.f32.mxu0 0.0
      %v709 = vand.u32 %v341, 4294901760
      %v710 = vsub.f32 %v341, %v709
      %v711 = vand.u32 %v710, 4294901760
      %v712 = vsub.f32 %v710, %v711
      %v713 = vand.u32 %v712, 4294901760
      %714 = vmatmul.mubr.f32.gmra.mxu0 %v713
      %v715 = vpop.f32.mrf.mxu0
      %v716 = vadd.f32 0.0, %v715
      %v717 = vpop.f32.mrf.mxu0
      %v718 = vadd.f32 0.0, %v717
      %719 = vmatprep.mubr.f32.mxu0 0.0
      %v720 = vand.u32 %v344, 4294901760
      %v721 = vsub.f32 %v344, %v720
      %v722 = vand.u32 %v721, 4294901760
      %v723 = vsub.f32 %v721, %v722
      %v724 = vand.u32 %v723, 4294901760
      %725 = vmatmul.mubr.f32.gmra.mxu0 %v724
      %v726 = vpop.f32.mrf.mxu0
      %v727 = vadd.f32 0.0, %v726
      %v728 = vpop.f32.mrf.mxu0
      %v729 = vadd.f32 0.0, %v728
      %730 = vmatprep.mubr.f32.mxu0 0.0
      %v731 = vand.u32 %v347, 4294901760
      %v732 = vsub.f32 %v347, %v731
      %v733 = vand.u32 %v732, 4294901760
      %v734 = vsub.f32 %v732, %v733
      %v735 = vand.u32 %v734, 4294901760
      %736 = vmatmul.mubr.f32.gmra.mxu0 %v735
      %v737 = vpop.f32.mrf.mxu0
      %v738 = vadd.f32 0.0, %v737
      %v739 = vpop.f32.mrf.mxu0
      %v740 = vadd.f32 0.0, %v739
      %741 = vmatprep.mubr.f32.mxu0 0.0
      %v742 = vand.u32 %v350, 4294901760
      %v743 = vsub.f32 %v350, %v742
      %v744 = vand.u32 %v743, 4294901760
      %v745 = vsub.f32 %v743, %v744
      %v746 = vand.u32 %v745, 4294901760
      %747 = vmatmul.mubr.f32.gmra.mxu0 %v746
      %v748 = vpop.f32.mrf.mxu0
      %v749 = vadd.f32 0.0, %v748
      %v750 = vpop.f32.mrf.mxu0
      %v751 = vadd.f32 0.0, %v750
      %752 = vmatprep.mubr.f32.mxu0 0.0
      %v753 = vand.u32 %v353, 4294901760
      %v754 = vsub.f32 %v353, %v753
      %v755 = vand.u32 %v754, 4294901760
      %v756 = vsub.f32 %v754, %v755
      %v757 = vand.u32 %v756, 4294901760
      %758 = vmatmul.mubr.f32.gmra.mxu0 %v757
      %v759 = vpop.f32.mrf.mxu0
      %v760 = vadd.f32 0.0, %v759
      %v761 = vpop.f32.mrf.mxu0
      %v762 = vadd.f32 0.0, %v761
      %763 = vmatprep.mubr.f32.mxu0 0.0
      %v764 = vand.u32 %v356, 4294901760
      %v765 = vsub.f32 %v356, %v764
      %v766 = vand.u32 %v765, 4294901760
      %v767 = vsub.f32 %v765, %v766
      %v768 = vand.u32 %v767, 4294901760
      %769 = vmatmul.mubr.f32.gmra.mxu0 %v768
      %v770 = vpop.f32.mrf.mxu0
      %v771 = vadd.f32 0.0, %v770
      %v772 = vpop.f32.mrf.mxu0
      %v773 = vadd.f32 0.0, %v772
      %774 = vmatprep.mubr.f32.mxu0 0.0
      %v775 = vand.u32 %v359, 4294901760
      %v776 = vsub.f32 %v359, %v775
      %v777 = vand.u32 %v776, 4294901760
      %v778 = vsub.f32 %v776, %v777
      %v779 = vand.u32 %v778, 4294901760
      %780 = vmatmul.mubr.f32.gmra.mxu0 %v779
      %v781 = vpop.f32.mrf.mxu0
      %v782 = vadd.f32 0.0, %v781
      %v783 = vpop.f32.mrf.mxu0
      %v784 = vadd.f32 0.0, %v783
      %785 = vmatprep.mubr.f32.mxu0 0.0
      %v786 = vand.u32 %v362, 4294901760
      %v787 = vsub.f32 %v362, %v786
      %v788 = vand.u32 %v787, 4294901760
      %v789 = vsub.f32 %v787, %v788
      %v790 = vand.u32 %v789, 4294901760
      %791 = vmatmul.mubr.f32.gmra.mxu0 %v790
      %v792 = vpop.f32.mrf.mxu0
      %v793 = vadd.f32 0.0, %v792
      %v794 = vpop.f32.mrf.mxu0
      %v795 = vadd.f32 0.0, %v794
      %796 = vmatprep.mubr.f32.mxu0 0.0
      %v797 = vand.u32 %v365, 4294901760
      %v798 = vsub.f32 %v365, %v797
      %v799 = vand.u32 %v798, 4294901760
      %v800 = vsub.f32 %v798, %v799
      %v801 = vand.u32 %v800, 4294901760
      %802 = vmatmul.mubr.f32.gmra.mxu0 %v801
      %v803 = vpop.f32.mrf.mxu0
      %v804 = vadd.f32 0.0, %v803
      %v805 = vpop.f32.mrf.mxu0
      %v806 = vadd.f32 0.0, %v805
      %807 = vmatprep.mubr.f32.mxu0 0.0
      %v808 = vand.u32 %v368, 4294901760
      %v809 = vsub.f32 %v368, %v808
      %v810 = vand.u32 %v809, 4294901760
      %v811 = vsub.f32 %v809, %v810
      %v812 = vand.u32 %v811, 4294901760
      %813 = vmatmul.mubr.f32.gmra.mxu0 %v812
      %v814 = vpop.f32.mrf.mxu0
      %v815 = vadd.f32 0.0, %v814
      %v816 = vpop.f32.mrf.mxu0
      %v817 = vadd.f32 0.0, %v816
      %818 = vdwg.mxu0
      %819 = vmatprep.subr.mxu0 0.0
      %v820 = vand.u32 %v320, 4294901760
      %v821 = vsub.f32 %v320, %v820
      %v822 = vand.u32 %v821, 4294901760
      %v823 = vsub.f32 %v821, %v822
      %v824 = vand.u32 %v823, 4294901760
      %825 = vmatpush1.xpose.msra.mxu0 %v824
      %826 = vmatprep.subr.mxu0 0.0
      %v827 = vand.u32 %v317, 4294901760
      %v828 = vsub.f32 %v317, %v827
      %v829 = vand.u32 %v828, 4294901760
      %v830 = vsub.f32 %v828, %v829
      %v831 = vand.u32 %v830, 4294901760
      %832 = vmatpush1.xpose.msra.mxu0 %v831
      %833 = vmatprep.subr.mxu0 0.0
      %v834 = vand.u32 %v314, 4294901760
      %v835 = vsub.f32 %v314, %v834
      %v836 = vand.u32 %v835, 4294901760
      %v837 = vsub.f32 %v835, %v836
      %v838 = vand.u32 %v837, 4294901760
      %839 = vmatpush1.xpose.msra.mxu0 %v838
      %840 = vmatprep.subr.mxu0 0.0
      %v841 = vand.u32 %v311, 4294901760
      %v842 = vsub.f32 %v311, %v841
      %v843 = vand.u32 %v842, 4294901760
      %v844 = vsub.f32 %v842, %v843
      %v845 = vand.u32 %v844, 4294901760
      %846 = vmatpush1.xpose.msra.mxu0 %v845
      %847 = vmatprep.subr.mxu0 0.0
      %v848 = vand.u32 %v308, 4294901760
      %v849 = vsub.f32 %v308, %v848
      %v850 = vand.u32 %v849, 4294901760
      %v851 = vsub.f32 %v849, %v850
      %v852 = vand.u32 %v851, 4294901760
      %853 = vmatpush1.xpose.msra.mxu0 %v852
      %854 = vmatprep.subr.mxu0 0.0
      %v855 = vand.u32 %v305, 4294901760
      %v856 = vsub.f32 %v305, %v855
      %v857 = vand.u32 %v856, 4294901760
      %v858 = vsub.f32 %v856, %v857
      %v859 = vand.u32 %v858, 4294901760
      %860 = vmatpush1.xpose.msra.mxu0 %v859
      %861 = vmatprep.subr.mxu0 0.0
      %v862 = vand.u32 %v302, 4294901760
      %v863 = vsub.f32 %v302, %v862
      %v864 = vand.u32 %v863, 4294901760
      %v865 = vsub.f32 %v863, %v864
      %v866 = vand.u32 %v865, 4294901760
      %867 = vmatpush1.xpose.msra.mxu0 %v866
      %868 = vmatprep.subr.mxu0 0.0
      %v869 = vand.u32 %v299, 4294901760
      %v870 = vsub.f32 %v299, %v869
      %v871 = vand.u32 %v870, 4294901760
      %v872 = vsub.f32 %v870, %v871
      %v873 = vand.u32 %v872, 4294901760
      %874 = vmatpush1.xpose.msra.mxu0 %v873
      %875 = vmatprep.subr.mxu0 0.0
      %v876 = vand.u32 %v296, 4294901760
      %v877 = vsub.f32 %v296, %v876
      %v878 = vand.u32 %v877, 4294901760
      %v879 = vsub.f32 %v877, %v878
      %v880 = vand.u32 %v879, 4294901760
      %881 = vmatpush1.xpose.msra.mxu0 %v880
      %882 = vmatprep.subr.mxu0 0.0
      %v883 = vand.u32 %v293, 4294901760
      %v884 = vsub.f32 %v293, %v883
      %v885 = vand.u32 %v884, 4294901760
      %v886 = vsub.f32 %v884, %v885
      %v887 = vand.u32 %v886, 4294901760
      %888 = vmatpush1.xpose.msra.mxu0 %v887
      %889 = vmatprep.subr.mxu0 0.0
      %v890 = vand.u32 %v290, 4294901760
      %v891 = vsub.f32 %v290, %v890
      %v892 = vand.u32 %v891, 4294901760
      %v893 = vsub.f32 %v891, %v892
      %v894 = vand.u32 %v893, 4294901760
      %895 = vmatpush1.xpose.msra.mxu0 %v894
      %896 = vmatprep.subr.mxu0 0.0
      %v897 = vand.u32 %v287, 4294901760
      %v898 = vsub.f32 %v287, %v897
      %v899 = vand.u32 %v898, 4294901760
      %v900 = vsub.f32 %v898, %v899
      %v901 = vand.u32 %v900, 4294901760
      %902 = vmatpush1.xpose.msra.mxu0 %v901
      %903 = vmatprep.subr.mxu0 0.0
      %v904 = vand.u32 %v284, 4294901760
      %v905 = vsub.f32 %v284, %v904
      %v906 = vand.u32 %v905, 4294901760
      %v907 = vsub.f32 %v905, %v906
      %v908 = vand.u32 %v907, 4294901760
      %909 = vmatpush1.xpose.msra.mxu0 %v908
      %910 = vmatprep.subr.mxu0 0.0
      %v911 = vand.u32 %v281, 4294901760
      %v912 = vsub.f32 %v281, %v911
      %v913 = vand.u32 %v912, 4294901760
      %v914 = vsub.f32 %v912, %v913
      %v915 = vand.u32 %v914, 4294901760
      %916 = vmatpush1.xpose.msra.mxu0 %v915
      %917 = vmatprep.subr.mxu0 0.0
      %v918 = vand.u32 %v278, 4294901760
      %v919 = vsub.f32 %v278, %v918
      %v920 = vand.u32 %v919, 4294901760
      %v921 = vsub.f32 %v919, %v920
      %v922 = vand.u32 %v921, 4294901760
      %923 = vmatpush1.xpose.msra.mxu0 %v922
      %924 = vmatprep.subr.mxu0 0.0
      %v925 = vand.u32 %v275, 4294901760
      %v926 = vsub.f32 %v275, %v925
      %v927 = vand.u32 %v926, 4294901760
      %v928 = vsub.f32 %v926, %v927
      %v929 = vand.u32 %v928, 4294901760
      %930 = vmatpush1.xpose.msra.mxu0 %v929
      %931 = vmatprep.subr.mxu0 0.0
      %v932 = vand.u32 %v368, 4294901760
      %v933 = vsub.f32 %v368, %v932
      %v934 = vand.u32 %v933, 4294901760
      %v935 = vsub.f32 %v933, %v934
      %v936 = vand.u32 %v935, 4294901760
      %937 = vmatpush2.xpose.msra.mxu0 %v936
      %938 = vmatprep.subr.mxu0 0.0
      %v939 = vand.u32 %v365, 4294901760
      %v940 = vsub.f32 %v365, %v939
      %v941 = vand.u32 %v940, 4294901760
      %v942 = vsub.f32 %v940, %v941
      %v943 = vand.u32 %v942, 4294901760
      %944 = vmatpush2.xpose.msra.mxu0 %v943
      %945 = vmatprep.subr.mxu0 0.0
      %v946 = vand.u32 %v362, 4294901760
      %v947 = vsub.f32 %v362, %v946
      %v948 = vand.u32 %v947, 4294901760
      %v949 = vsub.f32 %v947, %v948
      %v950 = vand.u32 %v949, 4294901760
      %951 = vmatpush2.xpose.msra.mxu0 %v950
      %952 = vmatprep.subr.mxu0 0.0
      %v953 = vand.u32 %v359, 4294901760
      %v954 = vsub.f32 %v359, %v953
      %v955 = vand.u32 %v954, 4294901760
      %v956 = vsub.f32 %v954, %v955
      %v957 = vand.u32 %v956, 4294901760
      %958 = vmatpush2.xpose.msra.mxu0 %v957
      %959 = vmatprep.subr.mxu0 0.0
      %v960 = vand.u32 %v356, 4294901760
      %v961 = vsub.f32 %v356, %v960
      %v962 = vand.u32 %v961, 4294901760
      %v963 = vsub.f32 %v961, %v962
      %v964 = vand.u32 %v963, 4294901760
      %965 = vmatpush2.xpose.msra.mxu0 %v964
      %966 = vmatprep.subr.mxu0 0.0
      %v967 = vand.u32 %v353, 4294901760
      %v968 = vsub.f32 %v353, %v967
      %v969 = vand.u32 %v968, 4294901760
      %v970 = vsub.f32 %v968, %v969
      %v971 = vand.u32 %v970, 4294901760
      %972 = vmatpush2.xpose.msra.mxu0 %v971
      %973 = vmatprep.subr.mxu0 0.0
      %v974 = vand.u32 %v350, 4294901760
      %v975 = vsub.f32 %v350, %v974
      %v976 = vand.u32 %v975, 4294901760
      %v977 = vsub.f32 %v975, %v976
      %v978 = vand.u32 %v977, 4294901760
      %979 = vmatpush2.xpose.msra.mxu0 %v978
      %980 = vmatprep.subr.mxu0 0.0
      %v981 = vand.u32 %v347, 4294901760
      %v982 = vsub.f32 %v347, %v981
      %v983 = vand.u32 %v982, 4294901760
      %v984 = vsub.f32 %v982, %v983
      %v985 = vand.u32 %v984, 4294901760
      %986 = vmatpush2.xpose.msra.mxu0 %v985
      %987 = vmatprep.subr.mxu0 0.0
      %v988 = vand.u32 %v344, 4294901760
      %v989 = vsub.f32 %v344, %v988
      %v990 = vand.u32 %v989, 4294901760
      %v991 = vsub.f32 %v989, %v990
      %v992 = vand.u32 %v991, 4294901760
      %993 = vmatpush2.xpose.msra.mxu0 %v992
      %994 = vmatprep.subr.mxu0 0.0
      %v995 = vand.u32 %v341, 4294901760
      %v996 = vsub.f32 %v341, %v995
      %v997 = vand.u32 %v996, 4294901760
      %v998 = vsub.f32 %v996, %v997
      %v999 = vand.u32 %v998, 4294901760
      %1000 = vmatpush2.xpose.msra.mxu0 %v999
      %1001 = vmatprep.subr.mxu0 0.0
      %v1002 = vand.u32 %v338, 4294901760
      %v1003 = vsub.f32 %v338, %v1002
      %v1004 = vand.u32 %v1003, 4294901760
      %v1005 = vsub.f32 %v1003, %v1004
      %v1006 = vand.u32 %v1005, 4294901760
      %1007 = vmatpush2.xpose.msra.mxu0 %v1006
      %1008 = vmatprep.subr.mxu0 0.0
      %v1009 = vand.u32 %v335, 4294901760
      %v1010 = vsub.f32 %v335, %v1009
      %v1011 = vand.u32 %v1010, 4294901760
      %v1012 = vsub.f32 %v1010, %v1011
      %v1013 = vand.u32 %v1012, 4294901760
      %1014 = vmatpush2.xpose.msra.mxu0 %v1013
      %1015 = vmatprep.subr.mxu0 0.0
      %v1016 = vand.u32 %v332, 4294901760
      %v1017 = vsub.f32 %v332, %v1016
      %v1018 = vand.u32 %v1017, 4294901760
      %v1019 = vsub.f32 %v1017, %v1018
      %v1020 = vand.u32 %v1019, 4294901760
      %1021 = vmatpush2.xpose.msra.mxu0 %v1020
      %1022 = vmatprep.subr.mxu0 0.0
      %v1023 = vand.u32 %v329, 4294901760
      %v1024 = vsub.f32 %v329, %v1023
      %v1025 = vand.u32 %v1024, 4294901760
      %v1026 = vsub.f32 %v1024, %v1025
      %v1027 = vand.u32 %v1026, 4294901760
      %1028 = vmatpush2.xpose.msra.mxu0 %v1027
      %1029 = vmatprep.subr.mxu0 0.0
      %v1030 = vand.u32 %v326, 4294901760
      %v1031 = vsub.f32 %v326, %v1030
      %v1032 = vand.u32 %v1031, 4294901760
      %v1033 = vsub.f32 %v1031, %v1032
      %v1034 = vand.u32 %v1033, 4294901760
      %1035 = vmatpush2.xpose.msra.mxu0 %v1034
      %1036 = vmatprep.subr.mxu0 0.0
      %v1037 = vand.u32 %v323, 4294901760
      %v1038 = vsub.f32 %v323, %v1037
      %v1039 = vand.u32 %v1038, 4294901760
      %v1040 = vsub.f32 %v1038, %v1039
      %v1041 = vand.u32 %v1040, 4294901760
      %1042 = vmatpush2.xpose.msra.mxu0 %v1041
      %1043 = vmatprep.mubr.f32.mxu0 0.0
      %v1044 = vand.u32 %v275, 4294901760
      %1045 = vmatmul.mubr.f32.gmra.mxu0 %v1044
      %v1046 = vpop.f32.mrf.mxu0
      %v1047 = vadd.f32 %v474, %v1046
      %v1048 = vpop.f32.mrf.mxu0
      %v1049 = vadd.f32 %v476, %v1048
      %1050 = vmatprep.mubr.f32.mxu0 0.0
      %v1051 = vand.u32 %v278, 4294901760
      %1052 = vmatmul.mubr.f32.gmra.mxu0 %v1051
      %v1053 = vpop.f32.mrf.mxu0
      %v1054 = vadd.f32 %v485, %v1053
      %v1055 = vpop.f32.mrf.mxu0
      %v1056 = vadd.f32 %v487, %v1055
      %1057 = vmatprep.mubr.f32.mxu0 0.0
      %v1058 = vand.u32 %v281, 4294901760
      %1059 = vmatmul.mubr.f32.gmra.mxu0 %v1058
      %v1060 = vpop.f32.mrf.mxu0
      %v1061 = vadd.f32 %v496, %v1060
      %v1062 = vpop.f32.mrf.mxu0
      %v1063 = vadd.f32 %v498, %v1062
      %1064 = vmatprep.mubr.f32.mxu0 0.0
      %v1065 = vand.u32 %v284, 4294901760
      %1066 = vmatmul.mubr.f32.gmra.mxu0 %v1065
      %v1067 = vpop.f32.mrf.mxu0
      %v1068 = vadd.f32 %v507, %v1067
      %v1069 = vpop.f32.mrf.mxu0
      %v1070 = vadd.f32 %v509, %v1069
      %1071 = vmatprep.mubr.f32.mxu0 0.0
      %v1072 = vand.u32 %v287, 4294901760
      %1073 = vmatmul.mubr.f32.gmra.mxu0 %v1072
      %v1074 = vpop.f32.mrf.mxu0
      %v1075 = vadd.f32 %v518, %v1074
      %v1076 = vpop.f32.mrf.mxu0
      %v1077 = vadd.f32 %v520, %v1076
      %1078 = vmatprep.mubr.f32.mxu0 0.0
      %v1079 = vand.u32 %v290, 4294901760
      %1080 = vmatmul.mubr.f32.gmra.mxu0 %v1079
      %v1081 = vpop.f32.mrf.mxu0
      %v1082 = vadd.f32 %v529, %v1081
      %v1083 = vpop.f32.mrf.mxu0
      %v1084 = vadd.f32 %v531, %v1083
      %1085 = vmatprep.mubr.f32.mxu0 0.0
      %v1086 = vand.u32 %v293, 4294901760
      %1087 = vmatmul.mubr.f32.gmra.mxu0 %v1086
      %v1088 = vpop.f32.mrf.mxu0
      %v1089 = vadd.f32 %v540, %v1088
      %v1090 = vpop.f32.mrf.mxu0
      %v1091 = vadd.f32 %v542, %v1090
      %1092 = vmatprep.mubr.f32.mxu0 0.0
      %v1093 = vand.u32 %v296, 4294901760
      %1094 = vmatmul.mubr.f32.gmra.mxu0 %v1093
      %v1095 = vpop.f32.mrf.mxu0
      %v1096 = vadd.f32 %v551, %v1095
      %v1097 = vpop.f32.mrf.mxu0
      %v1098 = vadd.f32 %v553, %v1097
      %1099 = vmatprep.mubr.f32.mxu0 0.0
      %v1100 = vand.u32 %v299, 4294901760
      %1101 = vmatmul.mubr.f32.gmra.mxu0 %v1100
      %v1102 = vpop.f32.mrf.mxu0
      %v1103 = vadd.f32 %v562, %v1102
      %v1104 = vpop.f32.mrf.mxu0
      %v1105 = vadd.f32 %v564, %v1104
      %1106 = vmatprep.mubr.f32.mxu0 0.0
      %v1107 = vand.u32 %v302, 4294901760
      %1108 = vmatmul.mubr.f32.gmra.mxu0 %v1107
      %v1109 = vpop.f32.mrf.mxu0
      %v1110 = vadd.f32 %v573, %v1109
      %v1111 = vpop.f32.mrf.mxu0
      %v1112 = vadd.f32 %v575, %v1111
      %1113 = vmatprep.mubr.f32.mxu0 0.0
      %v1114 = vand.u32 %v305, 4294901760
      %1115 = vmatmul.mubr.f32.gmra.mxu0 %v1114
      %v1116 = vpop.f32.mrf.mxu0
      %v1117 = vadd.f32 %v584, %v1116
      %v1118 = vpop.f32.mrf.mxu0
      %v1119 = vadd.f32 %v586, %v1118
      %1120 = vmatprep.mubr.f32.mxu0 0.0
      %v1121 = vand.u32 %v308, 4294901760
      %1122 = vmatmul.mubr.f32.gmra.mxu0 %v1121
      %v1123 = vpop.f32.mrf.mxu0
      %v1124 = vadd.f32 %v595, %v1123
      %v1125 = vpop.f32.mrf.mxu0
      %v1126 = vadd.f32 %v597, %v1125
      %1127 = vmatprep.mubr.f32.mxu0 0.0
      %v1128 = vand.u32 %v311, 4294901760
      %1129 = vmatmul.mubr.f32.gmra.mxu0 %v1128
      %v1130 = vpop.f32.mrf.mxu0
      %v1131 = vadd.f32 %v606, %v1130
      %v1132 = vpop.f32.mrf.mxu0
      %v1133 = vadd.f32 %v608, %v1132
      %1134 = vmatprep.mubr.f32.mxu0 0.0
      %v1135 = vand.u32 %v314, 4294901760
      %1136 = vmatmul.mubr.f32.gmra.mxu0 %v1135
      %v1137 = vpop.f32.mrf.mxu0
      %v1138 = vadd.f32 %v617, %v1137
      %v1139 = vpop.f32.mrf.mxu0
      %v1140 = vadd.f32 %v619, %v1139
      %1141 = vmatprep.mubr.f32.mxu0 0.0
      %v1142 = vand.u32 %v317, 4294901760
      %1143 = vmatmul.mubr.f32.gmra.mxu0 %v1142
      %v1144 = vpop.f32.mrf.mxu0
      %v1145 = vadd.f32 %v628, %v1144
      %v1146 = vpop.f32.mrf.mxu0
      %v1147 = vadd.f32 %v630, %v1146
      %1148 = vmatprep.mubr.f32.mxu0 0.0
      %v1149 = vand.u32 %v320, 4294901760
      %1150 = vmatmul.mubr.f32.gmra.mxu0 %v1149
      %v1151 = vpop.f32.mrf.mxu0
      %v1152 = vadd.f32 %v639, %v1151
      %v1153 = vpop.f32.mrf.mxu0
      %v1154 = vadd.f32 %v641, %v1153
      %1155 = vmatprep.mubr.f32.mxu0 0.0
      %v1156 = vand.u32 %v323, 4294901760
      %1157 = vmatmul.mubr.f32.gmra.mxu0 %v1156
      %v1158 = vpop.f32.mrf.mxu0
      %v1159 = vadd.f32 %v650, %v1158
      %v1160 = vpop.f32.mrf.mxu0
      %v1161 = vadd.f32 %v652, %v1160
      %1162 = vmatprep.mubr.f32.mxu0 0.0
      %v1163 = vand.u32 %v326, 4294901760
      %1164 = vmatmul.mubr.f32.gmra.mxu0 %v1163
      %v1165 = vpop.f32.mrf.mxu0
      %v1166 = vadd.f32 %v661, %v1165
      %v1167 = vpop.f32.mrf.mxu0
      %v1168 = vadd.f32 %v663, %v1167
      %1169 = vmatprep.mubr.f32.mxu0 0.0
      %v1170 = vand.u32 %v329, 4294901760
      %1171 = vmatmul.mubr.f32.gmra.mxu0 %v1170
      %v1172 = vpop.f32.mrf.mxu0
      %v1173 = vadd.f32 %v672, %v1172
      %v1174 = vpop.f32.mrf.mxu0
      %v1175 = vadd.f32 %v674, %v1174
      %1176 = vmatprep.mubr.f32.mxu0 0.0
      %v1177 = vand.u32 %v332, 4294901760
      %1178 = vmatmul.mubr.f32.gmra.mxu0 %v1177
      %v1179 = vpop.f32.mrf.mxu0
      %v1180 = vadd.f32 %v683, %v1179
      %v1181 = vpop.f32.mrf.mxu0
      %v1182 = vadd.f32 %v685, %v1181
      %1183 = vmatprep.mubr.f32.mxu0 0.0
      %v1184 = vand.u32 %v335, 4294901760
      %1185 = vmatmul.mubr.f32.gmra.mxu0 %v1184
      %v1186 = vpop.f32.mrf.mxu0
      %v1187 = vadd.f32 %v694, %v1186
      %v1188 = vpop.f32.mrf.mxu0
      %v1189 = vadd.f32 %v696, %v1188
      %1190 = vmatprep.mubr.f32.mxu0 0.0
      %v1191 = vand.u32 %v338, 4294901760
      %1192 = vmatmul.mubr.f32.gmra.mxu0 %v1191
      %v1193 = vpop.f32.mrf.mxu0
      %v1194 = vadd.f32 %v705, %v1193
      %v1195 = vpop.f32.mrf.mxu0
      %v1196 = vadd.f32 %v707, %v1195
      %1197 = vmatprep.mubr.f32.mxu0 0.0
      %v1198 = vand.u32 %v341, 4294901760
      %1199 = vmatmul.mubr.f32.gmra.mxu0 %v1198
      %v1200 = vpop.f32.mrf.mxu0
      %v1201 = vadd.f32 %v716, %v1200
      %v1202 = vpop.f32.mrf.mxu0
      %v1203 = vadd.f32 %v718, %v1202
      %1204 = vmatprep.mubr.f32.mxu0 0.0
      %v1205 = vand.u32 %v344, 4294901760
      %1206 = vmatmul.mubr.f32.gmra.mxu0 %v1205
      %v1207 = vpop.f32.mrf.mxu0
      %v1208 = vadd.f32 %v727, %v1207
      %v1209 = vpop.f32.mrf.mxu0
      %v1210 = vadd.f32 %v729, %v1209
      %1211 = vmatprep.mubr.f32.mxu0 0.0
      %v1212 = vand.u32 %v347, 4294901760
      %1213 = vmatmul.mubr.f32.gmra.mxu0 %v1212
      %v1214 = vpop.f32.mrf.mxu0
      %v1215 = vadd.f32 %v738, %v1214
      %v1216 = vpop.f32.mrf.mxu0
      %v1217 = vadd.f32 %v740, %v1216
      %1218 = vmatprep.mubr.f32.mxu0 0.0
      %v1219 = vand.u32 %v350, 4294901760
      %1220 = vmatmul.mubr.f32.gmra.mxu0 %v1219
      %v1221 = vpop.f32.mrf.mxu0
      %v1222 = vadd.f32 %v749, %v1221
      %v1223 = vpop.f32.mrf.mxu0
      %v1224 = vadd.f32 %v751, %v1223
      %1225 = vmatprep.mubr.f32.mxu0 0.0
      %v1226 = vand.u32 %v353, 4294901760
      %1227 = vmatmul.mubr.f32.gmra.mxu0 %v1226
      %v1228 = vpop.f32.mrf.mxu0
      %v1229 = vadd.f32 %v760, %v1228
      %v1230 = vpop.f32.mrf.mxu0
      %v1231 = vadd.f32 %v762, %v1230
      %1232 = vmatprep.mubr.f32.mxu0 0.0
      %v1233 = vand.u32 %v356, 4294901760
      %1234 = vmatmul.mubr.f32.gmra.mxu0 %v1233
      %v1235 = vpop.f32.mrf.mxu0
      %v1236 = vadd.f32 %v771, %v1235
      %v1237 = vpop.f32.mrf.mxu0
      %v1238 = vadd.f32 %v773, %v1237
      %1239 = vmatprep.mubr.f32.mxu0 0.0
      %v1240 = vand.u32 %v359, 4294901760
      %1241 = vmatmul.mubr.f32.gmra.mxu0 %v1240
      %v1242 = vpop.f32.mrf.mxu0
      %v1243 = vadd.f32 %v782, %v1242
      %v1244 = vpop.f32.mrf.mxu0
      %v1245 = vadd.f32 %v784, %v1244
      %1246 = vmatprep.mubr.f32.mxu0 0.0
      %v1247 = vand.u32 %v362, 4294901760
      %1248 = vmatmul.mubr.f32.gmra.mxu0 %v1247
      %v1249 = vpop.f32.mrf.mxu0
      %v1250 = vadd.f32 %v793, %v1249
      %v1251 = vpop.f32.mrf.mxu0
      %v1252 = vadd.f32 %v795, %v1251
      %1253 = vmatprep.mubr.f32.mxu0 0.0
      %v1254 = vand.u32 %v365, 4294901760
      %1255 = vmatmul.mubr.f32.gmra.mxu0 %v1254
      %v1256 = vpop.f32.mrf.mxu0
      %v1257 = vadd.f32 %v804, %v1256
      %v1258 = vpop.f32.mrf.mxu0
      %v1259 = vadd.f32 %v806, %v1258
      %1260 = vmatprep.mubr.f32.mxu0 0.0
      %v1261 = vand.u32 %v368, 4294901760
      %1262 = vmatmul.mubr.f32.gmra.mxu0 %v1261
      %v1263 = vpop.f32.mrf.mxu0
      %v1264 = vadd.f32 %v815, %v1263
      %v1265 = vpop.f32.mrf.mxu0
      %v1266 = vadd.f32 %v817, %v1265
      %1267 = vdwg.mxu0
      %1268 = vmatprep.subr.mxu0 0.0
      %v1269 = vand.u32 %v320, 4294901760
      %v1270 = vsub.f32 %v320, %v1269
      %1271 = vmatpush1.xpose.msra.mxu0 %v1270
      %1272 = vmatprep.subr.mxu0 0.0
      %v1273 = vand.u32 %v317, 4294901760
      %v1274 = vsub.f32 %v317, %v1273
      %1275 = vmatpush1.xpose.msra.mxu0 %v1274
      %1276 = vmatprep.subr.mxu0 0.0
      %v1277 = vand.u32 %v314, 4294901760
      %v1278 = vsub.f32 %v314, %v1277
      %1279 = vmatpush1.xpose.msra.mxu0 %v1278
      %1280 = vmatprep.subr.mxu0 0.0
      %v1281 = vand.u32 %v311, 4294901760
      %v1282 = vsub.f32 %v311, %v1281
      %1283 = vmatpush1.xpose.msra.mxu0 %v1282
      %1284 = vmatprep.subr.mxu0 0.0
      %v1285 = vand.u32 %v308, 4294901760
      %v1286 = vsub.f32 %v308, %v1285
      %1287 = vmatpush1.xpose.msra.mxu0 %v1286
      %1288 = vmatprep.subr.mxu0 0.0
      %v1289 = vand.u32 %v305, 4294901760
      %v1290 = vsub.f32 %v305, %v1289
      %1291 = vmatpush1.xpose.msra.mxu0 %v1290
      %1292 = vmatprep.subr.mxu0 0.0
      %v1293 = vand.u32 %v302, 4294901760
      %v1294 = vsub.f32 %v302, %v1293
      %1295 = vmatpush1.xpose.msra.mxu0 %v1294
      %1296 = vmatprep.subr.mxu0 0.0
      %v1297 = vand.u32 %v299, 4294901760
      %v1298 = vsub.f32 %v299, %v1297
      %1299 = vmatpush1.xpose.msra.mxu0 %v1298
      %1300 = vmatprep.subr.mxu0 0.0
      %v1301 = vand.u32 %v296, 4294901760
      %v1302 = vsub.f32 %v296, %v1301
      %1303 = vmatpush1.xpose.msra.mxu0 %v1302
      %1304 = vmatprep.subr.mxu0 0.0
      %v1305 = vand.u32 %v293, 4294901760
      %v1306 = vsub.f32 %v293, %v1305
      %1307 = vmatpush1.xpose.msra.mxu0 %v1306
      %1308 = vmatprep.subr.mxu0 0.0
      %v1309 = vand.u32 %v290, 4294901760
      %v1310 = vsub.f32 %v290, %v1309
      %1311 = vmatpush1.xpose.msra.mxu0 %v1310
      %1312 = vmatprep.subr.mxu0 0.0
      %v1313 = vand.u32 %v287, 4294901760
      %v1314 = vsub.f32 %v287, %v1313
      %1315 = vmatpush1.xpose.msra.mxu0 %v1314
      %1316 = vmatprep.subr.mxu0 0.0
      %v1317 = vand.u32 %v284, 4294901760
      %v1318 = vsub.f32 %v284, %v1317
      %1319 = vmatpush1.xpose.msra.mxu0 %v1318
      %1320 = vmatprep.subr.mxu0 0.0
      %v1321 = vand.u32 %v281, 4294901760
      %v1322 = vsub.f32 %v281, %v1321
      %1323 = vmatpush1.xpose.msra.mxu0 %v1322
      %1324 = vmatprep.subr.mxu0 0.0
      %v1325 = vand.u32 %v278, 4294901760
      %v1326 = vsub.f32 %v278, %v1325
      %1327 = vmatpush1.xpose.msra.mxu0 %v1326
      %1328 = vmatprep.subr.mxu0 0.0
      %v1329 = vand.u32 %v275, 4294901760
      %v1330 = vsub.f32 %v275, %v1329
      %1331 = vmatpush1.xpose.msra.mxu0 %v1330
      %1332 = vmatprep.subr.mxu0 0.0
      %v1333 = vand.u32 %v368, 4294901760
      %v1334 = vsub.f32 %v368, %v1333
      %1335 = vmatpush2.xpose.msra.mxu0 %v1334
      %1336 = vmatprep.subr.mxu0 0.0
      %v1337 = vand.u32 %v365, 4294901760
      %v1338 = vsub.f32 %v365, %v1337
      %1339 = vmatpush2.xpose.msra.mxu0 %v1338
      %1340 = vmatprep.subr.mxu0 0.0
      %v1341 = vand.u32 %v362, 4294901760
      %v1342 = vsub.f32 %v362, %v1341
      %1343 = vmatpush2.xpose.msra.mxu0 %v1342
      %1344 = vmatprep.subr.mxu0 0.0
      %v1345 = vand.u32 %v359, 4294901760
      %v1346 = vsub.f32 %v359, %v1345
      %1347 = vmatpush2.xpose.msra.mxu0 %v1346
      %1348 = vmatprep.subr.mxu0 0.0
      %v1349 = vand.u32 %v356, 4294901760
      %v1350 = vsub.f32 %v356, %v1349
      %1351 = vmatpush2.xpose.msra.mxu0 %v1350
      %1352 = vmatprep.subr.mxu0 0.0
      %v1353 = vand.u32 %v353, 4294901760
      %v1354 = vsub.f32 %v353, %v1353
      %1355 = vmatpush2.xpose.msra.mxu0 %v1354
      %1356 = vmatprep.subr.mxu0 0.0
      %v1357 = vand.u32 %v350, 4294901760
      %v1358 = vsub.f32 %v350, %v1357
      %1359 = vmatpush2.xpose.msra.mxu0 %v1358
      %1360 = vmatprep.subr.mxu0 0.0
      %v1361 = vand.u32 %v347, 4294901760
      %v1362 = vsub.f32 %v347, %v1361
      %1363 = vmatpush2.xpose.msra.mxu0 %v1362
      %1364 = vmatprep.subr.mxu0 0.0
      %v1365 = vand.u32 %v344, 4294901760
      %v1366 = vsub.f32 %v344, %v1365
      %1367 = vmatpush2.xpose.msra.mxu0 %v1366
      %1368 = vmatprep.subr.mxu0 0.0
      %v1369 = vand.u32 %v341, 4294901760
      %v1370 = vsub.f32 %v341, %v1369
      %1371 = vmatpush2.xpose.msra.mxu0 %v1370
      %1372 = vmatprep.subr.mxu0 0.0
      %v1373 = vand.u32 %v338, 4294901760
      %v1374 = vsub.f32 %v338, %v1373
      %1375 = vmatpush2.xpose.msra.mxu0 %v1374
      %1376 = vmatprep.subr.mxu0 0.0
      %v1377 = vand.u32 %v335, 4294901760
      %v1378 = vsub.f32 %v335, %v1377
      %1379 = vmatpush2.xpose.msra.mxu0 %v1378
      %1380 = vmatprep.subr.mxu0 0.0
      %v1381 = vand.u32 %v332, 4294901760
      %v1382 = vsub.f32 %v332, %v1381
      %1383 = vmatpush2.xpose.msra.mxu0 %v1382
      %1384 = vmatprep.subr.mxu0 0.0
      %v1385 = vand.u32 %v329, 4294901760
      %v1386 = vsub.f32 %v329, %v1385
      %1387 = vmatpush2.xpose.msra.mxu0 %v1386
      %1388 = vmatprep.subr.mxu0 0.0
      %v1389 = vand.u32 %v326, 4294901760
      %v1390 = vsub.f32 %v326, %v1389
      %1391 = vmatpush2.xpose.msra.mxu0 %v1390
      %1392 = vmatprep.subr.mxu0 0.0
      %v1393 = vand.u32 %v323, 4294901760
      %v1394 = vsub.f32 %v323, %v1393
      %1395 = vmatpush2.xpose.msra.mxu0 %v1394
      %1396 = vmatprep.mubr.f32.mxu0 0.0
      %v1397 = vand.u32 %v275, 4294901760
      %v1398 = vsub.f32 %v275, %v1397
      %1399 = vmatmul.mubr.f32.gmra.mxu0 %v1398
      %v1400 = vpop.f32.mrf.mxu0
      %v1401 = vadd.f32 %v1047, %v1400
      %v1402 = vpop.f32.mrf.mxu0
      %v1403 = vadd.f32 %v1049, %v1402
      %1404 = vmatprep.mubr.f32.mxu0 0.0
      %v1405 = vand.u32 %v278, 4294901760
      %v1406 = vsub.f32 %v278, %v1405
      %1407 = vmatmul.mubr.f32.gmra.mxu0 %v1406
      %v1408 = vpop.f32.mrf.mxu0
      %v1409 = vadd.f32 %v1054, %v1408
      %v1410 = vpop.f32.mrf.mxu0
      %v1411 = vadd.f32 %v1056, %v1410
      %1412 = vmatprep.mubr.f32.mxu0 0.0
      %v1413 = vand.u32 %v281, 4294901760
      %v1414 = vsub.f32 %v281, %v1413
      %1415 = vmatmul.mubr.f32.gmra.mxu0 %v1414
      %v1416 = vpop.f32.mrf.mxu0
      %v1417 = vadd.f32 %v1061, %v1416
      %v1418 = vpop.f32.mrf.mxu0
      %v1419 = vadd.f32 %v1063, %v1418
      %1420 = vmatprep.mubr.f32.mxu0 0.0
      %v1421 = vand.u32 %v284, 4294901760
      %v1422 = vsub.f32 %v284, %v1421
      %1423 = vmatmul.mubr.f32.gmra.mxu0 %v1422
      %v1424 = vpop.f32.mrf.mxu0
      %v1425 = vadd.f32 %v1068, %v1424
      %v1426 = vpop.f32.mrf.mxu0
      %v1427 = vadd.f32 %v1070, %v1426
      %1428 = vmatprep.mubr.f32.mxu0 0.0
      %v1429 = vand.u32 %v287, 4294901760
      %v1430 = vsub.f32 %v287, %v1429
      %1431 = vmatmul.mubr.f32.gmra.mxu0 %v1430
      %v1432 = vpop.f32.mrf.mxu0
      %v1433 = vadd.f32 %v1075, %v1432
      %v1434 = vpop.f32.mrf.mxu0
      %v1435 = vadd.f32 %v1077, %v1434
      %1436 = vmatprep.mubr.f32.mxu0 0.0
      %v1437 = vand.u32 %v290, 4294901760
      %v1438 = vsub.f32 %v290, %v1437
      %1439 = vmatmul.mubr.f32.gmra.mxu0 %v1438
      %v1440 = vpop.f32.mrf.mxu0
      %v1441 = vadd.f32 %v1082, %v1440
      %v1442 = vpop.f32.mrf.mxu0
      %v1443 = vadd.f32 %v1084, %v1442
      %1444 = vmatprep.mubr.f32.mxu0 0.0
      %v1445 = vand.u32 %v293, 4294901760
      %v1446 = vsub.f32 %v293, %v1445
      %1447 = vmatmul.mubr.f32.gmra.mxu0 %v1446
      %v1448 = vpop.f32.mrf.mxu0
      %v1449 = vadd.f32 %v1089, %v1448
      %v1450 = vpop.f32.mrf.mxu0
      %v1451 = vadd.f32 %v1091, %v1450
      %1452 = vmatprep.mubr.f32.mxu0 0.0
      %v1453 = vand.u32 %v296, 4294901760
      %v1454 = vsub.f32 %v296, %v1453
      %1455 = vmatmul.mubr.f32.gmra.mxu0 %v1454
      %v1456 = vpop.f32.mrf.mxu0
      %v1457 = vadd.f32 %v1096, %v1456
      %v1458 = vpop.f32.mrf.mxu0
      %v1459 = vadd.f32 %v1098, %v1458
      %1460 = vmatprep.mubr.f32.mxu0 0.0
      %v1461 = vand.u32 %v299, 4294901760
      %v1462 = vsub.f32 %v299, %v1461
      %1463 = vmatmul.mubr.f32.gmra.mxu0 %v1462
      %v1464 = vpop.f32.mrf.mxu0
      %v1465 = vadd.f32 %v1103, %v1464
      %v1466 = vpop.f32.mrf.mxu0
      %v1467 = vadd.f32 %v1105, %v1466
      %1468 = vmatprep.mubr.f32.mxu0 0.0
      %v1469 = vand.u32 %v302, 4294901760
      %v1470 = vsub.f32 %v302, %v1469
      %1471 = vmatmul.mubr.f32.gmra.mxu0 %v1470
      %v1472 = vpop.f32.mrf.mxu0
      %v1473 = vadd.f32 %v1110, %v1472
      %v1474 = vpop.f32.mrf.mxu0
      %v1475 = vadd.f32 %v1112, %v1474
      %1476 = vmatprep.mubr.f32.mxu0 0.0
      %v1477 = vand.u32 %v305, 4294901760
      %v1478 = vsub.f32 %v305, %v1477
      %1479 = vmatmul.mubr.f32.gmra.mxu0 %v1478
      %v1480 = vpop.f32.mrf.mxu0
      %v1481 = vadd.f32 %v1117, %v1480
      %v1482 = vpop.f32.mrf.mxu0
      %v1483 = vadd.f32 %v1119, %v1482
      %1484 = vmatprep.mubr.f32.mxu0 0.0
      %v1485 = vand.u32 %v308, 4294901760
      %v1486 = vsub.f32 %v308, %v1485
      %1487 = vmatmul.mubr.f32.gmra.mxu0 %v1486
      %v1488 = vpop.f32.mrf.mxu0
      %v1489 = vadd.f32 %v1124, %v1488
      %v1490 = vpop.f32.mrf.mxu0
      %v1491 = vadd.f32 %v1126, %v1490
      %1492 = vmatprep.mubr.f32.mxu0 0.0
      %v1493 = vand.u32 %v311, 4294901760
      %v1494 = vsub.f32 %v311, %v1493
      %1495 = vmatmul.mubr.f32.gmra.mxu0 %v1494
      %v1496 = vpop.f32.mrf.mxu0
      %v1497 = vadd.f32 %v1131, %v1496
      %v1498 = vpop.f32.mrf.mxu0
      %v1499 = vadd.f32 %v1133, %v1498
      %1500 = vmatprep.mubr.f32.mxu0 0.0
      %v1501 = vand.u32 %v314, 4294901760
      %v1502 = vsub.f32 %v314, %v1501
      %1503 = vmatmul.mubr.f32.gmra.mxu0 %v1502
      %v1504 = vpop.f32.mrf.mxu0
      %v1505 = vadd.f32 %v1138, %v1504
      %v1506 = vpop.f32.mrf.mxu0
      %v1507 = vadd.f32 %v1140, %v1506
      %1508 = vmatprep.mubr.f32.mxu0 0.0
      %v1509 = vand.u32 %v317, 4294901760
      %v1510 = vsub.f32 %v317, %v1509
      %1511 = vmatmul.mubr.f32.gmra.mxu0 %v1510
      %v1512 = vpop.f32.mrf.mxu0
      %v1513 = vadd.f32 %v1145, %v1512
      %v1514 = vpop.f32.mrf.mxu0
      %v1515 = vadd.f32 %v1147, %v1514
      %1516 = vmatprep.mubr.f32.mxu0 0.0
      %v1517 = vand.u32 %v320, 4294901760
      %v1518 = vsub.f32 %v320, %v1517
      %1519 = vmatmul.mubr.f32.gmra.mxu0 %v1518
      %v1520 = vpop.f32.mrf.mxu0
      %v1521 = vadd.f32 %v1152, %v1520
      %v1522 = vpop.f32.mrf.mxu0
      %v1523 = vadd.f32 %v1154, %v1522
      %1524 = vmatprep.mubr.f32.mxu0 0.0
      %v1525 = vand.u32 %v323, 4294901760
      %v1526 = vsub.f32 %v323, %v1525
      %1527 = vmatmul.mubr.f32.gmra.mxu0 %v1526
      %v1528 = vpop.f32.mrf.mxu0
      %v1529 = vadd.f32 %v1159, %v1528
      %v1530 = vpop.f32.mrf.mxu0
      %v1531 = vadd.f32 %v1161, %v1530
      %1532 = vmatprep.mubr.f32.mxu0 0.0
      %v1533 = vand.u32 %v326, 4294901760
      %v1534 = vsub.f32 %v326, %v1533
      %1535 = vmatmul.mubr.f32.gmra.mxu0 %v1534
      %v1536 = vpop.f32.mrf.mxu0
      %v1537 = vadd.f32 %v1166, %v1536
      %v1538 = vpop.f32.mrf.mxu0
      %v1539 = vadd.f32 %v1168, %v1538
      %1540 = vmatprep.mubr.f32.mxu0 0.0
      %v1541 = vand.u32 %v329, 4294901760
      %v1542 = vsub.f32 %v329, %v1541
      %1543 = vmatmul.mubr.f32.gmra.mxu0 %v1542
      %v1544 = vpop.f32.mrf.mxu0
      %v1545 = vadd.f32 %v1173, %v1544
      %v1546 = vpop.f32.mrf.mxu0
      %v1547 = vadd.f32 %v1175, %v1546
      %1548 = vmatprep.mubr.f32.mxu0 0.0
      %v1549 = vand.u32 %v332, 4294901760
      %v1550 = vsub.f32 %v332, %v1549
      %1551 = vmatmul.mubr.f32.gmra.mxu0 %v1550
      %v1552 = vpop.f32.mrf.mxu0
      %v1553 = vadd.f32 %v1180, %v1552
      %v1554 = vpop.f32.mrf.mxu0
      %v1555 = vadd.f32 %v1182, %v1554
      %1556 = vmatprep.mubr.f32.mxu0 0.0
      %v1557 = vand.u32 %v335, 4294901760
      %v1558 = vsub.f32 %v335, %v1557
      %1559 = vmatmul.mubr.f32.gmra.mxu0 %v1558
      %v1560 = vpop.f32.mrf.mxu0
      %v1561 = vadd.f32 %v1187, %v1560
      %v1562 = vpop.f32.mrf.mxu0
      %v1563 = vadd.f32 %v1189, %v1562
      %1564 = vmatprep.mubr.f32.mxu0 0.0
      %v1565 = vand.u32 %v338, 4294901760
      %v1566 = vsub.f32 %v338, %v1565
      %1567 = vmatmul.mubr.f32.gmra.mxu0 %v1566
      %v1568 = vpop.f32.mrf.mxu0
      %v1569 = vadd.f32 %v1194, %v1568
      %v1570 = vpop.f32.mrf.mxu0
      %v1571 = vadd.f32 %v1196, %v1570
      %1572 = vmatprep.mubr.f32.mxu0 0.0
      %v1573 = vand.u32 %v341, 4294901760
      %v1574 = vsub.f32 %v341, %v1573
      %1575 = vmatmul.mubr.f32.gmra.mxu0 %v1574
      %v1576 = vpop.f32.mrf.mxu0
      %v1577 = vadd.f32 %v1201, %v1576
      %v1578 = vpop.f32.mrf.mxu0
      %v1579 = vadd.f32 %v1203, %v1578
      %1580 = vmatprep.mubr.f32.mxu0 0.0
      %v1581 = vand.u32 %v344, 4294901760
      %v1582 = vsub.f32 %v344, %v1581
      %1583 = vmatmul.mubr.f32.gmra.mxu0 %v1582
      %v1584 = vpop.f32.mrf.mxu0
      %v1585 = vadd.f32 %v1208, %v1584
      %v1586 = vpop.f32.mrf.mxu0
      %v1587 = vadd.f32 %v1210, %v1586
      %1588 = vmatprep.mubr.f32.mxu0 0.0
      %v1589 = vand.u32 %v347, 4294901760
      %v1590 = vsub.f32 %v347, %v1589
      %1591 = vmatmul.mubr.f32.gmra.mxu0 %v1590
      %v1592 = vpop.f32.mrf.mxu0
      %v1593 = vadd.f32 %v1215, %v1592
      %v1594 = vpop.f32.mrf.mxu0
      %v1595 = vadd.f32 %v1217, %v1594
      %1596 = vmatprep.mubr.f32.mxu0 0.0
      %v1597 = vand.u32 %v350, 4294901760
      %v1598 = vsub.f32 %v350, %v1597
      %1599 = vmatmul.mubr.f32.gmra.mxu0 %v1598
      %v1600 = vpop.f32.mrf.mxu0
      %v1601 = vadd.f32 %v1222, %v1600
      %v1602 = vpop.f32.mrf.mxu0
      %v1603 = vadd.f32 %v1224, %v1602
      %1604 = vmatprep.mubr.f32.mxu0 0.0
      %v1605 = vand.u32 %v353, 4294901760
      %v1606 = vsub.f32 %v353, %v1605
      %1607 = vmatmul.mubr.f32.gmra.mxu0 %v1606
      %v1608 = vpop.f32.mrf.mxu0
      %v1609 = vadd.f32 %v1229, %v1608
      %v1610 = vpop.f32.mrf.mxu0
      %v1611 = vadd.f32 %v1231, %v1610
      %1612 = vmatprep.mubr.f32.mxu0 0.0
      %v1613 = vand.u32 %v356, 4294901760
      %v1614 = vsub.f32 %v356, %v1613
      %1615 = vmatmul.mubr.f32.gmra.mxu0 %v1614
      %v1616 = vpop.f32.mrf.mxu0
      %v1617 = vadd.f32 %v1236, %v1616
      %v1618 = vpop.f32.mrf.mxu0
      %v1619 = vadd.f32 %v1238, %v1618
      %1620 = vmatprep.mubr.f32.mxu0 0.0
      %v1621 = vand.u32 %v359, 4294901760
      %v1622 = vsub.f32 %v359, %v1621
      %1623 = vmatmul.mubr.f32.gmra.mxu0 %v1622
      %v1624 = vpop.f32.mrf.mxu0
      %v1625 = vadd.f32 %v1243, %v1624
      %v1626 = vpop.f32.mrf.mxu0
      %v1627 = vadd.f32 %v1245, %v1626
      %1628 = vmatprep.mubr.f32.mxu0 0.0
      %v1629 = vand.u32 %v362, 4294901760
      %v1630 = vsub.f32 %v362, %v1629
      %1631 = vmatmul.mubr.f32.gmra.mxu0 %v1630
      %v1632 = vpop.f32.mrf.mxu0
      %v1633 = vadd.f32 %v1250, %v1632
      %v1634 = vpop.f32.mrf.mxu0
      %v1635 = vadd.f32 %v1252, %v1634
      %1636 = vmatprep.mubr.f32.mxu0 0.0
      %v1637 = vand.u32 %v365, 4294901760
      %v1638 = vsub.f32 %v365, %v1637
      %1639 = vmatmul.mubr.f32.gmra.mxu0 %v1638
      %v1640 = vpop.f32.mrf.mxu0
      %v1641 = vadd.f32 %v1257, %v1640
      %v1642 = vpop.f32.mrf.mxu0
      %v1643 = vadd.f32 %v1259, %v1642
      %1644 = vmatprep.mubr.f32.mxu0 0.0
      %v1645 = vand.u32 %v368, 4294901760
      %v1646 = vsub.f32 %v368, %v1645
      %1647 = vmatmul.mubr.f32.gmra.mxu0 %v1646
      %v1648 = vpop.f32.mrf.mxu0
      %v1649 = vadd.f32 %v1264, %v1648
      %v1650 = vpop.f32.mrf.mxu0
      %v1651 = vadd.f32 %v1266, %v1650
      %1652 = vdwg.mxu0
      %1653 = vmatprep.subr.mxu0 0.0
      %v1654 = vand.u32 %v320, 4294901760
      %1655 = vmatpush1.xpose.msra.mxu0 %v1654
      %1656 = vmatprep.subr.mxu0 0.0
      %v1657 = vand.u32 %v317, 4294901760
      %1658 = vmatpush1.xpose.msra.mxu0 %v1657
      %1659 = vmatprep.subr.mxu0 0.0
      %v1660 = vand.u32 %v314, 4294901760
      %1661 = vmatpush1.xpose.msra.mxu0 %v1660
      %1662 = vmatprep.subr.mxu0 0.0
      %v1663 = vand.u32 %v311, 4294901760
      %1664 = vmatpush1.xpose.msra.mxu0 %v1663
      %1665 = vmatprep.subr.mxu0 0.0
      %v1666 = vand.u32 %v308, 4294901760
      %1667 = vmatpush1.xpose.msra.mxu0 %v1666
      %1668 = vmatprep.subr.mxu0 0.0
      %v1669 = vand.u32 %v305, 4294901760
      %1670 = vmatpush1.xpose.msra.mxu0 %v1669
      %1671 = vmatprep.subr.mxu0 0.0
      %v1672 = vand.u32 %v302, 4294901760
      %1673 = vmatpush1.xpose.msra.mxu0 %v1672
      %1674 = vmatprep.subr.mxu0 0.0
      %v1675 = vand.u32 %v299, 4294901760
      %1676 = vmatpush1.xpose.msra.mxu0 %v1675
      %1677 = vmatprep.subr.mxu0 0.0
      %v1678 = vand.u32 %v296, 4294901760
      %1679 = vmatpush1.xpose.msra.mxu0 %v1678
      %1680 = vmatprep.subr.mxu0 0.0
      %v1681 = vand.u32 %v293, 4294901760
      %1682 = vmatpush1.xpose.msra.mxu0 %v1681
      %1683 = vmatprep.subr.mxu0 0.0
      %v1684 = vand.u32 %v290, 4294901760
      %1685 = vmatpush1.xpose.msra.mxu0 %v1684
      %1686 = vmatprep.subr.mxu0 0.0
      %v1687 = vand.u32 %v287, 4294901760
      %1688 = vmatpush1.xpose.msra.mxu0 %v1687
      %1689 = vmatprep.subr.mxu0 0.0
      %v1690 = vand.u32 %v284, 4294901760
      %1691 = vmatpush1.xpose.msra.mxu0 %v1690
      %1692 = vmatprep.subr.mxu0 0.0
      %v1693 = vand.u32 %v281, 4294901760
      %1694 = vmatpush1.xpose.msra.mxu0 %v1693
      %1695 = vmatprep.subr.mxu0 0.0
      %v1696 = vand.u32 %v278, 4294901760
      %1697 = vmatpush1.xpose.msra.mxu0 %v1696
      %1698 = vmatprep.subr.mxu0 0.0
      %v1699 = vand.u32 %v275, 4294901760
      %1700 = vmatpush1.xpose.msra.mxu0 %v1699
      %1701 = vmatprep.subr.mxu0 0.0
      %v1702 = vand.u32 %v368, 4294901760
      %1703 = vmatpush2.xpose.msra.mxu0 %v1702
      %1704 = vmatprep.subr.mxu0 0.0
      %v1705 = vand.u32 %v365, 4294901760
      %1706 = vmatpush2.xpose.msra.mxu0 %v1705
      %1707 = vmatprep.subr.mxu0 0.0
      %v1708 = vand.u32 %v362, 4294901760
      %1709 = vmatpush2.xpose.msra.mxu0 %v1708
      %1710 = vmatprep.subr.mxu0 0.0
      %v1711 = vand.u32 %v359, 4294901760
      %1712 = vmatpush2.xpose.msra.mxu0 %v1711
      %1713 = vmatprep.subr.mxu0 0.0
      %v1714 = vand.u32 %v356, 4294901760
      %1715 = vmatpush2.xpose.msra.mxu0 %v1714
      %1716 = vmatprep.subr.mxu0 0.0
      %v1717 = vand.u32 %v353, 4294901760
      %1718 = vmatpush2.xpose.msra.mxu0 %v1717
      %1719 = vmatprep.subr.mxu0 0.0
      %v1720 = vand.u32 %v350, 4294901760
      %1721 = vmatpush2.xpose.msra.mxu0 %v1720
      %1722 = vmatprep.subr.mxu0 0.0
      %v1723 = vand.u32 %v347, 4294901760
      %1724 = vmatpush2.xpose.msra.mxu0 %v1723
      %1725 = vmatprep.subr.mxu0 0.0
      %v1726 = vand.u32 %v344, 4294901760
      %1727 = vmatpush2.xpose.msra.mxu0 %v1726
      %1728 = vmatprep.subr.mxu0 0.0
      %v1729 = vand.u32 %v341, 4294901760
      %1730 = vmatpush2.xpose.msra.mxu0 %v1729
      %1731 = vmatprep.subr.mxu0 0.0
      %v1732 = vand.u32 %v338, 4294901760
      %1733 = vmatpush2.xpose.msra.mxu0 %v1732
      %1734 = vmatprep.subr.mxu0 0.0
      %v1735 = vand.u32 %v335, 4294901760
      %1736 = vmatpush2.xpose.msra.mxu0 %v1735
      %1737 = vmatprep.subr.mxu0 0.0
      %v1738 = vand.u32 %v332, 4294901760
      %1739 = vmatpush2.xpose.msra.mxu0 %v1738
      %1740 = vmatprep.subr.mxu0 0.0
      %v1741 = vand.u32 %v329, 4294901760
      %1742 = vmatpush2.xpose.msra.mxu0 %v1741
      %1743 = vmatprep.subr.mxu0 0.0
      %v1744 = vand.u32 %v326, 4294901760
      %1745 = vmatpush2.xpose.msra.mxu0 %v1744
      %1746 = vmatprep.subr.mxu0 0.0
      %v1747 = vand.u32 %v323, 4294901760
      %1748 = vmatpush2.xpose.msra.mxu0 %v1747
      %1749 = vmatprep.mubr.f32.mxu0 0.0
      %v1750 = vand.u32 %v275, 4294901760
      %v1751 = vsub.f32 %v275, %v1750
      %v1752 = vand.u32 %v1751, 4294901760
      %1753 = vmatmul.mubr.f32.gmra.mxu0 %v1752
      %v1754 = vpop.f32.mrf.mxu0
      %v1755 = vadd.f32 %v1401, %v1754
      %v1756 = vpop.f32.mrf.mxu0
      %v1757 = vadd.f32 %v1403, %v1756
      %1758 = vmatprep.mubr.f32.mxu0 0.0
      %v1759 = vand.u32 %v278, 4294901760
      %v1760 = vsub.f32 %v278, %v1759
      %v1761 = vand.u32 %v1760, 4294901760
      %1762 = vmatmul.mubr.f32.gmra.mxu0 %v1761
      %v1763 = vpop.f32.mrf.mxu0
      %v1764 = vadd.f32 %v1409, %v1763
      %v1765 = vpop.f32.mrf.mxu0
      %v1766 = vadd.f32 %v1411, %v1765
      %1767 = vmatprep.mubr.f32.mxu0 0.0
      %v1768 = vand.u32 %v281, 4294901760
      %v1769 = vsub.f32 %v281, %v1768
      %v1770 = vand.u32 %v1769, 4294901760
      %1771 = vmatmul.mubr.f32.gmra.mxu0 %v1770
      %v1772 = vpop.f32.mrf.mxu0
      %v1773 = vadd.f32 %v1417, %v1772
      %v1774 = vpop.f32.mrf.mxu0
      %v1775 = vadd.f32 %v1419, %v1774
      %1776 = vmatprep.mubr.f32.mxu0 0.0
      %v1777 = vand.u32 %v284, 4294901760
      %v1778 = vsub.f32 %v284, %v1777
      %v1779 = vand.u32 %v1778, 4294901760
      %1780 = vmatmul.mubr.f32.gmra.mxu0 %v1779
      %v1781 = vpop.f32.mrf.mxu0
      %v1782 = vadd.f32 %v1425, %v1781
      %v1783 = vpop.f32.mrf.mxu0
      %v1784 = vadd.f32 %v1427, %v1783
      %1785 = vmatprep.mubr.f32.mxu0 0.0
      %v1786 = vand.u32 %v287, 4294901760
      %v1787 = vsub.f32 %v287, %v1786
      %v1788 = vand.u32 %v1787, 4294901760
      %1789 = vmatmul.mubr.f32.gmra.mxu0 %v1788
      %v1790 = vpop.f32.mrf.mxu0
      %v1791 = vadd.f32 %v1433, %v1790
      %v1792 = vpop.f32.mrf.mxu0
      %v1793 = vadd.f32 %v1435, %v1792
      %1794 = vmatprep.mubr.f32.mxu0 0.0
      %v1795 = vand.u32 %v290, 4294901760
      %v1796 = vsub.f32 %v290, %v1795
      %v1797 = vand.u32 %v1796, 4294901760
      %1798 = vmatmul.mubr.f32.gmra.mxu0 %v1797
      %v1799 = vpop.f32.mrf.mxu0
      %v1800 = vadd.f32 %v1441, %v1799
      %v1801 = vpop.f32.mrf.mxu0
      %v1802 = vadd.f32 %v1443, %v1801
      %1803 = vmatprep.mubr.f32.mxu0 0.0
      %v1804 = vand.u32 %v293, 4294901760
      %v1805 = vsub.f32 %v293, %v1804
      %v1806 = vand.u32 %v1805, 4294901760
      %1807 = vmatmul.mubr.f32.gmra.mxu0 %v1806
      %v1808 = vpop.f32.mrf.mxu0
      %v1809 = vadd.f32 %v1449, %v1808
      %v1810 = vpop.f32.mrf.mxu0
      %v1811 = vadd.f32 %v1451, %v1810
      %1812 = vmatprep.mubr.f32.mxu0 0.0
      %v1813 = vand.u32 %v296, 4294901760
      %v1814 = vsub.f32 %v296, %v1813
      %v1815 = vand.u32 %v1814, 4294901760
      %1816 = vmatmul.mubr.f32.gmra.mxu0 %v1815
      %v1817 = vpop.f32.mrf.mxu0
      %v1818 = vadd.f32 %v1457, %v1817
      %v1819 = vpop.f32.mrf.mxu0
      %v1820 = vadd.f32 %v1459, %v1819
      %1821 = vmatprep.mubr.f32.mxu0 0.0
      %v1822 = vand.u32 %v299, 4294901760
      %v1823 = vsub.f32 %v299, %v1822
      %v1824 = vand.u32 %v1823, 4294901760
      %1825 = vmatmul.mubr.f32.gmra.mxu0 %v1824
      %v1826 = vpop.f32.mrf.mxu0
      %v1827 = vadd.f32 %v1465, %v1826
      %v1828 = vpop.f32.mrf.mxu0
      %v1829 = vadd.f32 %v1467, %v1828
      %1830 = vmatprep.mubr.f32.mxu0 0.0
      %v1831 = vand.u32 %v302, 4294901760
      %v1832 = vsub.f32 %v302, %v1831
      %v1833 = vand.u32 %v1832, 4294901760
      %1834 = vmatmul.mubr.f32.gmra.mxu0 %v1833
      %v1835 = vpop.f32.mrf.mxu0
      %v1836 = vadd.f32 %v1473, %v1835
      %v1837 = vpop.f32.mrf.mxu0
      %v1838 = vadd.f32 %v1475, %v1837
      %1839 = vmatprep.mubr.f32.mxu0 0.0
      %v1840 = vand.u32 %v305, 4294901760
      %v1841 = vsub.f32 %v305, %v1840
      %v1842 = vand.u32 %v1841, 4294901760
      %1843 = vmatmul.mubr.f32.gmra.mxu0 %v1842
      %v1844 = vpop.f32.mrf.mxu0
      %v1845 = vadd.f32 %v1481, %v1844
      %v1846 = vpop.f32.mrf.mxu0
      %v1847 = vadd.f32 %v1483, %v1846
      %1848 = vmatprep.mubr.f32.mxu0 0.0
      %v1849 = vand.u32 %v308, 4294901760
      %v1850 = vsub.f32 %v308, %v1849
      %v1851 = vand.u32 %v1850, 4294901760
      %1852 = vmatmul.mubr.f32.gmra.mxu0 %v1851
      %v1853 = vpop.f32.mrf.mxu0
      %v1854 = vadd.f32 %v1489, %v1853
      %v1855 = vpop.f32.mrf.mxu0
      %v1856 = vadd.f32 %v1491, %v1855
      %1857 = vmatprep.mubr.f32.mxu0 0.0
      %v1858 = vand.u32 %v311, 4294901760
      %v1859 = vsub.f32 %v311, %v1858
      %v1860 = vand.u32 %v1859, 4294901760
      %1861 = vmatmul.mubr.f32.gmra.mxu0 %v1860
      %v1862 = vpop.f32.mrf.mxu0
      %v1863 = vadd.f32 %v1497, %v1862
      %v1864 = vpop.f32.mrf.mxu0
      %v1865 = vadd.f32 %v1499, %v1864
      %1866 = vmatprep.mubr.f32.mxu0 0.0
      %v1867 = vand.u32 %v314, 4294901760
      %v1868 = vsub.f32 %v314, %v1867
      %v1869 = vand.u32 %v1868, 4294901760
      %1870 = vmatmul.mubr.f32.gmra.mxu0 %v1869
      %v1871 = vpop.f32.mrf.mxu0
      %v1872 = vadd.f32 %v1505, %v1871
      %v1873 = vpop.f32.mrf.mxu0
      %v1874 = vadd.f32 %v1507, %v1873
      %1875 = vmatprep.mubr.f32.mxu0 0.0
      %v1876 = vand.u32 %v317, 4294901760
      %v1877 = vsub.f32 %v317, %v1876
      %v1878 = vand.u32 %v1877, 4294901760
      %1879 = vmatmul.mubr.f32.gmra.mxu0 %v1878
      %v1880 = vpop.f32.mrf.mxu0
      %v1881 = vadd.f32 %v1513, %v1880
      %v1882 = vpop.f32.mrf.mxu0
      %v1883 = vadd.f32 %v1515, %v1882
      %1884 = vmatprep.mubr.f32.mxu0 0.0
      %v1885 = vand.u32 %v320, 4294901760
      %v1886 = vsub.f32 %v320, %v1885
      %v1887 = vand.u32 %v1886, 4294901760
      %1888 = vmatmul.mubr.f32.gmra.mxu0 %v1887
      %v1889 = vpop.f32.mrf.mxu0
      %v1890 = vadd.f32 %v1521, %v1889
      %v1891 = vpop.f32.mrf.mxu0
      %v1892 = vadd.f32 %v1523, %v1891
      %1893 = vmatprep.mubr.f32.mxu0 0.0
      %v1894 = vand.u32 %v323, 4294901760
      %v1895 = vsub.f32 %v323, %v1894
      %v1896 = vand.u32 %v1895, 4294901760
      %1897 = vmatmul.mubr.f32.gmra.mxu0 %v1896
      %v1898 = vpop.f32.mrf.mxu0
      %v1899 = vadd.f32 %v1529, %v1898
      %v1900 = vpop.f32.mrf.mxu0
      %v1901 = vadd.f32 %v1531, %v1900
      %1902 = vmatprep.mubr.f32.mxu0 0.0
      %v1903 = vand.u32 %v326, 4294901760
      %v1904 = vsub.f32 %v326, %v1903
      %v1905 = vand.u32 %v1904, 4294901760
      %1906 = vmatmul.mubr.f32.gmra.mxu0 %v1905
      %v1907 = vpop.f32.mrf.mxu0
      %v1908 = vadd.f32 %v1537, %v1907
      %v1909 = vpop.f32.mrf.mxu0
      %v1910 = vadd.f32 %v1539, %v1909
      %1911 = vmatprep.mubr.f32.mxu0 0.0
      %v1912 = vand.u32 %v329, 4294901760
      %v1913 = vsub.f32 %v329, %v1912
      %v1914 = vand.u32 %v1913, 4294901760
      %1915 = vmatmul.mubr.f32.gmra.mxu0 %v1914
      %v1916 = vpop.f32.mrf.mxu0
      %v1917 = vadd.f32 %v1545, %v1916
      %v1918 = vpop.f32.mrf.mxu0
      %v1919 = vadd.f32 %v1547, %v1918
      %1920 = vmatprep.mubr.f32.mxu0 0.0
      %v1921 = vand.u32 %v332, 4294901760
      %v1922 = vsub.f32 %v332, %v1921
      %v1923 = vand.u32 %v1922, 4294901760
      %1924 = vmatmul.mubr.f32.gmra.mxu0 %v1923
      %v1925 = vpop.f32.mrf.mxu0
      %v1926 = vadd.f32 %v1553, %v1925
      %v1927 = vpop.f32.mrf.mxu0
      %v1928 = vadd.f32 %v1555, %v1927
      %1929 = vmatprep.mubr.f32.mxu0 0.0
      %v1930 = vand.u32 %v335, 4294901760
      %v1931 = vsub.f32 %v335, %v1930
      %v1932 = vand.u32 %v1931, 4294901760
      %1933 = vmatmul.mubr.f32.gmra.mxu0 %v1932
      %v1934 = vpop.f32.mrf.mxu0
      %v1935 = vadd.f32 %v1561, %v1934
      %v1936 = vpop.f32.mrf.mxu0
      %v1937 = vadd.f32 %v1563, %v1936
      %1938 = vmatprep.mubr.f32.mxu0 0.0
      %v1939 = vand.u32 %v338, 4294901760
      %v1940 = vsub.f32 %v338, %v1939
      %v1941 = vand.u32 %v1940, 4294901760
      %1942 = vmatmul.mubr.f32.gmra.mxu0 %v1941
      %v1943 = vpop.f32.mrf.mxu0
      %v1944 = vadd.f32 %v1569, %v1943
      %v1945 = vpop.f32.mrf.mxu0
      %v1946 = vadd.f32 %v1571, %v1945
      %1947 = vmatprep.mubr.f32.mxu0 0.0
      %v1948 = vand.u32 %v341, 4294901760
      %v1949 = vsub.f32 %v341, %v1948
      %v1950 = vand.u32 %v1949, 4294901760
      %1951 = vmatmul.mubr.f32.gmra.mxu0 %v1950
      %v1952 = vpop.f32.mrf.mxu0
      %v1953 = vadd.f32 %v1577, %v1952
      %v1954 = vpop.f32.mrf.mxu0
      %v1955 = vadd.f32 %v1579, %v1954
      %1956 = vmatprep.mubr.f32.mxu0 0.0
      %v1957 = vand.u32 %v344, 4294901760
      %v1958 = vsub.f32 %v344, %v1957
      %v1959 = vand.u32 %v1958, 4294901760
      %1960 = vmatmul.mubr.f32.gmra.mxu0 %v1959
      %v1961 = vpop.f32.mrf.mxu0
      %v1962 = vadd.f32 %v1585, %v1961
      %v1963 = vpop.f32.mrf.mxu0
      %v1964 = vadd.f32 %v1587, %v1963
      %1965 = vmatprep.mubr.f32.mxu0 0.0
      %v1966 = vand.u32 %v347, 4294901760
      %v1967 = vsub.f32 %v347, %v1966
      %v1968 = vand.u32 %v1967, 4294901760
      %1969 = vmatmul.mubr.f32.gmra.mxu0 %v1968
      %v1970 = vpop.f32.mrf.mxu0
      %v1971 = vadd.f32 %v1593, %v1970
      %v1972 = vpop.f32.mrf.mxu0
      %v1973 = vadd.f32 %v1595, %v1972
      %1974 = vmatprep.mubr.f32.mxu0 0.0
      %v1975 = vand.u32 %v350, 4294901760
      %v1976 = vsub.f32 %v350, %v1975
      %v1977 = vand.u32 %v1976, 4294901760
      %1978 = vmatmul.mubr.f32.gmra.mxu0 %v1977
      %v1979 = vpop.f32.mrf.mxu0
      %v1980 = vadd.f32 %v1601, %v1979
      %v1981 = vpop.f32.mrf.mxu0
      %v1982 = vadd.f32 %v1603, %v1981
      %1983 = vmatprep.mubr.f32.mxu0 0.0
      %v1984 = vand.u32 %v353, 4294901760
      %v1985 = vsub.f32 %v353, %v1984
      %v1986 = vand.u32 %v1985, 4294901760
      %1987 = vmatmul.mubr.f32.gmra.mxu0 %v1986
      %v1988 = vpop.f32.mrf.mxu0
      %v1989 = vadd.f32 %v1609, %v1988
      %v1990 = vpop.f32.mrf.mxu0
      %v1991 = vadd.f32 %v1611, %v1990
      %1992 = vmatprep.mubr.f32.mxu0 0.0
      %v1993 = vand.u32 %v356, 4294901760
      %v1994 = vsub.f32 %v356, %v1993
      %v1995 = vand.u32 %v1994, 4294901760
      %1996 = vmatmul.mubr.f32.gmra.mxu0 %v1995
      %v1997 = vpop.f32.mrf.mxu0
      %v1998 = vadd.f32 %v1617, %v1997
      %v1999 = vpop.f32.mrf.mxu0
      %v2000 = vadd.f32 %v1619, %v1999
      %2001 = vmatprep.mubr.f32.mxu0 0.0
      %v2002 = vand.u32 %v359, 4294901760
      %v2003 = vsub.f32 %v359, %v2002
      %v2004 = vand.u32 %v2003, 4294901760
      %2005 = vmatmul.mubr.f32.gmra.mxu0 %v2004
      %v2006 = vpop.f32.mrf.mxu0
      %v2007 = vadd.f32 %v1625, %v2006
      %v2008 = vpop.f32.mrf.mxu0
      %v2009 = vadd.f32 %v1627, %v2008
      %2010 = vmatprep.mubr.f32.mxu0 0.0
      %v2011 = vand.u32 %v362, 4294901760
      %v2012 = vsub.f32 %v362, %v2011
      %v2013 = vand.u32 %v2012, 4294901760
      %2014 = vmatmul.mubr.f32.gmra.mxu0 %v2013
      %v2015 = vpop.f32.mrf.mxu0
      %v2016 = vadd.f32 %v1633, %v2015
      %v2017 = vpop.f32.mrf.mxu0
      %v2018 = vadd.f32 %v1635, %v2017
      %2019 = vmatprep.mubr.f32.mxu0 0.0
      %v2020 = vand.u32 %v365, 4294901760
      %v2021 = vsub.f32 %v365, %v2020
      %v2022 = vand.u32 %v2021, 4294901760
      %2023 = vmatmul.mubr.f32.gmra.mxu0 %v2022
      %v2024 = vpop.f32.mrf.mxu0
      %v2025 = vadd.f32 %v1641, %v2024
      %v2026 = vpop.f32.mrf.mxu0
      %v2027 = vadd.f32 %v1643, %v2026
      %2028 = vmatprep.mubr.f32.mxu0 0.0
      %v2029 = vand.u32 %v368, 4294901760
      %v2030 = vsub.f32 %v368, %v2029
      %v2031 = vand.u32 %v2030, 4294901760
      %2032 = vmatmul.mubr.f32.gmra.mxu0 %v2031
      %v2033 = vpop.f32.mrf.mxu0
      %v2034 = vadd.f32 %v1649, %v2033
      %v2035 = vpop.f32.mrf.mxu0
      %v2036 = vadd.f32 %v1651, %v2035
      %2037 = vdwg.mxu0
      %2038 = vmatprep.subr.mxu0 0.0
      %v2039 = vand.u32 %v320, 4294901760
      %v2040 = vsub.f32 %v320, %v2039
      %v2041 = vand.u32 %v2040, 4294901760
      %2042 = vmatpush1.xpose.msra.mxu0 %v2041
      %2043 = vmatprep.subr.mxu0 0.0
      %v2044 = vand.u32 %v317, 4294901760
      %v2045 = vsub.f32 %v317, %v2044
      %v2046 = vand.u32 %v2045, 4294901760
      %2047 = vmatpush1.xpose.msra.mxu0 %v2046
      %2048 = vmatprep.subr.mxu0 0.0
      %v2049 = vand.u32 %v314, 4294901760
      %v2050 = vsub.f32 %v314, %v2049
      %v2051 = vand.u32 %v2050, 4294901760
      %2052 = vmatpush1.xpose.msra.mxu0 %v2051
      %2053 = vmatprep.subr.mxu0 0.0
      %v2054 = vand.u32 %v311, 4294901760
      %v2055 = vsub.f32 %v311, %v2054
      %v2056 = vand.u32 %v2055, 4294901760
      %2057 = vmatpush1.xpose.msra.mxu0 %v2056
      %2058 = vmatprep.subr.mxu0 0.0
      %v2059 = vand.u32 %v308, 4294901760
      %v2060 = vsub.f32 %v308, %v2059
      %v2061 = vand.u32 %v2060, 4294901760
      %2062 = vmatpush1.xpose.msra.mxu0 %v2061
      %2063 = vmatprep.subr.mxu0 0.0
      %v2064 = vand.u32 %v305, 4294901760
      %v2065 = vsub.f32 %v305, %v2064
      %v2066 = vand.u32 %v2065, 4294901760
      %2067 = vmatpush1.xpose.msra.mxu0 %v2066
      %2068 = vmatprep.subr.mxu0 0.0
      %v2069 = vand.u32 %v302, 4294901760
      %v2070 = vsub.f32 %v302, %v2069
      %v2071 = vand.u32 %v2070, 4294901760
      %2072 = vmatpush1.xpose.msra.mxu0 %v2071
      %2073 = vmatprep.subr.mxu0 0.0
      %v2074 = vand.u32 %v299, 4294901760
      %v2075 = vsub.f32 %v299, %v2074
      %v2076 = vand.u32 %v2075, 4294901760
      %2077 = vmatpush1.xpose.msra.mxu0 %v2076
      %2078 = vmatprep.subr.mxu0 0.0
      %v2079 = vand.u32 %v296, 4294901760
      %v2080 = vsub.f32 %v296, %v2079
      %v2081 = vand.u32 %v2080, 4294901760
      %2082 = vmatpush1.xpose.msra.mxu0 %v2081
      %2083 = vmatprep.subr.mxu0 0.0
      %v2084 = vand.u32 %v293, 4294901760
      %v2085 = vsub.f32 %v293, %v2084
      %v2086 = vand.u32 %v2085, 4294901760
      %2087 = vmatpush1.xpose.msra.mxu0 %v2086
      %2088 = vmatprep.subr.mxu0 0.0
      %v2089 = vand.u32 %v290, 4294901760
      %v2090 = vsub.f32 %v290, %v2089
      %v2091 = vand.u32 %v2090, 4294901760
      %2092 = vmatpush1.xpose.msra.mxu0 %v2091
      %2093 = vmatprep.subr.mxu0 0.0
      %v2094 = vand.u32 %v287, 4294901760
      %v2095 = vsub.f32 %v287, %v2094
      %v2096 = vand.u32 %v2095, 4294901760
      %2097 = vmatpush1.xpose.msra.mxu0 %v2096
      %2098 = vmatprep.subr.mxu0 0.0
      %v2099 = vand.u32 %v284, 4294901760
      %v2100 = vsub.f32 %v284, %v2099
      %v2101 = vand.u32 %v2100, 4294901760
      %2102 = vmatpush1.xpose.msra.mxu0 %v2101
      %2103 = vmatprep.subr.mxu0 0.0
      %v2104 = vand.u32 %v281, 4294901760
      %v2105 = vsub.f32 %v281, %v2104
      %v2106 = vand.u32 %v2105, 4294901760
      %2107 = vmatpush1.xpose.msra.mxu0 %v2106
      %2108 = vmatprep.subr.mxu0 0.0
      %v2109 = vand.u32 %v278, 4294901760
      %v2110 = vsub.f32 %v278, %v2109
      %v2111 = vand.u32 %v2110, 4294901760
      %2112 = vmatpush1.xpose.msra.mxu0 %v2111
      %2113 = vmatprep.subr.mxu0 0.0
      %v2114 = vand.u32 %v275, 4294901760
      %v2115 = vsub.f32 %v275, %v2114
      %v2116 = vand.u32 %v2115, 4294901760
      %2117 = vmatpush1.xpose.msra.mxu0 %v2116
      %2118 = vmatprep.subr.mxu0 0.0
      %v2119 = vand.u32 %v368, 4294901760
      %v2120 = vsub.f32 %v368, %v2119
      %v2121 = vand.u32 %v2120, 4294901760
      %2122 = vmatpush2.xpose.msra.mxu0 %v2121
      %2123 = vmatprep.subr.mxu0 0.0
      %v2124 = vand.u32 %v365, 4294901760
      %v2125 = vsub.f32 %v365, %v2124
      %v2126 = vand.u32 %v2125, 4294901760
      %2127 = vmatpush2.xpose.msra.mxu0 %v2126
      %2128 = vmatprep.subr.mxu0 0.0
      %v2129 = vand.u32 %v362, 4294901760
      %v2130 = vsub.f32 %v362, %v2129
      %v2131 = vand.u32 %v2130, 4294901760
      %2132 = vmatpush2.xpose.msra.mxu0 %v2131
      %2133 = vmatprep.subr.mxu0 0.0
      %v2134 = vand.u32 %v359, 4294901760
      %v2135 = vsub.f32 %v359, %v2134
      %v2136 = vand.u32 %v2135, 4294901760
      %2137 = vmatpush2.xpose.msra.mxu0 %v2136
      %2138 = vmatprep.subr.mxu0 0.0
      %v2139 = vand.u32 %v356, 4294901760
      %v2140 = vsub.f32 %v356, %v2139
      %v2141 = vand.u32 %v2140, 4294901760
      %2142 = vmatpush2.xpose.msra.mxu0 %v2141
      %2143 = vmatprep.subr.mxu0 0.0
      %v2144 = vand.u32 %v353, 4294901760
      %v2145 = vsub.f32 %v353, %v2144
      %v2146 = vand.u32 %v2145, 4294901760
      %2147 = vmatpush2.xpose.msra.mxu0 %v2146
      %2148 = vmatprep.subr.mxu0 0.0
      %v2149 = vand.u32 %v350, 4294901760
      %v2150 = vsub.f32 %v350, %v2149
      %v2151 = vand.u32 %v2150, 4294901760
      %2152 = vmatpush2.xpose.msra.mxu0 %v2151
      %2153 = vmatprep.subr.mxu0 0.0
      %v2154 = vand.u32 %v347, 4294901760
      %v2155 = vsub.f32 %v347, %v2154
      %v2156 = vand.u32 %v2155, 4294901760
      %2157 = vmatpush2.xpose.msra.mxu0 %v2156
      %2158 = vmatprep.subr.mxu0 0.0
      %v2159 = vand.u32 %v344, 4294901760
      %v2160 = vsub.f32 %v344, %v2159
      %v2161 = vand.u32 %v2160, 4294901760
      %2162 = vmatpush2.xpose.msra.mxu0 %v2161
      %2163 = vmatprep.subr.mxu0 0.0
      %v2164 = vand.u32 %v341, 4294901760
      %v2165 = vsub.f32 %v341, %v2164
      %v2166 = vand.u32 %v2165, 4294901760
      %2167 = vmatpush2.xpose.msra.mxu0 %v2166
      %2168 = vmatprep.subr.mxu0 0.0
      %v2169 = vand.u32 %v338, 4294901760
      %v2170 = vsub.f32 %v338, %v2169
      %v2171 = vand.u32 %v2170, 4294901760
      %2172 = vmatpush2.xpose.msra.mxu0 %v2171
      %2173 = vmatprep.subr.mxu0 0.0
      %v2174 = vand.u32 %v335, 4294901760
      %v2175 = vsub.f32 %v335, %v2174
      %v2176 = vand.u32 %v2175, 4294901760
      %2177 = vmatpush2.xpose.msra.mxu0 %v2176
      %2178 = vmatprep.subr.mxu0 0.0
      %v2179 = vand.u32 %v332, 4294901760
      %v2180 = vsub.f32 %v332, %v2179
      %v2181 = vand.u32 %v2180, 4294901760
      %2182 = vmatpush2.xpose.msra.mxu0 %v2181
      %2183 = vmatprep.subr.mxu0 0.0
      %v2184 = vand.u32 %v329, 4294901760
      %v2185 = vsub.f32 %v329, %v2184
      %v2186 = vand.u32 %v2185, 4294901760
      %2187 = vmatpush2.xpose.msra.mxu0 %v2186
      %2188 = vmatprep.subr.mxu0 0.0
      %v2189 = vand.u32 %v326, 4294901760
      %v2190 = vsub.f32 %v326, %v2189
      %v2191 = vand.u32 %v2190, 4294901760
      %2192 = vmatpush2.xpose.msra.mxu0 %v2191
      %2193 = vmatprep.subr.mxu0 0.0
      %v2194 = vand.u32 %v323, 4294901760
      %v2195 = vsub.f32 %v323, %v2194
      %v2196 = vand.u32 %v2195, 4294901760
      %2197 = vmatpush2.xpose.msra.mxu0 %v2196
      %2198 = vmatprep.mubr.f32.mxu0 0.0
      %v2199 = vand.u32 %v275, 4294901760
      %2200 = vmatmul.mubr.f32.gmra.mxu0 %v2199
      %v2201 = vpop.f32.mrf.mxu0
      %v2202 = vadd.f32 %v1755, %v2201
      %v2203 = vpop.f32.mrf.mxu0
      %v2204 = vadd.f32 %v1757, %v2203
      %2205 = vmatprep.mubr.f32.mxu0 0.0
      %v2206 = vand.u32 %v278, 4294901760
      %2207 = vmatmul.mubr.f32.gmra.mxu0 %v2206
      %v2208 = vpop.f32.mrf.mxu0
      %v2209 = vadd.f32 %v1764, %v2208
      %v2210 = vpop.f32.mrf.mxu0
      %v2211 = vadd.f32 %v1766, %v2210
      %2212 = vmatprep.mubr.f32.mxu0 0.0
      %v2213 = vand.u32 %v281, 4294901760
      %2214 = vmatmul.mubr.f32.gmra.mxu0 %v2213
      %v2215 = vpop.f32.mrf.mxu0
      %v2216 = vadd.f32 %v1773, %v2215
      %v2217 = vpop.f32.mrf.mxu0
      %v2218 = vadd.f32 %v1775, %v2217
      %2219 = vmatprep.mubr.f32.mxu0 0.0
      %v2220 = vand.u32 %v284, 4294901760
      %2221 = vmatmul.mubr.f32.gmra.mxu0 %v2220
      %v2222 = vpop.f32.mrf.mxu0
      %v2223 = vadd.f32 %v1782, %v2222
      %v2224 = vpop.f32.mrf.mxu0
      %v2225 = vadd.f32 %v1784, %v2224
      %2226 = vmatprep.mubr.f32.mxu0 0.0
      %v2227 = vand.u32 %v287, 4294901760
      %2228 = vmatmul.mubr.f32.gmra.mxu0 %v2227
      %v2229 = vpop.f32.mrf.mxu0
      %v2230 = vadd.f32 %v1791, %v2229
      %v2231 = vpop.f32.mrf.mxu0
      %v2232 = vadd.f32 %v1793, %v2231
      %2233 = vmatprep.mubr.f32.mxu0 0.0
      %v2234 = vand.u32 %v290, 4294901760
      %2235 = vmatmul.mubr.f32.gmra.mxu0 %v2234
      %v2236 = vpop.f32.mrf.mxu0
      %v2237 = vadd.f32 %v1800, %v2236
      %v2238 = vpop.f32.mrf.mxu0
      %v2239 = vadd.f32 %v1802, %v2238
      %2240 = vmatprep.mubr.f32.mxu0 0.0
      %v2241 = vand.u32 %v293, 4294901760
      %2242 = vmatmul.mubr.f32.gmra.mxu0 %v2241
      %v2243 = vpop.f32.mrf.mxu0
      %v2244 = vadd.f32 %v1809, %v2243
      %v2245 = vpop.f32.mrf.mxu0
      %v2246 = vadd.f32 %v1811, %v2245
      %2247 = vmatprep.mubr.f32.mxu0 0.0
      %v2248 = vand.u32 %v296, 4294901760
      %2249 = vmatmul.mubr.f32.gmra.mxu0 %v2248
      %v2250 = vpop.f32.mrf.mxu0
      %v2251 = vadd.f32 %v1818, %v2250
      %v2252 = vpop.f32.mrf.mxu0
      %v2253 = vadd.f32 %v1820, %v2252
      %2254 = vmatprep.mubr.f32.mxu0 0.0
      %v2255 = vand.u32 %v299, 4294901760
      %2256 = vmatmul.mubr.f32.gmra.mxu0 %v2255
      %v2257 = vpop.f32.mrf.mxu0
      %v2258 = vadd.f32 %v1827, %v2257
      %v2259 = vpop.f32.mrf.mxu0
      %v2260 = vadd.f32 %v1829, %v2259
      %2261 = vmatprep.mubr.f32.mxu0 0.0
      %v2262 = vand.u32 %v302, 4294901760
      %2263 = vmatmul.mubr.f32.gmra.mxu0 %v2262
      %v2264 = vpop.f32.mrf.mxu0
      %v2265 = vadd.f32 %v1836, %v2264
      %v2266 = vpop.f32.mrf.mxu0
      %v2267 = vadd.f32 %v1838, %v2266
      %2268 = vmatprep.mubr.f32.mxu0 0.0
      %v2269 = vand.u32 %v305, 4294901760
      %2270 = vmatmul.mubr.f32.gmra.mxu0 %v2269
      %v2271 = vpop.f32.mrf.mxu0
      %v2272 = vadd.f32 %v1845, %v2271
      %v2273 = vpop.f32.mrf.mxu0
      %v2274 = vadd.f32 %v1847, %v2273
      %2275 = vmatprep.mubr.f32.mxu0 0.0
      %v2276 = vand.u32 %v308, 4294901760
      %2277 = vmatmul.mubr.f32.gmra.mxu0 %v2276
      %v2278 = vpop.f32.mrf.mxu0
      %v2279 = vadd.f32 %v1854, %v2278
      %v2280 = vpop.f32.mrf.mxu0
      %v2281 = vadd.f32 %v1856, %v2280
      %2282 = vmatprep.mubr.f32.mxu0 0.0
      %v2283 = vand.u32 %v311, 4294901760
      %2284 = vmatmul.mubr.f32.gmra.mxu0 %v2283
      %v2285 = vpop.f32.mrf.mxu0
      %v2286 = vadd.f32 %v1863, %v2285
      %v2287 = vpop.f32.mrf.mxu0
      %v2288 = vadd.f32 %v1865, %v2287
      %2289 = vmatprep.mubr.f32.mxu0 0.0
      %v2290 = vand.u32 %v314, 4294901760
      %2291 = vmatmul.mubr.f32.gmra.mxu0 %v2290
      %v2292 = vpop.f32.mrf.mxu0
      %v2293 = vadd.f32 %v1872, %v2292
      %v2294 = vpop.f32.mrf.mxu0
      %v2295 = vadd.f32 %v1874, %v2294
      %2296 = vmatprep.mubr.f32.mxu0 0.0
      %v2297 = vand.u32 %v317, 4294901760
      %2298 = vmatmul.mubr.f32.gmra.mxu0 %v2297
      %v2299 = vpop.f32.mrf.mxu0
      %v2300 = vadd.f32 %v1881, %v2299
      %v2301 = vpop.f32.mrf.mxu0
      %v2302 = vadd.f32 %v1883, %v2301
      %2303 = vmatprep.mubr.f32.mxu0 0.0
      %v2304 = vand.u32 %v320, 4294901760
      %2305 = vmatmul.mubr.f32.gmra.mxu0 %v2304
      %v2306 = vpop.f32.mrf.mxu0
      %v2307 = vadd.f32 %v1890, %v2306
      %v2308 = vpop.f32.mrf.mxu0
      %v2309 = vadd.f32 %v1892, %v2308
      %2310 = vmatprep.mubr.f32.mxu0 0.0
      %v2311 = vand.u32 %v323, 4294901760
      %2312 = vmatmul.mubr.f32.gmra.mxu0 %v2311
      %v2313 = vpop.f32.mrf.mxu0
      %v2314 = vadd.f32 %v1899, %v2313
      %v2315 = vpop.f32.mrf.mxu0
      %v2316 = vadd.f32 %v1901, %v2315
      %2317 = vmatprep.mubr.f32.mxu0 0.0
      %v2318 = vand.u32 %v326, 4294901760
      %2319 = vmatmul.mubr.f32.gmra.mxu0 %v2318
      %v2320 = vpop.f32.mrf.mxu0
      %v2321 = vadd.f32 %v1908, %v2320
      %v2322 = vpop.f32.mrf.mxu0
      %v2323 = vadd.f32 %v1910, %v2322
      %2324 = vmatprep.mubr.f32.mxu0 0.0
      %v2325 = vand.u32 %v329, 4294901760
      %2326 = vmatmul.mubr.f32.gmra.mxu0 %v2325
      %v2327 = vpop.f32.mrf.mxu0
      %v2328 = vadd.f32 %v1917, %v2327
      %v2329 = vpop.f32.mrf.mxu0
      %v2330 = vadd.f32 %v1919, %v2329
      %2331 = vmatprep.mubr.f32.mxu0 0.0
      %v2332 = vand.u32 %v332, 4294901760
      %2333 = vmatmul.mubr.f32.gmra.mxu0 %v2332
      %v2334 = vpop.f32.mrf.mxu0
      %v2335 = vadd.f32 %v1926, %v2334
      %v2336 = vpop.f32.mrf.mxu0
      %v2337 = vadd.f32 %v1928, %v2336
      %2338 = vmatprep.mubr.f32.mxu0 0.0
      %v2339 = vand.u32 %v335, 4294901760
      %2340 = vmatmul.mubr.f32.gmra.mxu0 %v2339
      %v2341 = vpop.f32.mrf.mxu0
      %v2342 = vadd.f32 %v1935, %v2341
      %v2343 = vpop.f32.mrf.mxu0
      %v2344 = vadd.f32 %v1937, %v2343
      %2345 = vmatprep.mubr.f32.mxu0 0.0
      %v2346 = vand.u32 %v338, 4294901760
      %2347 = vmatmul.mubr.f32.gmra.mxu0 %v2346
      %v2348 = vpop.f32.mrf.mxu0
      %v2349 = vadd.f32 %v1944, %v2348
      %v2350 = vpop.f32.mrf.mxu0
      %v2351 = vadd.f32 %v1946, %v2350
      %2352 = vmatprep.mubr.f32.mxu0 0.0
      %v2353 = vand.u32 %v341, 4294901760
      %2354 = vmatmul.mubr.f32.gmra.mxu0 %v2353
      %v2355 = vpop.f32.mrf.mxu0
      %v2356 = vadd.f32 %v1953, %v2355
      %v2357 = vpop.f32.mrf.mxu0
      %v2358 = vadd.f32 %v1955, %v2357
      %2359 = vmatprep.mubr.f32.mxu0 0.0
      %v2360 = vand.u32 %v344, 4294901760
      %2361 = vmatmul.mubr.f32.gmra.mxu0 %v2360
      %v2362 = vpop.f32.mrf.mxu0
      %v2363 = vadd.f32 %v1962, %v2362
      %v2364 = vpop.f32.mrf.mxu0
      %v2365 = vadd.f32 %v1964, %v2364
      %2366 = vmatprep.mubr.f32.mxu0 0.0
      %v2367 = vand.u32 %v347, 4294901760
      %2368 = vmatmul.mubr.f32.gmra.mxu0 %v2367
      %v2369 = vpop.f32.mrf.mxu0
      %v2370 = vadd.f32 %v1971, %v2369
      %v2371 = vpop.f32.mrf.mxu0
      %v2372 = vadd.f32 %v1973, %v2371
      %2373 = vmatprep.mubr.f32.mxu0 0.0
      %v2374 = vand.u32 %v350, 4294901760
      %2375 = vmatmul.mubr.f32.gmra.mxu0 %v2374
      %v2376 = vpop.f32.mrf.mxu0
      %v2377 = vadd.f32 %v1980, %v2376
      %v2378 = vpop.f32.mrf.mxu0
      %v2379 = vadd.f32 %v1982, %v2378
      %2380 = vmatprep.mubr.f32.mxu0 0.0
      %v2381 = vand.u32 %v353, 4294901760
      %2382 = vmatmul.mubr.f32.gmra.mxu0 %v2381
      %v2383 = vpop.f32.mrf.mxu0
      %v2384 = vadd.f32 %v1989, %v2383
      %v2385 = vpop.f32.mrf.mxu0
      %v2386 = vadd.f32 %v1991, %v2385
      %2387 = vmatprep.mubr.f32.mxu0 0.0
      %v2388 = vand.u32 %v356, 4294901760
      %2389 = vmatmul.mubr.f32.gmra.mxu0 %v2388
      %v2390 = vpop.f32.mrf.mxu0
      %v2391 = vadd.f32 %v1998, %v2390
      %v2392 = vpop.f32.mrf.mxu0
      %v2393 = vadd.f32 %v2000, %v2392
      %2394 = vmatprep.mubr.f32.mxu0 0.0
      %v2395 = vand.u32 %v359, 4294901760
      %2396 = vmatmul.mubr.f32.gmra.mxu0 %v2395
      %v2397 = vpop.f32.mrf.mxu0
      %v2398 = vadd.f32 %v2007, %v2397
      %v2399 = vpop.f32.mrf.mxu0
      %v2400 = vadd.f32 %v2009, %v2399
      %2401 = vmatprep.mubr.f32.mxu0 0.0
      %v2402 = vand.u32 %v362, 4294901760
      %2403 = vmatmul.mubr.f32.gmra.mxu0 %v2402
      %v2404 = vpop.f32.mrf.mxu0
      %v2405 = vadd.f32 %v2016, %v2404
      %v2406 = vpop.f32.mrf.mxu0
      %v2407 = vadd.f32 %v2018, %v2406
      %2408 = vmatprep.mubr.f32.mxu0 0.0
      %v2409 = vand.u32 %v365, 4294901760
      %2410 = vmatmul.mubr.f32.gmra.mxu0 %v2409
      %v2411 = vpop.f32.mrf.mxu0
      %v2412 = vadd.f32 %v2025, %v2411
      %v2413 = vpop.f32.mrf.mxu0
      %v2414 = vadd.f32 %v2027, %v2413
      %2415 = vmatprep.mubr.f32.mxu0 0.0
      %v2416 = vand.u32 %v368, 4294901760
      %2417 = vmatmul.mubr.f32.gmra.mxu0 %v2416
      %v2418 = vpop.f32.mrf.mxu0
      %v2419 = vadd.f32 %v2034, %v2418
      %v2420 = vpop.f32.mrf.mxu0
      %v2421 = vadd.f32 %v2036, %v2420
      %2422 = vdwg.mxu0
      %2423 = vmatprep.subr.mxu0 0.0
      %v2424 = vand.u32 %v320, 4294901760
      %2425 = vmatpush1.xpose.msra.mxu0 %v2424
      %2426 = vmatprep.subr.mxu0 0.0
      %v2427 = vand.u32 %v317, 4294901760
      %2428 = vmatpush1.xpose.msra.mxu0 %v2427
      %2429 = vmatprep.subr.mxu0 0.0
      %v2430 = vand.u32 %v314, 4294901760
      %2431 = vmatpush1.xpose.msra.mxu0 %v2430
      %2432 = vmatprep.subr.mxu0 0.0
      %v2433 = vand.u32 %v311, 4294901760
      %2434 = vmatpush1.xpose.msra.mxu0 %v2433
      %2435 = vmatprep.subr.mxu0 0.0
      %v2436 = vand.u32 %v308, 4294901760
      %2437 = vmatpush1.xpose.msra.mxu0 %v2436
      %2438 = vmatprep.subr.mxu0 0.0
      %v2439 = vand.u32 %v305, 4294901760
      %2440 = vmatpush1.xpose.msra.mxu0 %v2439
      %2441 = vmatprep.subr.mxu0 0.0
      %v2442 = vand.u32 %v302, 4294901760
      %2443 = vmatpush1.xpose.msra.mxu0 %v2442
      %2444 = vmatprep.subr.mxu0 0.0
      %v2445 = vand.u32 %v299, 4294901760
      %2446 = vmatpush1.xpose.msra.mxu0 %v2445
      %2447 = vmatprep.subr.mxu0 0.0
      %v2448 = vand.u32 %v296, 4294901760
      %2449 = vmatpush1.xpose.msra.mxu0 %v2448
      %2450 = vmatprep.subr.mxu0 0.0
      %v2451 = vand.u32 %v293, 4294901760
      %2452 = vmatpush1.xpose.msra.mxu0 %v2451
      %2453 = vmatprep.subr.mxu0 0.0
      %v2454 = vand.u32 %v290, 4294901760
      %2455 = vmatpush1.xpose.msra.mxu0 %v2454
      %2456 = vmatprep.subr.mxu0 0.0
      %v2457 = vand.u32 %v287, 4294901760
      %2458 = vmatpush1.xpose.msra.mxu0 %v2457
      %2459 = vmatprep.subr.mxu0 0.0
      %v2460 = vand.u32 %v284, 4294901760
      %2461 = vmatpush1.xpose.msra.mxu0 %v2460
      %2462 = vmatprep.subr.mxu0 0.0
      %v2463 = vand.u32 %v281, 4294901760
      %2464 = vmatpush1.xpose.msra.mxu0 %v2463
      %2465 = vmatprep.subr.mxu0 0.0
      %v2466 = vand.u32 %v278, 4294901760
      %2467 = vmatpush1.xpose.msra.mxu0 %v2466
      %2468 = vmatprep.subr.mxu0 0.0
      %v2469 = vand.u32 %v275, 4294901760
      %2470 = vmatpush1.xpose.msra.mxu0 %v2469
      %2471 = vmatprep.subr.mxu0 0.0
      %v2472 = vand.u32 %v368, 4294901760
      %2473 = vmatpush2.xpose.msra.mxu0 %v2472
      %2474 = vmatprep.subr.mxu0 0.0
      %v2475 = vand.u32 %v365, 4294901760
      %2476 = vmatpush2.xpose.msra.mxu0 %v2475
      %2477 = vmatprep.subr.mxu0 0.0
      %v2478 = vand.u32 %v362, 4294901760
      %2479 = vmatpush2.xpose.msra.mxu0 %v2478
      %2480 = vmatprep.subr.mxu0 0.0
      %v2481 = vand.u32 %v359, 4294901760
      %2482 = vmatpush2.xpose.msra.mxu0 %v2481
      %2483 = vmatprep.subr.mxu0 0.0
      %v2484 = vand.u32 %v356, 4294901760
      %2485 = vmatpush2.xpose.msra.mxu0 %v2484
      %2486 = vmatprep.subr.mxu0 0.0
      %v2487 = vand.u32 %v353, 4294901760
      %2488 = vmatpush2.xpose.msra.mxu0 %v2487
      %2489 = vmatprep.subr.mxu0 0.0
      %v2490 = vand.u32 %v350, 4294901760
      %2491 = vmatpush2.xpose.msra.mxu0 %v2490
      %2492 = vmatprep.subr.mxu0 0.0
      %v2493 = vand.u32 %v347, 4294901760
      %2494 = vmatpush2.xpose.msra.mxu0 %v2493
      %2495 = vmatprep.subr.mxu0 0.0
      %v2496 = vand.u32 %v344, 4294901760
      %2497 = vmatpush2.xpose.msra.mxu0 %v2496
      %2498 = vmatprep.subr.mxu0 0.0
      %v2499 = vand.u32 %v341, 4294901760
      %2500 = vmatpush2.xpose.msra.mxu0 %v2499
      %2501 = vmatprep.subr.mxu0 0.0
      %v2502 = vand.u32 %v338, 4294901760
      %2503 = vmatpush2.xpose.msra.mxu0 %v2502
      %2504 = vmatprep.subr.mxu0 0.0
      %v2505 = vand.u32 %v335, 4294901760
      %2506 = vmatpush2.xpose.msra.mxu0 %v2505
      %2507 = vmatprep.subr.mxu0 0.0
      %v2508 = vand.u32 %v332, 4294901760
      %2509 = vmatpush2.xpose.msra.mxu0 %v2508
      %2510 = vmatprep.subr.mxu0 0.0
      %v2511 = vand.u32 %v329, 4294901760
      %2512 = vmatpush2.xpose.msra.mxu0 %v2511
      %2513 = vmatprep.subr.mxu0 0.0
      %v2514 = vand.u32 %v326, 4294901760
      %2515 = vmatpush2.xpose.msra.mxu0 %v2514
      %2516 = vmatprep.subr.mxu0 0.0
      %v2517 = vand.u32 %v323, 4294901760
      %2518 = vmatpush2.xpose.msra.mxu0 %v2517
      %2519 = vmatprep.mubr.f32.mxu0 0.0
      %v2520 = vand.u32 %v275, 4294901760
      %2521 = vmatmul.mubr.f32.gmra.mxu0 %v2520
      %v2522 = vpop.f32.mrf.mxu0
      %v2523 = vadd.f32 %v2202, %v2522
      %v2524 = vpop.f32.mrf.mxu0
      %v2525 = vadd.f32 %v2204, %v2524
      %2526 = vmatprep.mubr.f32.mxu0 0.0
      %v2527 = vand.u32 %v278, 4294901760
      %2528 = vmatmul.mubr.f32.gmra.mxu0 %v2527
      %v2529 = vpop.f32.mrf.mxu0
      %v2530 = vadd.f32 %v2209, %v2529
      %v2531 = vpop.f32.mrf.mxu0
      %v2532 = vadd.f32 %v2211, %v2531
      %2533 = vmatprep.mubr.f32.mxu0 0.0
      %v2534 = vand.u32 %v281, 4294901760
      %2535 = vmatmul.mubr.f32.gmra.mxu0 %v2534
      %v2536 = vpop.f32.mrf.mxu0
      %v2537 = vadd.f32 %v2216, %v2536
      %v2538 = vpop.f32.mrf.mxu0
      %v2539 = vadd.f32 %v2218, %v2538
      %2540 = vmatprep.mubr.f32.mxu0 0.0
      %v2541 = vand.u32 %v284, 4294901760
      %2542 = vmatmul.mubr.f32.gmra.mxu0 %v2541
      %v2543 = vpop.f32.mrf.mxu0
      %v2544 = vadd.f32 %v2223, %v2543
      %v2545 = vpop.f32.mrf.mxu0
      %v2546 = vadd.f32 %v2225, %v2545
      %2547 = vmatprep.mubr.f32.mxu0 0.0
      %v2548 = vand.u32 %v287, 4294901760
      %2549 = vmatmul.mubr.f32.gmra.mxu0 %v2548
      %v2550 = vpop.f32.mrf.mxu0
      %v2551 = vadd.f32 %v2230, %v2550
      %v2552 = vpop.f32.mrf.mxu0
      %v2553 = vadd.f32 %v2232, %v2552
      %2554 = vmatprep.mubr.f32.mxu0 0.0
      %v2555 = vand.u32 %v290, 4294901760
      %2556 = vmatmul.mubr.f32.gmra.mxu0 %v2555
      %v2557 = vpop.f32.mrf.mxu0
      %v2558 = vadd.f32 %v2237, %v2557
      %v2559 = vpop.f32.mrf.mxu0
      %v2560 = vadd.f32 %v2239, %v2559
      %2561 = vmatprep.mubr.f32.mxu0 0.0
      %v2562 = vand.u32 %v293, 4294901760
      %2563 = vmatmul.mubr.f32.gmra.mxu0 %v2562
      %v2564 = vpop.f32.mrf.mxu0
      %v2565 = vadd.f32 %v2244, %v2564
      %v2566 = vpop.f32.mrf.mxu0
      %v2567 = vadd.f32 %v2246, %v2566
      %2568 = vmatprep.mubr.f32.mxu0 0.0
      %v2569 = vand.u32 %v296, 4294901760
      %2570 = vmatmul.mubr.f32.gmra.mxu0 %v2569
      %v2571 = vpop.f32.mrf.mxu0
      %v2572 = vadd.f32 %v2251, %v2571
      %v2573 = vpop.f32.mrf.mxu0
      %v2574 = vadd.f32 %v2253, %v2573
      %2575 = vmatprep.mubr.f32.mxu0 0.0
      %v2576 = vand.u32 %v299, 4294901760
      %2577 = vmatmul.mubr.f32.gmra.mxu0 %v2576
      %v2578 = vpop.f32.mrf.mxu0
      %v2579 = vadd.f32 %v2258, %v2578
      %v2580 = vpop.f32.mrf.mxu0
      %v2581 = vadd.f32 %v2260, %v2580
      %2582 = vmatprep.mubr.f32.mxu0 0.0
      %v2583 = vand.u32 %v302, 4294901760
      %2584 = vmatmul.mubr.f32.gmra.mxu0 %v2583
      %v2585 = vpop.f32.mrf.mxu0
      %v2586 = vadd.f32 %v2265, %v2585
      %v2587 = vpop.f32.mrf.mxu0
      %v2588 = vadd.f32 %v2267, %v2587
      %2589 = vmatprep.mubr.f32.mxu0 0.0
      %v2590 = vand.u32 %v305, 4294901760
      %2591 = vmatmul.mubr.f32.gmra.mxu0 %v2590
      %v2592 = vpop.f32.mrf.mxu0
      %v2593 = vadd.f32 %v2272, %v2592
      %v2594 = vpop.f32.mrf.mxu0
      %v2595 = vadd.f32 %v2274, %v2594
      %2596 = vmatprep.mubr.f32.mxu0 0.0
      %v2597 = vand.u32 %v308, 4294901760
      %2598 = vmatmul.mubr.f32.gmra.mxu0 %v2597
      %v2599 = vpop.f32.mrf.mxu0
      %v2600 = vadd.f32 %v2279, %v2599
      %v2601 = vpop.f32.mrf.mxu0
      %v2602 = vadd.f32 %v2281, %v2601
      %2603 = vmatprep.mubr.f32.mxu0 0.0
      %v2604 = vand.u32 %v311, 4294901760
      %2605 = vmatmul.mubr.f32.gmra.mxu0 %v2604
      %v2606 = vpop.f32.mrf.mxu0
      %v2607 = vadd.f32 %v2286, %v2606
      %v2608 = vpop.f32.mrf.mxu0
      %v2609 = vadd.f32 %v2288, %v2608
      %2610 = vmatprep.mubr.f32.mxu0 0.0
      %v2611 = vand.u32 %v314, 4294901760
      %2612 = vmatmul.mubr.f32.gmra.mxu0 %v2611
      %v2613 = vpop.f32.mrf.mxu0
      %v2614 = vadd.f32 %v2293, %v2613
      %v2615 = vpop.f32.mrf.mxu0
      %v2616 = vadd.f32 %v2295, %v2615
      %2617 = vmatprep.mubr.f32.mxu0 0.0
      %v2618 = vand.u32 %v317, 4294901760
      %2619 = vmatmul.mubr.f32.gmra.mxu0 %v2618
      %v2620 = vpop.f32.mrf.mxu0
      %v2621 = vadd.f32 %v2300, %v2620
      %v2622 = vpop.f32.mrf.mxu0
      %v2623 = vadd.f32 %v2302, %v2622
      %2624 = vmatprep.mubr.f32.mxu0 0.0
      %v2625 = vand.u32 %v320, 4294901760
      %2626 = vmatmul.mubr.f32.gmra.mxu0 %v2625
      %v2627 = vpop.f32.mrf.mxu0
      %v2628 = vadd.f32 %v2307, %v2627
      %v2629 = vpop.f32.mrf.mxu0
      %v2630 = vadd.f32 %v2309, %v2629
      %2631 = vmatprep.mubr.f32.mxu0 0.0
      %v2632 = vand.u32 %v323, 4294901760
      %2633 = vmatmul.mubr.f32.gmra.mxu0 %v2632
      %v2634 = vpop.f32.mrf.mxu0
      %v2635 = vadd.f32 %v2314, %v2634
      %v2636 = vpop.f32.mrf.mxu0
      %v2637 = vadd.f32 %v2316, %v2636
      %2638 = vmatprep.mubr.f32.mxu0 0.0
      %v2639 = vand.u32 %v326, 4294901760
      %2640 = vmatmul.mubr.f32.gmra.mxu0 %v2639
      %v2641 = vpop.f32.mrf.mxu0
      %v2642 = vadd.f32 %v2321, %v2641
      %v2643 = vpop.f32.mrf.mxu0
      %v2644 = vadd.f32 %v2323, %v2643
      %2645 = vmatprep.mubr.f32.mxu0 0.0
      %v2646 = vand.u32 %v329, 4294901760
      %2647 = vmatmul.mubr.f32.gmra.mxu0 %v2646
      %v2648 = vpop.f32.mrf.mxu0
      %v2649 = vadd.f32 %v2328, %v2648
      %v2650 = vpop.f32.mrf.mxu0
      %v2651 = vadd.f32 %v2330, %v2650
      %2652 = vmatprep.mubr.f32.mxu0 0.0
      %v2653 = vand.u32 %v332, 4294901760
      %2654 = vmatmul.mubr.f32.gmra.mxu0 %v2653
      %v2655 = vpop.f32.mrf.mxu0
      %v2656 = vadd.f32 %v2335, %v2655
      %v2657 = vpop.f32.mrf.mxu0
      %v2658 = vadd.f32 %v2337, %v2657
      %2659 = vmatprep.mubr.f32.mxu0 0.0
      %v2660 = vand.u32 %v335, 4294901760
      %2661 = vmatmul.mubr.f32.gmra.mxu0 %v2660
      %v2662 = vpop.f32.mrf.mxu0
      %v2663 = vadd.f32 %v2342, %v2662
      %v2664 = vpop.f32.mrf.mxu0
      %v2665 = vadd.f32 %v2344, %v2664
      %2666 = vmatprep.mubr.f32.mxu0 0.0
      %v2667 = vand.u32 %v338, 4294901760
      %2668 = vmatmul.mubr.f32.gmra.mxu0 %v2667
      %v2669 = vpop.f32.mrf.mxu0
      %v2670 = vadd.f32 %v2349, %v2669
      %v2671 = vpop.f32.mrf.mxu0
      %v2672 = vadd.f32 %v2351, %v2671
      %2673 = vmatprep.mubr.f32.mxu0 0.0
      %v2674 = vand.u32 %v341, 4294901760
      %2675 = vmatmul.mubr.f32.gmra.mxu0 %v2674
      %v2676 = vpop.f32.mrf.mxu0
      %v2677 = vadd.f32 %v2356, %v2676
      %v2678 = vpop.f32.mrf.mxu0
      %v2679 = vadd.f32 %v2358, %v2678
      %2680 = vmatprep.mubr.f32.mxu0 0.0
      %v2681 = vand.u32 %v344, 4294901760
      %2682 = vmatmul.mubr.f32.gmra.mxu0 %v2681
      %v2683 = vpop.f32.mrf.mxu0
      %v2684 = vadd.f32 %v2363, %v2683
      %v2685 = vpop.f32.mrf.mxu0
      %v2686 = vadd.f32 %v2365, %v2685
      %2687 = vmatprep.mubr.f32.mxu0 0.0
      %v2688 = vand.u32 %v347, 4294901760
      %2689 = vmatmul.mubr.f32.gmra.mxu0 %v2688
      %v2690 = vpop.f32.mrf.mxu0
      %v2691 = vadd.f32 %v2370, %v2690
      %v2692 = vpop.f32.mrf.mxu0
      %v2693 = vadd.f32 %v2372, %v2692
      %2694 = vmatprep.mubr.f32.mxu0 0.0
      %v2695 = vand.u32 %v350, 4294901760
      %2696 = vmatmul.mubr.f32.gmra.mxu0 %v2695
      %v2697 = vpop.f32.mrf.mxu0
      %v2698 = vadd.f32 %v2377, %v2697
      %v2699 = vpop.f32.mrf.mxu0
      %v2700 = vadd.f32 %v2379, %v2699
      %2701 = vmatprep.mubr.f32.mxu0 0.0
      %v2702 = vand.u32 %v353, 4294901760
      %2703 = vmatmul.mubr.f32.gmra.mxu0 %v2702
      %v2704 = vpop.f32.mrf.mxu0
      %v2705 = vadd.f32 %v2384, %v2704
      %v2706 = vpop.f32.mrf.mxu0
      %v2707 = vadd.f32 %v2386, %v2706
      %2708 = vmatprep.mubr.f32.mxu0 0.0
      %v2709 = vand.u32 %v356, 4294901760
      %2710 = vmatmul.mubr.f32.gmra.mxu0 %v2709
      %v2711 = vpop.f32.mrf.mxu0
      %v2712 = vadd.f32 %v2391, %v2711
      %v2713 = vpop.f32.mrf.mxu0
      %v2714 = vadd.f32 %v2393, %v2713
      %2715 = vmatprep.mubr.f32.mxu0 0.0
      %v2716 = vand.u32 %v359, 4294901760
      %2717 = vmatmul.mubr.f32.gmra.mxu0 %v2716
      %v2718 = vpop.f32.mrf.mxu0
      %v2719 = vadd.f32 %v2398, %v2718
      %v2720 = vpop.f32.mrf.mxu0
      %v2721 = vadd.f32 %v2400, %v2720
      %2722 = vmatprep.mubr.f32.mxu0 0.0
      %v2723 = vand.u32 %v362, 4294901760
      %2724 = vmatmul.mubr.f32.gmra.mxu0 %v2723
      %v2725 = vpop.f32.mrf.mxu0
      %v2726 = vadd.f32 %v2405, %v2725
      %v2727 = vpop.f32.mrf.mxu0
      %v2728 = vadd.f32 %v2407, %v2727
      %2729 = vmatprep.mubr.f32.mxu0 0.0
      %v2730 = vand.u32 %v365, 4294901760
      %2731 = vmatmul.mubr.f32.gmra.mxu0 %v2730
      %v2732 = vpop.f32.mrf.mxu0
      %v2733 = vadd.f32 %v2412, %v2732
      %v2734 = vpop.f32.mrf.mxu0
      %v2735 = vadd.f32 %v2414, %v2734
      %2736 = vmatprep.mubr.f32.mxu0 0.0
      %v2737 = vand.u32 %v368, 4294901760
      %2738 = vmatmul.mubr.f32.gmra.mxu0 %v2737
      %v2739 = vpop.f32.mrf.mxu0
      %v2740 = vadd.f32 %v2419, %v2739
      %v2741 = vpop.f32.mrf.mxu0
      %v2742 = vadd.f32 %v2421, %v2741
      %2743 = vdwg.mxu0
      %2744 = vxpose.xlu0.b32.start [1/16] %v180, 128
      %2745 = vxpose.xlu0.b32.cont [2/16] %v183, 128
      %2746 = vxpose.xlu0.b32.cont [3/16] %v186, 128
      %2747 = vxpose.xlu0.b32.cont [4/16] %v189, 128
      %2748 = vxpose.xlu0.b32.cont [5/16] %v192, 128
      %2749 = vxpose.xlu0.b32.cont [6/16] %v195, 128
      %2750 = vxpose.xlu0.b32.cont [7/16] %v198, 128
      %2751 = vxpose.xlu0.b32.cont [8/16] %v201, 128
      %2752 = vxpose.xlu0.b32.cont [9/16] %v204, 128
      %2753 = vxpose.xlu0.b32.cont [10/16] %v207, 128
      %2754 = vxpose.xlu0.b32.cont [11/16] %v210, 128
      %2755 = vxpose.xlu0.b32.cont [12/16] %v213, 128
      %2756 = vxpose.xlu0.b32.cont [13/16] %v216, 128
      %2757 = vxpose.xlu0.b32.cont [14/16] %v219, 128
      %2758 = vxpose.xlu0.b32.cont [15/16] %v222, 128
      %2759 = vxpose.xlu0.b32.end [16/16] %v225, 128
      %v2760 = vpop.trf.xlu0
      %v2761 = vpop.trf.xlu0
      %v2762 = vpop.trf.xlu0
      %v2763 = vpop.trf.xlu0
      %v2764 = vpop.trf.xlu0
      %v2765 = vpop.trf.xlu0
      %v2766 = vpop.trf.xlu0
      %v2767 = vpop.trf.xlu0
      %v2768 = vpop.trf.xlu0
      %v2769 = vpop.trf.xlu0
      %v2770 = vpop.trf.xlu0
      %v2771 = vpop.trf.xlu0
      %v2772 = vpop.trf.xlu0
      %v2773 = vpop.trf.xlu0
      %v2774 = vpop.trf.xlu0
      %v2775 = vpop.trf.xlu0
      %2776 = vxpose.xlu0.b32.start [1/16] %v228, 128
      %2777 = vxpose.xlu0.b32.cont [2/16] %v231, 128
      %2778 = vxpose.xlu0.b32.cont [3/16] %v234, 128
      %2779 = vxpose.xlu0.b32.cont [4/16] %v237, 128
      %2780 = vxpose.xlu0.b32.cont [5/16] %v240, 128
      %2781 = vxpose.xlu0.b32.cont [6/16] %v243, 128
      %2782 = vxpose.xlu0.b32.cont [7/16] %v246, 128
      %2783 = vxpose.xlu0.b32.cont [8/16] %v249, 128
      %2784 = vxpose.xlu0.b32.cont [9/16] %v252, 128
      %2785 = vxpose.xlu0.b32.cont [10/16] %v255, 128
      %2786 = vxpose.xlu0.b32.cont [11/16] %v258, 128
      %2787 = vxpose.xlu0.b32.cont [12/16] %v261, 128
      %2788 = vxpose.xlu0.b32.cont [13/16] %v264, 128
      %2789 = vxpose.xlu0.b32.cont [14/16] %v267, 128
      %2790 = vxpose.xlu0.b32.cont [15/16] %v270, 128
      %2791 = vxpose.xlu0.b32.end [16/16] %v273, 128
      %v2792 = vpop.trf.xlu0
      %v2793 = vpop.trf.xlu0
      %v2794 = vpop.trf.xlu0
      %v2795 = vpop.trf.xlu0
      %v2796 = vpop.trf.xlu0
      %v2797 = vpop.trf.xlu0
      %v2798 = vpop.trf.xlu0
      %v2799 = vpop.trf.xlu0
      %v2800 = vpop.trf.xlu0
      %v2801 = vpop.trf.xlu0
      %v2802 = vpop.trf.xlu0
      %v2803 = vpop.trf.xlu0
      %v2804 = vpop.trf.xlu0
      %v2805 = vpop.trf.xlu0
      %v2806 = vpop.trf.xlu0
      %v2807 = vpop.trf.xlu0
      %v2808 = vlaneseq
      %v2809 = vshrl.u32 %v2808, 7
      %v2810 = vsub.s32 0, %v2809
      %v2811 = vrot.slane %v2760, %v2810
      %v2812 = vlaneseq
      %v2813 = vshrl.u32 %v2812, 7
      %v2814 = vsub.s32 0, %v2813
      %v2815 = vrot.slane %v2792, %v2814
      %v2816 = vadd.f32 %v180, %v2811
      %v2817 = vadd.f32 %v180, %v2815
      %v2818 = vadd.f32 %v183, %v2811
      %v2819 = vadd.f32 %v183, %v2815
      %v2820 = vadd.f32 %v186, %v2811
      %v2821 = vadd.f32 %v186, %v2815
      %v2822 = vadd.f32 %v189, %v2811
      %v2823 = vadd.f32 %v189, %v2815
      %v2824 = vadd.f32 %v192, %v2811
      %v2825 = vadd.f32 %v192, %v2815
      %v2826 = vadd.f32 %v195, %v2811
      %v2827 = vadd.f32 %v195, %v2815
      %v2828 = vadd.f32 %v198, %v2811
      %v2829 = vadd.f32 %v198, %v2815
      %v2830 = vadd.f32 %v201, %v2811
      %v2831 = vadd.f32 %v201, %v2815
      %v2832 = vadd.f32 %v204, %v2811
      %v2833 = vadd.f32 %v204, %v2815
      %v2834 = vadd.f32 %v207, %v2811
      %v2835 = vadd.f32 %v207, %v2815
      %v2836 = vadd.f32 %v210, %v2811
      %v2837 = vadd.f32 %v210, %v2815
      %v2838 = vadd.f32 %v213, %v2811
      %v2839 = vadd.f32 %v213, %v2815
      %v2840 = vadd.f32 %v216, %v2811
      %v2841 = vadd.f32 %v216, %v2815
      %v2842 = vadd.f32 %v219, %v2811
      %v2843 = vadd.f32 %v219, %v2815
      %v2844 = vadd.f32 %v222, %v2811
      %v2845 = vadd.f32 %v222, %v2815
      %v2846 = vadd.f32 %v225, %v2811
      %v2847 = vadd.f32 %v225, %v2815
      %v2848 = vadd.f32 %v228, %v2811
      %v2849 = vadd.f32 %v228, %v2815
      %v2850 = vadd.f32 %v231, %v2811
      %v2851 = vadd.f32 %v231, %v2815
      %v2852 = vadd.f32 %v234, %v2811
      %v2853 = vadd.f32 %v234, %v2815
      %v2854 = vadd.f32 %v237, %v2811
      %v2855 = vadd.f32 %v237, %v2815
      %v2856 = vadd.f32 %v240, %v2811
      %v2857 = vadd.f32 %v240, %v2815
      %v2858 = vadd.f32 %v243, %v2811
      %v2859 = vadd.f32 %v243, %v2815
      %v2860 = vadd.f32 %v246, %v2811
      %v2861 = vadd.f32 %v246, %v2815
      %v2862 = vadd.f32 %v249, %v2811
      %v2863 = vadd.f32 %v249, %v2815
      %v2864 = vadd.f32 %v252, %v2811
      %v2865 = vadd.f32 %v252, %v2815
      %v2866 = vadd.f32 %v255, %v2811
      %v2867 = vadd.f32 %v255, %v2815
      %v2868 = vadd.f32 %v258, %v2811
      %v2869 = vadd.f32 %v258, %v2815
      %v2870 = vadd.f32 %v261, %v2811
      %v2871 = vadd.f32 %v261, %v2815
      %v2872 = vadd.f32 %v264, %v2811
      %v2873 = vadd.f32 %v264, %v2815
      %v2874 = vadd.f32 %v267, %v2811
      %v2875 = vadd.f32 %v267, %v2815
      %v2876 = vadd.f32 %v270, %v2811
      %v2877 = vadd.f32 %v270, %v2815
      %v2878 = vadd.f32 %v273, %v2811
      %v2879 = vadd.f32 %v273, %v2815
      %v2880 = vmul.f32 %v2523, 2.0
      %v2881 = vmul.f32 %v2525, 2.0
      %v2882 = vmul.f32 %v2530, 2.0
      %v2883 = vmul.f32 %v2532, 2.0
      %v2884 = vmul.f32 %v2537, 2.0
      %v2885 = vmul.f32 %v2539, 2.0
      %v2886 = vmul.f32 %v2544, 2.0
      %v2887 = vmul.f32 %v2546, 2.0
      %v2888 = vmul.f32 %v2551, 2.0
      %v2889 = vmul.f32 %v2553, 2.0
      %v2890 = vmul.f32 %v2558, 2.0
      %v2891 = vmul.f32 %v2560, 2.0
      %v2892 = vmul.f32 %v2565, 2.0
      %v2893 = vmul.f32 %v2567, 2.0
      %v2894 = vmul.f32 %v2572, 2.0
      %v2895 = vmul.f32 %v2574, 2.0
      %v2896 = vmul.f32 %v2579, 2.0
      %v2897 = vmul.f32 %v2581, 2.0
      %v2898 = vmul.f32 %v2586, 2.0
      %v2899 = vmul.f32 %v2588, 2.0
      %v2900 = vmul.f32 %v2593, 2.0
      %v2901 = vmul.f32 %v2595, 2.0
      %v2902 = vmul.f32 %v2600, 2.0
      %v2903 = vmul.f32 %v2602, 2.0
      %v2904 = vmul.f32 %v2607, 2.0
      %v2905 = vmul.f32 %v2609, 2.0
      %v2906 = vmul.f32 %v2614, 2.0
      %v2907 = vmul.f32 %v2616, 2.0
      %v2908 = vmul.f32 %v2621, 2.0
      %v2909 = vmul.f32 %v2623, 2.0
      %v2910 = vmul.f32 %v2628, 2.0
      %v2911 = vmul.f32 %v2630, 2.0
      %v2912 = vmul.f32 %v2635, 2.0
      %v2913 = vmul.f32 %v2637, 2.0
      %v2914 = vmul.f32 %v2642, 2.0
      %v2915 = vmul.f32 %v2644, 2.0
      %v2916 = vmul.f32 %v2649, 2.0
      %v2917 = vmul.f32 %v2651, 2.0
      %v2918 = vmul.f32 %v2656, 2.0
      %v2919 = vmul.f32 %v2658, 2.0
      %v2920 = vmul.f32 %v2663, 2.0
      %v2921 = vmul.f32 %v2665, 2.0
      %v2922 = vmul.f32 %v2670, 2.0
      %v2923 = vmul.f32 %v2672, 2.0
      %v2924 = vmul.f32 %v2677, 2.0
      %v2925 = vmul.f32 %v2679, 2.0
      %v2926 = vmul.f32 %v2684, 2.0
      %v2927 = vmul.f32 %v2686, 2.0
      %v2928 = vmul.f32 %v2691, 2.0
      %v2929 = vmul.f32 %v2693, 2.0
      %v2930 = vmul.f32 %v2698, 2.0
      %v2931 = vmul.f32 %v2700, 2.0
      %v2932 = vmul.f32 %v2705, 2.0
      %v2933 = vmul.f32 %v2707, 2.0
      %v2934 = vmul.f32 %v2712, 2.0
      %v2935 = vmul.f32 %v2714, 2.0
      %v2936 = vmul.f32 %v2719, 2.0
      %v2937 = vmul.f32 %v2721, 2.0
      %v2938 = vmul.f32 %v2726, 2.0
      %v2939 = vmul.f32 %v2728, 2.0
      %v2940 = vmul.f32 %v2733, 2.0
      %v2941 = vmul.f32 %v2735, 2.0
      %v2942 = vmul.f32 %v2740, 2.0
      %v2943 = vmul.f32 %v2742, 2.0
      %v2944 = vsub.f32 %v2816, %v2880
      %v2945 = vsub.f32 %v2817, %v2881
      %v2946 = vsub.f32 %v2818, %v2882
      %v2947 = vsub.f32 %v2819, %v2883
      %v2948 = vsub.f32 %v2820, %v2884
      %v2949 = vsub.f32 %v2821, %v2885
      %v2950 = vsub.f32 %v2822, %v2886
      %v2951 = vsub.f32 %v2823, %v2887
      %v2952 = vsub.f32 %v2824, %v2888
      %v2953 = vsub.f32 %v2825, %v2889
      %v2954 = vsub.f32 %v2826, %v2890
      %v2955 = vsub.f32 %v2827, %v2891
      %v2956 = vsub.f32 %v2828, %v2892
      %v2957 = vsub.f32 %v2829, %v2893
      %v2958 = vsub.f32 %v2830, %v2894
      %v2959 = vsub.f32 %v2831, %v2895
      %v2960 = vsub.f32 %v2832, %v2896
      %v2961 = vsub.f32 %v2833, %v2897
      %v2962 = vsub.f32 %v2834, %v2898
      %v2963 = vsub.f32 %v2835, %v2899
      %v2964 = vsub.f32 %v2836, %v2900
      %v2965 = vsub.f32 %v2837, %v2901
      %v2966 = vsub.f32 %v2838, %v2902
      %v2967 = vsub.f32 %v2839, %v2903
      %v2968 = vsub.f32 %v2840, %v2904
      %v2969 = vsub.f32 %v2841, %v2905
      %v2970 = vsub.f32 %v2842, %v2906
      %v2971 = vsub.f32 %v2843, %v2907
      %v2972 = vsub.f32 %v2844, %v2908
      %v2973 = vsub.f32 %v2845, %v2909
      %v2974 = vsub.f32 %v2846, %v2910
      %v2975 = vsub.f32 %v2847, %v2911
      %v2976 = vsub.f32 %v2848, %v2912
      %v2977 = vsub.f32 %v2849, %v2913
      %v2978 = vsub.f32 %v2850, %v2914
      %v2979 = vsub.f32 %v2851, %v2915
      %v2980 = vsub.f32 %v2852, %v2916
      %v2981 = vsub.f32 %v2853, %v2917
      %v2982 = vsub.f32 %v2854, %v2918
      %v2983 = vsub.f32 %v2855, %v2919
      %v2984 = vsub.f32 %v2856, %v2920
      %v2985 = vsub.f32 %v2857, %v2921
      %v2986 = vsub.f32 %v2858, %v2922
      %v2987 = vsub.f32 %v2859, %v2923
      %v2988 = vsub.f32 %v2860, %v2924
      %v2989 = vsub.f32 %v2861, %v2925
      %v2990 = vsub.f32 %v2862, %v2926
      %v2991 = vsub.f32 %v2863, %v2927
      %v2992 = vsub.f32 %v2864, %v2928
      %v2993 = vsub.f32 %v2865, %v2929
      %v2994 = vsub.f32 %v2866, %v2930
      %v2995 = vsub.f32 %v2867, %v2931
      %v2996 = vsub.f32 %v2868, %v2932
      %v2997 = vsub.f32 %v2869, %v2933
      %v2998 = vsub.f32 %v2870, %v2934
      %v2999 = vsub.f32 %v2871, %v2935
      %v3000 = vsub.f32 %v2872, %v2936
      %v3001 = vsub.f32 %v2873, %v2937
      %v3002 = vsub.f32 %v2874, %v2938
      %v3003 = vsub.f32 %v2875, %v2939
      %v3004 = vsub.f32 %v2876, %v2940
      %v3005 = vsub.f32 %v2877, %v2941
      %v3006 = vsub.f32 %v2878, %v2942
      %v3007 = vsub.f32 %v2879, %v2943
      %v3008 = vmax.f32 %v2944, %v2945
      %3009 = vmax.xlane.f32.xlu0 %v3008
      %v3010 = vpop.xlane.xlu0 %3009
      %v3011 = vmax.f32 %v2946, %v2947
      %3012 = vmax.xlane.f32.xlu0 %v3011
      %v3013 = vpop.xlane.xlu0 %3012
      %v3014 = vmax.f32 %v2948, %v2949
      %3015 = vmax.xlane.f32.xlu0 %v3014
      %v3016 = vpop.xlane.xlu0 %3015
      %v3017 = vmax.f32 %v2950, %v2951
      %3018 = vmax.xlane.f32.xlu0 %v3017
      %v3019 = vpop.xlane.xlu0 %3018
      %v3020 = vmax.f32 %v2952, %v2953
      %3021 = vmax.xlane.f32.xlu0 %v3020
      %v3022 = vpop.xlane.xlu0 %3021
      %v3023 = vmax.f32 %v2954, %v2955
      %3024 = vmax.xlane.f32.xlu0 %v3023
      %v3025 = vpop.xlane.xlu0 %3024
      %v3026 = vmax.f32 %v2956, %v2957
      %3027 = vmax.xlane.f32.xlu0 %v3026
      %v3028 = vpop.xlane.xlu0 %3027
      %v3029 = vmax.f32 %v2958, %v2959
      %3030 = vmax.xlane.f32.xlu0 %v3029
      %v3031 = vpop.xlane.xlu0 %3030
      %v3032 = vmax.f32 %v2960, %v2961
      %3033 = vmax.xlane.f32.xlu0 %v3032
      %v3034 = vpop.xlane.xlu0 %3033
      %v3035 = vmax.f32 %v2962, %v2963
      %3036 = vmax.xlane.f32.xlu0 %v3035
      %v3037 = vpop.xlane.xlu0 %3036
      %v3038 = vmax.f32 %v2964, %v2965
      %3039 = vmax.xlane.f32.xlu0 %v3038
      %v3040 = vpop.xlane.xlu0 %3039
      %v3041 = vmax.f32 %v2966, %v2967
      %3042 = vmax.xlane.f32.xlu0 %v3041
      %v3043 = vpop.xlane.xlu0 %3042
      %v3044 = vmax.f32 %v2968, %v2969
      %3045 = vmax.xlane.f32.xlu0 %v3044
      %v3046 = vpop.xlane.xlu0 %3045
      %v3047 = vmax.f32 %v2970, %v2971
      %3048 = vmax.xlane.f32.xlu0 %v3047
      %v3049 = vpop.xlane.xlu0 %3048
      %v3050 = vmax.f32 %v2972, %v2973
      %3051 = vmax.xlane.f32.xlu0 %v3050
      %v3052 = vpop.xlane.xlu0 %3051
      %v3053 = vmax.f32 %v2974, %v2975
      %3054 = vmax.xlane.f32.xlu0 %v3053
      %v3055 = vpop.xlane.xlu0 %3054
      %v3056 = vmax.f32 %v2976, %v2977
      %3057 = vmax.xlane.f32.xlu0 %v3056
      %v3058 = vpop.xlane.xlu0 %3057
      %v3059 = vmax.f32 %v2978, %v2979
      %3060 = vmax.xlane.f32.xlu0 %v3059
      %v3061 = vpop.xlane.xlu0 %3060
      %v3062 = vmax.f32 %v2980, %v2981
      %3063 = vmax.xlane.f32.xlu0 %v3062
      %v3064 = vpop.xlane.xlu0 %3063
      %v3065 = vmax.f32 %v2982, %v2983
      %3066 = vmax.xlane.f32.xlu0 %v3065
      %v3067 = vpop.xlane.xlu0 %3066
      %v3068 = vmax.f32 %v2984, %v2985
      %3069 = vmax.xlane.f32.xlu0 %v3068
      %v3070 = vpop.xlane.xlu0 %3069
      %v3071 = vmax.f32 %v2986, %v2987
      %3072 = vmax.xlane.f32.xlu0 %v3071
      %v3073 = vpop.xlane.xlu0 %3072
      %v3074 = vmax.f32 %v2988, %v2989
      %3075 = vmax.xlane.f32.xlu0 %v3074
      %v3076 = vpop.xlane.xlu0 %3075
      %v3077 = vmax.f32 %v2990, %v2991
      %3078 = vmax.xlane.f32.xlu0 %v3077
      %v3079 = vpop.xlane.xlu0 %3078
      %v3080 = vmax.f32 %v2992, %v2993
      %3081 = vmax.xlane.f32.xlu0 %v3080
      %v3082 = vpop.xlane.xlu0 %3081
      %v3083 = vmax.f32 %v2994, %v2995
      %3084 = vmax.xlane.f32.xlu0 %v3083
      %v3085 = vpop.xlane.xlu0 %3084
      %v3086 = vmax.f32 %v2996, %v2997
      %3087 = vmax.xlane.f32.xlu0 %v3086
      %v3088 = vpop.xlane.xlu0 %3087
      %v3089 = vmax.f32 %v2998, %v2999
      %3090 = vmax.xlane.f32.xlu0 %v3089
      %v3091 = vpop.xlane.xlu0 %3090
      %v3092 = vmax.f32 %v3000, %v3001
      %3093 = vmax.xlane.f32.xlu0 %v3092
      %v3094 = vpop.xlane.xlu0 %3093
      %v3095 = vmax.f32 %v3002, %v3003
      %3096 = vmax.xlane.f32.xlu0 %v3095
      %v3097 = vpop.xlane.xlu0 %3096
      %v3098 = vmax.f32 %v3004, %v3005
      %3099 = vmax.xlane.f32.xlu0 %v3098
      %v3100 = vpop.xlane.xlu0 %3099
      %v3101 = vmax.f32 %v3006, %v3007
      %3102 = vmax.xlane.f32.xlu0 %v3101
      %v3103 = vpop.xlane.xlu0 %3102
      %v3104 = vmax.f32 %v3010, %v3022
      %v3105 = vmax.f32 %v3013, %v3025
      %v3106 = vmax.f32 %v3016, %v3028
      %v3107 = vmax.f32 %v3019, %v3031
      %v3108 = vmax.f32 %v3104, %v3034
      %v3109 = vmax.f32 %v3105, %v3037
      %v3110 = vmax.f32 %v3106, %v3040
      %v3111 = vmax.f32 %v3107, %v3043
      %v3112 = vmax.f32 %v3108, %v3046
      %v3113 = vmax.f32 %v3109, %v3049
      %v3114 = vmax.f32 %v3110, %v3052
      %v3115 = vmax.f32 %v3111, %v3055
      %v3116 = vmax.f32 %v3112, %v3058
      %v3117 = vmax.f32 %v3113, %v3061
      %v3118 = vmax.f32 %v3114, %v3064
      %v3119 = vmax.f32 %v3115, %v3067
      %v3120 = vmax.f32 %v3116, %v3070
      %v3121 = vmax.f32 %v3117, %v3073
      %v3122 = vmax.f32 %v3118, %v3076
      %v3123 = vmax.f32 %v3119, %v3079
      %v3124 = vmax.f32 %v3120, %v3082
      %v3125 = vmax.f32 %v3121, %v3085
      %v3126 = vmax.f32 %v3122, %v3088
      %v3127 = vmax.f32 %v3123, %v3091
      %v3128 = vmax.f32 %v3124, %v3094
      %v3129 = vmax.f32 %v3125, %v3097
      %v3130 = vmax.f32 %v3126, %v3100
      %v3131 = vmax.f32 %v3127, %v3103
      %v3132 = vmax.f32 %v3128, %v3129
      %v3133 = vmax.f32 %v3130, %v3131
      %v3134 = vmax.f32 %v3132, %v3133
      %v3135 = vrot.slane %v3134, 4
      %v3136 = vmax.f32 %v3134, %v3135
      %v3137 = vrot.slane %v3136, 2
      %v3138 = vmax.f32 %v3136, %v3137
      %v3139 = vrot.slane %v3138, 1
      %v3140 = vmax.f32 %v3138, %v3139
      %v3141 = vmax.f32 %v3140, 0.0
      %vm3142 = vcmask 0
      %3143 = vst.msk [vmem:[%s112] sm:$0x1] %vm3142, %v3141
      %p3144 = scmp.lt.s32.totalorder %s12, 1
      %s3145 = scalar_select %p3144, %s12, 1
      %s3146 = scalar_lea.vmem %s1, %s3145
      // Predicated region
      $region25: #{custom_multiscale_forward.2} parent=23 // pred_check
        %p3147 = pneg %p56
      $region26: #{custom_multiscale_forward.2} parent=23 // pred_check_branch
        %3149 = sbr.rel (%p3147) target = $region28
      $region27: #{custom_multiscale_forward.2} parent=23 // pred_region
        _
      $region28: #{custom_multiscale_forward.2} parent=23 // pred_fallthru
        _
    $region24: #{custom_multiscale_forward.2} parent=5 // pred_fallthru
      _
    %p3150 = scmp.le.s32.totalorder 2, %s7
    // Predicated region
    $region29: #{custom_multiscale_forward.2} parent=5 // pred_check
      %p3151 = pneg %p3150
    $region30: #{custom_multiscale_forward.2} parent=5 // pred_check_branch
      %3153 = sbr.rel (%p3151) target = $region32
    $region31: #{custom_multiscale_forward.2} parent=5 // pred_region
      %s3154 = ssub.s32 %s7, 2
      // Predicated region
      $region33: #{custom_multiscale_forward.2} parent=31 // pred_check
        %p3155 = pneg %p62
      $region34: #{custom_multiscale_forward.2} parent=31 // pred_check_branch
        %3157 = sbr.rel (%p3155) target = $region36
      $region35: #{custom_multiscale_forward.2} parent=31 // pred_region
        %p3158 = scmp.lt.s32.totalorder %s13, 1
        %s3159 = scalar_select %p3158, %s13, 1
        %s3160 = scalar_lea.vmem %s1, %s3159
      $region36: #{custom_multiscale_forward.2} parent=31 // pred_fallthru
        _
    $region32: #{custom_multiscale_forward.2} parent=5 // pred_fallthru
      _
  $region6: #{custom_multiscale_forward.2} parent=0 // loop_footer
    %s11 = sadd.s32 1, %s7
  $region7: #{custom_multiscale_forward.2} parent=0 // loop_footer_branch
    %6 = sbr.rel target = $region3
  $region8: #{custom_multiscale_forward.2} parent=0 // loop_exit
    _

// kernel: custom_multiscale_forward.3
$region0: #{custom_multiscale_forward.3}
  #allocation0 [shape = 'u32[]', space=smem, size = 0x4, offset = 0x4, fixed_abs, tag = 'smem constant byte address 0x4 - core index']
  #allocation1 [shape = 'u32[144,128]{1,0:T(1,128)}', space=vmem, size = 0x12000, scoped, tag = 'internal scratch']
  #allocation2 [shape = 's32[1]{0}', space=sflag, size = 0x4, scoped, tag = 'scoped memory for custom_multiscale_forward.3']
  #allocation3 [shape = 'f32[1]{0:T(128)S(6)}', space=smem, size = 0x200, scoped, tag = 'prefetched SMEM operand 0']
  %s0 = inlined_call_operand.<no memory space> [shape: f32[1], index: 0, kind: input, shape index: {}]
  %s1 = inlined_call_operand.vmem [shape: f32[2,256,16], index: 1, kind: input, shape index: {}]
  %s2 = inlined_call_operand.vmem [shape: f32[16,256], index: 2, kind: input, shape index: {}]
  %s3 = inlined_call_operand.vmem [shape: f32[1,256], index: 3, kind: input, shape index: {}]
  %s4 = inlined_call_operand.vmem [shape: f32[1,256], index: 4, kind: input, shape index: {}]
  %s5 = inlined_call_operand.vmem [shape: f32[1,256], index: 5, kind: input, shape index: {}]
  %s6 = inlined_call_operand.vmem [shape: f32[256,256], index: 6, kind: input, shape index: {}]
  %s7 = inlined_call_operand.vmem [shape: f32[1,256], index: 7, kind: input, shape index: {}]
  %s8 = inlined_call_operand.vmem [shape: f32[1,256], index: 8, kind: input, shape index: {}]
  %s9 = inlined_call_operand.vmem [shape: f32[1,256], index: 9, kind: input, shape index: {}]
  %s10 = inlined_call_operand.vmem [shape: f32[256,128], index: 10, kind: input, shape index: {}]
  %s11 = inlined_call_operand.vmem [shape: f32[1,128], index: 11, kind: input, shape index: {}]
  %s12 = inlined_call_operand.vmem [shape: f32[2,256,128], index: 12, kind: output, shape index: {}]
  %s13 = sld [smem:[#allocation0]]
  $region77: #{custom_multiscale_forward.3} parent=0
    _
  %s15 = ssub.s32 1, %s13
  %s16 = scalar_select 0, %s15, %s13
  %17 = sst [smem:[#allocation3]] %s0
  loop: start=0, step=1, limit=4
  $region2: #{custom_multiscale_forward.3} parent=0 // loop_pre_header
    _
  $region3: #{custom_multiscale_forward.3} parent=0 // loop_header
    %s19 = sphi 0, %s23
    %p20 = scmp.ge.s32.totalorder %s19, 4
    %s29 = sphi 0, %s31
    %s32 = sphi 0, %s29
    %s33 = sphi 0, %s32
    %s49 = sphi 0, %s33
    %s53 = sphi 0, %s53
    %s55 = sphi 0, %s53
    %s56 = sphi 0, %s55
    %s70 = sphi 0, %s56
    %s74 = sphi 0, %s74
    %s76 = sphi 0, %s74
    %s77 = sphi 0, %s76
    %s91 = sphi 0, %s77
    %s95 = sphi 0, %s95
    %s97 = sphi 0, %s95
    %s98 = sphi 0, %s97
    %s112 = sphi 0, %s98
    %s116 = sphi 0, %s116
    %s118 = sphi 0, %s116
    %s119 = sphi 0, %s118
    %s133 = sphi 0, %s119
    %s137 = sphi 0, %s137
    %s139 = sphi 0, %s137
    %s140 = sphi 0, %s139
    %s154 = sphi 0, %s140
    %s158 = sphi 0, %s158
    %s160 = sphi 0, %s158
    %s161 = sphi 0, %s160
    %s175 = sphi 0, %s161
    %s179 = sphi 0, %s179
    %s181 = sphi 0, %s179
    %s182 = sphi 0, %s181
    %s196 = sphi 0, %s182
    %s200 = sphi 0, %s200
    %s202 = sphi 0, %s200
    %s203 = sphi 0, %s202
    %s217 = sphi 0, %s203
    %s221 = sphi 0, %s221
    %s223 = sphi 0, %s221
    %s224 = sphi 0, %s223
    %s238 = sphi 0, %s224
    %s242 = sphi 0, %s242
    %s244 = sphi 0, %s242
    %s245 = sphi 0, %s244
    %s259 = sphi 0, %s245
    %s265 = sphi 0, %s267
    %s268 = sphi 0, %s265
    %s269 = sphi 0, %s268
    %s285 = sphi 0, %s269
  $region4: #{custom_multiscale_forward.3} parent=0 // loop_header_branch
    %22 = sbr.rel (%p20) target = $region8
  $region5: #{custom_multiscale_forward.3} parent=0 // loop_body
    %s24 = ssub.s32 %s19, 1
    %s25 = ssub.s32 %s19, 2
    %s26 = sadd.s32 %s19, 1
    %s27 = ssub.s32 %s19, %s26
    %p28 = scmp.eq.s32.totalorder %s27, 0
    %s30 = sadd.s32 %s29, 1
    %s31 = scalar_select %p28, %s29, %s30
    %p34 = pneg %p28
    %p35 = scmp.eq.s32.totalorder %s19, 1
    %p36 = por %p34, %p35
    %p37 = scmp.ne.s32.totalorder %s29, %s32
    %p38 = scmp.eq.s32.totalorder %s19, 0
    %p39 = por %p37, %p38
    %p40 = scmp.ne.s32.totalorder %s29, %s32
    %p41 = scmp.eq.s32.totalorder %s24, 1
    %p42 = por %p40, %p41
    %p43 = scmp.ne.s32.totalorder %s32, %s33
    %p44 = scmp.eq.s32.totalorder %s24, 0
    %p45 = por %p43, %p44
    %p46 = scmp.ne.s32.totalorder %s32, %s33
    %p47 = scmp.eq.s32.totalorder %s25, 1
    %p48 = por %p46, %p47
    %p50 = scmp.ne.s32.totalorder %s33, %s49
    %p51 = scmp.eq.s32.totalorder %s25, 0
    %p52 = por %p50, %p51
    %s54 = sadd.s32 %s53, 1
    %p57 = scmp.eq.s32.totalorder %s19, 1
    %p58 = scmp.ne.s32.totalorder %s53, %s55
    %p59 = scmp.eq.s32.totalorder %s19, 0
    %p60 = por %p58, %p59
    %p61 = scmp.ne.s32.totalorder %s53, %s55
    %p62 = scmp.eq.s32.totalorder %s24, 1
    %p63 = por %p61, %p62
    %p64 = scmp.ne.s32.totalorder %s55, %s56
    %p65 = scmp.eq.s32.totalorder %s24, 0
    %p66 = por %p64, %p65
    %p67 = scmp.ne.s32.totalorder %s55, %s56
    %p68 = scmp.eq.s32.totalorder %s25, 1
    %p69 = por %p67, %p68
    %p71 = scmp.ne.s32.totalorder %s56, %s70
    %p72 = scmp.eq.s32.totalorder %s25, 0
    %p73 = por %p71, %p72
    %s75 = sadd.s32 %s74, 1
    %p78 = scmp.eq.s32.totalorder %s19, 1
    %p79 = scmp.ne.s32.totalorder %s74, %s76
    %p80 = scmp.eq.s32.totalorder %s19, 0
    %p81 = por %p79, %p80
    %p82 = scmp.ne.s32.totalorder %s74, %s76
    %p83 = scmp.eq.s32.totalorder %s24, 1
    %p84 = por %p82, %p83
    %p85 = scmp.ne.s32.totalorder %s76, %s77
    %p86 = scmp.eq.s32.totalorder %s24, 0
    %p87 = por %p85, %p86
    %p88 = scmp.ne.s32.totalorder %s76, %s77
    %p89 = scmp.eq.s32.totalorder %s25, 1
    %p90 = por %p88, %p89
    %p92 = scmp.ne.s32.totalorder %s77, %s91
    %p93 = scmp.eq.s32.totalorder %s25, 0
    %p94 = por %p92, %p93
    %s96 = sadd.s32 %s95, 1
    %p99 = scmp.eq.s32.totalorder %s19, 1
    %p100 = scmp.ne.s32.totalorder %s95, %s97
    %p101 = scmp.eq.s32.totalorder %s19, 0
    %p102 = por %p100, %p101
    %p103 = scmp.ne.s32.totalorder %s95, %s97
    %p104 = scmp.eq.s32.totalorder %s24, 1
    %p105 = por %p103, %p104
    %p106 = scmp.ne.s32.totalorder %s97, %s98
    %p107 = scmp.eq.s32.totalorder %s24, 0
    %p108 = por %p106, %p107
    %p109 = scmp.ne.s32.totalorder %s97, %s98
    %p110 = scmp.eq.s32.totalorder %s25, 1
    %p111 = por %p109, %p110
    %p113 = scmp.ne.s32.totalorder %s98, %s112
    %p114 = scmp.eq.s32.totalorder %s25, 0
    %p115 = por %p113, %p114
    %s117 = sadd.s32 %s116, 1
    %p120 = scmp.eq.s32.totalorder %s19, 1
    %p121 = scmp.ne.s32.totalorder %s116, %s118
    %p122 = scmp.eq.s32.totalorder %s19, 0
    %p123 = por %p121, %p122
    %p124 = scmp.ne.s32.totalorder %s116, %s118
    %p125 = scmp.eq.s32.totalorder %s24, 1
    %p126 = por %p124, %p125
    %p127 = scmp.ne.s32.totalorder %s118, %s119
    %p128 = scmp.eq.s32.totalorder %s24, 0
    %p129 = por %p127, %p128
    %p130 = scmp.ne.s32.totalorder %s118, %s119
    %p131 = scmp.eq.s32.totalorder %s25, 1
    %p132 = por %p130, %p131
    %p134 = scmp.ne.s32.totalorder %s119, %s133
    %p135 = scmp.eq.s32.totalorder %s25, 0
    %p136 = por %p134, %p135
    %s138 = sadd.s32 %s137, 1
    %p141 = scmp.eq.s32.totalorder %s19, 1
    %p142 = scmp.ne.s32.totalorder %s137, %s139
    %p143 = scmp.eq.s32.totalorder %s19, 0
    %p144 = por %p142, %p143
    %p145 = scmp.ne.s32.totalorder %s137, %s139
    %p146 = scmp.eq.s32.totalorder %s24, 1
    %p147 = por %p145, %p146
    %p148 = scmp.ne.s32.totalorder %s139, %s140
    %p149 = scmp.eq.s32.totalorder %s24, 0
    %p150 = por %p148, %p149
    %p151 = scmp.ne.s32.totalorder %s139, %s140
    %p152 = scmp.eq.s32.totalorder %s25, 1
    %p153 = por %p151, %p152
    %p155 = scmp.ne.s32.totalorder %s140, %s154
    %p156 = scmp.eq.s32.totalorder %s25, 0
    %p157 = por %p155, %p156
    %s159 = sadd.s32 %s158, 1
    %p162 = scmp.eq.s32.totalorder %s19, 1
    %p163 = scmp.ne.s32.totalorder %s158, %s160
    %p164 = scmp.eq.s32.totalorder %s19, 0
    %p165 = por %p163, %p164
    %p166 = scmp.ne.s32.totalorder %s158, %s160
    %p167 = scmp.eq.s32.totalorder %s24, 1
    %p168 = por %p166, %p167
    %p169 = scmp.ne.s32.totalorder %s160, %s161
    %p170 = scmp.eq.s32.totalorder %s24, 0
    %p171 = por %p169, %p170
    %p172 = scmp.ne.s32.totalorder %s160, %s161
    %p173 = scmp.eq.s32.totalorder %s25, 1
    %p174 = por %p172, %p173
    %p176 = scmp.ne.s32.totalorder %s161, %s175
    %p177 = scmp.eq.s32.totalorder %s25, 0
    %p178 = por %p176, %p177
    %s180 = sadd.s32 %s179, 1
    %p183 = scmp.eq.s32.totalorder %s19, 1
    %p184 = scmp.ne.s32.totalorder %s179, %s181
    %p185 = scmp.eq.s32.totalorder %s19, 0
    %p186 = por %p184, %p185
    %p187 = scmp.ne.s32.totalorder %s179, %s181
    %p188 = scmp.eq.s32.totalorder %s24, 1
    %p189 = por %p187, %p188
    %p190 = scmp.ne.s32.totalorder %s181, %s182
    %p191 = scmp.eq.s32.totalorder %s24, 0
    %p192 = por %p190, %p191
    %p193 = scmp.ne.s32.totalorder %s181, %s182
    %p194 = scmp.eq.s32.totalorder %s25, 1
    %p195 = por %p193, %p194
    %p197 = scmp.ne.s32.totalorder %s182, %s196
    %p198 = scmp.eq.s32.totalorder %s25, 0
    %p199 = por %p197, %p198
    %s201 = sadd.s32 %s200, 1
    %p204 = scmp.eq.s32.totalorder %s19, 1
    %p205 = scmp.ne.s32.totalorder %s200, %s202
    %p206 = scmp.eq.s32.totalorder %s19, 0
    %p207 = por %p205, %p206
    %p208 = scmp.ne.s32.totalorder %s200, %s202
    %p209 = scmp.eq.s32.totalorder %s24, 1
    %p210 = por %p208, %p209
    %p211 = scmp.ne.s32.totalorder %s202, %s203
    %p212 = scmp.eq.s32.totalorder %s24, 0
    %p213 = por %p211, %p212
    %p214 = scmp.ne.s32.totalorder %s202, %s203
    %p215 = scmp.eq.s32.totalorder %s25, 1
    %p216 = por %p214, %p215
    %p218 = scmp.ne.s32.totalorder %s203, %s217
    %p219 = scmp.eq.s32.totalorder %s25, 0
    %p220 = por %p218, %p219
    %s222 = sadd.s32 %s221, 1
    %p225 = scmp.eq.s32.totalorder %s19, 1
    %p226 = scmp.ne.s32.totalorder %s221, %s223
    %p227 = scmp.eq.s32.totalorder %s19, 0
    %p228 = por %p226, %p227
    %p229 = scmp.ne.s32.totalorder %s221, %s223
    %p230 = scmp.eq.s32.totalorder %s24, 1
    %p231 = por %p229, %p230
    %p232 = scmp.ne.s32.totalorder %s223, %s224
    %p233 = scmp.eq.s32.totalorder %s24, 0
    %p234 = por %p232, %p233
    %p235 = scmp.ne.s32.totalorder %s223, %s224
    %p236 = scmp.eq.s32.totalorder %s25, 1
    %p237 = por %p235, %p236
    %p239 = scmp.ne.s32.totalorder %s224, %s238
    %p240 = scmp.eq.s32.totalorder %s25, 0
    %p241 = por %p239, %p240
    %s243 = sadd.s32 %s242, 1
    %p246 = scmp.eq.s32.totalorder %s19, 1
    %p247 = scmp.ne.s32.totalorder %s242, %s244
    %p248 = scmp.eq.s32.totalorder %s19, 0
    %p249 = por %p247, %p248
    %p250 = scmp.ne.s32.totalorder %s242, %s244
    %p251 = scmp.eq.s32.totalorder %s24, 1
    %p252 = por %p250, %p251
    %p253 = scmp.ne.s32.totalorder %s244, %s245
    %p254 = scmp.eq.s32.totalorder %s24, 0
    %p255 = por %p253, %p254
    %p256 = scmp.ne.s32.totalorder %s244, %s245
    %p257 = scmp.eq.s32.totalorder %s25, 1
    %p258 = por %p256, %p257
    %p260 = scmp.ne.s32.totalorder %s245, %s259
    %p261 = scmp.eq.s32.totalorder %s25, 0
    %p262 = por %p260, %p261
    %s263 = ssub.s32 %s19, %s26
    %p264 = scmp.eq.s32.totalorder %s263, 0
    %s266 = sadd.s32 %s265, 1
    %s267 = scalar_select %p264, %s265, %s266
    %p270 = pneg %p264
    %p271 = scmp.eq.s32.totalorder %s19, 1
    %p272 = por %p270, %p271
    %p273 = scmp.ne.s32.totalorder %s265, %s268
    %p274 = scmp.eq.s32.totalorder %s19, 0
    %p275 = por %p273, %p274
    %p276 = scmp.ne.s32.totalorder %s265, %s268
    %p277 = scmp.eq.s32.totalorder %s24, 1
    %p278 = por %p276, %p277
    %p279 = scmp.ne.s32.totalorder %s268, %s269
    %p280 = scmp.eq.s32.totalorder %s24, 0
    %p281 = por %p279, %p280
    %p282 = scmp.ne.s32.totalorder %s268, %s269
    %p283 = scmp.eq.s32.totalorder %s25, 1
    %p284 = por %p282, %p283
    %p286 = scmp.ne.s32.totalorder %s269, %s285
    %p287 = scmp.eq.s32.totalorder %s25, 0
    %p288 = por %p286, %p287
    %p289 = scmp.le.s32.totalorder 1, %s19
    %p290 = scmp.lt.s32.totalorder %s19, 3
    %p291 = pnand %p289, %p290
    %p292 = pneg %p291
    // Predicated region
    $region9: #{custom_multiscale_forward.3} parent=5 // pred_check
      _
    $region10: #{custom_multiscale_forward.3} parent=5 // pred_check_branch
      %294 = sbr.rel (%p291) target = $region12
    $region11: #{custom_multiscale_forward.3} parent=5 // pred_region
      %s295 = ssub.s32 %s19, 1
      // Predicated region
      $region13: #{custom_multiscale_forward.3} parent=11 // pred_check
        %p296 = pneg %p66
      $region14: #{custom_multiscale_forward.3} parent=11 // pred_check_branch
        %298 = sbr.rel (%p296) target = $region16
      $region15: #{custom_multiscale_forward.3} parent=11 // pred_region
        _
      $region16: #{custom_multiscale_forward.3} parent=11 // pred_fallthru
        _
      // Predicated region
      $region17: #{custom_multiscale_forward.3} parent=11 // pred_check
        %p299 = pneg %p87
      $region18: #{custom_multiscale_forward.3} parent=11 // pred_check_branch
        %301 = sbr.rel (%p299) target = $region20
      $region19: #{custom_multiscale_forward.3} parent=11 // pred_region
        _
      $region20: #{custom_multiscale_forward.3} parent=11 // pred_fallthru
        _
      // Predicated region
      $region21: #{custom_multiscale_forward.3} parent=11 // pred_check
        %p302 = pneg %p108
      $region22: #{custom_multiscale_forward.3} parent=11 // pred_check_branch
        %304 = sbr.rel (%p302) target = $region24
      $region23: #{custom_multiscale_forward.3} parent=11 // pred_region
        _
      $region24: #{custom_multiscale_forward.3} parent=11 // pred_fallthru
        _
      // Predicated region
      $region25: #{custom_multiscale_forward.3} parent=11 // pred_check
        %p305 = pneg %p129
      $region26: #{custom_multiscale_forward.3} parent=11 // pred_check_branch
        %307 = sbr.rel (%p305) target = $region28
      $region27: #{custom_multiscale_forward.3} parent=11 // pred_region
        _
      $region28: #{custom_multiscale_forward.3} parent=11 // pred_fallthru
        _
      // Predicated region
      $region29: #{custom_multiscale_forward.3} parent=11 // pred_check
        %p308 = pneg %p150
      $region30: #{custom_multiscale_forward.3} parent=11 // pred_check_branch
        %310 = sbr.rel (%p308) target = $region32
      $region31: #{custom_multiscale_forward.3} parent=11 // pred_region
        _
      $region32: #{custom_multiscale_forward.3} parent=11 // pred_fallthru
        _
      // Predicated region
      $region33: #{custom_multiscale_forward.3} parent=11 // pred_check
        %p311 = pneg %p171
      $region34: #{custom_multiscale_forward.3} parent=11 // pred_check_branch
        %313 = sbr.rel (%p311) target = $region36
      $region35: #{custom_multiscale_forward.3} parent=11 // pred_region
        _
      $region36: #{custom_multiscale_forward.3} parent=11 // pred_fallthru
        _
      // Predicated region
      $region37: #{custom_multiscale_forward.3} parent=11 // pred_check
        %p314 = pneg %p192
      $region38: #{custom_multiscale_forward.3} parent=11 // pred_check_branch
        %316 = sbr.rel (%p314) target = $region40
      $region39: #{custom_multiscale_forward.3} parent=11 // pred_region
        _
      $region40: #{custom_multiscale_forward.3} parent=11 // pred_fallthru
        _
      // Predicated region
      $region41: #{custom_multiscale_forward.3} parent=11 // pred_check
        %p317 = pneg %p213
      $region42: #{custom_multiscale_forward.3} parent=11 // pred_check_branch
        %319 = sbr.rel (%p317) target = $region44
      $region43: #{custom_multiscale_forward.3} parent=11 // pred_region
        _
      $region44: #{custom_multiscale_forward.3} parent=11 // pred_fallthru
        _
      // Predicated region
      $region45: #{custom_multiscale_forward.3} parent=11 // pred_check
        %p320 = pneg %p234
      $region46: #{custom_multiscale_forward.3} parent=11 // pred_check_branch
        %322 = sbr.rel (%p320) target = $region48
      $region47: #{custom_multiscale_forward.3} parent=11 // pred_region
        _
      $region48: #{custom_multiscale_forward.3} parent=11 // pred_fallthru
        _
      // Predicated region
      $region49: #{custom_multiscale_forward.3} parent=11 // pred_check
        %p323 = pneg %p255
      $region50: #{custom_multiscale_forward.3} parent=11 // pred_check_branch
        %325 = sbr.rel (%p323) target = $region52
      $region51: #{custom_multiscale_forward.3} parent=11 // pred_region
        _
      $region52: #{custom_multiscale_forward.3} parent=11 // pred_fallthru
        _
    $region12: #{custom_multiscale_forward.3} parent=5 // pred_fallthru
      _
    %p326 = scmp.lt.s32.totalorder %s19, 2
    // Predicated region
    $region53: #{custom_multiscale_forward.3} parent=5 // pred_check
      %p327 = pneg %p326
    $region54: #{custom_multiscale_forward.3} parent=5 // pred_check_branch
      %329 = sbr.rel (%p327) target = $region56
    $region55: #{custom_multiscale_forward.3} parent=5 // pred_region
      // Predicated region
      $region57: #{custom_multiscale_forward.3} parent=55 // pred_check
        %p330 = pneg %p39
      $region58: #{custom_multiscale_forward.3} parent=55 // pred_check_branch
        %332 = sbr.rel (%p330) target = $region60
      $region59: #{custom_multiscale_forward.3} parent=55 // pred_region
        %p333 = scmp.lt.s32.totalorder %s19, 1
        %s334 = scalar_select %p333, %s19, 1
        %s335 = smul.addr %s334, 32
        %s336 = smul.addr %s335, 8
        %s337 = scalar_lea.vmem %s1, %s336
      $region60: #{custom_multiscale_forward.3} parent=55 // pred_fallthru
        _
    $region56: #{custom_multiscale_forward.3} parent=5 // pred_fallthru
      _
    %p338 = scmp.le.s32.totalorder 1, %s19
    %p339 = scmp.lt.s32.totalorder %s19, 3
    %p340 = pnand %p338, %p339
    %p341 = pneg %p340
    // Predicated region
    $region61: #{custom_multiscale_forward.3} parent=5 // pred_check
      _
    $region62: #{custom_multiscale_forward.3} parent=5 // pred_check_branch
      %343 = sbr.rel (%p340) target = $region64
    $region63: #{custom_multiscale_forward.3} parent=5 // pred_region
      %s344 = ssub.s32 %s19, 1
      %p345 = scmp.lt.s32.totalorder %s24, 1
      %s346 = scalar_select %p345, %s24, 1
      %s347 = smul.addr %s346, 32
      %s348 = smul.addr %s347, 8
      %s349 = scalar_lea.vmem %s1, %s348
      %p350 = pneg %p45
      %p351 = pneg %p42
      %p352 = pneg %p66
      %p353 = pneg %p63
      %p354 = pneg %p87
      %p355 = pneg %p84
      %p356 = pneg %p108
      %p357 = pneg %p105
      %p358 = pneg %p129
      %p359 = pneg %p126
      %p360 = pneg %p150
      %p361 = pneg %p147
      %p362 = pneg %p171
      %p363 = pneg %p168
      %p364 = pneg %p192
      %p365 = pneg %p189
      %p366 = pneg %p213
      %p367 = pneg %p210
      %p368 = pneg %p234
      %p369 = pneg %p231
      %p370 = pneg %p255
      %p371 = pneg %p252
      %p372 = pneg %p281
      %p373 = pneg %p278
      %p374 = scmp.lt.s32.totalorder %s24, 1
      %s375 = scalar_select %p374, %s24, 1
      %s376 = smul.addr %s375, 32
      %s377 = smul.addr %s376, 8
      %s378 = scalar_lea.vmem %s12, %s377
      %p379 = scmp.lt.s32.totalorder %s24, 1
      %s380 = scalar_select %p379, %s24, 1
      %s381 = smul.addr %s380, 32
      %s382 = smul.addr %s381, 8
      %s383 = scalar_lea.vmem %s1, %s382
      %p384 = scmp.lt.s32.totalorder %s24, 1
      %s385 = scalar_select %p384, %s24, 1
      %s386 = smul.addr %s385, 32
      %s387 = smul.addr %s386, 8
      %s388 = scalar_lea.vmem %s12, %s387
      %v390 = vld [vmem:[%s383] sm:$0xff]
      %v391 = vld [vmem:[%s383 + $0x8] sm:$0xff]
      %v392 = vld [vmem:[%s383 + $0x10] sm:$0xff]
      %v393 = vld [vmem:[%s383 + $0x18] sm:$0xff]
      %v394 = vld [vmem:[%s383 + $0x20] sm:$0xff]
      %v395 = vld [vmem:[%s383 + $0x28] sm:$0xff]
      %v396 = vld [vmem:[%s383 + $0x30] sm:$0xff]
      %v397 = vld [vmem:[%s383 + $0x38] sm:$0xff]
      %v398 = vld [vmem:[%s383 + $0x40] sm:$0xff]
      %v399 = vld [vmem:[%s383 + $0x48] sm:$0xff]
      %v400 = vld [vmem:[%s383 + $0x50] sm:$0xff]
      %v401 = vld [vmem:[%s383 + $0x58] sm:$0xff]
      %v402 = vld [vmem:[%s383 + $0x60] sm:$0xff]
      %v403 = vld [vmem:[%s383 + $0x68] sm:$0xff]
      %v404 = vld [vmem:[%s383 + $0x70] sm:$0xff]
      %v405 = vld [vmem:[%s383 + $0x78] sm:$0xff]
      %v406 = vld [vmem:[%s383 + $0x80] sm:$0xff]
      %v407 = vld [vmem:[%s383 + $0x88] sm:$0xff]
      %v408 = vld [vmem:[%s383 + $0x90] sm:$0xff]
      %v409 = vld [vmem:[%s383 + $0x98] sm:$0xff]
      %v410 = vld [vmem:[%s383 + $0xa0] sm:$0xff]
      %v411 = vld [vmem:[%s383 + $0xa8] sm:$0xff]
      %v412 = vld [vmem:[%s383 + $0xb0] sm:$0xff]
      %v413 = vld [vmem:[%s383 + $0xb8] sm:$0xff]
      %v414 = vld [vmem:[%s383 + $0xc0] sm:$0xff]
      %v415 = vld [vmem:[%s383 + $0xc8] sm:$0xff]
      %v416 = vld [vmem:[%s383 + $0xd0] sm:$0xff]
      %v417 = vld [vmem:[%s383 + $0xd8] sm:$0xff]
      %v418 = vld [vmem:[%s383 + $0xe0] sm:$0xff]
      %v419 = vld [vmem:[%s383 + $0xe8] sm:$0xff]
      %v420 = vld [vmem:[%s383 + $0xf0] sm:$0xff]
      %v421 = vld [vmem:[%s383 + $0xf8] sm:$0xff]
      %v422 = vmul.f32 %v390, %v390
      %v423 = vmul.f32 %v391, %v391
      %v424 = vmul.f32 %v392, %v392
      %v425 = vmul.f32 %v393, %v393
      %v426 = vmul.f32 %v394, %v394
      %v427 = vmul.f32 %v395, %v395
      %v428 = vmul.f32 %v396, %v396
      %v429 = vmul.f32 %v397, %v397
      %v430 = vmul.f32 %v398, %v398
      %v431 = vmul.f32 %v399, %v399
      %v432 = vmul.f32 %v400, %v400
      %v433 = vmul.f32 %v401, %v401
      %v434 = vmul.f32 %v402, %v402
      %v435 = vmul.f32 %v403, %v403
      %v436 = vmul.f32 %v404, %v404
      %v437 = vmul.f32 %v405, %v405
      %v438 = vmul.f32 %v406, %v406
      %v439 = vmul.f32 %v407, %v407
      %v440 = vmul.f32 %v408, %v408
      %v441 = vmul.f32 %v409, %v409
      %v442 = vmul.f32 %v410, %v410
      %v443 = vmul.f32 %v411, %v411
      %v444 = vmul.f32 %v412, %v412
      %v445 = vmul.f32 %v413, %v413
      %v446 = vmul.f32 %v414, %v414
      %v447 = vmul.f32 %v415, %v415
      %v448 = vmul.f32 %v416, %v416
      %v449 = vmul.f32 %v417, %v417
      %v450 = vmul.f32 %v418, %v418
      %v451 = vmul.f32 %v419, %v419
      %v452 = vmul.f32 %v420, %v420
      %v453 = vmul.f32 %v421, %v421
      %vm454 = vcmask 130048
      %v455 = vsel %vm454, %v422, 0.0
      %456 = vadd.xlane.f32.xlu0 %v455
      %v457 = vpop.xlane.xlu0 %456
      %v458 = vsel %vm454, %v423, 0.0
      %459 = vadd.xlane.f32.xlu0 %v458
      %v460 = vpop.xlane.xlu0 %459
      %v461 = vsel %vm454, %v424, 0.0
      %462 = vadd.xlane.f32.xlu0 %v461
      %v463 = vpop.xlane.xlu0 %462
      %v464 = vsel %vm454, %v425, 0.0
      %465 = vadd.xlane.f32.xlu0 %v464
      %v466 = vpop.xlane.xlu0 %465
      %v467 = vsel %vm454, %v426, 0.0
      %468 = vadd.xlane.f32.xlu0 %v467
      %v469 = vpop.xlane.xlu0 %468
      %v470 = vsel %vm454, %v427, 0.0
      %471 = vadd.xlane.f32.xlu0 %v470
      %v472 = vpop.xlane.xlu0 %471
      %v473 = vsel %vm454, %v428, 0.0
      %474 = vadd.xlane.f32.xlu0 %v473
      %v475 = vpop.xlane.xlu0 %474
      %v476 = vsel %vm454, %v429, 0.0
      %477 = vadd.xlane.f32.xlu0 %v476
      %v478 = vpop.xlane.xlu0 %477
      %v479 = vsel %vm454, %v430, 0.0
      %480 = vadd.xlane.f32.xlu0 %v479
      %v481 = vpop.xlane.xlu0 %480
      %v482 = vsel %vm454, %v431, 0.0
      %483 = vadd.xlane.f32.xlu0 %v482
      %v484 = vpop.xlane.xlu0 %483
      %v485 = vsel %vm454, %v432, 0.0
      %486 = vadd.xlane.f32.xlu0 %v485
      %v487 = vpop.xlane.xlu0 %486
      %v488 = vsel %vm454, %v433, 0.0
      %489 = vadd.xlane.f32.xlu0 %v488
      %v490 = vpop.xlane.xlu0 %489
      %v491 = vsel %vm454, %v434, 0.0
      %492 = vadd.xlane.f32.xlu0 %v491
      %v493 = vpop.xlane.xlu0 %492
      %v494 = vsel %vm454, %v435, 0.0
      %495 = vadd.xlane.f32.xlu0 %v494
      %v496 = vpop.xlane.xlu0 %495
      %v497 = vsel %vm454, %v436, 0.0
      %498 = vadd.xlane.f32.xlu0 %v497
      %v499 = vpop.xlane.xlu0 %498
      %v500 = vsel %vm454, %v437, 0.0
      %501 = vadd.xlane.f32.xlu0 %v500
      %v502 = vpop.xlane.xlu0 %501
      %v503 = vsel %vm454, %v438, 0.0
      %504 = vadd.xlane.f32.xlu0 %v503
      %v505 = vpop.xlane.xlu0 %504
      %v506 = vsel %vm454, %v439, 0.0
      %507 = vadd.xlane.f32.xlu0 %v506
      %v508 = vpop.xlane.xlu0 %507
      %v509 = vsel %vm454, %v440, 0.0
      %510 = vadd.xlane.f32.xlu0 %v509
      %v511 = vpop.xlane.xlu0 %510
      %v512 = vsel %vm454, %v441, 0.0
      %513 = vadd.xlane.f32.xlu0 %v512
      %v514 = vpop.xlane.xlu0 %513
      %v515 = vsel %vm454, %v442, 0.0
      %516 = vadd.xlane.f32.xlu0 %v515
      %v517 = vpop.xlane.xlu0 %516
      %v518 = vsel %vm454, %v443, 0.0
      %519 = vadd.xlane.f32.xlu0 %v518
      %v520 = vpop.xlane.xlu0 %519
      %v521 = vsel %vm454, %v444, 0.0
      %522 = vadd.xlane.f32.xlu0 %v521
      %v523 = vpop.xlane.xlu0 %522
      %v524 = vsel %vm454, %v445, 0.0
      %525 = vadd.xlane.f32.xlu0 %v524
      %v526 = vpop.xlane.xlu0 %525
      %v527 = vsel %vm454, %v446, 0.0
      %528 = vadd.xlane.f32.xlu0 %v527
      %v529 = vpop.xlane.xlu0 %528
      %v530 = vsel %vm454, %v447, 0.0
      %531 = vadd.xlane.f32.xlu0 %v530
      %v532 = vpop.xlane.xlu0 %531
      %v533 = vsel %vm454, %v448, 0.0
      %534 = vadd.xlane.f32.xlu0 %v533
      %v535 = vpop.xlane.xlu0 %534
      %v536 = vsel %vm454, %v449, 0.0
      %537 = vadd.xlane.f32.xlu0 %v536
      %v538 = vpop.xlane.xlu0 %537
      %v539 = vsel %vm454, %v450, 0.0
      %540 = vadd.xlane.f32.xlu0 %v539
      %v541 = vpop.xlane.xlu0 %540
      %v542 = vsel %vm454, %v451, 0.0
      %543 = vadd.xlane.f32.xlu0 %v542
      %v544 = vpop.xlane.xlu0 %543
      %v545 = vsel %vm454, %v452, 0.0
      %546 = vadd.xlane.f32.xlu0 %v545
      %v547 = vpop.xlane.xlu0 %546
      %v548 = vsel %vm454, %v453, 0.0
      %549 = vadd.xlane.f32.xlu0 %v548
      %v550 = vpop.xlane.xlu0 %549
      %v552 = vsel %vm454, %v390, 0
      %v555 = vsel %vm454, %v391, 0
      %v558 = vsel %vm454, %v392, 0
      %v561 = vsel %vm454, %v393, 0
      %v564 = vsel %vm454, %v394, 0
      %v567 = vsel %vm454, %v395, 0
      %v570 = vsel %vm454, %v396, 0
      %v573 = vsel %vm454, %v397, 0
      %v576 = vsel %vm454, %v398, 0
      %v579 = vsel %vm454, %v399, 0
      %v582 = vsel %vm454, %v400, 0
      %v585 = vsel %vm454, %v401, 0
      %v588 = vsel %vm454, %v402, 0
      %v591 = vsel %vm454, %v403, 0
      %v594 = vsel %vm454, %v404, 0
      %v597 = vsel %vm454, %v405, 0
      %v600 = vsel %vm454, %v406, 0
      %v603 = vsel %vm454, %v407, 0
      %v606 = vsel %vm454, %v408, 0
      %v609 = vsel %vm454, %v409, 0
      %v612 = vsel %vm454, %v410, 0
      %v615 = vsel %vm454, %v411, 0
      %v618 = vsel %vm454, %v412, 0
      %v621 = vsel %vm454, %v413, 0
      %v624 = vsel %vm454, %v414, 0
      %v627 = vsel %vm454, %v415, 0
      %v630 = vsel %vm454, %v416, 0
      %v633 = vsel %vm454, %v417, 0
      %v636 = vsel %vm454, %v418, 0
      %v639 = vsel %vm454, %v419, 0
      %v642 = vsel %vm454, %v420, 0
      %v645 = vsel %vm454, %v421, 0
      %647 = vmatprep.subr.mxu0 0.0
      %v648 = vand.u32 %v597, 4294901760
      %649 = vmatpush1.xpose.msra.mxu0 %v648
      %650 = vmatprep.subr.mxu0 0.0
      %v651 = vand.u32 %v594, 4294901760
      %652 = vmatpush1.xpose.msra.mxu0 %v651
      %653 = vmatprep.subr.mxu0 0.0
      %v654 = vand.u32 %v591, 4294901760
      %655 = vmatpush1.xpose.msra.mxu0 %v654
      %656 = vmatprep.subr.mxu0 0.0
      %v657 = vand.u32 %v588, 4294901760
      %658 = vmatpush1.xpose.msra.mxu0 %v657
      %659 = vmatprep.subr.mxu0 0.0
      %v660 = vand.u32 %v585, 4294901760
      %661 = vmatpush1.xpose.msra.mxu0 %v660
      %662 = vmatprep.subr.mxu0 0.0
      %v663 = vand.u32 %v582, 4294901760
      %664 = vmatpush1.xpose.msra.mxu0 %v663
      %665 = vmatprep.subr.mxu0 0.0
      %v666 = vand.u32 %v579, 4294901760
      %667 = vmatpush1.xpose.msra.mxu0 %v666
      %668 = vmatprep.subr.mxu0 0.0
      %v669 = vand.u32 %v576, 4294901760
      %670 = vmatpush1.xpose.msra.mxu0 %v669
      %671 = vmatprep.subr.mxu0 0.0
      %v672 = vand.u32 %v573, 4294901760
      %673 = vmatpush1.xpose.msra.mxu0 %v672
      %674 = vmatprep.subr.mxu0 0.0
      %v675 = vand.u32 %v570, 4294901760
      %676 = vmatpush1.xpose.msra.mxu0 %v675
      %677 = vmatprep.subr.mxu0 0.0
      %v678 = vand.u32 %v567, 4294901760
      %679 = vmatpush1.xpose.msra.mxu0 %v678
      %680 = vmatprep.subr.mxu0 0.0
      %v681 = vand.u32 %v564, 4294901760
      %682 = vmatpush1.xpose.msra.mxu0 %v681
      %683 = vmatprep.subr.mxu0 0.0
      %v684 = vand.u32 %v561, 4294901760
      %685 = vmatpush1.xpose.msra.mxu0 %v684
      %686 = vmatprep.subr.mxu0 0.0
      %v687 = vand.u32 %v558, 4294901760
      %688 = vmatpush1.xpose.msra.mxu0 %v687
      %689 = vmatprep.subr.mxu0 0.0
      %v690 = vand.u32 %v555, 4294901760
      %691 = vmatpush1.xpose.msra.mxu0 %v690
      %692 = vmatprep.subr.mxu0 0.0
      %v693 = vand.u32 %v552, 4294901760
      %694 = vmatpush1.xpose.msra.mxu0 %v693
      %695 = vmatprep.subr.mxu0 0.0
      %v696 = vand.u32 %v645, 4294901760
      %697 = vmatpush2.xpose.msra.mxu0 %v696
      %698 = vmatprep.subr.mxu0 0.0
      %v699 = vand.u32 %v642, 4294901760
      %700 = vmatpush2.xpose.msra.mxu0 %v699
      %701 = vmatprep.subr.mxu0 0.0
      %v702 = vand.u32 %v639, 4294901760
      %703 = vmatpush2.xpose.msra.mxu0 %v702
      %704 = vmatprep.subr.mxu0 0.0
      %v705 = vand.u32 %v636, 4294901760
      %706 = vmatpush2.xpose.msra.mxu0 %v705
      %707 = vmatprep.subr.mxu0 0.0
      %v708 = vand.u32 %v633, 4294901760
      %709 = vmatpush2.xpose.msra.mxu0 %v708
      %710 = vmatprep.subr.mxu0 0.0
      %v711 = vand.u32 %v630, 4294901760
      %712 = vmatpush2.xpose.msra.mxu0 %v711
      %713 = vmatprep.subr.mxu0 0.0
      %v714 = vand.u32 %v627, 4294901760
      %715 = vmatpush2.xpose.msra.mxu0 %v714
      %716 = vmatprep.subr.mxu0 0.0
      %v717 = vand.u32 %v624, 4294901760
      %718 = vmatpush2.xpose.msra.mxu0 %v717
      %719 = vmatprep.subr.mxu0 0.0
      %v720 = vand.u32 %v621, 4294901760
      %721 = vmatpush2.xpose.msra.mxu0 %v720
      %722 = vmatprep.subr.mxu0 0.0
      %v723 = vand.u32 %v618, 4294901760
      %724 = vmatpush2.xpose.msra.mxu0 %v723
      %725 = vmatprep.subr.mxu0 0.0
      %v726 = vand.u32 %v615, 4294901760
      %727 = vmatpush2.xpose.msra.mxu0 %v726
      %728 = vmatprep.subr.mxu0 0.0
      %v729 = vand.u32 %v612, 4294901760
      %730 = vmatpush2.xpose.msra.mxu0 %v729
      %731 = vmatprep.subr.mxu0 0.0
      %v732 = vand.u32 %v609, 4294901760
      %733 = vmatpush2.xpose.msra.mxu0 %v732
      %734 = vmatprep.subr.mxu0 0.0
      %v735 = vand.u32 %v606, 4294901760
      %736 = vmatpush2.xpose.msra.mxu0 %v735
      %737 = vmatprep.subr.mxu0 0.0
      %v738 = vand.u32 %v603, 4294901760
      %739 = vmatpush2.xpose.msra.mxu0 %v738
      %740 = vmatprep.subr.mxu0 0.0
      %v741 = vand.u32 %v600, 4294901760
      %742 = vmatpush2.xpose.msra.mxu0 %v741
      %743 = vmatprep.mubr.f32.mxu0 0.0
      %v744 = vand.u32 %v552, 4294901760
      %v745 = vsub.f32 %v552, %v744
      %v746 = vand.u32 %v745, 4294901760
      %v747 = vsub.f32 %v745, %v746
      %v748 = vand.u32 %v747, 4294901760
      %749 = vmatmul.mubr.f32.gmra.mxu0 %v748
      %v750 = vpop.f32.mrf.mxu0
      %v751 = vadd.f32 0.0, %v750
      %v752 = vpop.f32.mrf.mxu0
      %v753 = vadd.f32 0.0, %v752
      %754 = vmatprep.mubr.f32.mxu0 0.0
      %v755 = vand.u32 %v555, 4294901760
      %v756 = vsub.f32 %v555, %v755
      %v757 = vand.u32 %v756, 4294901760
      %v758 = vsub.f32 %v756, %v757
      %v759 = vand.u32 %v758, 4294901760
      %760 = vmatmul.mubr.f32.gmra.mxu0 %v759
      %v761 = vpop.f32.mrf.mxu0
      %v762 = vadd.f32 0.0, %v761
      %v763 = vpop.f32.mrf.mxu0
      %v764 = vadd.f32 0.0, %v763
      %765 = vmatprep.mubr.f32.mxu0 0.0
      %v766 = vand.u32 %v558, 4294901760
      %v767 = vsub.f32 %v558, %v766
      %v768 = vand.u32 %v767, 4294901760
      %v769 = vsub.f32 %v767, %v768
      %v770 = vand.u32 %v769, 4294901760
      %771 = vmatmul.mubr.f32.gmra.mxu0 %v770
      %v772 = vpop.f32.mrf.mxu0
      %v773 = vadd.f32 0.0, %v772
      %v774 = vpop.f32.mrf.mxu0
      %v775 = vadd.f32 0.0, %v774
      %776 = vmatprep.mubr.f32.mxu0 0.0
      %v777 = vand.u32 %v561, 4294901760
      %v778 = vsub.f32 %v561, %v777
      %v779 = vand.u32 %v778, 4294901760
      %v780 = vsub.f32 %v778, %v779
      %v781 = vand.u32 %v780, 4294901760
      %782 = vmatmul.mubr.f32.gmra.mxu0 %v781
      %v783 = vpop.f32.mrf.mxu0
      %v784 = vadd.f32 0.0, %v783
      %v785 = vpop.f32.mrf.mxu0
      %v786 = vadd.f32 0.0, %v785
      %787 = vmatprep.mubr.f32.mxu0 0.0
      %v788 = vand.u32 %v564, 4294901760
      %v789 = vsub.f32 %v564, %v788
      %v790 = vand.u32 %v789, 4294901760
      %v791 = vsub.f32 %v789, %v790
      %v792 = vand.u32 %v791, 4294901760
      %793 = vmatmul.mubr.f32.gmra.mxu0 %v792
      %v794 = vpop.f32.mrf.mxu0
      %v795 = vadd.f32 0.0, %v794
      %v796 = vpop.f32.mrf.mxu0
      %v797 = vadd.f32 0.0, %v796
      %798 = vmatprep.mubr.f32.mxu0 0.0
      %v799 = vand.u32 %v567, 4294901760
      %v800 = vsub.f32 %v567, %v799
      %v801 = vand.u32 %v800, 4294901760
      %v802 = vsub.f32 %v800, %v801
      %v803 = vand.u32 %v802, 4294901760
      %804 = vmatmul.mubr.f32.gmra.mxu0 %v803
      %v805 = vpop.f32.mrf.mxu0
      %v806 = vadd.f32 0.0, %v805
      %v807 = vpop.f32.mrf.mxu0
      %v808 = vadd.f32 0.0, %v807
      %809 = vmatprep.mubr.f32.mxu0 0.0
      %v810 = vand.u32 %v570, 4294901760
      %v811 = vsub.f32 %v570, %v810
      %v812 = vand.u32 %v811, 4294901760
      %v813 = vsub.f32 %v811, %v812
      %v814 = vand.u32 %v813, 4294901760
      %815 = vmatmul.mubr.f32.gmra.mxu0 %v814
      %v816 = vpop.f32.mrf.mxu0
      %v817 = vadd.f32 0.0, %v816
      %v818 = vpop.f32.mrf.mxu0
      %v819 = vadd.f32 0.0, %v818
      %820 = vmatprep.mubr.f32.mxu0 0.0
      %v821 = vand.u32 %v573, 4294901760
      %v822 = vsub.f32 %v573, %v821
      %v823 = vand.u32 %v822, 4294901760
      %v824 = vsub.f32 %v822, %v823
      %v825 = vand.u32 %v824, 4294901760
      %826 = vmatmul.mubr.f32.gmra.mxu0 %v825
      %v827 = vpop.f32.mrf.mxu0
      %v828 = vadd.f32 0.0, %v827
      %v829 = vpop.f32.mrf.mxu0
      %v830 = vadd.f32 0.0, %v829
      %831 = vmatprep.mubr.f32.mxu0 0.0
      %v832 = vand.u32 %v576, 4294901760
      %v833 = vsub.f32 %v576, %v832
      %v834 = vand.u32 %v833, 4294901760
      %v835 = vsub.f32 %v833, %v834
      %v836 = vand.u32 %v835, 4294901760
      %837 = vmatmul.mubr.f32.gmra.mxu0 %v836
      %v838 = vpop.f32.mrf.mxu0
      %v839 = vadd.f32 0.0, %v838
      %v840 = vpop.f32.mrf.mxu0
      %v841 = vadd.f32 0.0, %v840
      %842 = vmatprep.mubr.f32.mxu0 0.0
      %v843 = vand.u32 %v579, 4294901760
      %v844 = vsub.f32 %v579, %v843
      %v845 = vand.u32 %v844, 4294901760
      %v846 = vsub.f32 %v844, %v845
      %v847 = vand.u32 %v846, 4294901760
      %848 = vmatmul.mubr.f32.gmra.mxu0 %v847
      %v849 = vpop.f32.mrf.mxu0
      %v850 = vadd.f32 0.0, %v849
      %v851 = vpop.f32.mrf.mxu0
      %v852 = vadd.f32 0.0, %v851
      %853 = vmatprep.mubr.f32.mxu0 0.0
      %v854 = vand.u32 %v582, 4294901760
      %v855 = vsub.f32 %v582, %v854
      %v856 = vand.u32 %v855, 4294901760
      %v857 = vsub.f32 %v855, %v856
      %v858 = vand.u32 %v857, 4294901760
      %859 = vmatmul.mubr.f32.gmra.mxu0 %v858
      %v860 = vpop.f32.mrf.mxu0
      %v861 = vadd.f32 0.0, %v860
      %v862 = vpop.f32.mrf.mxu0
      %v863 = vadd.f32 0.0, %v862
      %864 = vmatprep.mubr.f32.mxu0 0.0
      %v865 = vand.u32 %v585, 4294901760
      %v866 = vsub.f32 %v585, %v865
      %v867 = vand.u32 %v866, 4294901760
      %v868 = vsub.f32 %v866, %v867
      %v869 = vand.u32 %v868, 4294901760
      %870 = vmatmul.mubr.f32.gmra.mxu0 %v869
      %v871 = vpop.f32.mrf.mxu0
      %v872 = vadd.f32 0.0, %v871
      %v873 = vpop.f32.mrf.mxu0
      %v874 = vadd.f32 0.0, %v873
      %875 = vmatprep.mubr.f32.mxu0 0.0
      %v876 = vand.u32 %v588, 4294901760
      %v877 = vsub.f32 %v588, %v876
      %v878 = vand.u32 %v877, 4294901760
      %v879 = vsub.f32 %v877, %v878
      %v880 = vand.u32 %v879, 4294901760
      %881 = vmatmul.mubr.f32.gmra.mxu0 %v880
      %v882 = vpop.f32.mrf.mxu0
      %v883 = vadd.f32 0.0, %v882
      %v884 = vpop.f32.mrf.mxu0
      %v885 = vadd.f32 0.0, %v884
      %886 = vmatprep.mubr.f32.mxu0 0.0
      %v887 = vand.u32 %v591, 4294901760
      %v888 = vsub.f32 %v591, %v887
      %v889 = vand.u32 %v888, 4294901760
      %v890 = vsub.f32 %v888, %v889
      %v891 = vand.u32 %v890, 4294901760
      %892 = vmatmul.mubr.f32.gmra.mxu0 %v891
      %v893 = vpop.f32.mrf.mxu0
      %v894 = vadd.f32 0.0, %v893
      %v895 = vpop.f32.mrf.mxu0
      %v896 = vadd.f32 0.0, %v895
      %897 = vmatprep.mubr.f32.mxu0 0.0
      %v898 = vand.u32 %v594, 4294901760
      %v899 = vsub.f32 %v594, %v898
      %v900 = vand.u32 %v899, 4294901760
      %v901 = vsub.f32 %v899, %v900
      %v902 = vand.u32 %v901, 4294901760
      %903 = vmatmul.mubr.f32.gmra.mxu0 %v902
      %v904 = vpop.f32.mrf.mxu0
      %v905 = vadd.f32 0.0, %v904
      %v906 = vpop.f32.mrf.mxu0
      %v907 = vadd.f32 0.0, %v906
      %908 = vmatprep.mubr.f32.mxu0 0.0
      %v909 = vand.u32 %v597, 4294901760
      %v910 = vsub.f32 %v597, %v909
      %v911 = vand.u32 %v910, 4294901760
      %v912 = vsub.f32 %v910, %v911
      %v913 = vand.u32 %v912, 4294901760
      %914 = vmatmul.mubr.f32.gmra.mxu0 %v913
      %v915 = vpop.f32.mrf.mxu0
      %v916 = vadd.f32 0.0, %v915
      %v917 = vpop.f32.mrf.mxu0
      %v918 = vadd.f32 0.0, %v917
      %919 = vmatprep.mubr.f32.mxu0 0.0
      %v920 = vand.u32 %v600, 4294901760
      %v921 = vsub.f32 %v600, %v920
      %v922 = vand.u32 %v921, 4294901760
      %v923 = vsub.f32 %v921, %v922
      %v924 = vand.u32 %v923, 4294901760
      %925 = vmatmul.mubr.f32.gmra.mxu0 %v924
      %v926 = vpop.f32.mrf.mxu0
      %v927 = vadd.f32 0.0, %v926
      %v928 = vpop.f32.mrf.mxu0
      %v929 = vadd.f32 0.0, %v928
      %930 = vmatprep.mubr.f32.mxu0 0.0
      %v931 = vand.u32 %v603, 4294901760
      %v932 = vsub.f32 %v603, %v931
      %v933 = vand.u32 %v932, 4294901760
      %v934 = vsub.f32 %v932, %v933
      %v935 = vand.u32 %v934, 4294901760
      %936 = vmatmul.mubr.f32.gmra.mxu0 %v935
      %v937 = vpop.f32.mrf.mxu0
      %v938 = vadd.f32 0.0, %v937
      %v939 = vpop.f32.mrf.mxu0
      %v940 = vadd.f32 0.0, %v939
      %941 = vmatprep.mubr.f32.mxu0 0.0
      %v942 = vand.u32 %v606, 4294901760
      %v943 = vsub.f32 %v606, %v942
      %v944 = vand.u32 %v943, 4294901760
      %v945 = vsub.f32 %v943, %v944
      %v946 = vand.u32 %v945, 4294901760
      %947 = vmatmul.mubr.f32.gmra.mxu0 %v946
      %v948 = vpop.f32.mrf.mxu0
      %v949 = vadd.f32 0.0, %v948
      %v950 = vpop.f32.mrf.mxu0
      %v951 = vadd.f32 0.0, %v950
      %952 = vmatprep.mubr.f32.mxu0 0.0
      %v953 = vand.u32 %v609, 4294901760
      %v954 = vsub.f32 %v609, %v953
      %v955 = vand.u32 %v954, 4294901760
      %v956 = vsub.f32 %v954, %v955
      %v957 = vand.u32 %v956, 4294901760
      %958 = vmatmul.mubr.f32.gmra.mxu0 %v957
      %v959 = vpop.f32.mrf.mxu0
      %v960 = vadd.f32 0.0, %v959
      %v961 = vpop.f32.mrf.mxu0
      %v962 = vadd.f32 0.0, %v961
      %963 = vmatprep.mubr.f32.mxu0 0.0
      %v964 = vand.u32 %v612, 4294901760
      %v965 = vsub.f32 %v612, %v964
      %v966 = vand.u32 %v965, 4294901760
      %v967 = vsub.f32 %v965, %v966
      %v968 = vand.u32 %v967, 4294901760
      %969 = vmatmul.mubr.f32.gmra.mxu0 %v968
      %v970 = vpop.f32.mrf.mxu0
      %v971 = vadd.f32 0.0, %v970
      %v972 = vpop.f32.mrf.mxu0
      %v973 = vadd.f32 0.0, %v972
      %974 = vmatprep.mubr.f32.mxu0 0.0
      %v975 = vand.u32 %v615, 4294901760
      %v976 = vsub.f32 %v615, %v975
      %v977 = vand.u32 %v976, 4294901760
      %v978 = vsub.f32 %v976, %v977
      %v979 = vand.u32 %v978, 4294901760
      %980 = vmatmul.mubr.f32.gmra.mxu0 %v979
      %v981 = vpop.f32.mrf.mxu0
      %v982 = vadd.f32 0.0, %v981
      %v983 = vpop.f32.mrf.mxu0
      %v984 = vadd.f32 0.0, %v983
      %985 = vmatprep.mubr.f32.mxu0 0.0
      %v986 = vand.u32 %v618, 4294901760
      %v987 = vsub.f32 %v618, %v986
      %v988 = vand.u32 %v987, 4294901760
      %v989 = vsub.f32 %v987, %v988
      %v990 = vand.u32 %v989, 4294901760
      %991 = vmatmul.mubr.f32.gmra.mxu0 %v990
      %v992 = vpop.f32.mrf.mxu0
      %v993 = vadd.f32 0.0, %v992
      %v994 = vpop.f32.mrf.mxu0
      %v995 = vadd.f32 0.0, %v994
      %996 = vmatprep.mubr.f32.mxu0 0.0
      %v997 = vand.u32 %v621, 4294901760
      %v998 = vsub.f32 %v621, %v997
      %v999 = vand.u32 %v998, 4294901760
      %v1000 = vsub.f32 %v998, %v999
      %v1001 = vand.u32 %v1000, 4294901760
      %1002 = vmatmul.mubr.f32.gmra.mxu0 %v1001
      %v1003 = vpop.f32.mrf.mxu0
      %v1004 = vadd.f32 0.0, %v1003
      %v1005 = vpop.f32.mrf.mxu0
      %v1006 = vadd.f32 0.0, %v1005
      %1007 = vmatprep.mubr.f32.mxu0 0.0
      %v1008 = vand.u32 %v624, 4294901760
      %v1009 = vsub.f32 %v624, %v1008
      %v1010 = vand.u32 %v1009, 4294901760
      %v1011 = vsub.f32 %v1009, %v1010
      %v1012 = vand.u32 %v1011, 4294901760
      %1013 = vmatmul.mubr.f32.gmra.mxu0 %v1012
      %v1014 = vpop.f32.mrf.mxu0
      %v1015 = vadd.f32 0.0, %v1014
      %v1016 = vpop.f32.mrf.mxu0
      %v1017 = vadd.f32 0.0, %v1016
      %1018 = vmatprep.mubr.f32.mxu0 0.0
      %v1019 = vand.u32 %v627, 4294901760
      %v1020 = vsub.f32 %v627, %v1019
      %v1021 = vand.u32 %v1020, 4294901760
      %v1022 = vsub.f32 %v1020, %v1021
      %v1023 = vand.u32 %v1022, 4294901760
      %1024 = vmatmul.mubr.f32.gmra.mxu0 %v1023
      %v1025 = vpop.f32.mrf.mxu0
      %v1026 = vadd.f32 0.0, %v1025
      %v1027 = vpop.f32.mrf.mxu0
      %v1028 = vadd.f32 0.0, %v1027
      %1029 = vmatprep.mubr.f32.mxu0 0.0
      %v1030 = vand.u32 %v630, 4294901760
      %v1031 = vsub.f32 %v630, %v1030
      %v1032 = vand.u32 %v1031, 4294901760
      %v1033 = vsub.f32 %v1031, %v1032
      %v1034 = vand.u32 %v1033, 4294901760
      %1035 = vmatmul.mubr.f32.gmra.mxu0 %v1034
      %v1036 = vpop.f32.mrf.mxu0
      %v1037 = vadd.f32 0.0, %v1036
      %v1038 = vpop.f32.mrf.mxu0
      %v1039 = vadd.f32 0.0, %v1038
      %1040 = vmatprep.mubr.f32.mxu0 0.0
      %v1041 = vand.u32 %v633, 4294901760
      %v1042 = vsub.f32 %v633, %v1041
      %v1043 = vand.u32 %v1042, 4294901760
      %v1044 = vsub.f32 %v1042, %v1043
      %v1045 = vand.u32 %v1044, 4294901760
      %1046 = vmatmul.mubr.f32.gmra.mxu0 %v1045
      %v1047 = vpop.f32.mrf.mxu0
      %v1048 = vadd.f32 0.0, %v1047
      %v1049 = vpop.f32.mrf.mxu0
      %v1050 = vadd.f32 0.0, %v1049
      %1051 = vmatprep.mubr.f32.mxu0 0.0
      %v1052 = vand.u32 %v636, 4294901760
      %v1053 = vsub.f32 %v636, %v1052
      %v1054 = vand.u32 %v1053, 4294901760
      %v1055 = vsub.f32 %v1053, %v1054
      %v1056 = vand.u32 %v1055, 4294901760
      %1057 = vmatmul.mubr.f32.gmra.mxu0 %v1056
      %v1058 = vpop.f32.mrf.mxu0
      %v1059 = vadd.f32 0.0, %v1058
      %v1060 = vpop.f32.mrf.mxu0
      %v1061 = vadd.f32 0.0, %v1060
      %1062 = vmatprep.mubr.f32.mxu0 0.0
      %v1063 = vand.u32 %v639, 4294901760
      %v1064 = vsub.f32 %v639, %v1063
      %v1065 = vand.u32 %v1064, 4294901760
      %v1066 = vsub.f32 %v1064, %v1065
      %v1067 = vand.u32 %v1066, 4294901760
      %1068 = vmatmul.mubr.f32.gmra.mxu0 %v1067
      %v1069 = vpop.f32.mrf.mxu0
      %v1070 = vadd.f32 0.0, %v1069
      %v1071 = vpop.f32.mrf.mxu0
      %v1072 = vadd.f32 0.0, %v1071
      %1073 = vmatprep.mubr.f32.mxu0 0.0
      %v1074 = vand.u32 %v642, 4294901760
      %v1075 = vsub.f32 %v642, %v1074
      %v1076 = vand.u32 %v1075, 4294901760
      %v1077 = vsub.f32 %v1075, %v1076
      %v1078 = vand.u32 %v1077, 4294901760
      %1079 = vmatmul.mubr.f32.gmra.mxu0 %v1078
      %v1080 = vpop.f32.mrf.mxu0
      %v1081 = vadd.f32 0.0, %v1080
      %v1082 = vpop.f32.mrf.mxu0
      %v1083 = vadd.f32 0.0, %v1082
      %1084 = vmatprep.mubr.f32.mxu0 0.0
      %v1085 = vand.u32 %v645, 4294901760
      %v1086 = vsub.f32 %v645, %v1085
      %v1087 = vand.u32 %v1086, 4294901760
      %v1088 = vsub.f32 %v1086, %v1087
      %v1089 = vand.u32 %v1088, 4294901760
      %1090 = vmatmul.mubr.f32.gmra.mxu0 %v1089
      %v1091 = vpop.f32.mrf.mxu0
      %v1092 = vadd.f32 0.0, %v1091
      %v1093 = vpop.f32.mrf.mxu0
      %v1094 = vadd.f32 0.0, %v1093
      %1095 = vdwg.mxu0
      %1096 = vmatprep.subr.mxu0 0.0
      %v1097 = vand.u32 %v597, 4294901760
      %v1098 = vsub.f32 %v597, %v1097
      %v1099 = vand.u32 %v1098, 4294901760
      %v1100 = vsub.f32 %v1098, %v1099
      %v1101 = vand.u32 %v1100, 4294901760
      %1102 = vmatpush1.xpose.msra.mxu0 %v1101
      %1103 = vmatprep.subr.mxu0 0.0
      %v1104 = vand.u32 %v594, 4294901760
      %v1105 = vsub.f32 %v594, %v1104
      %v1106 = vand.u32 %v1105, 4294901760
      %v1107 = vsub.f32 %v1105, %v1106
      %v1108 = vand.u32 %v1107, 4294901760
      %1109 = vmatpush1.xpose.msra.mxu0 %v1108
      %1110 = vmatprep.subr.mxu0 0.0
      %v1111 = vand.u32 %v591, 4294901760
      %v1112 = vsub.f32 %v591, %v1111
      %v1113 = vand.u32 %v1112, 4294901760
      %v1114 = vsub.f32 %v1112, %v1113
      %v1115 = vand.u32 %v1114, 4294901760
      %1116 = vmatpush1.xpose.msra.mxu0 %v1115
      %1117 = vmatprep.subr.mxu0 0.0
      %v1118 = vand.u32 %v588, 4294901760
      %v1119 = vsub.f32 %v588, %v1118
      %v1120 = vand.u32 %v1119, 4294901760
      %v1121 = vsub.f32 %v1119, %v1120
      %v1122 = vand.u32 %v1121, 4294901760
      %1123 = vmatpush1.xpose.msra.mxu0 %v1122
      %1124 = vmatprep.subr.mxu0 0.0
      %v1125 = vand.u32 %v585, 4294901760
      %v1126 = vsub.f32 %v585, %v1125
      %v1127 = vand.u32 %v1126, 4294901760
      %v1128 = vsub.f32 %v1126, %v1127
      %v1129 = vand.u32 %v1128, 4294901760
      %1130 = vmatpush1.xpose.msra.mxu0 %v1129
      %1131 = vmatprep.subr.mxu0 0.0
      %v1132 = vand.u32 %v582, 4294901760
      %v1133 = vsub.f32 %v582, %v1132
      %v1134 = vand.u32 %v1133, 4294901760
      %v1135 = vsub.f32 %v1133, %v1134
      %v1136 = vand.u32 %v1135, 4294901760
      %1137 = vmatpush1.xpose.msra.mxu0 %v1136
      %1138 = vmatprep.subr.mxu0 0.0
      %v1139 = vand.u32 %v579, 4294901760
      %v1140 = vsub.f32 %v579, %v1139
      %v1141 = vand.u32 %v1140, 4294901760
      %v1142 = vsub.f32 %v1140, %v1141
      %v1143 = vand.u32 %v1142, 4294901760
      %1144 = vmatpush1.xpose.msra.mxu0 %v1143
      %1145 = vmatprep.subr.mxu0 0.0
      %v1146 = vand.u32 %v576, 4294901760
      %v1147 = vsub.f32 %v576, %v1146
      %v1148 = vand.u32 %v1147, 4294901760
      %v1149 = vsub.f32 %v1147, %v1148
      %v1150 = vand.u32 %v1149, 4294901760
      %1151 = vmatpush1.xpose.msra.mxu0 %v1150
      %1152 = vmatprep.subr.mxu0 0.0
      %v1153 = vand.u32 %v573, 4294901760
      %v1154 = vsub.f32 %v573, %v1153
      %v1155 = vand.u32 %v1154, 4294901760
      %v1156 = vsub.f32 %v1154, %v1155
      %v1157 = vand.u32 %v1156, 4294901760
      %1158 = vmatpush1.xpose.msra.mxu0 %v1157
      %1159 = vmatprep.subr.mxu0 0.0
      %v1160 = vand.u32 %v570, 4294901760
      %v1161 = vsub.f32 %v570, %v1160
      %v1162 = vand.u32 %v1161, 4294901760
      %v1163 = vsub.f32 %v1161, %v1162
      %v1164 = vand.u32 %v1163, 4294901760
      %1165 = vmatpush1.xpose.msra.mxu0 %v1164
      %1166 = vmatprep.subr.mxu0 0.0
      %v1167 = vand.u32 %v567, 4294901760
      %v1168 = vsub.f32 %v567, %v1167
      %v1169 = vand.u32 %v1168, 4294901760
      %v1170 = vsub.f32 %v1168, %v1169
      %v1171 = vand.u32 %v1170, 4294901760
      %1172 = vmatpush1.xpose.msra.mxu0 %v1171
      %1173 = vmatprep.subr.mxu0 0.0
      %v1174 = vand.u32 %v564, 4294901760
      %v1175 = vsub.f32 %v564, %v1174
      %v1176 = vand.u32 %v1175, 4294901760
      %v1177 = vsub.f32 %v1175, %v1176
      %v1178 = vand.u32 %v1177, 4294901760
      %1179 = vmatpush1.xpose.msra.mxu0 %v1178
      %1180 = vmatprep.subr.mxu0 0.0
      %v1181 = vand.u32 %v561, 4294901760
      %v1182 = vsub.f32 %v561, %v1181
      %v1183 = vand.u32 %v1182, 4294901760
      %v1184 = vsub.f32 %v1182, %v1183
      %v1185 = vand.u32 %v1184, 4294901760
      %1186 = vmatpush1.xpose.msra.mxu0 %v1185
      %1187 = vmatprep.subr.mxu0 0.0
      %v1188 = vand.u32 %v558, 4294901760
      %v1189 = vsub.f32 %v558, %v1188
      %v1190 = vand.u32 %v1189, 4294901760
      %v1191 = vsub.f32 %v1189, %v1190
      %v1192 = vand.u32 %v1191, 4294901760
      %1193 = vmatpush1.xpose.msra.mxu0 %v1192
      %1194 = vmatprep.subr.mxu0 0.0
      %v1195 = vand.u32 %v555, 4294901760
      %v1196 = vsub.f32 %v555, %v1195
      %v1197 = vand.u32 %v1196, 4294901760
      %v1198 = vsub.f32 %v1196, %v1197
      %v1199 = vand.u32 %v1198, 4294901760
      %1200 = vmatpush1.xpose.msra.mxu0 %v1199
      %1201 = vmatprep.subr.mxu0 0.0
      %v1202 = vand.u32 %v552, 4294901760
      %v1203 = vsub.f32 %v552, %v1202
      %v1204 = vand.u32 %v1203, 4294901760
      %v1205 = vsub.f32 %v1203, %v1204
      %v1206 = vand.u32 %v1205, 4294901760
      %1207 = vmatpush1.xpose.msra.mxu0 %v1206
      %1208 = vmatprep.subr.mxu0 0.0
      %v1209 = vand.u32 %v645, 4294901760
      %v1210 = vsub.f32 %v645, %v1209
      %v1211 = vand.u32 %v1210, 4294901760
      %v1212 = vsub.f32 %v1210, %v1211
      %v1213 = vand.u32 %v1212, 4294901760
      %1214 = vmatpush2.xpose.msra.mxu0 %v1213
      %1215 = vmatprep.subr.mxu0 0.0
      %v1216 = vand.u32 %v642, 4294901760
      %v1217 = vsub.f32 %v642, %v1216
      %v1218 = vand.u32 %v1217, 4294901760
      %v1219 = vsub.f32 %v1217, %v1218
      %v1220 = vand.u32 %v1219, 4294901760
      %1221 = vmatpush2.xpose.msra.mxu0 %v1220
      %1222 = vmatprep.subr.mxu0 0.0
      %v1223 = vand.u32 %v639, 4294901760
      %v1224 = vsub.f32 %v639, %v1223
      %v1225 = vand.u32 %v1224, 4294901760
      %v1226 = vsub.f32 %v1224, %v1225
      %v1227 = vand.u32 %v1226, 4294901760
      %1228 = vmatpush2.xpose.msra.mxu0 %v1227
      %1229 = vmatprep.subr.mxu0 0.0
      %v1230 = vand.u32 %v636, 4294901760
      %v1231 = vsub.f32 %v636, %v1230
      %v1232 = vand.u32 %v1231, 4294901760
      %v1233 = vsub.f32 %v1231, %v1232
      %v1234 = vand.u32 %v1233, 4294901760
      %1235 = vmatpush2.xpose.msra.mxu0 %v1234
      %1236 = vmatprep.subr.mxu0 0.0
      %v1237 = vand.u32 %v633, 4294901760
      %v1238 = vsub.f32 %v633, %v1237
      %v1239 = vand.u32 %v1238, 4294901760
      %v1240 = vsub.f32 %v1238, %v1239
      %v1241 = vand.u32 %v1240, 4294901760
      %1242 = vmatpush2.xpose.msra.mxu0 %v1241
      %1243 = vmatprep.subr.mxu0 0.0
      %v1244 = vand.u32 %v630, 4294901760
      %v1245 = vsub.f32 %v630, %v1244
      %v1246 = vand.u32 %v1245, 4294901760
      %v1247 = vsub.f32 %v1245, %v1246
      %v1248 = vand.u32 %v1247, 4294901760
      %1249 = vmatpush2.xpose.msra.mxu0 %v1248
      %1250 = vmatprep.subr.mxu0 0.0
      %v1251 = vand.u32 %v627, 4294901760
      %v1252 = vsub.f32 %v627, %v1251
      %v1253 = vand.u32 %v1252, 4294901760
      %v1254 = vsub.f32 %v1252, %v1253
      %v1255 = vand.u32 %v1254, 4294901760
      %1256 = vmatpush2.xpose.msra.mxu0 %v1255
      %1257 = vmatprep.subr.mxu0 0.0
      %v1258 = vand.u32 %v624, 4294901760
      %v1259 = vsub.f32 %v624, %v1258
      %v1260 = vand.u32 %v1259, 4294901760
      %v1261 = vsub.f32 %v1259, %v1260
      %v1262 = vand.u32 %v1261, 4294901760
      %1263 = vmatpush2.xpose.msra.mxu0 %v1262
      %1264 = vmatprep.subr.mxu0 0.0
      %v1265 = vand.u32 %v621, 4294901760
      %v1266 = vsub.f32 %v621, %v1265
      %v1267 = vand.u32 %v1266, 4294901760
      %v1268 = vsub.f32 %v1266, %v1267
      %v1269 = vand.u32 %v1268, 4294901760
      %1270 = vmatpush2.xpose.msra.mxu0 %v1269
      %1271 = vmatprep.subr.mxu0 0.0
      %v1272 = vand.u32 %v618, 4294901760
      %v1273 = vsub.f32 %v618, %v1272
      %v1274 = vand.u32 %v1273, 4294901760
      %v1275 = vsub.f32 %v1273, %v1274
      %v1276 = vand.u32 %v1275, 4294901760
      %1277 = vmatpush2.xpose.msra.mxu0 %v1276
      %1278 = vmatprep.subr.mxu0 0.0
      %v1279 = vand.u32 %v615, 4294901760
      %v1280 = vsub.f32 %v615, %v1279
      %v1281 = vand.u32 %v1280, 4294901760
      %v1282 = vsub.f32 %v1280, %v1281
      %v1283 = vand.u32 %v1282, 4294901760
      %1284 = vmatpush2.xpose.msra.mxu0 %v1283
      %1285 = vmatprep.subr.mxu0 0.0
      %v1286 = vand.u32 %v612, 4294901760
      %v1287 = vsub.f32 %v612, %v1286
      %v1288 = vand.u32 %v1287, 4294901760
      %v1289 = vsub.f32 %v1287, %v1288
      %v1290 = vand.u32 %v1289, 4294901760
      %1291 = vmatpush2.xpose.msra.mxu0 %v1290
      %1292 = vmatprep.subr.mxu0 0.0
      %v1293 = vand.u32 %v609, 4294901760
      %v1294 = vsub.f32 %v609, %v1293
      %v1295 = vand.u32 %v1294, 4294901760
      %v1296 = vsub.f32 %v1294, %v1295
      %v1297 = vand.u32 %v1296, 4294901760
      %1298 = vmatpush2.xpose.msra.mxu0 %v1297
      %1299 = vmatprep.subr.mxu0 0.0
      %v1300 = vand.u32 %v606, 4294901760
      %v1301 = vsub.f32 %v606, %v1300
      %v1302 = vand.u32 %v1301, 4294901760
      %v1303 = vsub.f32 %v1301, %v1302
      %v1304 = vand.u32 %v1303, 4294901760
      %1305 = vmatpush2.xpose.msra.mxu0 %v1304
      %1306 = vmatprep.subr.mxu0 0.0
      %v1307 = vand.u32 %v603, 4294901760
      %v1308 = vsub.f32 %v603, %v1307
      %v1309 = vand.u32 %v1308, 4294901760
      %v1310 = vsub.f32 %v1308, %v1309
      %v1311 = vand.u32 %v1310, 4294901760
      %1312 = vmatpush2.xpose.msra.mxu0 %v1311
      %1313 = vmatprep.subr.mxu0 0.0
      %v1314 = vand.u32 %v600, 4294901760
      %v1315 = vsub.f32 %v600, %v1314
      %v1316 = vand.u32 %v1315, 4294901760
      %v1317 = vsub.f32 %v1315, %v1316
      %v1318 = vand.u32 %v1317, 4294901760
      %1319 = vmatpush2.xpose.msra.mxu0 %v1318
      %1320 = vmatprep.mubr.f32.mxu0 0.0
      %v1321 = vand.u32 %v552, 4294901760
      %1322 = vmatmul.mubr.f32.gmra.mxu0 %v1321
      %v1323 = vpop.f32.mrf.mxu0
      %v1324 = vadd.f32 %v751, %v1323
      %v1325 = vpop.f32.mrf.mxu0
      %v1326 = vadd.f32 %v753, %v1325
      %1327 = vmatprep.mubr.f32.mxu0 0.0
      %v1328 = vand.u32 %v555, 4294901760
      %1329 = vmatmul.mubr.f32.gmra.mxu0 %v1328
      %v1330 = vpop.f32.mrf.mxu0
      %v1331 = vadd.f32 %v762, %v1330
      %v1332 = vpop.f32.mrf.mxu0
      %v1333 = vadd.f32 %v764, %v1332
      %1334 = vmatprep.mubr.f32.mxu0 0.0
      %v1335 = vand.u32 %v558, 4294901760
      %1336 = vmatmul.mubr.f32.gmra.mxu0 %v1335
      %v1337 = vpop.f32.mrf.mxu0
      %v1338 = vadd.f32 %v773, %v1337
      %v1339 = vpop.f32.mrf.mxu0
      %v1340 = vadd.f32 %v775, %v1339
      %1341 = vmatprep.mubr.f32.mxu0 0.0
      %v1342 = vand.u32 %v561, 4294901760
      %1343 = vmatmul.mubr.f32.gmra.mxu0 %v1342
      %v1344 = vpop.f32.mrf.mxu0
      %v1345 = vadd.f32 %v784, %v1344
      %v1346 = vpop.f32.mrf.mxu0
      %v1347 = vadd.f32 %v786, %v1346
      %1348 = vmatprep.mubr.f32.mxu0 0.0
      %v1349 = vand.u32 %v564, 4294901760
      %1350 = vmatmul.mubr.f32.gmra.mxu0 %v1349
      %v1351 = vpop.f32.mrf.mxu0
      %v1352 = vadd.f32 %v795, %v1351
      %v1353 = vpop.f32.mrf.mxu0
      %v1354 = vadd.f32 %v797, %v1353
      %1355 = vmatprep.mubr.f32.mxu0 0.0
      %v1356 = vand.u32 %v567, 4294901760
      %1357 = vmatmul.mubr.f32.gmra.mxu0 %v1356
      %v1358 = vpop.f32.mrf.mxu0
      %v1359 = vadd.f32 %v806, %v1358
      %v1360 = vpop.f32.mrf.mxu0
      %v1361 = vadd.f32 %v808, %v1360
      %1362 = vmatprep.mubr.f32.mxu0 0.0
      %v1363 = vand.u32 %v570, 4294901760
      %1364 = vmatmul.mubr.f32.gmra.mxu0 %v1363
      %v1365 = vpop.f32.mrf.mxu0
      %v1366 = vadd.f32 %v817, %v1365
      %v1367 = vpop.f32.mrf.mxu0
      %v1368 = vadd.f32 %v819, %v1367
      %1369 = vmatprep.mubr.f32.mxu0 0.0
      %v1370 = vand.u32 %v573, 4294901760
      %1371 = vmatmul.mubr.f32.gmra.mxu0 %v1370
      %v1372 = vpop.f32.mrf.mxu0
      %v1373 = vadd.f32 %v828, %v1372
      %v1374 = vpop.f32.mrf.mxu0
      %v1375 = vadd.f32 %v830, %v1374
      %1376 = vmatprep.mubr.f32.mxu0 0.0
      %v1377 = vand.u32 %v576, 4294901760
      %1378 = vmatmul.mubr.f32.gmra.mxu0 %v1377
      %v1379 = vpop.f32.mrf.mxu0
      %v1380 = vadd.f32 %v839, %v1379
      %v1381 = vpop.f32.mrf.mxu0
      %v1382 = vadd.f32 %v841, %v1381
      %1383 = vmatprep.mubr.f32.mxu0 0.0
      %v1384 = vand.u32 %v579, 4294901760
      %1385 = vmatmul.mubr.f32.gmra.mxu0 %v1384
      %v1386 = vpop.f32.mrf.mxu0
      %v1387 = vadd.f32 %v850, %v1386
      %v1388 = vpop.f32.mrf.mxu0
      %v1389 = vadd.f32 %v852, %v1388
      %1390 = vmatprep.mubr.f32.mxu0 0.0
      %v1391 = vand.u32 %v582, 4294901760
      %1392 = vmatmul.mubr.f32.gmra.mxu0 %v1391
      %v1393 = vpop.f32.mrf.mxu0
      %v1394 = vadd.f32 %v861, %v1393
      %v1395 = vpop.f32.mrf.mxu0
      %v1396 = vadd.f32 %v863, %v1395
      %1397 = vmatprep.mubr.f32.mxu0 0.0
      %v1398 = vand.u32 %v585, 4294901760
      %1399 = vmatmul.mubr.f32.gmra.mxu0 %v1398
      %v1400 = vpop.f32.mrf.mxu0
      %v1401 = vadd.f32 %v872, %v1400
      %v1402 = vpop.f32.mrf.mxu0
      %v1403 = vadd.f32 %v874, %v1402
      %1404 = vmatprep.mubr.f32.mxu0 0.0
      %v1405 = vand.u32 %v588, 4294901760
      %1406 = vmatmul.mubr.f32.gmra.mxu0 %v1405
      %v1407 = vpop.f32.mrf.mxu0
      %v1408 = vadd.f32 %v883, %v1407
      %v1409 = vpop.f32.mrf.mxu0
      %v1410 = vadd.f32 %v885, %v1409
      %1411 = vmatprep.mubr.f32.mxu0 0.0
      %v1412 = vand.u32 %v591, 4294901760
      %1413 = vmatmul.mubr.f32.gmra.mxu0 %v1412
      %v1414 = vpop.f32.mrf.mxu0
      %v1415 = vadd.f32 %v894, %v1414
      %v1416 = vpop.f32.mrf.mxu0
      %v1417 = vadd.f32 %v896, %v1416
      %1418 = vmatprep.mubr.f32.mxu0 0.0
      %v1419 = vand.u32 %v594, 4294901760
      %1420 = vmatmul.mubr.f32.gmra.mxu0 %v1419
      %v1421 = vpop.f32.mrf.mxu0
      %v1422 = vadd.f32 %v905, %v1421
      %v1423 = vpop.f32.mrf.mxu0
      %v1424 = vadd.f32 %v907, %v1423
      %1425 = vmatprep.mubr.f32.mxu0 0.0
      %v1426 = vand.u32 %v597, 4294901760
      %1427 = vmatmul.mubr.f32.gmra.mxu0 %v1426
      %v1428 = vpop.f32.mrf.mxu0
      %v1429 = vadd.f32 %v916, %v1428
      %v1430 = vpop.f32.mrf.mxu0
      %v1431 = vadd.f32 %v918, %v1430
      %1432 = vmatprep.mubr.f32.mxu0 0.0
      %v1433 = vand.u32 %v600, 4294901760
      %1434 = vmatmul.mubr.f32.gmra.mxu0 %v1433
      %v1435 = vpop.f32.mrf.mxu0
      %v1436 = vadd.f32 %v927, %v1435
      %v1437 = vpop.f32.mrf.mxu0
      %v1438 = vadd.f32 %v929, %v1437
      %1439 = vmatprep.mubr.f32.mxu0 0.0
      %v1440 = vand.u32 %v603, 4294901760
      %1441 = vmatmul.mubr.f32.gmra.mxu0 %v1440
      %v1442 = vpop.f32.mrf.mxu0
      %v1443 = vadd.f32 %v938, %v1442
      %v1444 = vpop.f32.mrf.mxu0
      %v1445 = vadd.f32 %v940, %v1444
      %1446 = vmatprep.mubr.f32.mxu0 0.0
      %v1447 = vand.u32 %v606, 4294901760
      %1448 = vmatmul.mubr.f32.gmra.mxu0 %v1447
      %v1449 = vpop.f32.mrf.mxu0
      %v1450 = vadd.f32 %v949, %v1449
      %v1451 = vpop.f32.mrf.mxu0
      %v1452 = vadd.f32 %v951, %v1451
      %1453 = vmatprep.mubr.f32.mxu0 0.0
      %v1454 = vand.u32 %v609, 4294901760
      %1455 = vmatmul.mubr.f32.gmra.mxu0 %v1454
      %v1456 = vpop.f32.mrf.mxu0
      %v1457 = vadd.f32 %v960, %v1456
      %v1458 = vpop.f32.mrf.mxu0
      %v1459 = vadd.f32 %v962, %v1458
      %1460 = vmatprep.mubr.f32.mxu0 0.0
      %v1461 = vand.u32 %v612, 4294901760
      %1462 = vmatmul.mubr.f32.gmra.mxu0 %v1461
      %v1463 = vpop.f32.mrf.mxu0
      %v1464 = vadd.f32 %v971, %v1463
      %v1465 = vpop.f32.mrf.mxu0
      %v1466 = vadd.f32 %v973, %v1465
      %1467 = vmatprep.mubr.f32.mxu0 0.0
      %v1468 = vand.u32 %v615, 4294901760
      %1469 = vmatmul.mubr.f32.gmra.mxu0 %v1468
      %v1470 = vpop.f32.mrf.mxu0
      %v1471 = vadd.f32 %v982, %v1470
      %v1472 = vpop.f32.mrf.mxu0
      %v1473 = vadd.f32 %v984, %v1472
      %1474 = vmatprep.mubr.f32.mxu0 0.0
      %v1475 = vand.u32 %v618, 4294901760
      %1476 = vmatmul.mubr.f32.gmra.mxu0 %v1475
      %v1477 = vpop.f32.mrf.mxu0
      %v1478 = vadd.f32 %v993, %v1477
      %v1479 = vpop.f32.mrf.mxu0
      %v1480 = vadd.f32 %v995, %v1479
      %1481 = vmatprep.mubr.f32.mxu0 0.0
      %v1482 = vand.u32 %v621, 4294901760
      %1483 = vmatmul.mubr.f32.gmra.mxu0 %v1482
      %v1484 = vpop.f32.mrf.mxu0
      %v1485 = vadd.f32 %v1004, %v1484
      %v1486 = vpop.f32.mrf.mxu0
      %v1487 = vadd.f32 %v1006, %v1486
      %1488 = vmatprep.mubr.f32.mxu0 0.0
      %v1489 = vand.u32 %v624, 4294901760
      %1490 = vmatmul.mubr.f32.gmra.mxu0 %v1489
      %v1491 = vpop.f32.mrf.mxu0
      %v1492 = vadd.f32 %v1015, %v1491
      %v1493 = vpop.f32.mrf.mxu0
      %v1494 = vadd.f32 %v1017, %v1493
      %1495 = vmatprep.mubr.f32.mxu0 0.0
      %v1496 = vand.u32 %v627, 4294901760
      %1497 = vmatmul.mubr.f32.gmra.mxu0 %v1496
      %v1498 = vpop.f32.mrf.mxu0
      %v1499 = vadd.f32 %v1026, %v1498
      %v1500 = vpop.f32.mrf.mxu0
      %v1501 = vadd.f32 %v1028, %v1500
      %1502 = vmatprep.mubr.f32.mxu0 0.0
      %v1503 = vand.u32 %v630, 4294901760
      %1504 = vmatmul.mubr.f32.gmra.mxu0 %v1503
      %v1505 = vpop.f32.mrf.mxu0
      %v1506 = vadd.f32 %v1037, %v1505
      %v1507 = vpop.f32.mrf.mxu0
      %v1508 = vadd.f32 %v1039, %v1507
      %1509 = vmatprep.mubr.f32.mxu0 0.0
      %v1510 = vand.u32 %v633, 4294901760
      %1511 = vmatmul.mubr.f32.gmra.mxu0 %v1510
      %v1512 = vpop.f32.mrf.mxu0
      %v1513 = vadd.f32 %v1048, %v1512
      %v1514 = vpop.f32.mrf.mxu0
      %v1515 = vadd.f32 %v1050, %v1514
      %1516 = vmatprep.mubr.f32.mxu0 0.0
      %v1517 = vand.u32 %v636, 4294901760
      %1518 = vmatmul.mubr.f32.gmra.mxu0 %v1517
      %v1519 = vpop.f32.mrf.mxu0
      %v1520 = vadd.f32 %v1059, %v1519
      %v1521 = vpop.f32.mrf.mxu0
      %v1522 = vadd.f32 %v1061, %v1521
      %1523 = vmatprep.mubr.f32.mxu0 0.0
      %v1524 = vand.u32 %v639, 4294901760
      %1525 = vmatmul.mubr.f32.gmra.mxu0 %v1524
      %v1526 = vpop.f32.mrf.mxu0
      %v1527 = vadd.f32 %v1070, %v1526
      %v1528 = vpop.f32.mrf.mxu0
      %v1529 = vadd.f32 %v1072, %v1528
      %1530 = vmatprep.mubr.f32.mxu0 0.0
      %v1531 = vand.u32 %v642, 4294901760
      %1532 = vmatmul.mubr.f32.gmra.mxu0 %v1531
      %v1533 = vpop.f32.mrf.mxu0
      %v1534 = vadd.f32 %v1081, %v1533
      %v1535 = vpop.f32.mrf.mxu0
      %v1536 = vadd.f32 %v1083, %v1535
      %1537 = vmatprep.mubr.f32.mxu0 0.0
      %v1538 = vand.u32 %v645, 4294901760
      %1539 = vmatmul.mubr.f32.gmra.mxu0 %v1538
      %v1540 = vpop.f32.mrf.mxu0
      %v1541 = vadd.f32 %v1092, %v1540
      %v1542 = vpop.f32.mrf.mxu0
      %v1543 = vadd.f32 %v1094, %v1542
      %1544 = vdwg.mxu0
      %1545 = vmatprep.subr.mxu0 0.0
      %v1546 = vand.u32 %v597, 4294901760
      %v1547 = vsub.f32 %v597, %v1546
      %1548 = vmatpush1.xpose.msra.mxu0 %v1547
      %1549 = vmatprep.subr.mxu0 0.0
      %v1550 = vand.u32 %v594, 4294901760
      %v1551 = vsub.f32 %v594, %v1550
      %1552 = vmatpush1.xpose.msra.mxu0 %v1551
      %1553 = vmatprep.subr.mxu0 0.0
      %v1554 = vand.u32 %v591, 4294901760
      %v1555 = vsub.f32 %v591, %v1554
      %1556 = vmatpush1.xpose.msra.mxu0 %v1555
      %1557 = vmatprep.subr.mxu0 0.0
      %v1558 = vand.u32 %v588, 4294901760
      %v1559 = vsub.f32 %v588, %v1558
      %1560 = vmatpush1.xpose.msra.mxu0 %v1559
      %1561 = vmatprep.subr.mxu0 0.0
      %v1562 = vand.u32 %v585, 4294901760
      %v1563 = vsub.f32 %v585, %v1562
      %1564 = vmatpush1.xpose.msra.mxu0 %v1563
      %1565 = vmatprep.subr.mxu0 0.0
      %v1566 = vand.u32 %v582, 4294901760
      %v1567 = vsub.f32 %v582, %v1566
      %1568 = vmatpush1.xpose.msra.mxu0 %v1567
      %1569 = vmatprep.subr.mxu0 0.0
      %v1570 = vand.u32 %v579, 4294901760
      %v1571 = vsub.f32 %v579, %v1570
      %1572 = vmatpush1.xpose.msra.mxu0 %v1571
      %1573 = vmatprep.subr.mxu0 0.0
      %v1574 = vand.u32 %v576, 4294901760
      %v1575 = vsub.f32 %v576, %v1574
      %1576 = vmatpush1.xpose.msra.mxu0 %v1575
      %1577 = vmatprep.subr.mxu0 0.0
      %v1578 = vand.u32 %v573, 4294901760
      %v1579 = vsub.f32 %v573, %v1578
      %1580 = vmatpush1.xpose.msra.mxu0 %v1579
      %1581 = vmatprep.subr.mxu0 0.0
      %v1582 = vand.u32 %v570, 4294901760
      %v1583 = vsub.f32 %v570, %v1582
      %1584 = vmatpush1.xpose.msra.mxu0 %v1583
      %1585 = vmatprep.subr.mxu0 0.0
      %v1586 = vand.u32 %v567, 4294901760
      %v1587 = vsub.f32 %v567, %v1586
      %1588 = vmatpush1.xpose.msra.mxu0 %v1587
      %1589 = vmatprep.subr.mxu0 0.0
      %v1590 = vand.u32 %v564, 4294901760
      %v1591 = vsub.f32 %v564, %v1590
      %1592 = vmatpush1.xpose.msra.mxu0 %v1591
      %1593 = vmatprep.subr.mxu0 0.0
      %v1594 = vand.u32 %v561, 4294901760
      %v1595 = vsub.f32 %v561, %v1594
      %1596 = vmatpush1.xpose.msra.mxu0 %v1595
      %1597 = vmatprep.subr.mxu0 0.0
      %v1598 = vand.u32 %v558, 4294901760
      %v1599 = vsub.f32 %v558, %v1598
      %1600 = vmatpush1.xpose.msra.mxu0 %v1599
      %1601 = vmatprep.subr.mxu0 0.0
      %v1602 = vand.u32 %v555, 4294901760
      %v1603 = vsub.f32 %v555, %v1602
      %1604 = vmatpush1.xpose.msra.mxu0 %v1603
      %1605 = vmatprep.subr.mxu0 0.0
      %v1606 = vand.u32 %v552, 4294901760
      %v1607 = vsub.f32 %v552, %v1606
      %1608 = vmatpush1.xpose.msra.mxu0 %v1607
      %1609 = vmatprep.subr.mxu0 0.0
      %v1610 = vand.u32 %v645, 4294901760
      %v1611 = vsub.f32 %v645, %v1610
      %1612 = vmatpush2.xpose.msra.mxu0 %v1611
      %1613 = vmatprep.subr.mxu0 0.0
      %v1614 = vand.u32 %v642, 4294901760
      %v1615 = vsub.f32 %v642, %v1614
      %1616 = vmatpush2.xpose.msra.mxu0 %v1615
      %1617 = vmatprep.subr.mxu0 0.0
      %v1618 = vand.u32 %v639, 4294901760
      %v1619 = vsub.f32 %v639, %v1618
      %1620 = vmatpush2.xpose.msra.mxu0 %v1619
      %1621 = vmatprep.subr.mxu0 0.0
      %v1622 = vand.u32 %v636, 4294901760
      %v1623 = vsub.f32 %v636, %v1622
      %1624 = vmatpush2.xpose.msra.mxu0 %v1623
      %1625 = vmatprep.subr.mxu0 0.0
      %v1626 = vand.u32 %v633, 4294901760
      %v1627 = vsub.f32 %v633, %v1626
      %1628 = vmatpush2.xpose.msra.mxu0 %v1627
      %1629 = vmatprep.subr.mxu0 0.0
      %v1630 = vand.u32 %v630, 4294901760
      %v1631 = vsub.f32 %v630, %v1630
      %1632 = vmatpush2.xpose.msra.mxu0 %v1631
      %1633 = vmatprep.subr.mxu0 0.0
      %v1634 = vand.u32 %v627, 4294901760
      %v1635 = vsub.f32 %v627, %v1634
      %1636 = vmatpush2.xpose.msra.mxu0 %v1635
      %1637 = vmatprep.subr.mxu0 0.0
      %v1638 = vand.u32 %v624, 4294901760
      %v1639 = vsub.f32 %v624, %v1638
      %1640 = vmatpush2.xpose.msra.mxu0 %v1639
      %1641 = vmatprep.subr.mxu0 0.0
      %v1642 = vand.u32 %v621, 4294901760
      %v1643 = vsub.f32 %v621, %v1642
      %1644 = vmatpush2.xpose.msra.mxu0 %v1643
      %1645 = vmatprep.subr.mxu0 0.0
      %v1646 = vand.u32 %v618, 4294901760
      %v1647 = vsub.f32 %v618, %v1646
      %1648 = vmatpush2.xpose.msra.mxu0 %v1647
      %1649 = vmatprep.subr.mxu0 0.0
      %v1650 = vand.u32 %v615, 4294901760
      %v1651 = vsub.f32 %v615, %v1650
      %1652 = vmatpush2.xpose.msra.mxu0 %v1651
      %1653 = vmatprep.subr.mxu0 0.0
      %v1654 = vand.u32 %v612, 4294901760
      %v1655 = vsub.f32 %v612, %v1654
      %1656 = vmatpush2.xpose.msra.mxu0 %v1655
      %1657 = vmatprep.subr.mxu0 0.0
      %v1658 = vand.u32 %v609, 4294901760
      %v1659 = vsub.f32 %v609, %v1658
      %1660 = vmatpush2.xpose.msra.mxu0 %v1659
      %1661 = vmatprep.subr.mxu0 0.0
      %v1662 = vand.u32 %v606, 4294901760
      %v1663 = vsub.f32 %v606, %v1662
      %1664 = vmatpush2.xpose.msra.mxu0 %v1663
      %1665 = vmatprep.subr.mxu0 0.0
      %v1666 = vand.u32 %v603, 4294901760
      %v1667 = vsub.f32 %v603, %v1666
      %1668 = vmatpush2.xpose.msra.mxu0 %v1667
      %1669 = vmatprep.subr.mxu0 0.0
      %v1670 = vand.u32 %v600, 4294901760
      %v1671 = vsub.f32 %v600, %v1670
      %1672 = vmatpush2.xpose.msra.mxu0 %v1671
      %1673 = vmatprep.mubr.f32.mxu0 0.0
      %v1674 = vand.u32 %v552, 4294901760
      %v1675 = vsub.f32 %v552, %v1674
      %1676 = vmatmul.mubr.f32.gmra.mxu0 %v1675
      %v1677 = vpop.f32.mrf.mxu0
      %v1678 = vadd.f32 %v1324, %v1677
      %v1679 = vpop.f32.mrf.mxu0
      %v1680 = vadd.f32 %v1326, %v1679
      %1681 = vmatprep.mubr.f32.mxu0 0.0
      %v1682 = vand.u32 %v555, 4294901760
      %v1683 = vsub.f32 %v555, %v1682
      %1684 = vmatmul.mubr.f32.gmra.mxu0 %v1683
      %v1685 = vpop.f32.mrf.mxu0
      %v1686 = vadd.f32 %v1331, %v1685
      %v1687 = vpop.f32.mrf.mxu0
      %v1688 = vadd.f32 %v1333, %v1687
      %1689 = vmatprep.mubr.f32.mxu0 0.0
      %v1690 = vand.u32 %v558, 4294901760
      %v1691 = vsub.f32 %v558, %v1690
      %1692 = vmatmul.mubr.f32.gmra.mxu0 %v1691
      %v1693 = vpop.f32.mrf.mxu0
      %v1694 = vadd.f32 %v1338, %v1693
      %v1695 = vpop.f32.mrf.mxu0
      %v1696 = vadd.f32 %v1340, %v1695
      %1697 = vmatprep.mubr.f32.mxu0 0.0
      %v1698 = vand.u32 %v561, 4294901760
      %v1699 = vsub.f32 %v561, %v1698
      %1700 = vmatmul.mubr.f32.gmra.mxu0 %v1699
      %v1701 = vpop.f32.mrf.mxu0
      %v1702 = vadd.f32 %v1345, %v1701
      %v1703 = vpop.f32.mrf.mxu0
      %v1704 = vadd.f32 %v1347, %v1703
      %1705 = vmatprep.mubr.f32.mxu0 0.0
      %v1706 = vand.u32 %v564, 4294901760
      %v1707 = vsub.f32 %v564, %v1706
      %1708 = vmatmul.mubr.f32.gmra.mxu0 %v1707
      %v1709 = vpop.f32.mrf.mxu0
      %v1710 = vadd.f32 %v1352, %v1709
      %v1711 = vpop.f32.mrf.mxu0
      %v1712 = vadd.f32 %v1354, %v1711
      %1713 = vmatprep.mubr.f32.mxu0 0.0
      %v1714 = vand.u32 %v567, 4294901760
      %v1715 = vsub.f32 %v567, %v1714
      %1716 = vmatmul.mubr.f32.gmra.mxu0 %v1715
      %v1717 = vpop.f32.mrf.mxu0
      %v1718 = vadd.f32 %v1359, %v1717
      %v1719 = vpop.f32.mrf.mxu0
      %v1720 = vadd.f32 %v1361, %v1719
      %1721 = vmatprep.mubr.f32.mxu0 0.0
      %v1722 = vand.u32 %v570, 4294901760
      %v1723 = vsub.f32 %v570, %v1722
      %1724 = vmatmul.mubr.f32.gmra.mxu0 %v1723
      %v1725 = vpop.f32.mrf.mxu0
      %v1726 = vadd.f32 %v1366, %v1725
      %v1727 = vpop.f32.mrf.mxu0
      %v1728 = vadd.f32 %v1368, %v1727
      %1729 = vmatprep.mubr.f32.mxu0 0.0
      %v1730 = vand.u32 %v573, 4294901760
      %v1731 = vsub.f32 %v573, %v1730
      %1732 = vmatmul.mubr.f32.gmra.mxu0 %v1731
      %v1733 = vpop.f32.mrf.mxu0
      %v1734 = vadd.f32 %v1373, %v1733
      %v1735 = vpop.f32.mrf.mxu0
      %v1736 = vadd.f32 %v1375, %v1735
      %1737 = vmatprep.mubr.f32.mxu0 0.0
      %v1738 = vand.u32 %v576, 4294901760
      %v1739 = vsub.f32 %v576, %v1738
      %1740 = vmatmul.mubr.f32.gmra.mxu0 %v1739
      %v1741 = vpop.f32.mrf.mxu0
      %v1742 = vadd.f32 %v1380, %v1741
      %v1743 = vpop.f32.mrf.mxu0
      %v1744 = vadd.f32 %v1382, %v1743
      %1745 = vmatprep.mubr.f32.mxu0 0.0
      %v1746 = vand.u32 %v579, 4294901760
      %v1747 = vsub.f32 %v579, %v1746
      %1748 = vmatmul.mubr.f32.gmra.mxu0 %v1747
      %v1749 = vpop.f32.mrf.mxu0
      %v1750 = vadd.f32 %v1387, %v1749
      %v1751 = vpop.f32.mrf.mxu0
      %v1752 = vadd.f32 %v1389, %v1751
      %1753 = vmatprep.mubr.f32.mxu0 0.0
      %v1754 = vand.u32 %v582, 4294901760
      %v1755 = vsub.f32 %v582, %v1754
      %1756 = vmatmul.mubr.f32.gmra.mxu0 %v1755
      %v1757 = vpop.f32.mrf.mxu0
      %v1758 = vadd.f32 %v1394, %v1757
      %v1759 = vpop.f32.mrf.mxu0
      %v1760 = vadd.f32 %v1396, %v1759
      %1761 = vmatprep.mubr.f32.mxu0 0.0
      %v1762 = vand.u32 %v585, 4294901760
      %v1763 = vsub.f32 %v585, %v1762
      %1764 = vmatmul.mubr.f32.gmra.mxu0 %v1763
      %v1765 = vpop.f32.mrf.mxu0
      %v1766 = vadd.f32 %v1401, %v1765
      %v1767 = vpop.f32.mrf.mxu0
      %v1768 = vadd.f32 %v1403, %v1767
      %1769 = vmatprep.mubr.f32.mxu0 0.0
      %v1770 = vand.u32 %v588, 4294901760
      %v1771 = vsub.f32 %v588, %v1770
      %1772 = vmatmul.mubr.f32.gmra.mxu0 %v1771
      %v1773 = vpop.f32.mrf.mxu0
      %v1774 = vadd.f32 %v1408, %v1773
      %v1775 = vpop.f32.mrf.mxu0
      %v1776 = vadd.f32 %v1410, %v1775
      %1777 = vmatprep.mubr.f32.mxu0 0.0
      %v1778 = vand.u32 %v591, 4294901760
      %v1779 = vsub.f32 %v591, %v1778
      %1780 = vmatmul.mubr.f32.gmra.mxu0 %v1779
      %v1781 = vpop.f32.mrf.mxu0
      %v1782 = vadd.f32 %v1415, %v1781
      %v1783 = vpop.f32.mrf.mxu0
      %v1784 = vadd.f32 %v1417, %v1783
      %1785 = vmatprep.mubr.f32.mxu0 0.0
      %v1786 = vand.u32 %v594, 4294901760
      %v1787 = vsub.f32 %v594, %v1786
      %1788 = vmatmul.mubr.f32.gmra.mxu0 %v1787
      %v1789 = vpop.f32.mrf.mxu0
      %v1790 = vadd.f32 %v1422, %v1789
      %v1791 = vpop.f32.mrf.mxu0
      %v1792 = vadd.f32 %v1424, %v1791
      %1793 = vmatprep.mubr.f32.mxu0 0.0
      %v1794 = vand.u32 %v597, 4294901760
      %v1795 = vsub.f32 %v597, %v1794
      %1796 = vmatmul.mubr.f32.gmra.mxu0 %v1795
      %v1797 = vpop.f32.mrf.mxu0
      %v1798 = vadd.f32 %v1429, %v1797
      %v1799 = vpop.f32.mrf.mxu0
      %v1800 = vadd.f32 %v1431, %v1799
      %1801 = vmatprep.mubr.f32.mxu0 0.0
      %v1802 = vand.u32 %v600, 4294901760
      %v1803 = vsub.f32 %v600, %v1802
      %1804 = vmatmul.mubr.f32.gmra.mxu0 %v1803
      %v1805 = vpop.f32.mrf.mxu0
      %v1806 = vadd.f32 %v1436, %v1805
      %v1807 = vpop.f32.mrf.mxu0
      %v1808 = vadd.f32 %v1438, %v1807
      %1809 = vmatprep.mubr.f32.mxu0 0.0
      %v1810 = vand.u32 %v603, 4294901760
      %v1811 = vsub.f32 %v603, %v1810
      %1812 = vmatmul.mubr.f32.gmra.mxu0 %v1811
      %v1813 = vpop.f32.mrf.mxu0
      %v1814 = vadd.f32 %v1443, %v1813
      %v1815 = vpop.f32.mrf.mxu0
      %v1816 = vadd.f32 %v1445, %v1815
      %1817 = vmatprep.mubr.f32.mxu0 0.0
      %v1818 = vand.u32 %v606, 4294901760
      %v1819 = vsub.f32 %v606, %v1818
      %1820 = vmatmul.mubr.f32.gmra.mxu0 %v1819
      %v1821 = vpop.f32.mrf.mxu0
      %v1822 = vadd.f32 %v1450, %v1821
      %v1823 = vpop.f32.mrf.mxu0
      %v1824 = vadd.f32 %v1452, %v1823
      %1825 = vmatprep.mubr.f32.mxu0 0.0
      %v1826 = vand.u32 %v609, 4294901760
      %v1827 = vsub.f32 %v609, %v1826
      %1828 = vmatmul.mubr.f32.gmra.mxu0 %v1827
      %v1829 = vpop.f32.mrf.mxu0
      %v1830 = vadd.f32 %v1457, %v1829
      %v1831 = vpop.f32.mrf.mxu0
      %v1832 = vadd.f32 %v1459, %v1831
      %1833 = vmatprep.mubr.f32.mxu0 0.0
      %v1834 = vand.u32 %v612, 4294901760
      %v1835 = vsub.f32 %v612, %v1834
      %1836 = vmatmul.mubr.f32.gmra.mxu0 %v1835
      %v1837 = vpop.f32.mrf.mxu0
      %v1838 = vadd.f32 %v1464, %v1837
      %v1839 = vpop.f32.mrf.mxu0
      %v1840 = vadd.f32 %v1466, %v1839
      %1841 = vmatprep.mubr.f32.mxu0 0.0
      %v1842 = vand.u32 %v615, 4294901760
      %v1843 = vsub.f32 %v615, %v1842
      %1844 = vmatmul.mubr.f32.gmra.mxu0 %v1843
      %v1845 = vpop.f32.mrf.mxu0
      %v1846 = vadd.f32 %v1471, %v1845
      %v1847 = vpop.f32.mrf.mxu0
      %v1848 = vadd.f32 %v1473, %v1847
      %1849 = vmatprep.mubr.f32.mxu0 0.0
      %v1850 = vand.u32 %v618, 4294901760
      %v1851 = vsub.f32 %v618, %v1850
      %1852 = vmatmul.mubr.f32.gmra.mxu0 %v1851
      %v1853 = vpop.f32.mrf.mxu0
      %v1854 = vadd.f32 %v1478, %v1853
      %v1855 = vpop.f32.mrf.mxu0
      %v1856 = vadd.f32 %v1480, %v1855
      %1857 = vmatprep.mubr.f32.mxu0 0.0
      %v1858 = vand.u32 %v621, 4294901760
      %v1859 = vsub.f32 %v621, %v1858
      %1860 = vmatmul.mubr.f32.gmra.mxu0 %v1859
      %v1861 = vpop.f32.mrf.mxu0
      %v1862 = vadd.f32 %v1485, %v1861
      %v1863 = vpop.f32.mrf.mxu0
      %v1864 = vadd.f32 %v1487, %v1863
      %1865 = vmatprep.mubr.f32.mxu0 0.0
      %v1866 = vand.u32 %v624, 4294901760
      %v1867 = vsub.f32 %v624, %v1866
      %1868 = vmatmul.mubr.f32.gmra.mxu0 %v1867
      %v1869 = vpop.f32.mrf.mxu0
      %v1870 = vadd.f32 %v1492, %v1869
      %v1871 = vpop.f32.mrf.mxu0
      %v1872 = vadd.f32 %v1494, %v1871
      %1873 = vmatprep.mubr.f32.mxu0 0.0
      %v1874 = vand.u32 %v627, 4294901760
      %v1875 = vsub.f32 %v627, %v1874
      %1876 = vmatmul.mubr.f32.gmra.mxu0 %v1875
      %v1877 = vpop.f32.mrf.mxu0
      %v1878 = vadd.f32 %v1499, %v1877
      %v1879 = vpop.f32.mrf.mxu0
      %v1880 = vadd.f32 %v1501, %v1879
      %1881 = vmatprep.mubr.f32.mxu0 0.0
      %v1882 = vand.u32 %v630, 4294901760
      %v1883 = vsub.f32 %v630, %v1882
      %1884 = vmatmul.mubr.f32.gmra.mxu0 %v1883
      %v1885 = vpop.f32.mrf.mxu0
      %v1886 = vadd.f32 %v1506, %v1885
      %v1887 = vpop.f32.mrf.mxu0
      %v1888 = vadd.f32 %v1508, %v1887
      %1889 = vmatprep.mubr.f32.mxu0 0.0
      %v1890 = vand.u32 %v633, 4294901760
      %v1891 = vsub.f32 %v633, %v1890
      %1892 = vmatmul.mubr.f32.gmra.mxu0 %v1891
      %v1893 = vpop.f32.mrf.mxu0
      %v1894 = vadd.f32 %v1513, %v1893
      %v1895 = vpop.f32.mrf.mxu0
      %v1896 = vadd.f32 %v1515, %v1895
      %1897 = vmatprep.mubr.f32.mxu0 0.0
      %v1898 = vand.u32 %v636, 4294901760
      %v1899 = vsub.f32 %v636, %v1898
      %1900 = vmatmul.mubr.f32.gmra.mxu0 %v1899
      %v1901 = vpop.f32.mrf.mxu0
      %v1902 = vadd.f32 %v1520, %v1901
      %v1903 = vpop.f32.mrf.mxu0
      %v1904 = vadd.f32 %v1522, %v1903
      %1905 = vmatprep.mubr.f32.mxu0 0.0
      %v1906 = vand.u32 %v639, 4294901760
      %v1907 = vsub.f32 %v639, %v1906
      %1908 = vmatmul.mubr.f32.gmra.mxu0 %v1907
      %v1909 = vpop.f32.mrf.mxu0
      %v1910 = vadd.f32 %v1527, %v1909
      %v1911 = vpop.f32.mrf.mxu0
      %v1912 = vadd.f32 %v1529, %v1911
      %1913 = vmatprep.mubr.f32.mxu0 0.0
      %v1914 = vand.u32 %v642, 4294901760
      %v1915 = vsub.f32 %v642, %v1914
      %1916 = vmatmul.mubr.f32.gmra.mxu0 %v1915
      %v1917 = vpop.f32.mrf.mxu0
      %v1918 = vadd.f32 %v1534, %v1917
      %v1919 = vpop.f32.mrf.mxu0
      %v1920 = vadd.f32 %v1536, %v1919
      %1921 = vmatprep.mubr.f32.mxu0 0.0
      %v1922 = vand.u32 %v645, 4294901760
      %v1923 = vsub.f32 %v645, %v1922
      %1924 = vmatmul.mubr.f32.gmra.mxu0 %v1923
      %v1925 = vpop.f32.mrf.mxu0
      %v1926 = vadd.f32 %v1541, %v1925
      %v1927 = vpop.f32.mrf.mxu0
      %v1928 = vadd.f32 %v1543, %v1927
      %1929 = vdwg.mxu0
      %1930 = vmatprep.subr.mxu0 0.0
      %v1931 = vand.u32 %v597, 4294901760
      %1932 = vmatpush1.xpose.msra.mxu0 %v1931
      %1933 = vmatprep.subr.mxu0 0.0
      %v1934 = vand.u32 %v594, 4294901760
      %1935 = vmatpush1.xpose.msra.mxu0 %v1934
      %1936 = vmatprep.subr.mxu0 0.0
      %v1937 = vand.u32 %v591, 4294901760
      %1938 = vmatpush1.xpose.msra.mxu0 %v1937
      %1939 = vmatprep.subr.mxu0 0.0
      %v1940 = vand.u32 %v588, 4294901760
      %1941 = vmatpush1.xpose.msra.mxu0 %v1940
      %1942 = vmatprep.subr.mxu0 0.0
      %v1943 = vand.u32 %v585, 4294901760
      %1944 = vmatpush1.xpose.msra.mxu0 %v1943
      %1945 = vmatprep.subr.mxu0 0.0
      %v1946 = vand.u32 %v582, 4294901760
      %1947 = vmatpush1.xpose.msra.mxu0 %v1946
      %1948 = vmatprep.subr.mxu0 0.0
      %v1949 = vand.u32 %v579, 4294901760
      %1950 = vmatpush1.xpose.msra.mxu0 %v1949
      %1951 = vmatprep.subr.mxu0 0.0
      %v1952 = vand.u32 %v576, 4294901760
      %1953 = vmatpush1.xpose.msra.mxu0 %v1952
      %1954 = vmatprep.subr.mxu0 0.0
      %v1955 = vand.u32 %v573, 4294901760
      %1956 = vmatpush1.xpose.msra.mxu0 %v1955
      %1957 = vmatprep.subr.mxu0 0.0
      %v1958 = vand.u32 %v570, 4294901760
      %1959 = vmatpush1.xpose.msra.mxu0 %v1958
      %1960 = vmatprep.subr.mxu0 0.0
      %v1961 = vand.u32 %v567, 4294901760
      %1962 = vmatpush1.xpose.msra.mxu0 %v1961
      %1963 = vmatprep.subr.mxu0 0.0
      %v1964 = vand.u32 %v564, 4294901760
      %1965 = vmatpush1.xpose.msra.mxu0 %v1964
      %1966 = vmatprep.subr.mxu0 0.0
      %v1967 = vand.u32 %v561, 4294901760
      %1968 = vmatpush1.xpose.msra.mxu0 %v1967
      %1969 = vmatprep.subr.mxu0 0.0
      %v1970 = vand.u32 %v558, 4294901760
      %1971 = vmatpush1.xpose.msra.mxu0 %v1970
      %1972 = vmatprep.subr.mxu0 0.0
      %v1973 = vand.u32 %v555, 4294901760
      %1974 = vmatpush1.xpose.msra.mxu0 %v1973
      %1975 = vmatprep.subr.mxu0 0.0
      %v1976 = vand.u32 %v552, 4294901760
      %1977 = vmatpush1.xpose.msra.mxu0 %v1976
      %1978 = vmatprep.subr.mxu0 0.0
      %v1979 = vand.u32 %v645, 4294901760
      %1980 = vmatpush2.xpose.msra.mxu0 %v1979
      %1981 = vmatprep.subr.mxu0 0.0
      %v1982 = vand.u32 %v642, 4294901760
      %1983 = vmatpush2.xpose.msra.mxu0 %v1982
      %1984 = vmatprep.subr.mxu0 0.0
      %v1985 = vand.u32 %v639, 4294901760
      %1986 = vmatpush2.xpose.msra.mxu0 %v1985
      %1987 = vmatprep.subr.mxu0 0.0
      %v1988 = vand.u32 %v636, 4294901760
      %1989 = vmatpush2.xpose.msra.mxu0 %v1988
      %1990 = vmatprep.subr.mxu0 0.0
      %v1991 = vand.u32 %v633, 4294901760
      %1992 = vmatpush2.xpose.msra.mxu0 %v1991
      %1993 = vmatprep.subr.mxu0 0.0
      %v1994 = vand.u32 %v630, 4294901760
      %1995 = vmatpush2.xpose.msra.mxu0 %v1994
      %1996 = vmatprep.subr.mxu0 0.0
      %v1997 = vand.u32 %v627, 4294901760
      %1998 = vmatpush2.xpose.msra.mxu0 %v1997
      %1999 = vmatprep.subr.mxu0 0.0
      %v2000 = vand.u32 %v624, 4294901760
      %2001 = vmatpush2.xpose.msra.mxu0 %v2000
      %2002 = vmatprep.subr.mxu0 0.0
      %v2003 = vand.u32 %v621, 4294901760
      %2004 = vmatpush2.xpose.msra.mxu0 %v2003
      %2005 = vmatprep.subr.mxu0 0.0
      %v2006 = vand.u32 %v618, 4294901760
      %2007 = vmatpush2.xpose.msra.mxu0 %v2006
      %2008 = vmatprep.subr.mxu0 0.0
      %v2009 = vand.u32 %v615, 4294901760
      %2010 = vmatpush2.xpose.msra.mxu0 %v2009
      %2011 = vmatprep.subr.mxu0 0.0
      %v2012 = vand.u32 %v612, 4294901760
      %2013 = vmatpush2.xpose.msra.mxu0 %v2012
      %2014 = vmatprep.subr.mxu0 0.0
      %v2015 = vand.u32 %v609, 4294901760
      %2016 = vmatpush2.xpose.msra.mxu0 %v2015
      %2017 = vmatprep.subr.mxu0 0.0
      %v2018 = vand.u32 %v606, 4294901760
      %2019 = vmatpush2.xpose.msra.mxu0 %v2018
      %2020 = vmatprep.subr.mxu0 0.0
      %v2021 = vand.u32 %v603, 4294901760
      %2022 = vmatpush2.xpose.msra.mxu0 %v2021
      %2023 = vmatprep.subr.mxu0 0.0
      %v2024 = vand.u32 %v600, 4294901760
      %2025 = vmatpush2.xpose.msra.mxu0 %v2024
      %2026 = vmatprep.mubr.f32.mxu0 0.0
      %v2027 = vand.u32 %v552, 4294901760
      %v2028 = vsub.f32 %v552, %v2027
      %v2029 = vand.u32 %v2028, 4294901760
      %2030 = vmatmul.mubr.f32.gmra.mxu0 %v2029
      %v2031 = vpop.f32.mrf.mxu0
      %v2032 = vadd.f32 %v1678, %v2031
      %v2033 = vpop.f32.mrf.mxu0
      %v2034 = vadd.f32 %v1680, %v2033
      %2035 = vmatprep.mubr.f32.mxu0 0.0
      %v2036 = vand.u32 %v555, 4294901760
      %v2037 = vsub.f32 %v555, %v2036
      %v2038 = vand.u32 %v2037, 4294901760
      %2039 = vmatmul.mubr.f32.gmra.mxu0 %v2038
      %v2040 = vpop.f32.mrf.mxu0
      %v2041 = vadd.f32 %v1686, %v2040
      %v2042 = vpop.f32.mrf.mxu0
      %v2043 = vadd.f32 %v1688, %v2042
      %2044 = vmatprep.mubr.f32.mxu0 0.0
      %v2045 = vand.u32 %v558, 4294901760
      %v2046 = vsub.f32 %v558, %v2045
      %v2047 = vand.u32 %v2046, 4294901760
      %2048 = vmatmul.mubr.f32.gmra.mxu0 %v2047
      %v2049 = vpop.f32.mrf.mxu0
      %v2050 = vadd.f32 %v1694, %v2049
      %v2051 = vpop.f32.mrf.mxu0
      %v2052 = vadd.f32 %v1696, %v2051
      %2053 = vmatprep.mubr.f32.mxu0 0.0
      %v2054 = vand.u32 %v561, 4294901760
      %v2055 = vsub.f32 %v561, %v2054
      %v2056 = vand.u32 %v2055, 4294901760
      %2057 = vmatmul.mubr.f32.gmra.mxu0 %v2056
      %v2058 = vpop.f32.mrf.mxu0
      %v2059 = vadd.f32 %v1702, %v2058
      %v2060 = vpop.f32.mrf.mxu0
      %v2061 = vadd.f32 %v1704, %v2060
      %2062 = vmatprep.mubr.f32.mxu0 0.0
      %v2063 = vand.u32 %v564, 4294901760
      %v2064 = vsub.f32 %v564, %v2063
      %v2065 = vand.u32 %v2064, 4294901760
      %2066 = vmatmul.mubr.f32.gmra.mxu0 %v2065
      %v2067 = vpop.f32.mrf.mxu0
      %v2068 = vadd.f32 %v1710, %v2067
      %v2069 = vpop.f32.mrf.mxu0
      %v2070 = vadd.f32 %v1712, %v2069
      %2071 = vmatprep.mubr.f32.mxu0 0.0
      %v2072 = vand.u32 %v567, 4294901760
      %v2073 = vsub.f32 %v567, %v2072
      %v2074 = vand.u32 %v2073, 4294901760
      %2075 = vmatmul.mubr.f32.gmra.mxu0 %v2074
      %v2076 = vpop.f32.mrf.mxu0
      %v2077 = vadd.f32 %v1718, %v2076
      %v2078 = vpop.f32.mrf.mxu0
      %v2079 = vadd.f32 %v1720, %v2078
      %2080 = vmatprep.mubr.f32.mxu0 0.0
      %v2081 = vand.u32 %v570, 4294901760
      %v2082 = vsub.f32 %v570, %v2081
      %v2083 = vand.u32 %v2082, 4294901760
      %2084 = vmatmul.mubr.f32.gmra.mxu0 %v2083
      %v2085 = vpop.f32.mrf.mxu0
      %v2086 = vadd.f32 %v1726, %v2085
      %v2087 = vpop.f32.mrf.mxu0
      %v2088 = vadd.f32 %v1728, %v2087
      %2089 = vmatprep.mubr.f32.mxu0 0.0
      %v2090 = vand.u32 %v573, 4294901760
      %v2091 = vsub.f32 %v573, %v2090
      %v2092 = vand.u32 %v2091, 4294901760
      %2093 = vmatmul.mubr.f32.gmra.mxu0 %v2092
      %v2094 = vpop.f32.mrf.mxu0
      %v2095 = vadd.f32 %v1734, %v2094
      %v2096 = vpop.f32.mrf.mxu0
      %v2097 = vadd.f32 %v1736, %v2096
      %2098 = vmatprep.mubr.f32.mxu0 0.0
      %v2099 = vand.u32 %v576, 4294901760
      %v2100 = vsub.f32 %v576, %v2099
      %v2101 = vand.u32 %v2100, 4294901760
      %2102 = vmatmul.mubr.f32.gmra.mxu0 %v2101
      %v2103 = vpop.f32.mrf.mxu0
      %v2104 = vadd.f32 %v1742, %v2103
      %v2105 = vpop.f32.mrf.mxu0
      %v2106 = vadd.f32 %v1744, %v2105
      %2107 = vmatprep.mubr.f32.mxu0 0.0
      %v2108 = vand.u32 %v579, 4294901760
      %v2109 = vsub.f32 %v579, %v2108
      %v2110 = vand.u32 %v2109, 4294901760
      %2111 = vmatmul.mubr.f32.gmra.mxu0 %v2110
      %v2112 = vpop.f32.mrf.mxu0
      %v2113 = vadd.f32 %v1750, %v2112
      %v2114 = vpop.f32.mrf.mxu0
      %v2115 = vadd.f32 %v1752, %v2114
      %2116 = vmatprep.mubr.f32.mxu0 0.0
      %v2117 = vand.u32 %v582, 4294901760
      %v2118 = vsub.f32 %v582, %v2117
      %v2119 = vand.u32 %v2118, 4294901760
      %2120 = vmatmul.mubr.f32.gmra.mxu0 %v2119
      %v2121 = vpop.f32.mrf.mxu0
      %v2122 = vadd.f32 %v1758, %v2121
      %v2123 = vpop.f32.mrf.mxu0
      %v2124 = vadd.f32 %v1760, %v2123
      %2125 = vmatprep.mubr.f32.mxu0 0.0
      %v2126 = vand.u32 %v585, 4294901760
      %v2127 = vsub.f32 %v585, %v2126
      %v2128 = vand.u32 %v2127, 4294901760
      %2129 = vmatmul.mubr.f32.gmra.mxu0 %v2128
      %v2130 = vpop.f32.mrf.mxu0
      %v2131 = vadd.f32 %v1766, %v2130
      %v2132 = vpop.f32.mrf.mxu0
      %v2133 = vadd.f32 %v1768, %v2132
      %2134 = vmatprep.mubr.f32.mxu0 0.0
      %v2135 = vand.u32 %v588, 4294901760
      %v2136 = vsub.f32 %v588, %v2135
      %v2137 = vand.u32 %v2136, 4294901760
      %2138 = vmatmul.mubr.f32.gmra.mxu0 %v2137
      %v2139 = vpop.f32.mrf.mxu0
      %v2140 = vadd.f32 %v1774, %v2139
      %v2141 = vpop.f32.mrf.mxu0
      %v2142 = vadd.f32 %v1776, %v2141
      %2143 = vmatprep.mubr.f32.mxu0 0.0
      %v2144 = vand.u32 %v591, 4294901760
      %v2145 = vsub.f32 %v591, %v2144
      %v2146 = vand.u32 %v2145, 4294901760
      %2147 = vmatmul.mubr.f32.gmra.mxu0 %v2146
      %v2148 = vpop.f32.mrf.mxu0
      %v2149 = vadd.f32 %v1782, %v2148
      %v2150 = vpop.f32.mrf.mxu0
      %v2151 = vadd.f32 %v1784, %v2150
      %2152 = vmatprep.mubr.f32.mxu0 0.0
      %v2153 = vand.u32 %v594, 4294901760
      %v2154 = vsub.f32 %v594, %v2153
      %v2155 = vand.u32 %v2154, 4294901760
      %2156 = vmatmul.mubr.f32.gmra.mxu0 %v2155
      %v2157 = vpop.f32.mrf.mxu0
      %v2158 = vadd.f32 %v1790, %v2157
      %v2159 = vpop.f32.mrf.mxu0
      %v2160 = vadd.f32 %v1792, %v2159
      %2161 = vmatprep.mubr.f32.mxu0 0.0
      %v2162 = vand.u32 %v597, 4294901760
      %v2163 = vsub.f32 %v597, %v2162
      %v2164 = vand.u32 %v2163, 4294901760
      %2165 = vmatmul.mubr.f32.gmra.mxu0 %v2164
      %v2166 = vpop.f32.mrf.mxu0
      %v2167 = vadd.f32 %v1798, %v2166
      %v2168 = vpop.f32.mrf.mxu0
      %v2169 = vadd.f32 %v1800, %v2168
      %2170 = vmatprep.mubr.f32.mxu0 0.0
      %v2171 = vand.u32 %v600, 4294901760
      %v2172 = vsub.f32 %v600, %v2171
      %v2173 = vand.u32 %v2172, 4294901760
      %2174 = vmatmul.mubr.f32.gmra.mxu0 %v2173
      %v2175 = vpop.f32.mrf.mxu0
      %v2176 = vadd.f32 %v1806, %v2175
      %v2177 = vpop.f32.mrf.mxu0
      %v2178 = vadd.f32 %v1808, %v2177
      %2179 = vmatprep.mubr.f32.mxu0 0.0
      %v2180 = vand.u32 %v603, 4294901760
      %v2181 = vsub.f32 %v603, %v2180
      %v2182 = vand.u32 %v2181, 4294901760
      %2183 = vmatmul.mubr.f32.gmra.mxu0 %v2182
      %v2184 = vpop.f32.mrf.mxu0
      %v2185 = vadd.f32 %v1814, %v2184
      %v2186 = vpop.f32.mrf.mxu0
      %v2187 = vadd.f32 %v1816, %v2186
      %2188 = vmatprep.mubr.f32.mxu0 0.0
      %v2189 = vand.u32 %v606, 4294901760
      %v2190 = vsub.f32 %v606, %v2189
      %v2191 = vand.u32 %v2190, 4294901760
      %2192 = vmatmul.mubr.f32.gmra.mxu0 %v2191
      %v2193 = vpop.f32.mrf.mxu0
      %v2194 = vadd.f32 %v1822, %v2193
      %v2195 = vpop.f32.mrf.mxu0
      %v2196 = vadd.f32 %v1824, %v2195
      %2197 = vmatprep.mubr.f32.mxu0 0.0
      %v2198 = vand.u32 %v609, 4294901760
      %v2199 = vsub.f32 %v609, %v2198
      %v2200 = vand.u32 %v2199, 4294901760
      %2201 = vmatmul.mubr.f32.gmra.mxu0 %v2200
      %v2202 = vpop.f32.mrf.mxu0
      %v2203 = vadd.f32 %v1830, %v2202
      %v2204 = vpop.f32.mrf.mxu0
      %v2205 = vadd.f32 %v1832, %v2204
      %2206 = vmatprep.mubr.f32.mxu0 0.0
      %v2207 = vand.u32 %v612, 4294901760
      %v2208 = vsub.f32 %v612, %v2207
      %v2209 = vand.u32 %v2208, 4294901760
      %2210 = vmatmul.mubr.f32.gmra.mxu0 %v2209
      %v2211 = vpop.f32.mrf.mxu0
      %v2212 = vadd.f32 %v1838, %v2211
      %v2213 = vpop.f32.mrf.mxu0
      %v2214 = vadd.f32 %v1840, %v2213
      %2215 = vmatprep.mubr.f32.mxu0 0.0
      %v2216 = vand.u32 %v615, 4294901760
      %v2217 = vsub.f32 %v615, %v2216
      %v2218 = vand.u32 %v2217, 4294901760
      %2219 = vmatmul.mubr.f32.gmra.mxu0 %v2218
      %v2220 = vpop.f32.mrf.mxu0
      %v2221 = vadd.f32 %v1846, %v2220
      %v2222 = vpop.f32.mrf.mxu0
      %v2223 = vadd.f32 %v1848, %v2222
      %2224 = vmatprep.mubr.f32.mxu0 0.0
      %v2225 = vand.u32 %v618, 4294901760
      %v2226 = vsub.f32 %v618, %v2225
      %v2227 = vand.u32 %v2226, 4294901760
      %2228 = vmatmul.mubr.f32.gmra.mxu0 %v2227
      %v2229 = vpop.f32.mrf.mxu0
      %v2230 = vadd.f32 %v1854, %v2229
      %v2231 = vpop.f32.mrf.mxu0
      %v2232 = vadd.f32 %v1856, %v2231
      %2233 = vmatprep.mubr.f32.mxu0 0.0
      %v2234 = vand.u32 %v621, 4294901760
      %v2235 = vsub.f32 %v621, %v2234
      %v2236 = vand.u32 %v2235, 4294901760
      %2237 = vmatmul.mubr.f32.gmra.mxu0 %v2236
      %v2238 = vpop.f32.mrf.mxu0
      %v2239 = vadd.f32 %v1862, %v2238
      %v2240 = vpop.f32.mrf.mxu0
      %v2241 = vadd.f32 %v1864, %v2240
      %2242 = vmatprep.mubr.f32.mxu0 0.0
      %v2243 = vand.u32 %v624, 4294901760
      %v2244 = vsub.f32 %v624, %v2243
      %v2245 = vand.u32 %v2244, 4294901760
      %2246 = vmatmul.mubr.f32.gmra.mxu0 %v2245
      %v2247 = vpop.f32.mrf.mxu0
      %v2248 = vadd.f32 %v1870, %v2247
      %v2249 = vpop.f32.mrf.mxu0
      %v2250 = vadd.f32 %v1872, %v2249
      %2251 = vmatprep.mubr.f32.mxu0 0.0
      %v2252 = vand.u32 %v627, 4294901760
      %v2253 = vsub.f32 %v627, %v2252
      %v2254 = vand.u32 %v2253, 4294901760
      %2255 = vmatmul.mubr.f32.gmra.mxu0 %v2254
      %v2256 = vpop.f32.mrf.mxu0
      %v2257 = vadd.f32 %v1878, %v2256
      %v2258 = vpop.f32.mrf.mxu0
      %v2259 = vadd.f32 %v1880, %v2258
      %2260 = vmatprep.mubr.f32.mxu0 0.0
      %v2261 = vand.u32 %v630, 4294901760
      %v2262 = vsub.f32 %v630, %v2261
      %v2263 = vand.u32 %v2262, 4294901760
      %2264 = vmatmul.mubr.f32.gmra.mxu0 %v2263
      %v2265 = vpop.f32.mrf.mxu0
      %v2266 = vadd.f32 %v1886, %v2265
      %v2267 = vpop.f32.mrf.mxu0
      %v2268 = vadd.f32 %v1888, %v2267
      %2269 = vmatprep.mubr.f32.mxu0 0.0
      %v2270 = vand.u32 %v633, 4294901760
      %v2271 = vsub.f32 %v633, %v2270
      %v2272 = vand.u32 %v2271, 4294901760
      %2273 = vmatmul.mubr.f32.gmra.mxu0 %v2272
      %v2274 = vpop.f32.mrf.mxu0
      %v2275 = vadd.f32 %v1894, %v2274
      %v2276 = vpop.f32.mrf.mxu0
      %v2277 = vadd.f32 %v1896, %v2276
      %2278 = vmatprep.mubr.f32.mxu0 0.0
      %v2279 = vand.u32 %v636, 4294901760
      %v2280 = vsub.f32 %v636, %v2279
      %v2281 = vand.u32 %v2280, 4294901760
      %2282 = vmatmul.mubr.f32.gmra.mxu0 %v2281
      %v2283 = vpop.f32.mrf.mxu0
      %v2284 = vadd.f32 %v1902, %v2283
      %v2285 = vpop.f32.mrf.mxu0
      %v2286 = vadd.f32 %v1904, %v2285
      %2287 = vmatprep.mubr.f32.mxu0 0.0
      %v2288 = vand.u32 %v639, 4294901760
      %v2289 = vsub.f32 %v639, %v2288
      %v2290 = vand.u32 %v2289, 4294901760
      %2291 = vmatmul.mubr.f32.gmra.mxu0 %v2290
      %v2292 = vpop.f32.mrf.mxu0
      %v2293 = vadd.f32 %v1910, %v2292
      %v2294 = vpop.f32.mrf.mxu0
      %v2295 = vadd.f32 %v1912, %v2294
      %2296 = vmatprep.mubr.f32.mxu0 0.0
      %v2297 = vand.u32 %v642, 4294901760
      %v2298 = vsub.f32 %v642, %v2297
      %v2299 = vand.u32 %v2298, 4294901760
      %2300 = vmatmul.mubr.f32.gmra.mxu0 %v2299
      %v2301 = vpop.f32.mrf.mxu0
      %v2302 = vadd.f32 %v1918, %v2301
      %v2303 = vpop.f32.mrf.mxu0
      %v2304 = vadd.f32 %v1920, %v2303
      %2305 = vmatprep.mubr.f32.mxu0 0.0
      %v2306 = vand.u32 %v645, 4294901760
      %v2307 = vsub.f32 %v645, %v2306
      %v2308 = vand.u32 %v2307, 4294901760
      %2309 = vmatmul.mubr.f32.gmra.mxu0 %v2308
      %v2310 = vpop.f32.mrf.mxu0
      %v2311 = vadd.f32 %v1926, %v2310
      %v2312 = vpop.f32.mrf.mxu0
      %v2313 = vadd.f32 %v1928, %v2312
      %2314 = vdwg.mxu0
      %2315 = vmatprep.subr.mxu0 0.0
      %v2316 = vand.u32 %v597, 4294901760
      %v2317 = vsub.f32 %v597, %v2316
      %v2318 = vand.u32 %v2317, 4294901760
      %2319 = vmatpush1.xpose.msra.mxu0 %v2318
      %2320 = vmatprep.subr.mxu0 0.0
      %v2321 = vand.u32 %v594, 4294901760
      %v2322 = vsub.f32 %v594, %v2321
      %v2323 = vand.u32 %v2322, 4294901760
      %2324 = vmatpush1.xpose.msra.mxu0 %v2323
      %2325 = vmatprep.subr.mxu0 0.0
      %v2326 = vand.u32 %v591, 4294901760
      %v2327 = vsub.f32 %v591, %v2326
      %v2328 = vand.u32 %v2327, 4294901760
      %2329 = vmatpush1.xpose.msra.mxu0 %v2328
      %2330 = vmatprep.subr.mxu0 0.0
      %v2331 = vand.u32 %v588, 4294901760
      %v2332 = vsub.f32 %v588, %v2331
      %v2333 = vand.u32 %v2332, 4294901760
      %2334 = vmatpush1.xpose.msra.mxu0 %v2333
      %2335 = vmatprep.subr.mxu0 0.0
      %v2336 = vand.u32 %v585, 4294901760
      %v2337 = vsub.f32 %v585, %v2336
      %v2338 = vand.u32 %v2337, 4294901760
      %2339 = vmatpush1.xpose.msra.mxu0 %v2338
      %2340 = vmatprep.subr.mxu0 0.0
      %v2341 = vand.u32 %v582, 4294901760
      %v2342 = vsub.f32 %v582, %v2341
      %v2343 = vand.u32 %v2342, 4294901760
      %2344 = vmatpush1.xpose.msra.mxu0 %v2343
      %2345 = vmatprep.subr.mxu0 0.0
      %v2346 = vand.u32 %v579, 4294901760
      %v2347 = vsub.f32 %v579, %v2346
      %v2348 = vand.u32 %v2347, 4294901760
      %2349 = vmatpush1.xpose.msra.mxu0 %v2348
      %2350 = vmatprep.subr.mxu0 0.0
      %v2351 = vand.u32 %v576, 4294901760
      %v2352 = vsub.f32 %v576, %v2351
      %v2353 = vand.u32 %v2352, 4294901760
      %2354 = vmatpush1.xpose.msra.mxu0 %v2353
      %2355 = vmatprep.subr.mxu0 0.0
      %v2356 = vand.u32 %v573, 4294901760
      %v2357 = vsub.f32 %v573, %v2356
      %v2358 = vand.u32 %v2357, 4294901760
      %2359 = vmatpush1.xpose.msra.mxu0 %v2358
      %2360 = vmatprep.subr.mxu0 0.0
      %v2361 = vand.u32 %v570, 4294901760
      %v2362 = vsub.f32 %v570, %v2361
      %v2363 = vand.u32 %v2362, 4294901760
      %2364 = vmatpush1.xpose.msra.mxu0 %v2363
      %2365 = vmatprep.subr.mxu0 0.0
      %v2366 = vand.u32 %v567, 4294901760
      %v2367 = vsub.f32 %v567, %v2366
      %v2368 = vand.u32 %v2367, 4294901760
      %2369 = vmatpush1.xpose.msra.mxu0 %v2368
      %2370 = vmatprep.subr.mxu0 0.0
      %v2371 = vand.u32 %v564, 4294901760
      %v2372 = vsub.f32 %v564, %v2371
      %v2373 = vand.u32 %v2372, 4294901760
      %2374 = vmatpush1.xpose.msra.mxu0 %v2373
      %2375 = vmatprep.subr.mxu0 0.0
      %v2376 = vand.u32 %v561, 4294901760
      %v2377 = vsub.f32 %v561, %v2376
      %v2378 = vand.u32 %v2377, 4294901760
      %2379 = vmatpush1.xpose.msra.mxu0 %v2378
      %2380 = vmatprep.subr.mxu0 0.0
      %v2381 = vand.u32 %v558, 4294901760
      %v2382 = vsub.f32 %v558, %v2381
      %v2383 = vand.u32 %v2382, 4294901760
      %2384 = vmatpush1.xpose.msra.mxu0 %v2383
      %2385 = vmatprep.subr.mxu0 0.0
      %v2386 = vand.u32 %v555, 4294901760
      %v2387 = vsub.f32 %v555, %v2386
      %v2388 = vand.u32 %v2387, 4294901760
      %2389 = vmatpush1.xpose.msra.mxu0 %v2388
      %2390 = vmatprep.subr.mxu0 0.0
      %v2391 = vand.u32 %v552, 4294901760
      %v2392 = vsub.f32 %v552, %v2391
      %v2393 = vand.u32 %v2392, 4294901760
      %2394 = vmatpush1.xpose.msra.mxu0 %v2393
      %2395 = vmatprep.subr.mxu0 0.0
      %v2396 = vand.u32 %v645, 4294901760
      %v2397 = vsub.f32 %v645, %v2396
      %v2398 = vand.u32 %v2397, 4294901760
      %2399 = vmatpush2.xpose.msra.mxu0 %v2398
      %2400 = vmatprep.subr.mxu0 0.0
      %v2401 = vand.u32 %v642, 4294901760
      %v2402 = vsub.f32 %v642, %v2401
      %v2403 = vand.u32 %v2402, 4294901760
      %2404 = vmatpush2.xpose.msra.mxu0 %v2403
      %2405 = vmatprep.subr.mxu0 0.0
      %v2406 = vand.u32 %v639, 4294901760
      %v2407 = vsub.f32 %v639, %v2406
      %v2408 = vand.u32 %v2407, 4294901760
      %2409 = vmatpush2.xpose.msra.mxu0 %v2408
      %2410 = vmatprep.subr.mxu0 0.0
      %v2411 = vand.u32 %v636, 4294901760
      %v2412 = vsub.f32 %v636, %v2411
      %v2413 = vand.u32 %v2412, 4294901760
      %2414 = vmatpush2.xpose.msra.mxu0 %v2413
      %2415 = vmatprep.subr.mxu0 0.0
      %v2416 = vand.u32 %v633, 4294901760
      %v2417 = vsub.f32 %v633, %v2416
      %v2418 = vand.u32 %v2417, 4294901760
      %2419 = vmatpush2.xpose.msra.mxu0 %v2418
      %2420 = vmatprep.subr.mxu0 0.0
      %v2421 = vand.u32 %v630, 4294901760
      %v2422 = vsub.f32 %v630, %v2421
      %v2423 = vand.u32 %v2422, 4294901760
      %2424 = vmatpush2.xpose.msra.mxu0 %v2423
      %2425 = vmatprep.subr.mxu0 0.0
      %v2426 = vand.u32 %v627, 4294901760
      %v2427 = vsub.f32 %v627, %v2426
      %v2428 = vand.u32 %v2427, 4294901760
      %2429 = vmatpush2.xpose.msra.mxu0 %v2428
      %2430 = vmatprep.subr.mxu0 0.0
      %v2431 = vand.u32 %v624, 4294901760
      %v2432 = vsub.f32 %v624, %v2431
      %v2433 = vand.u32 %v2432, 4294901760
      %2434 = vmatpush2.xpose.msra.mxu0 %v2433
      %2435 = vmatprep.subr.mxu0 0.0
      %v2436 = vand.u32 %v621, 4294901760
      %v2437 = vsub.f32 %v621, %v2436
      %v2438 = vand.u32 %v2437, 4294901760
      %2439 = vmatpush2.xpose.msra.mxu0 %v2438
      %2440 = vmatprep.subr.mxu0 0.0
      %v2441 = vand.u32 %v618, 4294901760
      %v2442 = vsub.f32 %v618, %v2441
      %v2443 = vand.u32 %v2442, 4294901760
      %2444 = vmatpush2.xpose.msra.mxu0 %v2443
      %2445 = vmatprep.subr.mxu0 0.0
      %v2446 = vand.u32 %v615, 4294901760
      %v2447 = vsub.f32 %v615, %v2446
      %v2448 = vand.u32 %v2447, 4294901760
      %2449 = vmatpush2.xpose.msra.mxu0 %v2448
      %2450 = vmatprep.subr.mxu0 0.0
      %v2451 = vand.u32 %v612, 4294901760
      %v2452 = vsub.f32 %v612, %v2451
      %v2453 = vand.u32 %v2452, 4294901760
      %2454 = vmatpush2.xpose.msra.mxu0 %v2453
      %2455 = vmatprep.subr.mxu0 0.0
      %v2456 = vand.u32 %v609, 4294901760
      %v2457 = vsub.f32 %v609, %v2456
      %v2458 = vand.u32 %v2457, 4294901760
      %2459 = vmatpush2.xpose.msra.mxu0 %v2458
      %2460 = vmatprep.subr.mxu0 0.0
      %v2461 = vand.u32 %v606, 4294901760
      %v2462 = vsub.f32 %v606, %v2461
      %v2463 = vand.u32 %v2462, 4294901760
      %2464 = vmatpush2.xpose.msra.mxu0 %v2463
      %2465 = vmatprep.subr.mxu0 0.0
      %v2466 = vand.u32 %v603, 4294901760
      %v2467 = vsub.f32 %v603, %v2466
      %v2468 = vand.u32 %v2467, 4294901760
      %2469 = vmatpush2.xpose.msra.mxu0 %v2468
      %2470 = vmatprep.subr.mxu0 0.0
      %v2471 = vand.u32 %v600, 4294901760
      %v2472 = vsub.f32 %v600, %v2471
      %v2473 = vand.u32 %v2472, 4294901760
      %2474 = vmatpush2.xpose.msra.mxu0 %v2473
      %2475 = vmatprep.mubr.f32.mxu0 0.0
      %v2476 = vand.u32 %v552, 4294901760
      %2477 = vmatmul.mubr.f32.gmra.mxu0 %v2476
      %v2478 = vpop.f32.mrf.mxu0
      %v2479 = vadd.f32 %v2032, %v2478
      %v2480 = vpop.f32.mrf.mxu0
      %v2481 = vadd.f32 %v2034, %v2480
      %2482 = vmatprep.mubr.f32.mxu0 0.0
      %v2483 = vand.u32 %v555, 4294901760
      %2484 = vmatmul.mubr.f32.gmra.mxu0 %v2483
      %v2485 = vpop.f32.mrf.mxu0
      %v2486 = vadd.f32 %v2041, %v2485
      %v2487 = vpop.f32.mrf.mxu0
      %v2488 = vadd.f32 %v2043, %v2487
      %2489 = vmatprep.mubr.f32.mxu0 0.0
      %v2490 = vand.u32 %v558, 4294901760
      %2491 = vmatmul.mubr.f32.gmra.mxu0 %v2490
      %v2492 = vpop.f32.mrf.mxu0
      %v2493 = vadd.f32 %v2050, %v2492
      %v2494 = vpop.f32.mrf.mxu0
      %v2495 = vadd.f32 %v2052, %v2494
      %2496 = vmatprep.mubr.f32.mxu0 0.0
      %v2497 = vand.u32 %v561, 4294901760
      %2498 = vmatmul.mubr.f32.gmra.mxu0 %v2497
      %v2499 = vpop.f32.mrf.mxu0
      %v2500 = vadd.f32 %v2059, %v2499
      %v2501 = vpop.f32.mrf.mxu0
      %v2502 = vadd.f32 %v2061, %v2501
      %2503 = vmatprep.mubr.f32.mxu0 0.0
      %v2504 = vand.u32 %v564, 4294901760
      %2505 = vmatmul.mubr.f32.gmra.mxu0 %v2504
      %v2506 = vpop.f32.mrf.mxu0
      %v2507 = vadd.f32 %v2068, %v2506
      %v2508 = vpop.f32.mrf.mxu0
      %v2509 = vadd.f32 %v2070, %v2508
      %2510 = vmatprep.mubr.f32.mxu0 0.0
      %v2511 = vand.u32 %v567, 4294901760
      %2512 = vmatmul.mubr.f32.gmra.mxu0 %v2511
      %v2513 = vpop.f32.mrf.mxu0
      %v2514 = vadd.f32 %v2077, %v2513
      %v2515 = vpop.f32.mrf.mxu0
      %v2516 = vadd.f32 %v2079, %v2515
      %2517 = vmatprep.mubr.f32.mxu0 0.0
      %v2518 = vand.u32 %v570, 4294901760
      %2519 = vmatmul.mubr.f32.gmra.mxu0 %v2518
      %v2520 = vpop.f32.mrf.mxu0
      %v2521 = vadd.f32 %v2086, %v2520
      %v2522 = vpop.f32.mrf.mxu0
      %v2523 = vadd.f32 %v2088, %v2522
      %2524 = vmatprep.mubr.f32.mxu0 0.0
      %v2525 = vand.u32 %v573, 4294901760
      %2526 = vmatmul.mubr.f32.gmra.mxu0 %v2525
      %v2527 = vpop.f32.mrf.mxu0
      %v2528 = vadd.f32 %v2095, %v2527
      %v2529 = vpop.f32.mrf.mxu0
      %v2530 = vadd.f32 %v2097, %v2529
      %2531 = vmatprep.mubr.f32.mxu0 0.0
      %v2532 = vand.u32 %v576, 4294901760
      %2533 = vmatmul.mubr.f32.gmra.mxu0 %v2532
      %v2534 = vpop.f32.mrf.mxu0
      %v2535 = vadd.f32 %v2104, %v2534
      %v2536 = vpop.f32.mrf.mxu0
      %v2537 = vadd.f32 %v2106, %v2536
      %2538 = vmatprep.mubr.f32.mxu0 0.0
      %v2539 = vand.u32 %v579, 4294901760
      %2540 = vmatmul.mubr.f32.gmra.mxu0 %v2539
      %v2541 = vpop.f32.mrf.mxu0
      %v2542 = vadd.f32 %v2113, %v2541
      %v2543 = vpop.f32.mrf.mxu0
      %v2544 = vadd.f32 %v2115, %v2543
      %2545 = vmatprep.mubr.f32.mxu0 0.0
      %v2546 = vand.u32 %v582, 4294901760
      %2547 = vmatmul.mubr.f32.gmra.mxu0 %v2546
      %v2548 = vpop.f32.mrf.mxu0
      %v2549 = vadd.f32 %v2122, %v2548
      %v2550 = vpop.f32.mrf.mxu0
      %v2551 = vadd.f32 %v2124, %v2550
      %2552 = vmatprep.mubr.f32.mxu0 0.0
      %v2553 = vand.u32 %v585, 4294901760
      %2554 = vmatmul.mubr.f32.gmra.mxu0 %v2553
      %v2555 = vpop.f32.mrf.mxu0
      %v2556 = vadd.f32 %v2131, %v2555
      %v2557 = vpop.f32.mrf.mxu0
      %v2558 = vadd.f32 %v2133, %v2557
      %2559 = vmatprep.mubr.f32.mxu0 0.0
      %v2560 = vand.u32 %v588, 4294901760
      %2561 = vmatmul.mubr.f32.gmra.mxu0 %v2560
      %v2562 = vpop.f32.mrf.mxu0
      %v2563 = vadd.f32 %v2140, %v2562
      %v2564 = vpop.f32.mrf.mxu0
      %v2565 = vadd.f32 %v2142, %v2564
      %2566 = vmatprep.mubr.f32.mxu0 0.0
      %v2567 = vand.u32 %v591, 4294901760
      %2568 = vmatmul.mubr.f32.gmra.mxu0 %v2567
      %v2569 = vpop.f32.mrf.mxu0
      %v2570 = vadd.f32 %v2149, %v2569
      %v2571 = vpop.f32.mrf.mxu0
      %v2572 = vadd.f32 %v2151, %v2571
      %2573 = vmatprep.mubr.f32.mxu0 0.0
      %v2574 = vand.u32 %v594, 4294901760
      %2575 = vmatmul.mubr.f32.gmra.mxu0 %v2574
      %v2576 = vpop.f32.mrf.mxu0
      %v2577 = vadd.f32 %v2158, %v2576
      %v2578 = vpop.f32.mrf.mxu0
      %v2579 = vadd.f32 %v2160, %v2578
      %2580 = vmatprep.mubr.f32.mxu0 0.0
      %v2581 = vand.u32 %v597, 4294901760
      %2582 = vmatmul.mubr.f32.gmra.mxu0 %v2581
      %v2583 = vpop.f32.mrf.mxu0
      %v2584 = vadd.f32 %v2167, %v2583
      %v2585 = vpop.f32.mrf.mxu0
      %v2586 = vadd.f32 %v2169, %v2585
      %2587 = vmatprep.mubr.f32.mxu0 0.0
      %v2588 = vand.u32 %v600, 4294901760
      %2589 = vmatmul.mubr.f32.gmra.mxu0 %v2588
      %v2590 = vpop.f32.mrf.mxu0
      %v2591 = vadd.f32 %v2176, %v2590
      %v2592 = vpop.f32.mrf.mxu0
      %v2593 = vadd.f32 %v2178, %v2592
      %2594 = vmatprep.mubr.f32.mxu0 0.0
      %v2595 = vand.u32 %v603, 4294901760
      %2596 = vmatmul.mubr.f32.gmra.mxu0 %v2595
      %v2597 = vpop.f32.mrf.mxu0
      %v2598 = vadd.f32 %v2185, %v2597
      %v2599 = vpop.f32.mrf.mxu0
      %v2600 = vadd.f32 %v2187, %v2599
      %2601 = vmatprep.mubr.f32.mxu0 0.0
      %v2602 = vand.u32 %v606, 4294901760
      %2603 = vmatmul.mubr.f32.gmra.mxu0 %v2602
      %v2604 = vpop.f32.mrf.mxu0
      %v2605 = vadd.f32 %v2194, %v2604
      %v2606 = vpop.f32.mrf.mxu0
      %v2607 = vadd.f32 %v2196, %v2606
      %2608 = vmatprep.mubr.f32.mxu0 0.0
      %v2609 = vand.u32 %v609, 4294901760
      %2610 = vmatmul.mubr.f32.gmra.mxu0 %v2609
      %v2611 = vpop.f32.mrf.mxu0
      %v2612 = vadd.f32 %v2203, %v2611
      %v2613 = vpop.f32.mrf.mxu0
      %v2614 = vadd.f32 %v2205, %v2613
      %2615 = vmatprep.mubr.f32.mxu0 0.0
      %v2616 = vand.u32 %v612, 4294901760
      %2617 = vmatmul.mubr.f32.gmra.mxu0 %v2616
      %v2618 = vpop.f32.mrf.mxu0
      %v2619 = vadd.f32 %v2212, %v2618
      %v2620 = vpop.f32.mrf.mxu0
      %v2621 = vadd.f32 %v2214, %v2620
      %2622 = vmatprep.mubr.f32.mxu0 0.0
      %v2623 = vand.u32 %v615, 4294901760
      %2624 = vmatmul.mubr.f32.gmra.mxu0 %v2623
      %v2625 = vpop.f32.mrf.mxu0
      %v2626 = vadd.f32 %v2221, %v2625
      %v2627 = vpop.f32.mrf.mxu0
      %v2628 = vadd.f32 %v2223, %v2627
      %2629 = vmatprep.mubr.f32.mxu0 0.0
      %v2630 = vand.u32 %v618, 4294901760
      %2631 = vmatmul.mubr.f32.gmra.mxu0 %v2630
      %v2632 = vpop.f32.mrf.mxu0
      %v2633 = vadd.f32 %v2230, %v2632
      %v2634 = vpop.f32.mrf.mxu0
      %v2635 = vadd.f32 %v2232, %v2634
      %2636 = vmatprep.mubr.f32.mxu0 0.0
      %v2637 = vand.u32 %v621, 4294901760
      %2638 = vmatmul.mubr.f32.gmra.mxu0 %v2637
      %v2639 = vpop.f32.mrf.mxu0
      %v2640 = vadd.f32 %v2239, %v2639
      %v2641 = vpop.f32.mrf.mxu0
      %v2642 = vadd.f32 %v2241, %v2641
      %2643 = vmatprep.mubr.f32.mxu0 0.0
      %v2644 = vand.u32 %v624, 4294901760
      %2645 = vmatmul.mubr.f32.gmra.mxu0 %v2644
      %v2646 = vpop.f32.mrf.mxu0
      %v2647 = vadd.f32 %v2248, %v2646
      %v2648 = vpop.f32.mrf.mxu0
      %v2649 = vadd.f32 %v2250, %v2648
      %2650 = vmatprep.mubr.f32.mxu0 0.0
      %v2651 = vand.u32 %v627, 4294901760
      %2652 = vmatmul.mubr.f32.gmra.mxu0 %v2651
      %v2653 = vpop.f32.mrf.mxu0
      %v2654 = vadd.f32 %v2257, %v2653
      %v2655 = vpop.f32.mrf.mxu0
      %v2656 = vadd.f32 %v2259, %v2655
      %2657 = vmatprep.mubr.f32.mxu0 0.0
      %v2658 = vand.u32 %v630, 4294901760
      %2659 = vmatmul.mubr.f32.gmra.mxu0 %v2658
      %v2660 = vpop.f32.mrf.mxu0
      %v2661 = vadd.f32 %v2266, %v2660
      %v2662 = vpop.f32.mrf.mxu0
      %v2663 = vadd.f32 %v2268, %v2662
      %2664 = vmatprep.mubr.f32.mxu0 0.0
      %v2665 = vand.u32 %v633, 4294901760
      %2666 = vmatmul.mubr.f32.gmra.mxu0 %v2665
      %v2667 = vpop.f32.mrf.mxu0
      %v2668 = vadd.f32 %v2275, %v2667
      %v2669 = vpop.f32.mrf.mxu0
      %v2670 = vadd.f32 %v2277, %v2669
      %2671 = vmatprep.mubr.f32.mxu0 0.0
      %v2672 = vand.u32 %v636, 4294901760
      %2673 = vmatmul.mubr.f32.gmra.mxu0 %v2672
      %v2674 = vpop.f32.mrf.mxu0
      %v2675 = vadd.f32 %v2284, %v2674
      %v2676 = vpop.f32.mrf.mxu0
      %v2677 = vadd.f32 %v2286, %v2676
      %2678 = vmatprep.mubr.f32.mxu0 0.0
      %v2679 = vand.u32 %v639, 4294901760
      %2680 = vmatmul.mubr.f32.gmra.mxu0 %v2679
      %v2681 = vpop.f32.mrf.mxu0
      %v2682 = vadd.f32 %v2293, %v2681
      %v2683 = vpop.f32.mrf.mxu0
      %v2684 = vadd.f32 %v2295, %v2683
      %2685 = vmatprep.mubr.f32.mxu0 0.0
      %v2686 = vand.u32 %v642, 4294901760
      %2687 = vmatmul.mubr.f32.gmra.mxu0 %v2686
      %v2688 = vpop.f32.mrf.mxu0
      %v2689 = vadd.f32 %v2302, %v2688
      %v2690 = vpop.f32.mrf.mxu0
      %v2691 = vadd.f32 %v2304, %v2690
      %2692 = vmatprep.mubr.f32.mxu0 0.0
      %v2693 = vand.u32 %v645, 4294901760
      %2694 = vmatmul.mubr.f32.gmra.mxu0 %v2693
      %v2695 = vpop.f32.mrf.mxu0
      %v2696 = vadd.f32 %v2311, %v2695
      %v2697 = vpop.f32.mrf.mxu0
      %v2698 = vadd.f32 %v2313, %v2697
      %2699 = vdwg.mxu0
      %2700 = vmatprep.subr.mxu0 0.0
      %v2701 = vand.u32 %v597, 4294901760
      %2702 = vmatpush1.xpose.msra.mxu0 %v2701
      %2703 = vmatprep.subr.mxu0 0.0
      %v2704 = vand.u32 %v594, 4294901760
      %2705 = vmatpush1.xpose.msra.mxu0 %v2704
      %2706 = vmatprep.subr.mxu0 0.0
      %v2707 = vand.u32 %v591, 4294901760
      %2708 = vmatpush1.xpose.msra.mxu0 %v2707
      %2709 = vmatprep.subr.mxu0 0.0
      %v2710 = vand.u32 %v588, 4294901760
      %2711 = vmatpush1.xpose.msra.mxu0 %v2710
      %2712 = vmatprep.subr.mxu0 0.0
      %v2713 = vand.u32 %v585, 4294901760
      %2714 = vmatpush1.xpose.msra.mxu0 %v2713
      %2715 = vmatprep.subr.mxu0 0.0
      %v2716 = vand.u32 %v582, 4294901760
      %2717 = vmatpush1.xpose.msra.mxu0 %v2716
      %2718 = vmatprep.subr.mxu0 0.0
      %v2719 = vand.u32 %v579, 4294901760
      %2720 = vmatpush1.xpose.msra.mxu0 %v2719
      %2721 = vmatprep.subr.mxu0 0.0
      %v2722 = vand.u32 %v576, 4294901760
      %2723 = vmatpush1.xpose.msra.mxu0 %v2722
      %2724 = vmatprep.subr.mxu0 0.0
      %v2725 = vand.u32 %v573, 4294901760
      %2726 = vmatpush1.xpose.msra.mxu0 %v2725
      %2727 = vmatprep.subr.mxu0 0.0
      %v2728 = vand.u32 %v570, 4294901760
      %2729 = vmatpush1.xpose.msra.mxu0 %v2728
      %2730 = vmatprep.subr.mxu0 0.0
      %v2731 = vand.u32 %v567, 4294901760
      %2732 = vmatpush1.xpose.msra.mxu0 %v2731
      %2733 = vmatprep.subr.mxu0 0.0
      %v2734 = vand.u32 %v564, 4294901760
      %2735 = vmatpush1.xpose.msra.mxu0 %v2734
      %2736 = vmatprep.subr.mxu0 0.0
      %v2737 = vand.u32 %v561, 4294901760
      %2738 = vmatpush1.xpose.msra.mxu0 %v2737
      %2739 = vmatprep.subr.mxu0 0.0
      %v2740 = vand.u32 %v558, 4294901760
      %2741 = vmatpush1.xpose.msra.mxu0 %v2740
      %2742 = vmatprep.subr.mxu0 0.0
      %v2743 = vand.u32 %v555, 4294901760
      %2744 = vmatpush1.xpose.msra.mxu0 %v2743
      %2745 = vmatprep.subr.mxu0 0.0
      %v2746 = vand.u32 %v552, 4294901760
      %2747 = vmatpush1.xpose.msra.mxu0 %v2746
      %2748 = vmatprep.subr.mxu0 0.0
      %v2749 = vand.u32 %v645, 4294901760
      %2750 = vmatpush2.xpose.msra.mxu0 %v2749
      %2751 = vmatprep.subr.mxu0 0.0
      %v2752 = vand.u32 %v642, 4294901760
      %2753 = vmatpush2.xpose.msra.mxu0 %v2752
      %2754 = vmatprep.subr.mxu0 0.0
      %v2755 = vand.u32 %v639, 4294901760
      %2756 = vmatpush2.xpose.msra.mxu0 %v2755
      %2757 = vmatprep.subr.mxu0 0.0
      %v2758 = vand.u32 %v636, 4294901760
      %2759 = vmatpush2.xpose.msra.mxu0 %v2758
      %2760 = vmatprep.subr.mxu0 0.0
      %v2761 = vand.u32 %v633, 4294901760
      %2762 = vmatpush2.xpose.msra.mxu0 %v2761
      %2763 = vmatprep.subr.mxu0 0.0
      %v2764 = vand.u32 %v630, 4294901760
      %2765 = vmatpush2.xpose.msra.mxu0 %v2764
      %2766 = vmatprep.subr.mxu0 0.0
      %v2767 = vand.u32 %v627, 4294901760
      %2768 = vmatpush2.xpose.msra.mxu0 %v2767
      %2769 = vmatprep.subr.mxu0 0.0
      %v2770 = vand.u32 %v624, 4294901760
      %2771 = vmatpush2.xpose.msra.mxu0 %v2770
      %2772 = vmatprep.subr.mxu0 0.0
      %v2773 = vand.u32 %v621, 4294901760
      %2774 = vmatpush2.xpose.msra.mxu0 %v2773
      %2775 = vmatprep.subr.mxu0 0.0
      %v2776 = vand.u32 %v618, 4294901760
      %2777 = vmatpush2.xpose.msra.mxu0 %v2776
      %2778 = vmatprep.subr.mxu0 0.0
      %v2779 = vand.u32 %v615, 4294901760
      %2780 = vmatpush2.xpose.msra.mxu0 %v2779
      %2781 = vmatprep.subr.mxu0 0.0
      %v2782 = vand.u32 %v612, 4294901760
      %2783 = vmatpush2.xpose.msra.mxu0 %v2782
      %2784 = vmatprep.subr.mxu0 0.0
      %v2785 = vand.u32 %v609, 4294901760
      %2786 = vmatpush2.xpose.msra.mxu0 %v2785
      %2787 = vmatprep.subr.mxu0 0.0
      %v2788 = vand.u32 %v606, 4294901760
      %2789 = vmatpush2.xpose.msra.mxu0 %v2788
      %2790 = vmatprep.subr.mxu0 0.0
      %v2791 = vand.u32 %v603, 4294901760
      %2792 = vmatpush2.xpose.msra.mxu0 %v2791
      %2793 = vmatprep.subr.mxu0 0.0
      %v2794 = vand.u32 %v600, 4294901760
      %2795 = vmatpush2.xpose.msra.mxu0 %v2794
      %2796 = vmatprep.mubr.f32.mxu0 0.0
      %v2797 = vand.u32 %v552, 4294901760
      %2798 = vmatmul.mubr.f32.gmra.mxu0 %v2797
      %v2799 = vpop.f32.mrf.mxu0
      %v2800 = vadd.f32 %v2479, %v2799
      %v2801 = vpop.f32.mrf.mxu0
      %v2802 = vadd.f32 %v2481, %v2801
      %2803 = vmatprep.mubr.f32.mxu0 0.0
      %v2804 = vand.u32 %v555, 4294901760
      %2805 = vmatmul.mubr.f32.gmra.mxu0 %v2804
      %v2806 = vpop.f32.mrf.mxu0
      %v2807 = vadd.f32 %v2486, %v2806
      %v2808 = vpop.f32.mrf.mxu0
      %v2809 = vadd.f32 %v2488, %v2808
      %2810 = vmatprep.mubr.f32.mxu0 0.0
      %v2811 = vand.u32 %v558, 4294901760
      %2812 = vmatmul.mubr.f32.gmra.mxu0 %v2811
      %v2813 = vpop.f32.mrf.mxu0
      %v2814 = vadd.f32 %v2493, %v2813
      %v2815 = vpop.f32.mrf.mxu0
      %v2816 = vadd.f32 %v2495, %v2815
      %2817 = vmatprep.mubr.f32.mxu0 0.0
      %v2818 = vand.u32 %v561, 4294901760
      %2819 = vmatmul.mubr.f32.gmra.mxu0 %v2818
      %v2820 = vpop.f32.mrf.mxu0
      %v2821 = vadd.f32 %v2500, %v2820
      %v2822 = vpop.f32.mrf.mxu0
      %v2823 = vadd.f32 %v2502, %v2822
      %2824 = vmatprep.mubr.f32.mxu0 0.0
      %v2825 = vand.u32 %v564, 4294901760
      %2826 = vmatmul.mubr.f32.gmra.mxu0 %v2825
      %v2827 = vpop.f32.mrf.mxu0
      %v2828 = vadd.f32 %v2507, %v2827
      %v2829 = vpop.f32.mrf.mxu0
      %v2830 = vadd.f32 %v2509, %v2829
      %2831 = vmatprep.mubr.f32.mxu0 0.0
      %v2832 = vand.u32 %v567, 4294901760
      %2833 = vmatmul.mubr.f32.gmra.mxu0 %v2832
      %v2834 = vpop.f32.mrf.mxu0
      %v2835 = vadd.f32 %v2514, %v2834
      %v2836 = vpop.f32.mrf.mxu0
      %v2837 = vadd.f32 %v2516, %v2836
      %2838 = vmatprep.mubr.f32.mxu0 0.0
      %v2839 = vand.u32 %v570, 4294901760
      %2840 = vmatmul.mubr.f32.gmra.mxu0 %v2839
      %v2841 = vpop.f32.mrf.mxu0
      %v2842 = vadd.f32 %v2521, %v2841
      %v2843 = vpop.f32.mrf.mxu0
      %v2844 = vadd.f32 %v2523, %v2843
      %2845 = vmatprep.mubr.f32.mxu0 0.0
      %v2846 = vand.u32 %v573, 4294901760
      %2847 = vmatmul.mubr.f32.gmra.mxu0 %v2846
      %v2848 = vpop.f32.mrf.mxu0
      %v2849 = vadd.f32 %v2528, %v2848
      %v2850 = vpop.f32.mrf.mxu0
      %v2851 = vadd.f32 %v2530, %v2850
      %2852 = vmatprep.mubr.f32.mxu0 0.0
      %v2853 = vand.u32 %v576, 4294901760
      %2854 = vmatmul.mubr.f32.gmra.mxu0 %v2853
      %v2855 = vpop.f32.mrf.mxu0
      %v2856 = vadd.f32 %v2535, %v2855
      %v2857 = vpop.f32.mrf.mxu0
      %v2858 = vadd.f32 %v2537, %v2857
      %2859 = vmatprep.mubr.f32.mxu0 0.0
      %v2860 = vand.u32 %v579, 4294901760
      %2861 = vmatmul.mubr.f32.gmra.mxu0 %v2860
      %v2862 = vpop.f32.mrf.mxu0
      %v2863 = vadd.f32 %v2542, %v2862
      %v2864 = vpop.f32.mrf.mxu0
      %v2865 = vadd.f32 %v2544, %v2864
      %2866 = vmatprep.mubr.f32.mxu0 0.0
      %v2867 = vand.u32 %v582, 4294901760
      %2868 = vmatmul.mubr.f32.gmra.mxu0 %v2867
      %v2869 = vpop.f32.mrf.mxu0
      %v2870 = vadd.f32 %v2549, %v2869
      %v2871 = vpop.f32.mrf.mxu0
      %v2872 = vadd.f32 %v2551, %v2871
      %2873 = vmatprep.mubr.f32.mxu0 0.0
      %v2874 = vand.u32 %v585, 4294901760
      %2875 = vmatmul.mubr.f32.gmra.mxu0 %v2874
      %v2876 = vpop.f32.mrf.mxu0
      %v2877 = vadd.f32 %v2556, %v2876
      %v2878 = vpop.f32.mrf.mxu0
      %v2879 = vadd.f32 %v2558, %v2878
      %2880 = vmatprep.mubr.f32.mxu0 0.0
      %v2881 = vand.u32 %v588, 4294901760
      %2882 = vmatmul.mubr.f32.gmra.mxu0 %v2881
      %v2883 = vpop.f32.mrf.mxu0
      %v2884 = vadd.f32 %v2563, %v2883
      %v2885 = vpop.f32.mrf.mxu0
      %v2886 = vadd.f32 %v2565, %v2885
      %2887 = vmatprep.mubr.f32.mxu0 0.0
      %v2888 = vand.u32 %v591, 4294901760
      %2889 = vmatmul.mubr.f32.gmra.mxu0 %v2888
      %v2890 = vpop.f32.mrf.mxu0
      %v2891 = vadd.f32 %v2570, %v2890
      %v2892 = vpop.f32.mrf.mxu0
      %v2893 = vadd.f32 %v2572, %v2892
      %2894 = vmatprep.mubr.f32.mxu0 0.0
      %v2895 = vand.u32 %v594, 4294901760
      %2896 = vmatmul.mubr.f32.gmra.mxu0 %v2895
      %v2897 = vpop.f32.mrf.mxu0
      %v2898 = vadd.f32 %v2577, %v2897
      %v2899 = vpop.f32.mrf.mxu0
      %v2900 = vadd.f32 %v2579, %v2899
      %2901 = vmatprep.mubr.f32.mxu0 0.0
      %v2902 = vand.u32 %v597, 4294901760
      %2903 = vmatmul.mubr.f32.gmra.mxu0 %v2902
      %v2904 = vpop.f32.mrf.mxu0
      %v2905 = vadd.f32 %v2584, %v2904
      %v2906 = vpop.f32.mrf.mxu0
      %v2907 = vadd.f32 %v2586, %v2906
      %2908 = vmatprep.mubr.f32.mxu0 0.0
      %v2909 = vand.u32 %v600, 4294901760
      %2910 = vmatmul.mubr.f32.gmra.mxu0 %v2909
      %v2911 = vpop.f32.mrf.mxu0
      %v2912 = vadd.f32 %v2591, %v2911
      %v2913 = vpop.f32.mrf.mxu0
      %v2914 = vadd.f32 %v2593, %v2913
      %2915 = vmatprep.mubr.f32.mxu0 0.0
      %v2916 = vand.u32 %v603, 4294901760
      %2917 = vmatmul.mubr.f32.gmra.mxu0 %v2916
      %v2918 = vpop.f32.mrf.mxu0
      %v2919 = vadd.f32 %v2598, %v2918
      %v2920 = vpop.f32.mrf.mxu0
      %v2921 = vadd.f32 %v2600, %v2920
      %2922 = vmatprep.mubr.f32.mxu0 0.0
      %v2923 = vand.u32 %v606, 4294901760
      %2924 = vmatmul.mubr.f32.gmra.mxu0 %v2923
      %v2925 = vpop.f32.mrf.mxu0
      %v2926 = vadd.f32 %v2605, %v2925
      %v2927 = vpop.f32.mrf.mxu0
      %v2928 = vadd.f32 %v2607, %v2927
      %2929 = vmatprep.mubr.f32.mxu0 0.0
      %v2930 = vand.u32 %v609, 4294901760
      %2931 = vmatmul.mubr.f32.gmra.mxu0 %v2930
      %v2932 = vpop.f32.mrf.mxu0
      %v2933 = vadd.f32 %v2612, %v2932
      %v2934 = vpop.f32.mrf.mxu0
      %v2935 = vadd.f32 %v2614, %v2934
      %2936 = vmatprep.mubr.f32.mxu0 0.0
      %v2937 = vand.u32 %v612, 4294901760
      %2938 = vmatmul.mubr.f32.gmra.mxu0 %v2937
      %v2939 = vpop.f32.mrf.mxu0
      %v2940 = vadd.f32 %v2619, %v2939
      %v2941 = vpop.f32.mrf.mxu0
      %v2942 = vadd.f32 %v2621, %v2941
      %2943 = vmatprep.mubr.f32.mxu0 0.0
      %v2944 = vand.u32 %v615, 4294901760
      %2945 = vmatmul.mubr.f32.gmra.mxu0 %v2944
      %v2946 = vpop.f32.mrf.mxu0
      %v2947 = vadd.f32 %v2626, %v2946
      %v2948 = vpop.f32.mrf.mxu0
      %v2949 = vadd.f32 %v2628, %v2948
      %2950 = vmatprep.mubr.f32.mxu0 0.0
      %v2951 = vand.u32 %v618, 4294901760
      %2952 = vmatmul.mubr.f32.gmra.mxu0 %v2951
      %v2953 = vpop.f32.mrf.mxu0
      %v2954 = vadd.f32 %v2633, %v2953
      %v2955 = vpop.f32.mrf.mxu0
      %v2956 = vadd.f32 %v2635, %v2955
      %2957 = vmatprep.mubr.f32.mxu0 0.0
      %v2958 = vand.u32 %v621, 4294901760
      %2959 = vmatmul.mubr.f32.gmra.mxu0 %v2958
      %v2960 = vpop.f32.mrf.mxu0
      %v2961 = vadd.f32 %v2640, %v2960
      %v2962 = vpop.f32.mrf.mxu0
      %v2963 = vadd.f32 %v2642, %v2962
      %2964 = vmatprep.mubr.f32.mxu0 0.0
      %v2965 = vand.u32 %v624, 4294901760
      %2966 = vmatmul.mubr.f32.gmra.mxu0 %v2965
      %v2967 = vpop.f32.mrf.mxu0
      %v2968 = vadd.f32 %v2647, %v2967
      %v2969 = vpop.f32.mrf.mxu0
      %v2970 = vadd.f32 %v2649, %v2969
      %2971 = vmatprep.mubr.f32.mxu0 0.0
      %v2972 = vand.u32 %v627, 4294901760
      %2973 = vmatmul.mubr.f32.gmra.mxu0 %v2972
      %v2974 = vpop.f32.mrf.mxu0
      %v2975 = vadd.f32 %v2654, %v2974
      %v2976 = vpop.f32.mrf.mxu0
      %v2977 = vadd.f32 %v2656, %v2976
      %2978 = vmatprep.mubr.f32.mxu0 0.0
      %v2979 = vand.u32 %v630, 4294901760
      %2980 = vmatmul.mubr.f32.gmra.mxu0 %v2979
      %v2981 = vpop.f32.mrf.mxu0
      %v2982 = vadd.f32 %v2661, %v2981
      %v2983 = vpop.f32.mrf.mxu0
      %v2984 = vadd.f32 %v2663, %v2983
      %2985 = vmatprep.mubr.f32.mxu0 0.0
      %v2986 = vand.u32 %v633, 4294901760
      %2987 = vmatmul.mubr.f32.gmra.mxu0 %v2986
      %v2988 = vpop.f32.mrf.mxu0
      %v2989 = vadd.f32 %v2668, %v2988
      %v2990 = vpop.f32.mrf.mxu0
      %v2991 = vadd.f32 %v2670, %v2990
      %2992 = vmatprep.mubr.f32.mxu0 0.0
      %v2993 = vand.u32 %v636, 4294901760
      %2994 = vmatmul.mubr.f32.gmra.mxu0 %v2993
      %v2995 = vpop.f32.mrf.mxu0
      %v2996 = vadd.f32 %v2675, %v2995
      %v2997 = vpop.f32.mrf.mxu0
      %v2998 = vadd.f32 %v2677, %v2997
      %2999 = vmatprep.mubr.f32.mxu0 0.0
      %v3000 = vand.u32 %v639, 4294901760
      %3001 = vmatmul.mubr.f32.gmra.mxu0 %v3000
      %v3002 = vpop.f32.mrf.mxu0
      %v3003 = vadd.f32 %v2682, %v3002
      %v3004 = vpop.f32.mrf.mxu0
      %v3005 = vadd.f32 %v2684, %v3004
      %3006 = vmatprep.mubr.f32.mxu0 0.0
      %v3007 = vand.u32 %v642, 4294901760
      %3008 = vmatmul.mubr.f32.gmra.mxu0 %v3007
      %v3009 = vpop.f32.mrf.mxu0
      %v3010 = vadd.f32 %v2689, %v3009
      %v3011 = vpop.f32.mrf.mxu0
      %v3012 = vadd.f32 %v2691, %v3011
      %3013 = vmatprep.mubr.f32.mxu0 0.0
      %v3014 = vand.u32 %v645, 4294901760
      %3015 = vmatmul.mubr.f32.gmra.mxu0 %v3014
      %v3016 = vpop.f32.mrf.mxu0
      %v3017 = vadd.f32 %v2696, %v3016
      %v3018 = vpop.f32.mrf.mxu0
      %v3019 = vadd.f32 %v2698, %v3018
      %3020 = vdwg.mxu0
      %3021 = vxpose.xlu0.b32.start [1/16] %v457, 128
      %3022 = vxpose.xlu0.b32.cont [2/16] %v460, 128
      %3023 = vxpose.xlu0.b32.cont [3/16] %v463, 128
      %3024 = vxpose.xlu0.b32.cont [4/16] %v466, 128
      %3025 = vxpose.xlu0.b32.cont [5/16] %v469, 128
      %3026 = vxpose.xlu0.b32.cont [6/16] %v472, 128
      %3027 = vxpose.xlu0.b32.cont [7/16] %v475, 128
      %3028 = vxpose.xlu0.b32.cont [8/16] %v478, 128
      %3029 = vxpose.xlu0.b32.cont [9/16] %v481, 128
      %3030 = vxpose.xlu0.b32.cont [10/16] %v484, 128
      %3031 = vxpose.xlu0.b32.cont [11/16] %v487, 128
      %3032 = vxpose.xlu0.b32.cont [12/16] %v490, 128
      %3033 = vxpose.xlu0.b32.cont [13/16] %v493, 128
      %3034 = vxpose.xlu0.b32.cont [14/16] %v496, 128
      %3035 = vxpose.xlu0.b32.cont [15/16] %v499, 128
      %3036 = vxpose.xlu0.b32.end [16/16] %v502, 128
      %v3037 = vpop.trf.xlu0
      %v3038 = vpop.trf.xlu0
      %v3039 = vpop.trf.xlu0
      %v3040 = vpop.trf.xlu0
      %v3041 = vpop.trf.xlu0
      %v3042 = vpop.trf.xlu0
      %v3043 = vpop.trf.xlu0
      %v3044 = vpop.trf.xlu0
      %v3045 = vpop.trf.xlu0
      %v3046 = vpop.trf.xlu0
      %v3047 = vpop.trf.xlu0
      %v3048 = vpop.trf.xlu0
      %v3049 = vpop.trf.xlu0
      %v3050 = vpop.trf.xlu0
      %v3051 = vpop.trf.xlu0
      %v3052 = vpop.trf.xlu0
      %3053 = vxpose.xlu0.b32.start [1/16] %v505, 128
      %3054 = vxpose.xlu0.b32.cont [2/16] %v508, 128
      %3055 = vxpose.xlu0.b32.cont [3/16] %v511, 128
      %3056 = vxpose.xlu0.b32.cont [4/16] %v514, 128
      %3057 = vxpose.xlu0.b32.cont [5/16] %v517, 128
      %3058 = vxpose.xlu0.b32.cont [6/16] %v520, 128
      %3059 = vxpose.xlu0.b32.cont [7/16] %v523, 128
      %3060 = vxpose.xlu0.b32.cont [8/16] %v526, 128
      %3061 = vxpose.xlu0.b32.cont [9/16] %v529, 128
      %3062 = vxpose.xlu0.b32.cont [10/16] %v532, 128
      %3063 = vxpose.xlu0.b32.cont [11/16] %v535, 128
      %3064 = vxpose.xlu0.b32.cont [12/16] %v538, 128
      %3065 = vxpose.xlu0.b32.cont [13/16] %v541, 128
      %3066 = vxpose.xlu0.b32.cont [14/16] %v544, 128
      %3067 = vxpose.xlu0.b32.cont [15/16] %v547, 128
      %3068 = vxpose.xlu0.b32.end [16/16] %v550, 128
      %v3069 = vpop.trf.xlu0
      %v3070 = vpop.trf.xlu0
      %v3071 = vpop.trf.xlu0
      %v3072 = vpop.trf.xlu0
      %v3073 = vpop.trf.xlu0
      %v3074 = vpop.trf.xlu0
      %v3075 = vpop.trf.xlu0
      %v3076 = vpop.trf.xlu0
      %v3077 = vpop.trf.xlu0
      %v3078 = vpop.trf.xlu0
      %v3079 = vpop.trf.xlu0
      %v3080 = vpop.trf.xlu0
      %v3081 = vpop.trf.xlu0
      %v3082 = vpop.trf.xlu0
      %v3083 = vpop.trf.xlu0
      %v3084 = vpop.trf.xlu0
      %v3085 = vlaneseq
      %v3086 = vshrl.u32 %v3085, 7
      %v3087 = vsub.s32 0, %v3086
      %v3088 = vrot.slane %v3037, %v3087
      %v3089 = vlaneseq
      %v3090 = vshrl.u32 %v3089, 7
      %v3091 = vsub.s32 0, %v3090
      %v3092 = vrot.slane %v3069, %v3091
      %v3093 = vadd.f32 %v457, %v3088
      %v3094 = vadd.f32 %v457, %v3092
      %v3095 = vadd.f32 %v460, %v3088
      %v3096 = vadd.f32 %v460, %v3092
      %v3097 = vadd.f32 %v463, %v3088
      %v3098 = vadd.f32 %v463, %v3092
      %v3099 = vadd.f32 %v466, %v3088
      %v3100 = vadd.f32 %v466, %v3092
      %v3101 = vadd.f32 %v469, %v3088
      %v3102 = vadd.f32 %v469, %v3092
      %v3103 = vadd.f32 %v472, %v3088
      %v3104 = vadd.f32 %v472, %v3092
      %v3105 = vadd.f32 %v475, %v3088
      %v3106 = vadd.f32 %v475, %v3092
      %v3107 = vadd.f32 %v478, %v3088
      %v3108 = vadd.f32 %v478, %v3092
      %v3109 = vadd.f32 %v481, %v3088
      %v3110 = vadd.f32 %v481, %v3092
      %v3111 = vadd.f32 %v484, %v3088
      %v3112 = vadd.f32 %v484, %v3092
      %v3113 = vadd.f32 %v487, %v3088
      %v3114 = vadd.f32 %v487, %v3092
      %v3115 = vadd.f32 %v490, %v3088
      %v3116 = vadd.f32 %v490, %v3092
      %v3117 = vadd.f32 %v493, %v3088
      %v3118 = vadd.f32 %v493, %v3092
      %v3119 = vadd.f32 %v496, %v3088
      %v3120 = vadd.f32 %v496, %v3092
      %v3121 = vadd.f32 %v499, %v3088
      %v3122 = vadd.f32 %v499, %v3092
      %v3123 = vadd.f32 %v502, %v3088
      %v3124 = vadd.f32 %v502, %v3092
      %v3125 = vadd.f32 %v505, %v3088
      %v3126 = vadd.f32 %v505, %v3092
      %v3127 = vadd.f32 %v508, %v3088
      %v3128 = vadd.f32 %v508, %v3092
      %v3129 = vadd.f32 %v511, %v3088
      %v3130 = vadd.f32 %v511, %v3092
      %v3131 = vadd.f32 %v514, %v3088
      %v3132 = vadd.f32 %v514, %v3092
      %v3133 = vadd.f32 %v517, %v3088
      %v3134 = vadd.f32 %v517, %v3092
      %v3135 = vadd.f32 %v520, %v3088
      %v3136 = vadd.f32 %v520, %v3092
      %v3137 = vadd.f32 %v523, %v3088
      %v3138 = vadd.f32 %v523, %v3092
      %v3139 = vadd.f32 %v526, %v3088
      %v3140 = vadd.f32 %v526, %v3092
      %v3141 = vadd.f32 %v529, %v3088
      %v3142 = vadd.f32 %v529, %v3092
      %v3143 = vadd.f32 %v532, %v3088
      %v3144 = vadd.f32 %v532, %v3092
      %v3145 = vadd.f32 %v535, %v3088
      %v3146 = vadd.f32 %v535, %v3092
      %v3147 = vadd.f32 %v538, %v3088
      %v3148 = vadd.f32 %v538, %v3092
      %v3149 = vadd.f32 %v541, %v3088
      %v3150 = vadd.f32 %v541, %v3092
      %v3151 = vadd.f32 %v544, %v3088
      %v3152 = vadd.f32 %v544, %v3092
      %v3153 = vadd.f32 %v547, %v3088
      %v3154 = vadd.f32 %v547, %v3092
      %v3155 = vadd.f32 %v550, %v3088
      %v3156 = vadd.f32 %v550, %v3092
      %v3157 = vmul.f32 %v2800, 2.0
      %v3158 = vmul.f32 %v2802, 2.0
      %v3159 = vmul.f32 %v2807, 2.0
      %v3160 = vmul.f32 %v2809, 2.0
      %v3161 = vmul.f32 %v2814, 2.0
      %v3162 = vmul.f32 %v2816, 2.0
      %v3163 = vmul.f32 %v2821, 2.0
      %v3164 = vmul.f32 %v2823, 2.0
      %v3165 = vmul.f32 %v2828, 2.0
      %v3166 = vmul.f32 %v2830, 2.0
      %v3167 = vmul.f32 %v2835, 2.0
      %v3168 = vmul.f32 %v2837, 2.0
      %v3169 = vmul.f32 %v2842, 2.0
      %v3170 = vmul.f32 %v2844, 2.0
      %v3171 = vmul.f32 %v2849, 2.0
      %v3172 = vmul.f32 %v2851, 2.0
      %v3173 = vmul.f32 %v2856, 2.0
      %v3174 = vmul.f32 %v2858, 2.0
      %v3175 = vmul.f32 %v2863, 2.0
      %v3176 = vmul.f32 %v2865, 2.0
      %v3177 = vmul.f32 %v2870, 2.0
      %v3178 = vmul.f32 %v2872, 2.0
      %v3179 = vmul.f32 %v2877, 2.0
      %v3180 = vmul.f32 %v2879, 2.0
      %v3181 = vmul.f32 %v2884, 2.0
      %v3182 = vmul.f32 %v2886, 2.0
      %v3183 = vmul.f32 %v2891, 2.0
      %v3184 = vmul.f32 %v2893, 2.0
      %v3185 = vmul.f32 %v2898, 2.0
      %v3186 = vmul.f32 %v2900, 2.0
      %v3187 = vmul.f32 %v2905, 2.0
      %v3188 = vmul.f32 %v2907, 2.0
      %v3189 = vmul.f32 %v2912, 2.0
      %v3190 = vmul.f32 %v2914, 2.0
      %v3191 = vmul.f32 %v2919, 2.0
      %v3192 = vmul.f32 %v2921, 2.0
      %v3193 = vmul.f32 %v2926, 2.0
      %v3194 = vmul.f32 %v2928, 2.0
      %v3195 = vmul.f32 %v2933, 2.0
      %v3196 = vmul.f32 %v2935, 2.0
      %v3197 = vmul.f32 %v2940, 2.0
      %v3198 = vmul.f32 %v2942, 2.0
      %v3199 = vmul.f32 %v2947, 2.0
      %v3200 = vmul.f32 %v2949, 2.0
      %v3201 = vmul.f32 %v2954, 2.0
      %v3202 = vmul.f32 %v2956, 2.0
      %v3203 = vmul.f32 %v2961, 2.0
      %v3204 = vmul.f32 %v2963, 2.0
      %v3205 = vmul.f32 %v2968, 2.0
      %v3206 = vmul.f32 %v2970, 2.0
      %v3207 = vmul.f32 %v2975, 2.0
      %v3208 = vmul.f32 %v2977, 2.0
      %v3209 = vmul.f32 %v2982, 2.0
      %v3210 = vmul.f32 %v2984, 2.0
      %v3211 = vmul.f32 %v2989, 2.0
      %v3212 = vmul.f32 %v2991, 2.0
      %v3213 = vmul.f32 %v2996, 2.0
      %v3214 = vmul.f32 %v2998, 2.0
      %v3215 = vmul.f32 %v3003, 2.0
      %v3216 = vmul.f32 %v3005, 2.0
      %v3217 = vmul.f32 %v3010, 2.0
      %v3218 = vmul.f32 %v3012, 2.0
      %v3219 = vmul.f32 %v3017, 2.0
      %v3220 = vmul.f32 %v3019, 2.0
      %v3221 = vsub.f32 %v3093, %v3157
      %v3222 = vsub.f32 %v3094, %v3158
      %v3223 = vsub.f32 %v3095, %v3159
      %v3224 = vsub.f32 %v3096, %v3160
      %v3225 = vsub.f32 %v3097, %v3161
      %v3226 = vsub.f32 %v3098, %v3162
      %v3227 = vsub.f32 %v3099, %v3163
      %v3228 = vsub.f32 %v3100, %v3164
      %v3229 = vsub.f32 %v3101, %v3165
      %v3230 = vsub.f32 %v3102, %v3166
      %v3231 = vsub.f32 %v3103, %v3167
      %v3232 = vsub.f32 %v3104, %v3168
      %v3233 = vsub.f32 %v3105, %v3169
      %v3234 = vsub.f32 %v3106, %v3170
      %v3235 = vsub.f32 %v3107, %v3171
      %v3236 = vsub.f32 %v3108, %v3172
      %v3237 = vsub.f32 %v3109, %v3173
      %v3238 = vsub.f32 %v3110, %v3174
      %v3239 = vsub.f32 %v3111, %v3175
      %v3240 = vsub.f32 %v3112, %v3176
      %v3241 = vsub.f32 %v3113, %v3177
      %v3242 = vsub.f32 %v3114, %v3178
      %v3243 = vsub.f32 %v3115, %v3179
      %v3244 = vsub.f32 %v3116, %v3180
      %v3245 = vsub.f32 %v3117, %v3181
      %v3246 = vsub.f32 %v3118, %v3182
      %v3247 = vsub.f32 %v3119, %v3183
      %v3248 = vsub.f32 %v3120, %v3184
      %v3249 = vsub.f32 %v3121, %v3185
      %v3250 = vsub.f32 %v3122, %v3186
      %v3251 = vsub.f32 %v3123, %v3187
      %v3252 = vsub.f32 %v3124, %v3188
      %v3253 = vsub.f32 %v3125, %v3189
      %v3254 = vsub.f32 %v3126, %v3190
      %v3255 = vsub.f32 %v3127, %v3191
      %v3256 = vsub.f32 %v3128, %v3192
      %v3257 = vsub.f32 %v3129, %v3193
      %v3258 = vsub.f32 %v3130, %v3194
      %v3259 = vsub.f32 %v3131, %v3195
      %v3260 = vsub.f32 %v3132, %v3196
      %v3261 = vsub.f32 %v3133, %v3197
      %v3262 = vsub.f32 %v3134, %v3198
      %v3263 = vsub.f32 %v3135, %v3199
      %v3264 = vsub.f32 %v3136, %v3200
      %v3265 = vsub.f32 %v3137, %v3201
      %v3266 = vsub.f32 %v3138, %v3202
      %v3267 = vsub.f32 %v3139, %v3203
      %v3268 = vsub.f32 %v3140, %v3204
      %v3269 = vsub.f32 %v3141, %v3205
      %v3270 = vsub.f32 %v3142, %v3206
      %v3271 = vsub.f32 %v3143, %v3207
      %v3272 = vsub.f32 %v3144, %v3208
      %v3273 = vsub.f32 %v3145, %v3209
      %v3274 = vsub.f32 %v3146, %v3210
      %v3275 = vsub.f32 %v3147, %v3211
      %v3276 = vsub.f32 %v3148, %v3212
      %v3277 = vsub.f32 %v3149, %v3213
      %v3278 = vsub.f32 %v3150, %v3214
      %v3279 = vsub.f32 %v3151, %v3215
      %v3280 = vsub.f32 %v3152, %v3216
      %v3281 = vsub.f32 %v3153, %v3217
      %v3282 = vsub.f32 %v3154, %v3218
      %v3283 = vsub.f32 %v3155, %v3219
      %v3284 = vsub.f32 %v3156, %v3220
      %s3285 = sld [smem:[#allocation3]]
      %v3286 = vstv %s3285
      %vm3287 = vcmp.lt.f32.partialorder %v3221, %v3286
      %vm3288 = vcmp.lt.f32.partialorder %v3222, %v3286
      %vm3289 = vcmp.lt.f32.partialorder %v3223, %v3286
      %vm3290 = vcmp.lt.f32.partialorder %v3224, %v3286
      %vm3291 = vcmp.lt.f32.partialorder %v3225, %v3286
      %vm3292 = vcmp.lt.f32.partialorder %v3226, %v3286
      %vm3293 = vcmp.lt.f32.partialorder %v3227, %v3286
      %vm3294 = vcmp.lt.f32.partialorder %v3228, %v3286
      %vm3295 = vcmp.lt.f32.partialorder %v3229, %v3286
      %vm3296 = vcmp.lt.f32.partialorder %v3230, %v3286
      %vm3297 = vcmp.lt.f32.partialorder %v3231, %v3286
      %vm3298 = vcmp.lt.f32.partialorder %v3232, %v3286
      %vm3299 = vcmp.lt.f32.partialorder %v3233, %v3286
      %vm3300 = vcmp.lt.f32.partialorder %v3234, %v3286
      %vm3301 = vcmp.lt.f32.partialorder %v3235, %v3286
      %vm3302 = vcmp.lt.f32.partialorder %v3236, %v3286
      %vm3303 = vcmp.lt.f32.partialorder %v3237, %v3286
      %vm3304 = vcmp.lt.f32.partialorder %v3238, %v3286
      %vm3305 = vcmp.lt.f32.partialorder %v3239, %v3286
      %vm3306 = vcmp.lt.f32.partialorder %v3240, %v3286
      %vm3307 = vcmp.lt.f32.partialorder %v3241, %v3286
      %vm3308 = vcmp.lt.f32.partialorder %v3242, %v3286
      %vm3309 = vcmp.lt.f32.partialorder %v3243, %v3286
      %vm3310 = vcmp.lt.f32.partialorder %v3244, %v3286
      %vm3311 = vcmp.lt.f32.partialorder %v3245, %v3286
      %vm3312 = vcmp.lt.f32.partialorder %v3246, %v3286
      %vm3313 = vcmp.lt.f32.partialorder %v3247, %v3286
      %vm3314 = vcmp.lt.f32.partialorder %v3248, %v3286
      %vm3315 = vcmp.lt.f32.partialorder %v3249, %v3286
      %vm3316 = vcmp.lt.f32.partialorder %v3250, %v3286
      %vm3317 = vcmp.lt.f32.partialorder %v3251, %v3286
      %vm3318 = vcmp.lt.f32.partialorder %v3252, %v3286
      %vm3319 = vcmp.lt.f32.partialorder %v3253, %v3286
      %vm3320 = vcmp.lt.f32.partialorder %v3254, %v3286
      %vm3321 = vcmp.lt.f32.partialorder %v3255, %v3286
      %vm3322 = vcmp.lt.f32.partialorder %v3256, %v3286
      %vm3323 = vcmp.lt.f32.partialorder %v3257, %v3286
      %vm3324 = vcmp.lt.f32.partialorder %v3258, %v3286
      %vm3325 = vcmp.lt.f32.partialorder %v3259, %v3286
      %vm3326 = vcmp.lt.f32.partialorder %v3260, %v3286
      %vm3327 = vcmp.lt.f32.partialorder %v3261, %v3286
      %vm3328 = vcmp.lt.f32.partialorder %v3262, %v3286
      %vm3329 = vcmp.lt.f32.partialorder %v3263, %v3286
      %vm3330 = vcmp.lt.f32.partialorder %v3264, %v3286
      %vm3331 = vcmp.lt.f32.partialorder %v3265, %v3286
      %vm3332 = vcmp.lt.f32.partialorder %v3266, %v3286
      %vm3333 = vcmp.lt.f32.partialorder %v3267, %v3286
      %vm3334 = vcmp.lt.f32.partialorder %v3268, %v3286
      %vm3335 = vcmp.lt.f32.partialorder %v3269, %v3286
      %vm3336 = vcmp.lt.f32.partialorder %v3270, %v3286
      %vm3337 = vcmp.lt.f32.partialorder %v3271, %v3286
      %vm3338 = vcmp.lt.f32.partialorder %v3272, %v3286
      %vm3339 = vcmp.lt.f32.partialorder %v3273, %v3286
      %vm3340 = vcmp.lt.f32.partialorder %v3274, %v3286
      %vm3341 = vcmp.lt.f32.partialorder %v3275, %v3286
      %vm3342 = vcmp.lt.f32.partialorder %v3276, %v3286
      %vm3343 = vcmp.lt.f32.partialorder %v3277, %v3286
      %vm3344 = vcmp.lt.f32.partialorder %v3278, %v3286
      %vm3345 = vcmp.lt.f32.partialorder %v3279, %v3286
      %vm3346 = vcmp.lt.f32.partialorder %v3280, %v3286
      %vm3347 = vcmp.lt.f32.partialorder %v3281, %v3286
      %vm3348 = vcmp.lt.f32.partialorder %v3282, %v3286
      %vm3349 = vcmp.lt.f32.partialorder %v3283, %v3286
      %vm3350 = vcmp.lt.f32.partialorder %v3284, %v3286
      %v3351 = vsel %vm3287, 1, 0
      %v3352 = vsel %vm3288, 1, 0
      %v3353 = vsel %vm3289, 1, 0
      %v3354 = vsel %vm3290, 1, 0
      %v3355 = vsel %vm3291, 1, 0
      %v3356 = vsel %vm3292, 1, 0
      %v3357 = vsel %vm3293, 1, 0
      %v3358 = vsel %vm3294, 1, 0
      %v3359 = vsel %vm3295, 1, 0
      %v3360 = vsel %vm3296, 1, 0
      %v3361 = vsel %vm3297, 1, 0
      %v3362 = vsel %vm3298, 1, 0
      %v3363 = vsel %vm3299, 1, 0
      %v3364 = vsel %vm3300, 1, 0
      %v3365 = vsel %vm3301, 1, 0
      %v3366 = vsel %vm3302, 1, 0
      %v3367 = vsel %vm3303, 1, 0
      %v3368 = vsel %vm3304, 1, 0
      %v3369 = vsel %vm3305, 1, 0
      %v3370 = vsel %vm3306, 1, 0
      %v3371 = vsel %vm3307, 1, 0
      %v3372 = vsel %vm3308, 1, 0
      %v3373 = vsel %vm3309, 1, 0
      %v3374 = vsel %vm3310, 1, 0
      %v3375 = vsel %vm3311, 1, 0
      %v3376 = vsel %vm3312, 1, 0
      %v3377 = vsel %vm3313, 1, 0
      %v3378 = vsel %vm3314, 1, 0
      %v3379 = vsel %vm3315, 1, 0
      %v3380 = vsel %vm3316, 1, 0
      %v3381 = vsel %vm3317, 1, 0
      %v3382 = vsel %vm3318, 1, 0
      %v3383 = vsel %vm3319, 1, 0
      %v3384 = vsel %vm3320, 1, 0
      %v3385 = vsel %vm3321, 1, 0
      %v3386 = vsel %vm3322, 1, 0
      %v3387 = vsel %vm3323, 1, 0
      %v3388 = vsel %vm3324, 1, 0
      %v3389 = vsel %vm3325, 1, 0
      %v3390 = vsel %vm3326, 1, 0
      %v3391 = vsel %vm3327, 1, 0
      %v3392 = vsel %vm3328, 1, 0
      %v3393 = vsel %vm3329, 1, 0
      %v3394 = vsel %vm3330, 1, 0
      %v3395 = vsel %vm3331, 1, 0
      %v3396 = vsel %vm3332, 1, 0
      %v3397 = vsel %vm3333, 1, 0
      %v3398 = vsel %vm3334, 1, 0
      %v3399 = vsel %vm3335, 1, 0
      %v3400 = vsel %vm3336, 1, 0
      %v3401 = vsel %vm3337, 1, 0
      %v3402 = vsel %vm3338, 1, 0
      %v3403 = vsel %vm3339, 1, 0
      %v3404 = vsel %vm3340, 1, 0
      %v3405 = vsel %vm3341, 1, 0
      %v3406 = vsel %vm3342, 1, 0
      %v3407 = vsel %vm3343, 1, 0
      %v3408 = vsel %vm3344, 1, 0
      %v3409 = vsel %vm3345, 1, 0
      %v3410 = vsel %vm3346, 1, 0
      %v3411 = vsel %vm3347, 1, 0
      %v3412 = vsel %vm3348, 1, 0
      %v3413 = vsel %vm3349, 1, 0
      %v3414 = vsel %vm3350, 1, 0
      %v3415 = vcvt.s32.f32 %v3351
      %v3416 = vcvt.s32.f32 %v3352
      %v3417 = vcvt.s32.f32 %v3353
      %v3418 = vcvt.s32.f32 %v3354
      %v3419 = vcvt.s32.f32 %v3355
      %v3420 = vcvt.s32.f32 %v3356
      %v3421 = vcvt.s32.f32 %v3357
      %v3422 = vcvt.s32.f32 %v3358
      %v3423 = vcvt.s32.f32 %v3359
      %v3424 = vcvt.s32.f32 %v3360
      %v3425 = vcvt.s32.f32 %v3361
      %v3426 = vcvt.s32.f32 %v3362
      %v3427 = vcvt.s32.f32 %v3363
      %v3428 = vcvt.s32.f32 %v3364
      %v3429 = vcvt.s32.f32 %v3365
      %v3430 = vcvt.s32.f32 %v3366
      %v3431 = vcvt.s32.f32 %v3367
      %v3432 = vcvt.s32.f32 %v3368
      %v3433 = vcvt.s32.f32 %v3369
      %v3434 = vcvt.s32.f32 %v3370
      %v3435 = vcvt.s32.f32 %v3371
      %v3436 = vcvt.s32.f32 %v3372
      %v3437 = vcvt.s32.f32 %v3373
      %v3438 = vcvt.s32.f32 %v3374
      %v3439 = vcvt.s32.f32 %v3375
      %v3440 = vcvt.s32.f32 %v3376
      %v3441 = vcvt.s32.f32 %v3377
      %v3442 = vcvt.s32.f32 %v3378
      %v3443 = vcvt.s32.f32 %v3379
      %v3444 = vcvt.s32.f32 %v3380
      %v3445 = vcvt.s32.f32 %v3381
      %v3446 = vcvt.s32.f32 %v3382
      %v3447 = vcvt.s32.f32 %v3383
      %v3448 = vcvt.s32.f32 %v3384
      %v3449 = vcvt.s32.f32 %v3385
      %v3450 = vcvt.s32.f32 %v3386
      %v3451 = vcvt.s32.f32 %v3387
      %v3452 = vcvt.s32.f32 %v3388
      %v3453 = vcvt.s32.f32 %v3389
      %v3454 = vcvt.s32.f32 %v3390
      %v3455 = vcvt.s32.f32 %v3391
      %v3456 = vcvt.s32.f32 %v3392
      %v3457 = vcvt.s32.f32 %v3393
      %v3458 = vcvt.s32.f32 %v3394
      %v3459 = vcvt.s32.f32 %v3395
      %v3460 = vcvt.s32.f32 %v3396
      %v3461 = vcvt.s32.f32 %v3397
      %v3462 = vcvt.s32.f32 %v3398
      %v3463 = vcvt.s32.f32 %v3399
      %v3464 = vcvt.s32.f32 %v3400
      %v3465 = vcvt.s32.f32 %v3401
      %v3466 = vcvt.s32.f32 %v3402
      %v3467 = vcvt.s32.f32 %v3403
      %v3468 = vcvt.s32.f32 %v3404
      %v3469 = vcvt.s32.f32 %v3405
      %v3470 = vcvt.s32.f32 %v3406
      %v3471 = vcvt.s32.f32 %v3407
      %v3472 = vcvt.s32.f32 %v3408
      %v3473 = vcvt.s32.f32 %v3409
      %v3474 = vcvt.s32.f32 %v3410
      %v3475 = vcvt.s32.f32 %v3411
      %v3476 = vcvt.s32.f32 %v3412
      %v3477 = vcvt.s32.f32 %v3413
      %v3478 = vcvt.s32.f32 %v3414
      %v3479 = vpack.c.bf16 %v3417, %v3415
      %v3480 = vpack.c.bf16 %v3418, %v3416
      %v3481 = vpack.c.bf16 %v3421, %v3419
      %v3482 = vpack.c.bf16 %v3422, %v3420
      %v3483 = vpack.c.bf16 %v3425, %v3423
      %v3484 = vpack.c.bf16 %v3426, %v3424
      %v3485 = vpack.c.bf16 %v3429, %v3427
      %v3486 = vpack.c.bf16 %v3430, %v3428
      %v3487 = vpack.c.bf16 %v3433, %v3431
      %v3488 = vpack.c.bf16 %v3434, %v3432
      %v3489 = vpack.c.bf16 %v3437, %v3435
      %v3490 = vpack.c.bf16 %v3438, %v3436
      %v3491 = vpack.c.bf16 %v3441, %v3439
      %v3492 = vpack.c.bf16 %v3442, %v3440
      %v3493 = vpack.c.bf16 %v3445, %v3443
      %v3494 = vpack.c.bf16 %v3446, %v3444
      %v3495 = vpack.c.bf16 %v3449, %v3447
      %v3496 = vpack.c.bf16 %v3450, %v3448
      %v3497 = vpack.c.bf16 %v3453, %v3451
      %v3498 = vpack.c.bf16 %v3454, %v3452
      %v3499 = vpack.c.bf16 %v3457, %v3455
      %v3500 = vpack.c.bf16 %v3458, %v3456
      %v3501 = vpack.c.bf16 %v3461, %v3459
      %v3502 = vpack.c.bf16 %v3462, %v3460
      %v3503 = vpack.c.bf16 %v3465, %v3463
      %v3504 = vpack.c.bf16 %v3466, %v3464
      %v3505 = vpack.c.bf16 %v3469, %v3467
      %v3506 = vpack.c.bf16 %v3470, %v3468
      %v3507 = vpack.c.bf16 %v3473, %v3471
      %v3508 = vpack.c.bf16 %v3474, %v3472
      %v3509 = vpack.c.bf16 %v3477, %v3475
      %v3510 = vpack.c.bf16 %v3478, %v3476
      %v3511 = vadd.f32 %v3415, %v3416
      %3512 = vadd.xlane.f32.xlu0 %v3511
      %v3513 = vpop.xlane.xlu0 %3512
      %v3514 = vadd.f32 %v3417, %v3418
      %3515 = vadd.xlane.f32.xlu0 %v3514
      %v3516 = vpop.xlane.xlu0 %3515
      %v3517 = vadd.f32 %v3419, %v3420
      %3518 = vadd.xlane.f32.xlu0 %v3517
      %v3519 = vpop.xlane.xlu0 %3518
      %v3520 = vadd.f32 %v3421, %v3422
      %3521 = vadd.xlane.f32.xlu0 %v3520
      %v3522 = vpop.xlane.xlu0 %3521
      %v3523 = vadd.f32 %v3423, %v3424
      %3524 = vadd.xlane.f32.xlu0 %v3523
      %v3525 = vpop.xlane.xlu0 %3524
      %v3526 = vadd.f32 %v3425, %v3426
      %3527 = vadd.xlane.f32.xlu0 %v3526
      %v3528 = vpop.xlane.xlu0 %3527
      %v3529 = vadd.f32 %v3427, %v3428
      %3530 = vadd.xlane.f32.xlu0 %v3529
      %v3531 = vpop.xlane.xlu0 %3530
      %v3532 = vadd.f32 %v3429, %v3430
      %3533 = vadd.xlane.f32.xlu0 %v3532
      %v3534 = vpop.xlane.xlu0 %3533
      %v3535 = vadd.f32 %v3431, %v3432
      %3536 = vadd.xlane.f32.xlu0 %v3535
      %v3537 = vpop.xlane.xlu0 %3536
      %v3538 = vadd.f32 %v3433, %v3434
      %3539 = vadd.xlane.f32.xlu0 %v3538
      %v3540 = vpop.xlane.xlu0 %3539
      %v3541 = vadd.f32 %v3435, %v3436
      %3542 = vadd.xlane.f32.xlu0 %v3541
      %v3543 = vpop.xlane.xlu0 %3542
      %v3544 = vadd.f32 %v3437, %v3438
      %3545 = vadd.xlane.f32.xlu0 %v3544
      %v3546 = vpop.xlane.xlu0 %3545
      %v3547 = vadd.f32 %v3439, %v3440
      %3548 = vadd.xlane.f32.xlu0 %v3547
      %v3549 = vpop.xlane.xlu0 %3548
      %v3550 = vadd.f32 %v3441, %v3442
      %3551 = vadd.xlane.f32.xlu0 %v3550
      %v3552 = vpop.xlane.xlu0 %3551
      %v3553 = vadd.f32 %v3443, %v3444
      %3554 = vadd.xlane.f32.xlu0 %v3553
      %v3555 = vpop.xlane.xlu0 %3554
      %v3556 = vadd.f32 %v3445, %v3446
      %3557 = vadd.xlane.f32.xlu0 %v3556
      %v3558 = vpop.xlane.xlu0 %3557
      %v3559 = vadd.f32 %v3447, %v3448
      %3560 = vadd.xlane.f32.xlu0 %v3559
      %v3561 = vpop.xlane.xlu0 %3560
      %v3562 = vadd.f32 %v3449, %v3450
      %3563 = vadd.xlane.f32.xlu0 %v3562
      %v3564 = vpop.xlane.xlu0 %3563
      %v3565 = vadd.f32 %v3451, %v3452
      %3566 = vadd.xlane.f32.xlu0 %v3565
      %v3567 = vpop.xlane.xlu0 %3566
      %v3568 = vadd.f32 %v3453, %v3454
      %3569 = vadd.xlane.f32.xlu0 %v3568
      %v3570 = vpop.xlane.xlu0 %3569
      %v3571 = vadd.f32 %v3455, %v3456
      %3572 = vadd.xlane.f32.xlu0 %v3571
      %v3573 = vpop.xlane.xlu0 %3572
      %v3574 = vadd.f32 %v3457, %v3458
      %3575 = vadd.xlane.f32.xlu0 %v3574
      %v3576 = vpop.xlane.xlu0 %3575
      %v3577 = vadd.f32 %v3459, %v3460
      %3578 = vadd.xlane.f32.xlu0 %v3577
      %v3579 = vpop.xlane.xlu0 %3578
      %v3580 = vadd.f32 %v3461, %v3462
      %3581 = vadd.xlane.f32.xlu0 %v3580
      %v3582 = vpop.xlane.xlu0 %3581
      %v3583 = vadd.f32 %v3463, %v3464
      %3584 = vadd.xlane.f32.xlu0 %v3583
      %v3585 = vpop.xlane.xlu0 %3584
      %v3586 = vadd.f32 %v3465, %v3466
      %3587 = vadd.xlane.f32.xlu0 %v3586
      %v3588 = vpop.xlane.xlu0 %3587
      %v3589 = vadd.f32 %v3467, %v3468
      %3590 = vadd.xlane.f32.xlu0 %v3589
      %v3591 = vpop.xlane.xlu0 %3590
      %v3592 = vadd.f32 %v3469, %v3470
      %3593 = vadd.xlane.f32.xlu0 %v3592
      %v3594 = vpop.xlane.xlu0 %3593
      %v3595 = vadd.f32 %v3471, %v3472
      %3596 = vadd.xlane.f32.xlu0 %v3595
      %v3597 = vpop.xlane.xlu0 %3596
      %v3598 = vadd.f32 %v3473, %v3474
      %3599 = vadd.xlane.f32.xlu0 %v3598
      %v3600 = vpop.xlane.xlu0 %3599
      %v3601 = vadd.f32 %v3475, %v3476
      %3602 = vadd.xlane.f32.xlu0 %v3601
      %v3603 = vpop.xlane.xlu0 %3602
      %v3604 = vadd.f32 %v3477, %v3478
      %3605 = vadd.xlane.f32.xlu0 %v3604
      %v3606 = vpop.xlane.xlu0 %3605
      %v3607 = vadd.f32 %v3513, 1.0
      %v3608 = vadd.f32 %v3516, 1.0
      %v3609 = vadd.f32 %v3519, 1.0
      %v3610 = vadd.f32 %v3522, 1.0
      %v3611 = vadd.f32 %v3525, 1.0
      %v3612 = vadd.f32 %v3528, 1.0
      %v3613 = vadd.f32 %v3531, 1.0
      %v3614 = vadd.f32 %v3534, 1.0
      %v3615 = vadd.f32 %v3537, 1.0
      %v3616 = vadd.f32 %v3540, 1.0
      %v3617 = vadd.f32 %v3543, 1.0
      %v3618 = vadd.f32 %v3546, 1.0
      %v3619 = vadd.f32 %v3549, 1.0
      %v3620 = vadd.f32 %v3552, 1.0
      %v3621 = vadd.f32 %v3555, 1.0
      %v3622 = vadd.f32 %v3558, 1.0
      %v3623 = vadd.f32 %v3561, 1.0
      %v3624 = vadd.f32 %v3564, 1.0
      %v3625 = vadd.f32 %v3567, 1.0
      %v3626 = vadd.f32 %v3570, 1.0
      %v3627 = vadd.f32 %v3573, 1.0
      %v3628 = vadd.f32 %v3576, 1.0
      %v3629 = vadd.f32 %v3579, 1.0
      %v3630 = vadd.f32 %v3582, 1.0
      %v3631 = vadd.f32 %v3585, 1.0
      %v3632 = vadd.f32 %v3588, 1.0
      %v3633 = vadd.f32 %v3591, 1.0
      %v3634 = vadd.f32 %v3594, 1.0
      %v3635 = vadd.f32 %v3597, 1.0
      %v3636 = vadd.f32 %v3600, 1.0
      %v3637 = vadd.f32 %v3603, 1.0
      %v3638 = vadd.f32 %v3606, 1.0
      %v3639 = vrsqrt.pop %v3607
      %v3640 = vrsqrt.pop %v3608
      %v3641 = vrsqrt.pop %v3609
      %v3642 = vrsqrt.pop %v3610
      %v3643 = vrsqrt.pop %v3611
      %v3644 = vrsqrt.pop %v3612
      %v3645 = vrsqrt.pop %v3613
      %v3646 = vrsqrt.pop %v3614
      %v3647 = vrsqrt.pop %v3615
      %v3648 = vrsqrt.pop %v3616
      %v3649 = vrsqrt.pop %v3617
      %v3650 = vrsqrt.pop %v3618
      %v3651 = vrsqrt.pop %v3619
      %v3652 = vrsqrt.pop %v3620
      %v3653 = vrsqrt.pop %v3621
      %v3654 = vrsqrt.pop %v3622
      %v3655 = vrsqrt.pop %v3623
      %v3656 = vrsqrt.pop %v3624
      %v3657 = vrsqrt.pop %v3625
      %v3658 = vrsqrt.pop %v3626
      %v3659 = vrsqrt.pop %v3627
      %v3660 = vrsqrt.pop %v3628
      %v3661 = vrsqrt.pop %v3629
      %v3662 = vrsqrt.pop %v3630
      %v3663 = vrsqrt.pop %v3631
      %v3664 = vrsqrt.pop %v3632
      %v3665 = vrsqrt.pop %v3633
      %v3666 = vrsqrt.pop %v3634
      %v3667 = vrsqrt.pop %v3635
      %v3668 = vrsqrt.pop %v3636
      %v3669 = vrsqrt.pop %v3637
      %v3670 = vrsqrt.pop %v3638
      %v3671 = vld [vmem:[%s2] sm:$0xff]
      %v3672 = vld [vmem:[%s2 + $0x8] sm:$0xff]
      %v3673 = vld [vmem:[%s2 + $0x10] sm:$0xff]
      %v3674 = vld [vmem:[%s2 + $0x18] sm:$0xff]
      %v3675 = vld [vmem:[%s3] sm:$0x3]
      %v3677 = vlaneseq
      %v3678 = vshrl.u32 %v3677, 7
      %v3679 = vsub.s32 0, %v3678
      %v3680 = vrot.slane %v3675, %v3679
      %v3681 = vlaneseq
      %v3682 = vshrl.u32 %v3681, 7
      %v3683 = vsub.s32 1, %v3682
      %v3684 = vrot.slane %v3675, %v3683
      %3687 = vmatprep.subr.mxu0 0.0
      %3688 = vmatpush1.msra.mxu0 0.0
      %3689 = vmatprep.subr.mxu0 0.0
      %3690 = vmatpush1.msra.mxu0 0.0
      %3691 = vmatprep.subr.mxu0 0.0
      %3692 = vmatpush1.msra.mxu0 0.0
      %3693 = vmatprep.subr.mxu0 0.0
      %3694 = vmatpush1.msra.mxu0 0.0
      %3695 = vmatprep.subr.mxu0 0.0
      %3696 = vmatpush1.msra.mxu0 0.0
      %3697 = vmatprep.subr.mxu0 0.0
      %3698 = vmatpush1.msra.mxu0 0.0
      %3699 = vmatprep.subr.mxu0 0.0
      %3700 = vmatpush1.msra.mxu0 0.0
      %3701 = vmatprep.subr.mxu0 0.0
      %3702 = vmatpush1.msra.mxu0 0.0
      %3703 = vmatprep.subr.mxu0 0.0
      %3704 = vmatpush1.msra.mxu0 0.0
      %3705 = vmatprep.subr.mxu0 0.0
      %3706 = vmatpush1.msra.mxu0 0.0
      %3707 = vmatprep.subr.mxu0 0.0
      %3708 = vmatpush1.msra.mxu0 0.0
      %3709 = vmatprep.subr.mxu0 0.0
      %3710 = vmatpush1.msra.mxu0 0.0
      %3711 = vmatprep.subr.mxu0 0.0
      %3712 = vmatpush1.msra.mxu0 0.0
      %3713 = vmatprep.subr.mxu0 0.0
      %3714 = vmatpush1.msra.mxu0 0.0
      %3715 = vmatprep.subr.mxu0 %v3674
      %3716 = vmatpush1.msra.mxu0 %v3673
      %3717 = vmatprep.subr.mxu0 %v3672
      %3718 = vmatpush1.msra.mxu0 %v3671
      %3719 = vmatprep.subr.mxu0 0.0
      %3720 = vmatpush2.msra.mxu0 0.0
      %3721 = vmatprep.subr.mxu0 0.0
      %3722 = vmatpush2.msra.mxu0 0.0
      %3723 = vmatprep.subr.mxu0 0.0
      %3724 = vmatpush2.msra.mxu0 0.0
      %3725 = vmatprep.subr.mxu0 0.0
      %3726 = vmatpush2.msra.mxu0 0.0
      %3727 = vmatprep.subr.mxu0 0.0
      %3728 = vmatpush2.msra.mxu0 0.0
      %3729 = vmatprep.subr.mxu0 0.0
      %3730 = vmatpush2.msra.mxu0 0.0
      %3731 = vmatprep.subr.mxu0 0.0
      %3732 = vmatpush2.msra.mxu0 0.0
      %3733 = vmatprep.subr.mxu0 0.0
      %3734 = vmatpush2.msra.mxu0 0.0
      %3735 = vmatprep.subr.mxu0 0.0
      %3736 = vmatpush2.msra.mxu0 0.0
      %3737 = vmatprep.subr.mxu0 0.0
      %3738 = vmatpush2.msra.mxu0 0.0
      %3739 = vmatprep.subr.mxu0 0.0
      %3740 = vmatpush2.msra.mxu0 0.0
      %3741 = vmatprep.subr.mxu0 0.0
      %3742 = vmatpush2.msra.mxu0 0.0
      %3743 = vmatprep.subr.mxu0 0.0
      %3744 = vmatpush2.msra.mxu0 0.0
      %3745 = vmatprep.subr.mxu0 0.0
      %3746 = vmatpush2.msra.mxu0 0.0
      %3747 = vmatprep.subr.mxu0 0.0
      %3748 = vmatpush2.msra.mxu0 0.0
      %3749 = vmatprep.subr.mxu0 0.0
      %3750 = vmatpush2.msra.mxu0 0.0
      %3751 = vmatprep.mubr.f32.mxu0 0.0
      %3752 = vmatmul.mubr.f32.gmra.mxu0 %v552
      %v3753 = vpop.f32.mrf.mxu0
      %v3754 = vadd.f32 %v3680, %v3753
      %v3755 = vpop.f32.mrf.mxu0
      %v3756 = vadd.f32 %v3684, %v3755
      %3757 = vmatprep.mubr.f32.mxu0 0.0
      %3758 = vmatmul.mubr.f32.gmra.mxu0 %v555
      %v3759 = vpop.f32.mrf.mxu0
      %v3760 = vadd.f32 %v3680, %v3759
      %v3761 = vpop.f32.mrf.mxu0
      %v3762 = vadd.f32 %v3684, %v3761
      %3763 = vmatprep.mubr.f32.mxu0 0.0
      %3764 = vmatmul.mubr.f32.gmra.mxu0 %v558
      %v3765 = vpop.f32.mrf.mxu0
      %v3766 = vadd.f32 %v3680, %v3765
      %v3767 = vpop.f32.mrf.mxu0
      %v3768 = vadd.f32 %v3684, %v3767
      %3769 = vmatprep.mubr.f32.mxu0 0.0
      %3770 = vmatmul.mubr.f32.gmra.mxu0 %v561
      %v3771 = vpop.f32.mrf.mxu0
      %v3772 = vadd.f32 %v3680, %v3771
      %v3773 = vpop.f32.mrf.mxu0
      %v3774 = vadd.f32 %v3684, %v3773
      %3775 = vmatprep.mubr.f32.mxu0 0.0
      %3776 = vmatmul.mubr.f32.gmra.mxu0 %v564
      %v3777 = vpop.f32.mrf.mxu0
      %v3778 = vadd.f32 %v3680, %v3777
      %v3779 = vpop.f32.mrf.mxu0
      %v3780 = vadd.f32 %v3684, %v3779
      %3781 = vmatprep.mubr.f32.mxu0 0.0
      %3782 = vmatmul.mubr.f32.gmra.mxu0 %v567
      %v3783 = vpop.f32.mrf.mxu0
      %v3784 = vadd.f32 %v3680, %v3783
      %v3785 = vpop.f32.mrf.mxu0
      %v3786 = vadd.f32 %v3684, %v3785
      %3787 = vmatprep.mubr.f32.mxu0 0.0
      %3788 = vmatmul.mubr.f32.gmra.mxu0 %v570
      %v3789 = vpop.f32.mrf.mxu0
      %v3790 = vadd.f32 %v3680, %v3789
      %v3791 = vpop.f32.mrf.mxu0
      %v3792 = vadd.f32 %v3684, %v3791
      %3793 = vmatprep.mubr.f32.mxu0 0.0
      %3794 = vmatmul.mubr.f32.gmra.mxu0 %v573
      %v3795 = vpop.f32.mrf.mxu0
      %v3796 = vadd.f32 %v3680, %v3795
      %v3797 = vpop.f32.mrf.mxu0
      %v3798 = vadd.f32 %v3684, %v3797
      %3799 = vmatprep.mubr.f32.mxu0 0.0
      %3800 = vmatmul.mubr.f32.gmra.mxu0 %v576
      %v3801 = vpop.f32.mrf.mxu0
      %v3802 = vadd.f32 %v3680, %v3801
      %v3803 = vpop.f32.mrf.mxu0
      %v3804 = vadd.f32 %v3684, %v3803
      %3805 = vmatprep.mubr.f32.mxu0 0.0
      %3806 = vmatmul.mubr.f32.gmra.mxu0 %v579
      %v3807 = vpop.f32.mrf.mxu0
      %v3808 = vadd.f32 %v3680, %v3807
      %v3809 = vpop.f32.mrf.mxu0
      %v3810 = vadd.f32 %v3684, %v3809
      %3811 = vmatprep.mubr.f32.mxu0 0.0
      %3812 = vmatmul.mubr.f32.gmra.mxu0 %v582
      %v3813 = vpop.f32.mrf.mxu0
      %v3814 = vadd.f32 %v3680, %v3813
      %v3815 = vpop.f32.mrf.mxu0
      %v3816 = vadd.f32 %v3684, %v3815
      %3817 = vmatprep.mubr.f32.mxu0 0.0
      %3818 = vmatmul.mubr.f32.gmra.mxu0 %v585
      %v3819 = vpop.f32.mrf.mxu0
      %v3820 = vadd.f32 %v3680, %v3819
      %v3821 = vpop.f32.mrf.mxu0
      %v3822 = vadd.f32 %v3684, %v3821
      %3823 = vmatprep.mubr.f32.mxu0 0.0
      %3824 = vmatmul.mubr.f32.gmra.mxu0 %v588
      %v3825 = vpop.f32.mrf.mxu0
      %v3826 = vadd.f32 %v3680, %v3825
      %v3827 = vpop.f32.mrf.mxu0
      %v3828 = vadd.f32 %v3684, %v3827
      %3829 = vmatprep.mubr.f32.mxu0 0.0
      %3830 = vmatmul.mubr.f32.gmra.mxu0 %v591
      %v3831 = vpop.f32.mrf.mxu0
      %v3832 = vadd.f32 %v3680, %v3831
      %v3833 = vpop.f32.mrf.mxu0
      %v3834 = vadd.f32 %v3684, %v3833
      %3835 = vmatprep.mubr.f32.mxu0 0.0
      %3836 = vmatmul.mubr.f32.gmra.mxu0 %v594
      %v3837 = vpop.f32.mrf.mxu0
      %v3838 = vadd.f32 %v3680, %v3837
      %v3839 = vpop.f32.mrf.mxu0
      %v3840 = vadd.f32 %v3684, %v3839
      %3841 = vmatprep.mubr.f32.mxu0 0.0
      %3842 = vmatmul.mubr.f32.gmra.mxu0 %v597
      %v3843 = vpop.f32.mrf.mxu0
      %v3844 = vadd.f32 %v3680, %v3843
      %v3845 = vpop.f32.mrf.mxu0
      %v3846 = vadd.f32 %v3684, %v3845
      %3847 = vmatprep.mubr.f32.mxu0 0.0
      %3848 = vmatmul.mubr.f32.gmra.mxu0 %v600
      %v3849 = vpop.f32.mrf.mxu0
      %v3850 = vadd.f32 %v3680, %v3849
      %v3851 = vpop.f32.mrf.mxu0
      %v3852 = vadd.f32 %v3684, %v3851
      %3853 = vmatprep.mubr.f32.mxu0 0.0
      %3854 = vmatmul.mubr.f32.gmra.mxu0 %v603
      %v3855 = vpop.f32.mrf.mxu0
      %v3856 = vadd.f32 %v3680, %v3855
      %v3857 = vpop.f32.mrf.mxu0
      %v3858 = vadd.f32 %v3684, %v3857
      %3859 = vmatprep.mubr.f32.mxu0 0.0
      %3860 = vmatmul.mubr.f32.gmra.mxu0 %v606
      %v3861 = vpop.f32.mrf.mxu0
      %v3862 = vadd.f32 %v3680, %v3861
      %v3863 = vpop.f32.mrf.mxu0
      %v3864 = vadd.f32 %v3684, %v3863
      %3865 = vmatprep.mubr.f32.mxu0 0.0
      %3866 = vmatmul.mubr.f32.gmra.mxu0 %v609
      %v3867 = vpop.f32.mrf.mxu0
      %v3868 = vadd.f32 %v3680, %v3867
      %v3869 = vpop.f32.mrf.mxu0
      %v3870 = vadd.f32 %v3684, %v3869
      %3871 = vmatprep.mubr.f32.mxu0 0.0
      %3872 = vmatmul.mubr.f32.gmra.mxu0 %v612
      %v3873 = vpop.f32.mrf.mxu0
      %v3874 = vadd.f32 %v3680, %v3873
      %v3875 = vpop.f32.mrf.mxu0
      %v3876 = vadd.f32 %v3684, %v3875
      %3877 = vmatprep.mubr.f32.mxu0 0.0
      %3878 = vmatmul.mubr.f32.gmra.mxu0 %v615
      %v3879 = vpop.f32.mrf.mxu0
      %v3880 = vadd.f32 %v3680, %v3879
      %v3881 = vpop.f32.mrf.mxu0
      %v3882 = vadd.f32 %v3684, %v3881
      %3883 = vmatprep.mubr.f32.mxu0 0.0
      %3884 = vmatmul.mubr.f32.gmra.mxu0 %v618
      %v3885 = vpop.f32.mrf.mxu0
      %v3886 = vadd.f32 %v3680, %v3885
      %v3887 = vpop.f32.mrf.mxu0
      %v3888 = vadd.f32 %v3684, %v3887
      %3889 = vmatprep.mubr.f32.mxu0 0.0
      %3890 = vmatmul.mubr.f32.gmra.mxu0 %v621
      %v3891 = vpop.f32.mrf.mxu0
      %v3892 = vadd.f32 %v3680, %v3891
      %v3893 = vpop.f32.mrf.mxu0
      %v3894 = vadd.f32 %v3684, %v3893
      %3895 = vmatprep.mubr.f32.mxu0 0.0
      %3896 = vmatmul.mubr.f32.gmra.mxu0 %v624
      %v3897 = vpop.f32.mrf.mxu0
      %v3898 = vadd.f32 %v3680, %v3897
      %v3899 = vpop.f32.mrf.mxu0
      %v3900 = vadd.f32 %v3684, %v3899
      %3901 = vmatprep.mubr.f32.mxu0 0.0
      %3902 = vmatmul.mubr.f32.gmra.mxu0 %v627
      %v3903 = vpop.f32.mrf.mxu0
      %v3904 = vadd.f32 %v3680, %v3903
      %v3905 = vpop.f32.mrf.mxu0
      %v3906 = vadd.f32 %v3684, %v3905
      %3907 = vmatprep.mubr.f32.mxu0 0.0
      %3908 = vmatmul.mubr.f32.gmra.mxu0 %v630
      %v3909 = vpop.f32.mrf.mxu0
      %v3910 = vadd.f32 %v3680, %v3909
      %v3911 = vpop.f32.mrf.mxu0
      %v3912 = vadd.f32 %v3684, %v3911
      %3913 = vmatprep.mubr.f32.mxu0 0.0
      %3914 = vmatmul.mubr.f32.gmra.mxu0 %v633
      %v3915 = vpop.f32.mrf.mxu0
      %v3916 = vadd.f32 %v3680, %v3915
      %v3917 = vpop.f32.mrf.mxu0
      %v3918 = vadd.f32 %v3684, %v3917
      %3919 = vmatprep.mubr.f32.mxu0 0.0
      %3920 = vmatmul.mubr.f32.gmra.mxu0 %v636
      %v3921 = vpop.f32.mrf.mxu0
      %v3922 = vadd.f32 %v3680, %v3921
      %v3923 = vpop.f32.mrf.mxu0
      %v3924 = vadd.f32 %v3684, %v3923
      %3925 = vmatprep.mubr.f32.mxu0 0.0
      %3926 = vmatmul.mubr.f32.gmra.mxu0 %v639
      %v3927 = vpop.f32.mrf.mxu0
      %v3928 = vadd.f32 %v3680, %v3927
      %v3929 = vpop.f32.mrf.mxu0
      %v3930 = vadd.f32 %v3684, %v3929
      %3931 = vmatprep.mubr.f32.mxu0 0.0
      %3932 = vmatmul.mubr.f32.gmra.mxu0 %v642
      %v3933 = vpop.f32.mrf.mxu0
      %v3934 = vadd.f32 %v3680, %v3933
      %v3935 = vpop.f32.mrf.mxu0
      %v3936 = vadd.f32 %v3684, %v3935
      %3937 = vmatprep.mubr.f32.mxu0 0.0
      %3938 = vmatmul.mubr.f32.gmra.mxu0 %v645
      %v3939 = vpop.f32.mrf.mxu0
      %v3940 = vadd.f32 %v3680, %v3939
      %v3941 = vpop.f32.mrf.mxu0
      %v3942 = vadd.f32 %v3684, %v3941
      %3943 = vdwg.mxu0
      %v3944 = vmul.f32 %v3639, %v3754
      %v3945 = vmul.f32 %v3639, %v3756
      %v3946 = vmul.f32 %v3640, %v3760
      %v3947 = vmul.f32 %v3640, %v3762
      %v3948 = vmul.f32 %v3641, %v3766
      %v3949 = vmul.f32 %v3641, %v3768
      %v3950 = vmul.f32 %v3642, %v3772
      %v3951 = vmul.f32 %v3642, %v3774
      %v3952 = vmul.f32 %v3643, %v3778
      %v3953 = vmul.f32 %v3643, %v3780
      %v3954 = vmul.f32 %v3644, %v3784
      %v3955 = vmul.f32 %v3644, %v3786
      %v3956 = vmul.f32 %v3645, %v3790
      %v3957 = vmul.f32 %v3645, %v3792
      %v3958 = vmul.f32 %v3646, %v3796
      %v3959 = vmul.f32 %v3646, %v3798
      %v3960 = vmul.f32 %v3647, %v3802
      %v3961 = vmul.f32 %v3647, %v3804
      %v3962 = vmul.f32 %v3648, %v3808
      %v3963 = vmul.f32 %v3648, %v3810
      %v3964 = vmul.f32 %v3649, %v3814
      %v3965 = vmul.f32 %v3649, %v3816
      %v3966 = vmul.f32 %v3650, %v3820
      %v3967 = vmul.f32 %v3650, %v3822
      %v3968 = vmul.f32 %v3651, %v3826
      %v3969 = vmul.f32 %v3651, %v3828
      %v3970 = vmul.f32 %v3652, %v3832
      %v3971 = vmul.f32 %v3652, %v3834
      %v3972 = vmul.f32 %v3653, %v3838
      %v3973 = vmul.f32 %v3653, %v3840
      %v3974 = vmul.f32 %v3654, %v3844
      %v3975 = vmul.f32 %v3654, %v3846
      %v3976 = vmul.f32 %v3655, %v3850
      %v3977 = vmul.f32 %v3655, %v3852
      %v3978 = vmul.f32 %v3656, %v3856
      %v3979 = vmul.f32 %v3656, %v3858
      %v3980 = vmul.f32 %v3657, %v3862
      %v3981 = vmul.f32 %v3657, %v3864
      %v3982 = vmul.f32 %v3658, %v3868
      %v3983 = vmul.f32 %v3658, %v3870
      %v3984 = vmul.f32 %v3659, %v3874
      %v3985 = vmul.f32 %v3659, %v3876
      %v3986 = vmul.f32 %v3660, %v3880
      %v3987 = vmul.f32 %v3660, %v3882
      %v3988 = vmul.f32 %v3661, %v3886
      %v3989 = vmul.f32 %v3661, %v3888
      %v3990 = vmul.f32 %v3662, %v3892
      %v3991 = vmul.f32 %v3662, %v3894
      %v3992 = vmul.f32 %v3663, %v3898
      %v3993 = vmul.f32 %v3663, %v3900
      %v3994 = vmul.f32 %v3664, %v3904
      %v3995 = vmul.f32 %v3664, %v3906
      %v3996 = vmul.f32 %v3665, %v3910
      %v3997 = vmul.f32 %v3665, %v3912
      %v3998 = vmul.f32 %v3666, %v3916
      %v3999 = vmul.f32 %v3666, %v3918
      %v4000 = vmul.f32 %v3667, %v3922
      %v4001 = vmul.f32 %v3667, %v3924
      %v4002 = vmul.f32 %v3668, %v3928
      %v4003 = vmul.f32 %v3668, %v3930
      %v4004 = vmul.f32 %v3669, %v3934
      %v4005 = vmul.f32 %v3669, %v3936
      %v4006 = vmul.f32 %v3670, %v3940
      %v4007 = vmul.f32 %v3670, %v3942
      %v4008 = vpack.c.bf16 %v3946, %v3944
      %v4009 = vpack.c.bf16 %v3947, %v3945
      %v4010 = vpack.c.bf16 %v3950, %v3948
      %v4011 = vpack.c.bf16 %v3951, %v3949
      %v4012 = vpack.c.bf16 %v3954, %v3952
      %v4013 = vpack.c.bf16 %v3955, %v3953
      %v4014 = vpack.c.bf16 %v3958, %v3956
      %v4015 = vpack.c.bf16 %v3959, %v3957
      %v4016 = vpack.c.bf16 %v3962, %v3960
      %v4017 = vpack.c.bf16 %v3963, %v3961
      %v4018 = vpack.c.bf16 %v3966, %v3964
      %v4019 = vpack.c.bf16 %v3967, %v3965
      %v4020 = vpack.c.bf16 %v3970, %v3968
      %v4021 = vpack.c.bf16 %v3971, %v3969
      %v4022 = vpack.c.bf16 %v3974, %v3972
      %v4023 = vpack.c.bf16 %v3975, %v3973
      %v4024 = vpack.c.bf16 %v3978, %v3976
      %v4025 = vpack.c.bf16 %v3979, %v3977
      %v4026 = vpack.c.bf16 %v3982, %v3980
      %v4027 = vpack.c.bf16 %v3983, %v3981
      %v4028 = vpack.c.bf16 %v3986, %v3984
      %v4029 = vpack.c.bf16 %v3987, %v3985
      %v4030 = vpack.c.bf16 %v3990, %v3988
      %v4031 = vpack.c.bf16 %v3991, %v3989
      %v4032 = vpack.c.bf16 %v3994, %v3992
      %v4033 = vpack.c.bf16 %v3995, %v3993
      %v4034 = vpack.c.bf16 %v3998, %v3996
      %v4035 = vpack.c.bf16 %v3999, %v3997
      %v4036 = vpack.c.bf16 %v4002, %v4000
      %v4037 = vpack.c.bf16 %v4003, %v4001
      %v4038 = vpack.c.bf16 %v4006, %v4004
      %v4039 = vpack.c.bf16 %v4007, %v4005
      %v4040 = vunpack.c.l.bf16 %v4008
      %v4041 = vunpack.c.l.bf16 %v4009
      %v4042 = vunpack.c.h.bf16 %v4008
      %v4043 = vunpack.c.h.bf16 %v4009
      %v4044 = vunpack.c.l.bf16 %v4010
      %v4045 = vunpack.c.l.bf16 %v4011
      %v4046 = vunpack.c.h.bf16 %v4010
      %v4047 = vunpack.c.h.bf16 %v4011
      %v4048 = vunpack.c.l.bf16 %v4012
      %v4049 = vunpack.c.l.bf16 %v4013
      %v4050 = vunpack.c.h.bf16 %v4012
      %v4051 = vunpack.c.h.bf16 %v4013
      %v4052 = vunpack.c.l.bf16 %v4014
      %v4053 = vunpack.c.l.bf16 %v4015
      %v4054 = vunpack.c.h.bf16 %v4014
      %v4055 = vunpack.c.h.bf16 %v4015
      %v4056 = vunpack.c.l.bf16 %v4016
      %v4057 = vunpack.c.l.bf16 %v4017
      %v4058 = vunpack.c.h.bf16 %v4016
      %v4059 = vunpack.c.h.bf16 %v4017
      %v4060 = vunpack.c.l.bf16 %v4018
      %v4061 = vunpack.c.l.bf16 %v4019
      %v4062 = vunpack.c.h.bf16 %v4018
      %v4063 = vunpack.c.h.bf16 %v4019
      %v4064 = vunpack.c.l.bf16 %v4020
      %v4065 = vunpack.c.l.bf16 %v4021
      %v4066 = vunpack.c.h.bf16 %v4020
      %v4067 = vunpack.c.h.bf16 %v4021
      %v4068 = vunpack.c.l.bf16 %v4022
      %v4069 = vunpack.c.l.bf16 %v4023
      %v4070 = vunpack.c.h.bf16 %v4022
      %v4071 = vunpack.c.h.bf16 %v4023
      %v4072 = vunpack.c.l.bf16 %v4024
      %v4073 = vunpack.c.l.bf16 %v4025
      %v4074 = vunpack.c.h.bf16 %v4024
      %v4075 = vunpack.c.h.bf16 %v4025
      %v4076 = vunpack.c.l.bf16 %v4026
      %v4077 = vunpack.c.l.bf16 %v4027
      %v4078 = vunpack.c.h.bf16 %v4026
      %v4079 = vunpack.c.h.bf16 %v4027
      %v4080 = vunpack.c.l.bf16 %v4028
      %v4081 = vunpack.c.l.bf16 %v4029
      %v4082 = vunpack.c.h.bf16 %v4028
      %v4083 = vunpack.c.h.bf16 %v4029
      %v4084 = vunpack.c.l.bf16 %v4030
      %v4085 = vunpack.c.l.bf16 %v4031
      %v4086 = vunpack.c.h.bf16 %v4030
      %v4087 = vunpack.c.h.bf16 %v4031
      %v4088 = vunpack.c.l.bf16 %v4032
      %v4089 = vunpack.c.l.bf16 %v4033
      %v4090 = vunpack.c.h.bf16 %v4032
      %v4091 = vunpack.c.h.bf16 %v4033
      %v4092 = vunpack.c.l.bf16 %v4034
      %v4093 = vunpack.c.l.bf16 %v4035
      %v4094 = vunpack.c.h.bf16 %v4034
      %v4095 = vunpack.c.h.bf16 %v4035
      %v4096 = vunpack.c.l.bf16 %v4036
      %v4097 = vunpack.c.l.bf16 %v4037
      %v4098 = vunpack.c.h.bf16 %v4036
      %v4099 = vunpack.c.h.bf16 %v4037
      %v4100 = vunpack.c.l.bf16 %v4038
      %v4101 = vunpack.c.l.bf16 %v4039
      %v4102 = vunpack.c.h.bf16 %v4038
      %v4103 = vunpack.c.h.bf16 %v4039
      %v4104 = vsub.f32 %v3944, %v4040
      %v4105 = vsub.f32 %v3945, %v4041
      %v4106 = vsub.f32 %v3946, %v4042
      %v4107 = vsub.f32 %v3947, %v4043
      %v4108 = vsub.f32 %v3948, %v4044
      %v4109 = vsub.f32 %v3949, %v4045
      %v4110 = vsub.f32 %v3950, %v4046
      %v4111 = vsub.f32 %v3951, %v4047
      %v4112 = vsub.f32 %v3952, %v4048
      %v4113 = vsub.f32 %v3953, %v4049
      %v4114 = vsub.f32 %v3954, %v4050
      %v4115 = vsub.f32 %v3955, %v4051
      %v4116 = vsub.f32 %v3956, %v4052
      %v4117 = vsub.f32 %v3957, %v4053
      %v4118 = vsub.f32 %v3958, %v4054
      %v4119 = vsub.f32 %v3959, %v4055
      %v4120 = vsub.f32 %v3960, %v4056
      %v4121 = vsub.f32 %v3961, %v4057
      %v4122 = vsub.f32 %v3962, %v4058
      %v4123 = vsub.f32 %v3963, %v4059
      %v4124 = vsub.f32 %v3964, %v4060
      %v4125 = vsub.f32 %v3965, %v4061
      %v4126 = vsub.f32 %v3966, %v4062
      %v4127 = vsub.f32 %v3967, %v4063
      %v4128 = vsub.f32 %v3968, %v4064
      %v4129 = vsub.f32 %v3969, %v4065
      %v4130 = vsub.f32 %v3970, %v4066
      %v4131 = vsub.f32 %v3971, %v4067
      %v4132 = vsub.f32 %v3972, %v4068
      %v4133 = vsub.f32 %v3973, %v4069
      %v4134 = vsub.f32 %v3974, %v4070
      %v4135 = vsub.f32 %v3975, %v4071
      %v4136 = vsub.f32 %v3976, %v4072
      %v4137 = vsub.f32 %v3977, %v4073
      %v4138 = vsub.f32 %v3978, %v4074
      %v4139 = vsub.f32 %v3979, %v4075
      %v4140 = vsub.f32 %v3980, %v4076
      %v4141 = vsub.f32 %v3981, %v4077
      %v4142 = vsub.f32 %v3982, %v4078
      %v4143 = vsub.f32 %v3983, %v4079
      %v4144 = vsub.f32 %v3984, %v4080
      %v4145 = vsub.f32 %v3985, %v4081
      %v4146 = vsub.f32 %v3986, %v4082
      %v4147 = vsub.f32 %v3987, %v4083
      %v4148 = vsub.f32 %v3988, %v4084
      %v4149 = vsub.f32 %v3989, %v4085
      %v4150 = vsub.f32 %v3990, %v4086
      %v4151 = vsub.f32 %v3991, %v4087
      %v4152 = vsub.f32 %v3992, %v4088
      %v4153 = vsub.f32 %v3993, %v4089
      %v4154 = vsub.f32 %v3994, %v4090
      %v4155 = vsub.f32 %v3995, %v4091
      %v4156 = vsub.f32 %v3996, %v4092
      %v4157 = vsub.f32 %v3997, %v4093
      %v4158 = vsub.f32 %v3998, %v4094
      %v4159 = vsub.f32 %v3999, %v4095
      %v4160 = vsub.f32 %v4000, %v4096
      %v4161 = vsub.f32 %v4001, %v4097
      %v4162 = vsub.f32 %v4002, %v4098
      %v4163 = vsub.f32 %v4003, %v4099
      %v4164 = vsub.f32 %v4004, %v4100
      %v4165 = vsub.f32 %v4005, %v4101
      %v4166 = vsub.f32 %v4006, %v4102
      %v4167 = vsub.f32 %v4007, %v4103
      %v4168 = vpack.c.bf16 %v4106, %v4104
      %v4169 = vpack.c.bf16 %v4107, %v4105
      %v4170 = vpack.c.bf16 %v4110, %v4108
      %v4171 = vpack.c.bf16 %v4111, %v4109
      %v4172 = vpack.c.bf16 %v4114, %v4112
      %v4173 = vpack.c.bf16 %v4115, %v4113
      %v4174 = vpack.c.bf16 %v4118, %v4116
      %v4175 = vpack.c.bf16 %v4119, %v4117
      %v4176 = vpack.c.bf16 %v4122, %v4120
      %v4177 = vpack.c.bf16 %v4123, %v4121
      %v4178 = vpack.c.bf16 %v4126, %v4124
      %v4179 = vpack.c.bf16 %v4127, %v4125
      %v4180 = vpack.c.bf16 %v4130, %v4128
      %v4181 = vpack.c.bf16 %v4131, %v4129
      %v4182 = vpack.c.bf16 %v4134, %v4132
      %v4183 = vpack.c.bf16 %v4135, %v4133
      %v4184 = vpack.c.bf16 %v4138, %v4136
      %v4185 = vpack.c.bf16 %v4139, %v4137
      %v4186 = vpack.c.bf16 %v4142, %v4140
      %v4187 = vpack.c.bf16 %v4143, %v4141
      %v4188 = vpack.c.bf16 %v4146, %v4144
      %v4189 = vpack.c.bf16 %v4147, %v4145
      %v4190 = vpack.c.bf16 %v4150, %v4148
      %v4191 = vpack.c.bf16 %v4151, %v4149
      %v4192 = vpack.c.bf16 %v4154, %v4152
      %v4193 = vpack.c.bf16 %v4155, %v4153
      %v4194 = vpack.c.bf16 %v4158, %v4156
      %v4195 = vpack.c.bf16 %v4159, %v4157
      %v4196 = vpack.c.bf16 %v4162, %v4160
      %v4197 = vpack.c.bf16 %v4163, %v4161
      %v4198 = vpack.c.bf16 %v4166, %v4164
      %v4199 = vpack.c.bf16 %v4167, %v4165
      %4200 = vmatprep.subr.bf16.mxu0 %v4183
      %4201 = vmatpush1.bf16.msra.mxu0 %v4182
      %4202 = vmatprep.subr.bf16.mxu0 %v4181
      %4203 = vmatpush1.bf16.msra.mxu0 %v4180
      %4204 = vmatprep.subr.bf16.mxu0 %v4179
      %4205 = vmatpush1.bf16.msra.mxu0 %v4178
      %4206 = vmatprep.subr.bf16.mxu0 %v4177
      %4207 = vmatpush1.bf16.msra.mxu0 %v4176
      %4208 = vmatprep.subr.bf16.mxu0 %v4175
      %4209 = vmatpush1.bf16.msra.mxu0 %v4174
      %4210 = vmatprep.subr.bf16.mxu0 %v4173
      %4211 = vmatpush1.bf16.msra.mxu0 %v4172
      %4212 = vmatprep.subr.bf16.mxu0 %v4171
      %4213 = vmatpush1.bf16.msra.mxu0 %v4170
      %4214 = vmatprep.subr.bf16.mxu0 %v4169
      %4215 = vmatpush1.bf16.msra.mxu0 %v4168
      %4216 = vmatprep.subr.bf16.mxu0 %v4199
      %4217 = vmatpush2.bf16.msra.mxu0 %v4198
      %4218 = vmatprep.subr.bf16.mxu0 %v4197
      %4219 = vmatpush2.bf16.msra.mxu0 %v4196
      %4220 = vmatprep.subr.bf16.mxu0 %v4195
      %4221 = vmatpush2.bf16.msra.mxu0 %v4194
      %4222 = vmatprep.subr.bf16.mxu0 %v4193
      %4223 = vmatpush2.bf16.msra.mxu0 %v4192
      %4224 = vmatprep.subr.bf16.mxu0 %v4191
      %4225 = vmatpush2.bf16.msra.mxu0 %v4190
      %4226 = vmatprep.subr.bf16.mxu0 %v4189
      %4227 = vmatpush2.bf16.msra.mxu0 %v4188
      %4228 = vmatprep.subr.bf16.mxu0 %v4187
      %4229 = vmatpush2.bf16.msra.mxu0 %v4186
      %4230 = vmatprep.subr.bf16.mxu0 %v4185
      %4231 = vmatpush2.bf16.msra.mxu0 %v4184
      %4232 = vmatprep.mubr.bf16.mxu0 %v3480
      %4233 = vmatmul.mubr.bf16.gmra.mxu0 %v3479
      %v4234 = vpop.f32.mrf.mxu0
      %v4235 = vadd.f32 0.0, %v4234
      %v4236 = vpop.f32.mrf.mxu0
      %v4237 = vadd.f32 0.0, %v4236
      %v4238 = vpop.f32.mrf.mxu0
      %v4239 = vadd.f32 0.0, %v4238
      %v4240 = vpop.f32.mrf.mxu0
      %v4241 = vadd.f32 0.0, %v4240
      %4242 = vmatprep.mubr.bf16.mxu0 %v3482
      %4243 = vmatmul.mubr.bf16.gmra.mxu0 %v3481
      %v4244 = vpop.f32.mrf.mxu0
      %v4245 = vadd.f32 0.0, %v4244
      %v4246 = vpop.f32.mrf.mxu0
      %v4247 = vadd.f32 0.0, %v4246
      %v4248 = vpop.f32.mrf.mxu0
      %v4249 = vadd.f32 0.0, %v4248
      %v4250 = vpop.f32.mrf.mxu0
      %v4251 = vadd.f32 0.0, %v4250
      %4252 = vmatprep.mubr.bf16.mxu0 %v3484
      %4253 = vmatmul.mubr.bf16.gmra.mxu0 %v3483
      %v4254 = vpop.f32.mrf.mxu0
      %v4255 = vadd.f32 0.0, %v4254
      %v4256 = vpop.f32.mrf.mxu0
      %v4257 = vadd.f32 0.0, %v4256
      %v4258 = vpop.f32.mrf.mxu0
      %v4259 = vadd.f32 0.0, %v4258
      %v4260 = vpop.f32.mrf.mxu0
      %v4261 = vadd.f32 0.0, %v4260
      %4262 = vmatprep.mubr.bf16.mxu0 %v3486
      %4263 = vmatmul.mubr.bf16.gmra.mxu0 %v3485
      %v4264 = vpop.f32.mrf.mxu0
      %v4265 = vadd.f32 0.0, %v4264
      %v4266 = vpop.f32.mrf.mxu0
      %v4267 = vadd.f32 0.0, %v4266
      %v4268 = vpop.f32.mrf.mxu0
      %v4269 = vadd.f32 0.0, %v4268
      %v4270 = vpop.f32.mrf.mxu0
      %v4271 = vadd.f32 0.0, %v4270
      %4272 = vmatprep.mubr.bf16.mxu0 %v3488
      %4273 = vmatmul.mubr.bf16.gmra.mxu0 %v3487
      %v4274 = vpop.f32.mrf.mxu0
      %v4275 = vadd.f32 0.0, %v4274
      %v4276 = vpop.f32.mrf.mxu0
      %v4277 = vadd.f32 0.0, %v4276
      %v4278 = vpop.f32.mrf.mxu0
      %v4279 = vadd.f32 0.0, %v4278
      %v4280 = vpop.f32.mrf.mxu0
      %v4281 = vadd.f32 0.0, %v4280
      %4282 = vmatprep.mubr.bf16.mxu0 %v3490
      %4283 = vmatmul.mubr.bf16.gmra.mxu0 %v3489
      %v4284 = vpop.f32.mrf.mxu0
      %v4285 = vadd.f32 0.0, %v4284
      %v4286 = vpop.f32.mrf.mxu0
      %v4287 = vadd.f32 0.0, %v4286
      %v4288 = vpop.f32.mrf.mxu0
      %v4289 = vadd.f32 0.0, %v4288
      %v4290 = vpop.f32.mrf.mxu0
      %v4291 = vadd.f32 0.0, %v4290
      %4292 = vmatprep.mubr.bf16.mxu0 %v3492
      %4293 = vmatmul.mubr.bf16.gmra.mxu0 %v3491
      %v4294 = vpop.f32.mrf.mxu0
      %v4295 = vadd.f32 0.0, %v4294
      %v4296 = vpop.f32.mrf.mxu0
      %v4297 = vadd.f32 0.0, %v4296
      %v4298 = vpop.f32.mrf.mxu0
      %v4299 = vadd.f32 0.0, %v4298
      %v4300 = vpop.f32.mrf.mxu0
      %v4301 = vadd.f32 0.0, %v4300
      %4302 = vmatprep.mubr.bf16.mxu0 %v3494
      %4303 = vmatmul.mubr.bf16.gmra.mxu0 %v3493
      %v4304 = vpop.f32.mrf.mxu0
      %v4305 = vadd.f32 0.0, %v4304
      %v4306 = vpop.f32.mrf.mxu0
      %v4307 = vadd.f32 0.0, %v4306
      %v4308 = vpop.f32.mrf.mxu0
      %v4309 = vadd.f32 0.0, %v4308
      %v4310 = vpop.f32.mrf.mxu0
      %v4311 = vadd.f32 0.0, %v4310
      %4312 = vmatprep.mubr.bf16.mxu0 %v3496
      %4313 = vmatmul.mubr.bf16.gmra.mxu0 %v3495
      %v4314 = vpop.f32.mrf.mxu0
      %v4315 = vadd.f32 0.0, %v4314
      %v4316 = vpop.f32.mrf.mxu0
      %v4317 = vadd.f32 0.0, %v4316
      %v4318 = vpop.f32.mrf.mxu0
      %v4319 = vadd.f32 0.0, %v4318
      %v4320 = vpop.f32.mrf.mxu0
      %v4321 = vadd.f32 0.0, %v4320
      %4322 = vmatprep.mubr.bf16.mxu0 %v3498
      %4323 = vmatmul.mubr.bf16.gmra.mxu0 %v3497
      %v4324 = vpop.f32.mrf.mxu0
      %v4325 = vadd.f32 0.0, %v4324
      %v4326 = vpop.f32.mrf.mxu0
      %v4327 = vadd.f32 0.0, %v4326
      %v4328 = vpop.f32.mrf.mxu0
      %v4329 = vadd.f32 0.0, %v4328
      %v4330 = vpop.f32.mrf.mxu0
      %v4331 = vadd.f32 0.0, %v4330
      %4332 = vmatprep.mubr.bf16.mxu0 %v3500
      %4333 = vmatmul.mubr.bf16.gmra.mxu0 %v3499
      %v4334 = vpop.f32.mrf.mxu0
      %v4335 = vadd.f32 0.0, %v4334
      %v4336 = vpop.f32.mrf.mxu0
      %v4337 = vadd.f32 0.0, %v4336
      %v4338 = vpop.f32.mrf.mxu0
      %v4339 = vadd.f32 0.0, %v4338
      %v4340 = vpop.f32.mrf.mxu0
      %v4341 = vadd.f32 0.0, %v4340
      %4342 = vmatprep.mubr.bf16.mxu0 %v3502
      %4343 = vmatmul.mubr.bf16.gmra.mxu0 %v3501
      %v4344 = vpop.f32.mrf.mxu0
      %v4345 = vadd.f32 0.0, %v4344
      %v4346 = vpop.f32.mrf.mxu0
      %v4347 = vadd.f32 0.0, %v4346
      %v4348 = vpop.f32.mrf.mxu0
      %v4349 = vadd.f32 0.0, %v4348
      %v4350 = vpop.f32.mrf.mxu0
      %v4351 = vadd.f32 0.0, %v4350
      %4352 = vmatprep.mubr.bf16.mxu0 %v3504
      %4353 = vmatmul.mubr.bf16.gmra.mxu0 %v3503
      %v4354 = vpop.f32.mrf.mxu0
      %v4355 = vadd.f32 0.0, %v4354
      %v4356 = vpop.f32.mrf.mxu0
      %v4357 = vadd.f32 0.0, %v4356
      %v4358 = vpop.f32.mrf.mxu0
      %v4359 = vadd.f32 0.0, %v4358
      %v4360 = vpop.f32.mrf.mxu0
      %v4361 = vadd.f32 0.0, %v4360
      %4362 = vmatprep.mubr.bf16.mxu0 %v3506
      %4363 = vmatmul.mubr.bf16.gmra.mxu0 %v3505
      %v4364 = vpop.f32.mrf.mxu0
      %v4365 = vadd.f32 0.0, %v4364
      %v4366 = vpop.f32.mrf.mxu0
      %v4367 = vadd.f32 0.0, %v4366
      %v4368 = vpop.f32.mrf.mxu0
      %v4369 = vadd.f32 0.0, %v4368
      %v4370 = vpop.f32.mrf.mxu0
      %v4371 = vadd.f32 0.0, %v4370
      %4372 = vmatprep.mubr.bf16.mxu0 %v3508
      %4373 = vmatmul.mubr.bf16.gmra.mxu0 %v3507
      %v4374 = vpop.f32.mrf.mxu0
      %v4375 = vadd.f32 0.0, %v4374
      %v4376 = vpop.f32.mrf.mxu0
      %v4377 = vadd.f32 0.0, %v4376
      %v4378 = vpop.f32.mrf.mxu0
      %v4379 = vadd.f32 0.0, %v4378
      %v4380 = vpop.f32.mrf.mxu0
      %v4381 = vadd.f32 0.0, %v4380
      %4382 = vmatprep.mubr.bf16.mxu0 %v3510
      %4383 = vmatmul.mubr.bf16.gmra.mxu0 %v3509
      %v4384 = vpop.f32.mrf.mxu0
      %v4385 = vadd.f32 0.0, %v4384
      %v4386 = vpop.f32.mrf.mxu0
      %v4387 = vadd.f32 0.0, %v4386
      %v4388 = vpop.f32.mrf.mxu0
      %v4389 = vadd.f32 0.0, %v4388
      %v4390 = vpop.f32.mrf.mxu0
      %v4391 = vadd.f32 0.0, %v4390
      %4392 = vdwg.mxu0
      %4393 = vmatprep.subr.bf16.mxu0 %v4023
      %4394 = vmatpush1.bf16.msra.mxu0 %v4022
      %4395 = vmatprep.subr.bf16.mxu0 %v4021
      %4396 = vmatpush1.bf16.msra.mxu0 %v4020
      %4397 = vmatprep.subr.bf16.mxu0 %v4019
      %4398 = vmatpush1.bf16.msra.mxu0 %v4018
      %4399 = vmatprep.subr.bf16.mxu0 %v4017
      %4400 = vmatpush1.bf16.msra.mxu0 %v4016
      %4401 = vmatprep.subr.bf16.mxu0 %v4015
      %4402 = vmatpush1.bf16.msra.mxu0 %v4014
      %4403 = vmatprep.subr.bf16.mxu0 %v4013
      %4404 = vmatpush1.bf16.msra.mxu0 %v4012
      %4405 = vmatprep.subr.bf16.mxu0 %v4011
      %4406 = vmatpush1.bf16.msra.mxu0 %v4010
      %4407 = vmatprep.subr.bf16.mxu0 %v4009
      %4408 = vmatpush1.bf16.msra.mxu0 %v4008
      %4409 = vmatprep.subr.bf16.mxu0 %v4039
      %4410 = vmatpush2.bf16.msra.mxu0 %v4038
      %4411 = vmatprep.subr.bf16.mxu0 %v4037
      %4412 = vmatpush2.bf16.msra.mxu0 %v4036
      %4413 = vmatprep.subr.bf16.mxu0 %v4035
      %4414 = vmatpush2.bf16.msra.mxu0 %v4034
      %4415 = vmatprep.subr.bf16.mxu0 %v4033
      %4416 = vmatpush2.bf16.msra.mxu0 %v4032
      %4417 = vmatprep.subr.bf16.mxu0 %v4031
      %4418 = vmatpush2.bf16.msra.mxu0 %v4030
      %4419 = vmatprep.subr.bf16.mxu0 %v4029
      %4420 = vmatpush2.bf16.msra.mxu0 %v4028
      %4421 = vmatprep.subr.bf16.mxu0 %v4027
      %4422 = vmatpush2.bf16.msra.mxu0 %v4026
      %4423 = vmatprep.subr.bf16.mxu0 %v4025
      %4424 = vmatpush2.bf16.msra.mxu0 %v4024
      %4425 = vmatprep.mubr.bf16.mxu0 %v3480
      %4426 = vmatmul.mubr.bf16.gmra.mxu0 %v3479
      %v4427 = vpop.f32.mrf.mxu0
      %v4428 = vadd.f32 %v4235, %v4427
      %v4429 = vpop.f32.mrf.mxu0
      %v4430 = vadd.f32 %v4237, %v4429
      %v4431 = vpop.f32.mrf.mxu0
      %v4432 = vadd.f32 %v4239, %v4431
      %v4433 = vpop.f32.mrf.mxu0
      %v4434 = vadd.f32 %v4241, %v4433
      %4435 = vmatprep.mubr.bf16.mxu0 %v3482
      %4436 = vmatmul.mubr.bf16.gmra.mxu0 %v3481
      %v4437 = vpop.f32.mrf.mxu0
      %v4438 = vadd.f32 %v4245, %v4437
      %v4439 = vpop.f32.mrf.mxu0
      %v4440 = vadd.f32 %v4247, %v4439
      %v4441 = vpop.f32.mrf.mxu0
      %v4442 = vadd.f32 %v4249, %v4441
      %v4443 = vpop.f32.mrf.mxu0
      %v4444 = vadd.f32 %v4251, %v4443
      %4445 = vmatprep.mubr.bf16.mxu0 %v3484
      %4446 = vmatmul.mubr.bf16.gmra.mxu0 %v3483
      %v4447 = vpop.f32.mrf.mxu0
      %v4448 = vadd.f32 %v4255, %v4447
      %v4449 = vpop.f32.mrf.mxu0
      %v4450 = vadd.f32 %v4257, %v4449
      %v4451 = vpop.f32.mrf.mxu0
      %v4452 = vadd.f32 %v4259, %v4451
      %v4453 = vpop.f32.mrf.mxu0
      %v4454 = vadd.f32 %v4261, %v4453
      %4455 = vmatprep.mubr.bf16.mxu0 %v3486
      %4456 = vmatmul.mubr.bf16.gmra.mxu0 %v3485
      %v4457 = vpop.f32.mrf.mxu0
      %v4458 = vadd.f32 %v4265, %v4457
      %v4459 = vpop.f32.mrf.mxu0
      %v4460 = vadd.f32 %v4267, %v4459
      %v4461 = vpop.f32.mrf.mxu0
      %v4462 = vadd.f32 %v4269, %v4461
      %v4463 = vpop.f32.mrf.mxu0
      %v4464 = vadd.f32 %v4271, %v4463
      %4465 = vmatprep.mubr.bf16.mxu0 %v3488
      %4466 = vmatmul.mubr.bf16.gmra.mxu0 %v3487
      %v4467 = vpop.f32.mrf.mxu0
      %v4468 = vadd.f32 %v4275, %v4467
      %v4469 = vpop.f32.mrf.mxu0
      %v4470 = vadd.f32 %v4277, %v4469
      %v4471 = vpop.f32.mrf.mxu0
      %v4472 = vadd.f32 %v4279, %v4471
      %v4473 = vpop.f32.mrf.mxu0
      %v4474 = vadd.f32 %v4281, %v4473
      %4475 = vmatprep.mubr.bf16.mxu0 %v3490
      %4476 = vmatmul.mubr.bf16.gmra.mxu0 %v3489
      %v4477 = vpop.f32.mrf.mxu0
      %v4478 = vadd.f32 %v4285, %v4477
      %v4479 = vpop.f32.mrf.mxu0
      %v4480 = vadd.f32 %v4287, %v4479
      %v4481 = vpop.f32.mrf.mxu0
      %v4482 = vadd.f32 %v4289, %v4481
      %v4483 = vpop.f32.mrf.mxu0
      %v4484 = vadd.f32 %v4291, %v4483
      %4485 = vmatprep.mubr.bf16.mxu0 %v3492
      %4486 = vmatmul.mubr.bf16.gmra.mxu0 %v3491
      %v4487 = vpop.f32.mrf.mxu0
      %v4488 = vadd.f32 %v4295, %v4487
      %v4489 = vpop.f32.mrf.mxu0
      %v4490 = vadd.f32 %v4297, %v4489
      %v4491 = vpop.f32.mrf.mxu0
      %v4492 = vadd.f32 %v4299, %v4491
      %v4493 = vpop.f32.mrf.mxu0
      %v4494 = vadd.f32 %v4301, %v4493
      %4495 = vmatprep.mubr.bf16.mxu0 %v3494
      %4496 = vmatmul.mubr.bf16.gmra.mxu0 %v3493
      %v4497 = vpop.f32.mrf.mxu0
      %v4498 = vadd.f32 %v4305, %v4497
      %v4499 = vpop.f32.mrf.mxu0
      %v4500 = vadd.f32 %v4307, %v4499
      %v4501 = vpop.f32.mrf.mxu0
      %v4502 = vadd.f32 %v4309, %v4501
      %v4503 = vpop.f32.mrf.mxu0
      %v4504 = vadd.f32 %v4311, %v4503
      %4505 = vmatprep.mubr.bf16.mxu0 %v3496
      %4506 = vmatmul.mubr.bf16.gmra.mxu0 %v3495
      %v4507 = vpop.f32.mrf.mxu0
      %v4508 = vadd.f32 %v4315, %v4507
      %v4509 = vpop.f32.mrf.mxu0
      %v4510 = vadd.f32 %v4317, %v4509
      %v4511 = vpop.f32.mrf.mxu0
      %v4512 = vadd.f32 %v4319, %v4511
      %v4513 = vpop.f32.mrf.mxu0
      %v4514 = vadd.f32 %v4321, %v4513
      %4515 = vmatprep.mubr.bf16.mxu0 %v3498
      %4516 = vmatmul.mubr.bf16.gmra.mxu0 %v3497
      %v4517 = vpop.f32.mrf.mxu0
      %v4518 = vadd.f32 %v4325, %v4517
      %v4519 = vpop.f32.mrf.mxu0
      %v4520 = vadd.f32 %v4327, %v4519
      %v4521 = vpop.f32.mrf.mxu0
      %v4522 = vadd.f32 %v4329, %v4521
      %v4523 = vpop.f32.mrf.mxu0
      %v4524 = vadd.f32 %v4331, %v4523
      %4525 = vmatprep.mubr.bf16.mxu0 %v3500
      %4526 = vmatmul.mubr.bf16.gmra.mxu0 %v3499
      %v4527 = vpop.f32.mrf.mxu0
      %v4528 = vadd.f32 %v4335, %v4527
      %v4529 = vpop.f32.mrf.mxu0
      %v4530 = vadd.f32 %v4337, %v4529
      %v4531 = vpop.f32.mrf.mxu0
      %v4532 = vadd.f32 %v4339, %v4531
      %v4533 = vpop.f32.mrf.mxu0
      %v4534 = vadd.f32 %v4341, %v4533
      %4535 = vmatprep.mubr.bf16.mxu0 %v3502
      %4536 = vmatmul.mubr.bf16.gmra.mxu0 %v3501
      %v4537 = vpop.f32.mrf.mxu0
      %v4538 = vadd.f32 %v4345, %v4537
      %v4539 = vpop.f32.mrf.mxu0
      %v4540 = vadd.f32 %v4347, %v4539
      %v4541 = vpop.f32.mrf.mxu0
      %v4542 = vadd.f32 %v4349, %v4541
      %v4543 = vpop.f32.mrf.mxu0
      %v4544 = vadd.f32 %v4351, %v4543
      %4545 = vmatprep.mubr.bf16.mxu0 %v3504
      %4546 = vmatmul.mubr.bf16.gmra.mxu0 %v3503
      %v4547 = vpop.f32.mrf.mxu0
      %v4548 = vadd.f32 %v4355, %v4547
      %v4549 = vpop.f32.mrf.mxu0
      %v4550 = vadd.f32 %v4357, %v4549
      %v4551 = vpop.f32.mrf.mxu0
      %v4552 = vadd.f32 %v4359, %v4551
      %v4553 = vpop.f32.mrf.mxu0
      %v4554 = vadd.f32 %v4361, %v4553
      %4555 = vmatprep.mubr.bf16.mxu0 %v3506
      %4556 = vmatmul.mubr.bf16.gmra.mxu0 %v3505
      %v4557 = vpop.f32.mrf.mxu0
      %v4558 = vadd.f32 %v4365, %v4557
      %v4559 = vpop.f32.mrf.mxu0
      %v4560 = vadd.f32 %v4367, %v4559
      %v4561 = vpop.f32.mrf.mxu0
      %v4562 = vadd.f32 %v4369, %v4561
      %v4563 = vpop.f32.mrf.mxu0
      %v4564 = vadd.f32 %v4371, %v4563
      %4565 = vmatprep.mubr.bf16.mxu0 %v3508
      %4566 = vmatmul.mubr.bf16.gmra.mxu0 %v3507
      %v4567 = vpop.f32.mrf.mxu0
      %v4568 = vadd.f32 %v4375, %v4567
      %v4569 = vpop.f32.mrf.mxu0
      %v4570 = vadd.f32 %v4377, %v4569
      %v4571 = vpop.f32.mrf.mxu0
      %v4572 = vadd.f32 %v4379, %v4571
      %v4573 = vpop.f32.mrf.mxu0
      %v4574 = vadd.f32 %v4381, %v4573
      %4575 = vmatprep.mubr.bf16.mxu0 %v3510
      %4576 = vmatmul.mubr.bf16.gmra.mxu0 %v3509
      %v4577 = vpop.f32.mrf.mxu0
      %v4578 = vadd.f32 %v4385, %v4577
      %v4579 = vpop.f32.mrf.mxu0
      %v4580 = vadd.f32 %v4387, %v4579
      %v4581 = vpop.f32.mrf.mxu0
      %v4582 = vadd.f32 %v4389, %v4581
      %v4583 = vpop.f32.mrf.mxu0
      %v4584 = vadd.f32 %v4391, %v4583
      %4585 = vdwg.mxu0
      %v4586 = vadd.f32 %v4428, %v3944
      %v4587 = vadd.f32 %v4430, %v3945
      %v4588 = vadd.f32 %v4432, %v3946
      %v4589 = vadd.f32 %v4434, %v3947
      %v4590 = vadd.f32 %v4438, %v3948
      %v4591 = vadd.f32 %v4440, %v3949
      %v4592 = vadd.f32 %v4442, %v3950
      %v4593 = vadd.f32 %v4444, %v3951
      %v4594 = vadd.f32 %v4448, %v3952
      %v4595 = vadd.f32 %v4450, %v3953
      %v4596 = vadd.f32 %v4452, %v3954
      %v4597 = vadd.f32 %v4454, %v3955
      %v4598 = vadd.f32 %v4458, %v3956
      %v4599 = vadd.f32 %v4460, %v3957
      %v4600 = vadd.f32 %v4462, %v3958
      %v4601 = vadd.f32 %v4464, %v3959
      %v4602 = vadd.f32 %v4468, %v3960
      %v4603 = vadd.f32 %v4470, %v3961
      %v4604 = vadd.f32 %v4472, %v3962
      %v4605 = vadd.f32 %v4474, %v3963
      %v4606 = vadd.f32 %v4478, %v3964
      %v4607 = vadd.f32 %v4480, %v3965
      %v4608 = vadd.f32 %v4482, %v3966
      %v4609 = vadd.f32 %v4484, %v3967
      %v4610 = vadd.f32 %v4488, %v3968
      %v4611 = vadd.f32 %v4490, %v3969
      %v4612 = vadd.f32 %v4492, %v3970
      %v4613 = vadd.f32 %v4494, %v3971
      %v4614 = vadd.f32 %v4498, %v3972
      %v4615 = vadd.f32 %v4500, %v3973
      %v4616 = vadd.f32 %v4502, %v3974
      %v4617 = vadd.f32 %v4504, %v3975
      %v4618 = vadd.f32 %v4508, %v3976
      %v4619 = vadd.f32 %v4510, %v3977
      %v4620 = vadd.f32 %v4512, %v3978
      %v4621 = vadd.f32 %v4514, %v3979
      %v4622 = vadd.f32 %v4518, %v3980
      %v4623 = vadd.f32 %v4520, %v3981
      %v4624 = vadd.f32 %v4522, %v3982
      %v4625 = vadd.f32 %v4524, %v3983
      %v4626 = vadd.f32 %v4528, %v3984
      %v4627 = vadd.f32 %v4530, %v3985
      %v4628 = vadd.f32 %v4532, %v3986
      %v4629 = vadd.f32 %v4534, %v3987
      %v4630 = vadd.f32 %v4538, %v3988
      %v4631 = vadd.f32 %v4540, %v3989
      %v4632 = vadd.f32 %v4542, %v3990
      %v4633 = vadd.f32 %v4544, %v3991
      %v4634 = vadd.f32 %v4548, %v3992
      %v4635 = vadd.f32 %v4550, %v3993
      %v4636 = vadd.f32 %v4552, %v3994
      %v4637 = vadd.f32 %v4554, %v3995
      %v4638 = vadd.f32 %v4558, %v3996
      %v4639 = vadd.f32 %v4560, %v3997
      %v4640 = vadd.f32 %v4562, %v3998
      %v4641 = vadd.f32 %v4564, %v3999
      %v4642 = vadd.f32 %v4568, %v4000
      %v4643 = vadd.f32 %v4570, %v4001
      %v4644 = vadd.f32 %v4572, %v4002
      %v4645 = vadd.f32 %v4574, %v4003
      %v4646 = vadd.f32 %v4578, %v4004
      %v4647 = vadd.f32 %v4580, %v4005
      %v4648 = vadd.f32 %v4582, %v4006
      %v4649 = vadd.f32 %v4584, %v4007
      %v4650 = vmul.f32 %v3639, %v4586
      %v4651 = vmul.f32 %v3639, %v4587
      %v4652 = vmul.f32 %v3640, %v4588
      %v4653 = vmul.f32 %v3640, %v4589
      %v4654 = vmul.f32 %v3641, %v4590
      %v4655 = vmul.f32 %v3641, %v4591
      %v4656 = vmul.f32 %v3642, %v4592
      %v4657 = vmul.f32 %v3642, %v4593
      %v4658 = vmul.f32 %v3643, %v4594
      %v4659 = vmul.f32 %v3643, %v4595
      %v4660 = vmul.f32 %v3644, %v4596
      %v4661 = vmul.f32 %v3644, %v4597
      %v4662 = vmul.f32 %v3645, %v4598
      %v4663 = vmul.f32 %v3645, %v4599
      %v4664 = vmul.f32 %v3646, %v4600
      %v4665 = vmul.f32 %v3646, %v4601
      %v4666 = vmul.f32 %v3647, %v4602
      %v4667 = vmul.f32 %v3647, %v4603
      %v4668 = vmul.f32 %v3648, %v4604
      %v4669 = vmul.f32 %v3648, %v4605
      %v4670 = vmul.f32 %v3649, %v4606
      %v4671 = vmul.f32 %v3649, %v4607
      %v4672 = vmul.f32 %v3650, %v4608
      %v4673 = vmul.f32 %v3650, %v4609
      %v4674 = vmul.f32 %v3651, %v4610
      %v4675 = vmul.f32 %v3651, %v4611
      %v4676 = vmul.f32 %v3652, %v4612
      %v4677 = vmul.f32 %v3652, %v4613
      %v4678 = vmul.f32 %v3653, %v4614
      %v4679 = vmul.f32 %v3653, %v4615
      %v4680 = vmul.f32 %v3654, %v4616
      %v4681 = vmul.f32 %v3654, %v4617
      %v4682 = vmul.f32 %v3655, %v4618
      %v4683 = vmul.f32 %v3655, %v4619
      %v4684 = vmul.f32 %v3656, %v4620
      %v4685 = vmul.f32 %v3656, %v4621
      %v4686 = vmul.f32 %v3657, %v4622
      %v4687 = vmul.f32 %v3657, %v4623
      %v4688 = vmul.f32 %v3658, %v4624
      %v4689 = vmul.f32 %v3658, %v4625
      %v4690 = vmul.f32 %v3659, %v4626
      %v4691 = vmul.f32 %v3659, %v4627
      %v4692 = vmul.f32 %v3660, %v4628
      %v4693 = vmul.f32 %v3660, %v4629
      %v4694 = vmul.f32 %v3661, %v4630
      %v4695 = vmul.f32 %v3661, %v4631
      %v4696 = vmul.f32 %v3662, %v4632
      %v4697 = vmul.f32 %v3662, %v4633
      %v4698 = vmul.f32 %v3663, %v4634
      %v4699 = vmul.f32 %v3663, %v4635
      %v4700 = vmul.f32 %v3664, %v4636
      %v4701 = vmul.f32 %v3664, %v4637
      %v4702 = vmul.f32 %v3665, %v4638
      %v4703 = vmul.f32 %v3665, %v4639
      %v4704 = vmul.f32 %v3666, %v4640
      %v4705 = vmul.f32 %v3666, %v4641
      %v4706 = vmul.f32 %v3667, %v4642
      %v4707 = vmul.f32 %v3667, %v4643
      %v4708 = vmul.f32 %v3668, %v4644
      %v4709 = vmul.f32 %v3668, %v4645
      %v4710 = vmul.f32 %v3669, %v4646
      %v4711 = vmul.f32 %v3669, %v4647
      %v4712 = vmul.f32 %v3670, %v4648
      %v4713 = vmul.f32 %v3670, %v4649
      %v4714 = vadd.f32 %v4650, %v4651
      %4715 = vadd.xlane.f32.xlu0 %v4714
      %v4716 = vpop.xlane.xlu0 %4715
      %v4717 = vadd.f32 %v4652, %v4653
      %4718 = vadd.xlane.f32.xlu0 %v4717
      %v4719 = vpop.xlane.xlu0 %4718
      %v4720 = vadd.f32 %v4654, %v4655
      %4721 = vadd.xlane.f32.xlu0 %v4720
      %v4722 = vpop.xlane.xlu0 %4721
      %v4723 = vadd.f32 %v4656, %v4657
      %4724 = vadd.xlane.f32.xlu0 %v4723
      %v4725 = vpop.xlane.xlu0 %4724
      %v4726 = vadd.f32 %v4658, %v4659
      %4727 = vadd.xlane.f32.xlu0 %v4726
      %v4728 = vpop.xlane.xlu0 %4727
      %v4729 = vadd.f32 %v4660, %v4661
      %4730 = vadd.xlane.f32.xlu0 %v4729
      %v4731 = vpop.xlane.xlu0 %4730
      %v4732 = vadd.f32 %v4662, %v4663
      %4733 = vadd.xlane.f32.xlu0 %v4732
      %v4734 = vpop.xlane.xlu0 %4733
      %v4735 = vadd.f32 %v4664, %v4665
      %4736 = vadd.xlane.f32.xlu0 %v4735
      %v4737 = vpop.xlane.xlu0 %4736
      %v4738 = vadd.f32 %v4666, %v4667
      %4739 = vadd.xlane.f32.xlu0 %v4738
      %v4740 = vpop.xlane.xlu0 %4739
      %v4741 = vadd.f32 %v4668, %v4669
      %4742 = vadd.xlane.f32.xlu0 %v4741
      %v4743 = vpop.xlane.xlu0 %4742
      %v4744 = vadd.f32 %v4670, %v4671
      %4745 = vadd.xlane.f32.xlu0 %v4744
      %v4746 = vpop.xlane.xlu0 %4745
      %v4747 = vadd.f32 %v4672, %v4673
      %4748 = vadd.xlane.f32.xlu0 %v4747
      %v4749 = vpop.xlane.xlu0 %4748
      %v4750 = vadd.f32 %v4674, %v4675
      %4751 = vadd.xlane.f32.xlu0 %v4750
      %v4752 = vpop.xlane.xlu0 %4751
      %v4753 = vadd.f32 %v4676, %v4677
      %4754 = vadd.xlane.f32.xlu0 %v4753
      %v4755 = vpop.xlane.xlu0 %4754
      %v4756 = vadd.f32 %v4678, %v4679
      %4757 = vadd.xlane.f32.xlu0 %v4756
      %v4758 = vpop.xlane.xlu0 %4757
      %v4759 = vadd.f32 %v4680, %v4681
      %4760 = vadd.xlane.f32.xlu0 %v4759
      %v4761 = vpop.xlane.xlu0 %4760
      %v4762 = vadd.f32 %v4682, %v4683
      %4763 = vadd.xlane.f32.xlu0 %v4762
      %v4764 = vpop.xlane.xlu0 %4763
      %v4765 = vadd.f32 %v4684, %v4685
      %4766 = vadd.xlane.f32.xlu0 %v4765
      %v4767 = vpop.xlane.xlu0 %4766
      %v4768 = vadd.f32 %v4686, %v4687
      %4769 = vadd.xlane.f32.xlu0 %v4768
      %v4770 = vpop.xlane.xlu0 %4769
      %v4771 = vadd.f32 %v4688, %v4689
      %4772 = vadd.xlane.f32.xlu0 %v4771
      %v4773 = vpop.xlane.xlu0 %4772
      %v4774 = vadd.f32 %v4690, %v4691
      %4775 = vadd.xlane.f32.xlu0 %v4774
      %v4776 = vpop.xlane.xlu0 %4775
      %v4777 = vadd.f32 %v4692, %v4693
      %4778 = vadd.xlane.f32.xlu0 %v4777
      %v4779 = vpop.xlane.xlu0 %4778
      %v4780 = vadd.f32 %v4694, %v4695
      %4781 = vadd.xlane.f32.xlu0 %v4780
      %v4782 = vpop.xlane.xlu0 %4781
      %v4783 = vadd.f32 %v4696, %v4697
      %4784 = vadd.xlane.f32.xlu0 %v4783
      %v4785 = vpop.xlane.xlu0 %4784
      %v4786 = vadd.f32 %v4698, %v4699
      %4787 = vadd.xlane.f32.xlu0 %v4786
      %v4788 = vpop.xlane.xlu0 %4787
      %v4789 = vadd.f32 %v4700, %v4701
      %4790 = vadd.xlane.f32.xlu0 %v4789
      %v4791 = vpop.xlane.xlu0 %4790
      %v4792 = vadd.f32 %v4702, %v4703
      %4793 = vadd.xlane.f32.xlu0 %v4792
      %v4794 = vpop.xlane.xlu0 %4793
      %v4795 = vadd.f32 %v4704, %v4705
      %4796 = vadd.xlane.f32.xlu0 %v4795
      %v4797 = vpop.xlane.xlu0 %4796
      %v4798 = vadd.f32 %v4706, %v4707
      %4799 = vadd.xlane.f32.xlu0 %v4798
      %v4800 = vpop.xlane.xlu0 %4799
      %v4801 = vadd.f32 %v4708, %v4709
      %4802 = vadd.xlane.f32.xlu0 %v4801
      %v4803 = vpop.xlane.xlu0 %4802
      %v4804 = vadd.f32 %v4710, %v4711
      %4805 = vadd.xlane.f32.xlu0 %v4804
      %v4806 = vpop.xlane.xlu0 %4805
      %v4807 = vadd.f32 %v4712, %v4713
      %4808 = vadd.xlane.f32.xlu0 %v4807
      %v4809 = vpop.xlane.xlu0 %4808
      %v4810 = vrcp.pop 256.0
      %v4811 = vmul.f32 %v4716, %v4810
      %v4812 = vmul.f32 %v4719, %v4810
      %v4813 = vmul.f32 %v4722, %v4810
      %v4814 = vmul.f32 %v4725, %v4810
      %v4815 = vmul.f32 %v4728, %v4810
      %v4816 = vmul.f32 %v4731, %v4810
      %v4817 = vmul.f32 %v4734, %v4810
      %v4818 = vmul.f32 %v4737, %v4810
      %v4819 = vmul.f32 %v4740, %v4810
      %v4820 = vmul.f32 %v4743, %v4810
      %v4821 = vmul.f32 %v4746, %v4810
      %v4822 = vmul.f32 %v4749, %v4810
      %v4823 = vmul.f32 %v4752, %v4810
      %v4824 = vmul.f32 %v4755, %v4810
      %v4825 = vmul.f32 %v4758, %v4810
      %v4826 = vmul.f32 %v4761, %v4810
      %v4827 = vmul.f32 %v4764, %v4810
      %v4828 = vmul.f32 %v4767, %v4810
      %v4829 = vmul.f32 %v4770, %v4810
      %v4830 = vmul.f32 %v4773, %v4810
      %v4831 = vmul.f32 %v4776, %v4810
      %v4832 = vmul.f32 %v4779, %v4810
      %v4833 = vmul.f32 %v4782, %v4810
      %v4834 = vmul.f32 %v4785, %v4810
      %v4835 = vmul.f32 %v4788, %v4810
      %v4836 = vmul.f32 %v4791, %v4810
      %v4837 = vmul.f32 %v4794, %v4810
      %v4838 = vmul.f32 %v4797, %v4810
      %v4839 = vmul.f32 %v4800, %v4810
      %v4840 = vmul.f32 %v4803, %v4810
      %v4841 = vmul.f32 %v4806, %v4810
      %v4842 = vmul.f32 %v4809, %v4810
      %v4843 = vmul.f32 %v4650, %v4650
      %v4844 = vmul.f32 %v4651, %v4651
      %v4845 = vmul.f32 %v4652, %v4652
      %v4846 = vmul.f32 %v4653, %v4653
      %v4847 = vmul.f32 %v4654, %v4654
      %v4848 = vmul.f32 %v4655, %v4655
      %v4849 = vmul.f32 %v4656, %v4656
      %v4850 = vmul.f32 %v4657, %v4657
      %v4851 = vmul.f32 %v4658, %v4658
      %v4852 = vmul.f32 %v4659, %v4659
      %v4853 = vmul.f32 %v4660, %v4660
      %v4854 = vmul.f32 %v4661, %v4661
      %v4855 = vmul.f32 %v4662, %v4662
      %v4856 = vmul.f32 %v4663, %v4663
      %v4857 = vmul.f32 %v4664, %v4664
      %v4858 = vmul.f32 %v4665, %v4665
      %v4859 = vmul.f32 %v4666, %v4666
      %v4860 = vmul.f32 %v4667, %v4667
      %v4861 = vmul.f32 %v4668, %v4668
      %v4862 = vmul.f32 %v4669, %v4669
      %v4863 = vmul.f32 %v4670, %v4670
      %v4864 = vmul.f32 %v4671, %v4671
      %v4865 = vmul.f32 %v4672, %v4672
      %v4866 = vmul.f32 %v4673, %v4673
      %v4867 = vmul.f32 %v4674, %v4674
      %v4868 = vmul.f32 %v4675, %v4675
      %v4869 = vmul.f32 %v4676, %v4676
      %v4870 = vmul.f32 %v4677, %v4677
      %v4871 = vmul.f32 %v4678, %v4678
      %v4872 = vmul.f32 %v4679, %v4679
      %v4873 = vmul.f32 %v4680, %v4680
      %v4874 = vmul.f32 %v4681, %v4681
      %v4875 = vmul.f32 %v4682, %v4682
      %v4876 = vmul.f32 %v4683, %v4683
      %v4877 = vmul.f32 %v4684, %v4684
      %v4878 = vmul.f32 %v4685, %v4685
      %v4879 = vmul.f32 %v4686, %v4686
      %v4880 = vmul.f32 %v4687, %v4687
      %v4881 = vmul.f32 %v4688, %v4688
      %v4882 = vmul.f32 %v4689, %v4689
      %v4883 = vmul.f32 %v4690, %v4690
      %v4884 = vmul.f32 %v4691, %v4691
      %v4885 = vmul.f32 %v4692, %v4692
      %v4886 = vmul.f32 %v4693, %v4693
      %v4887 = vmul.f32 %v4694, %v4694
      %v4888 = vmul.f32 %v4695, %v4695
      %v4889 = vmul.f32 %v4696, %v4696
      %v4890 = vmul.f32 %v4697, %v4697
      %v4891 = vmul.f32 %v4698, %v4698
      %v4892 = vmul.f32 %v4699, %v4699
      %v4893 = vmul.f32 %v4700, %v4700
      %v4894 = vmul.f32 %v4701, %v4701
      %v4895 = vmul.f32 %v4702, %v4702
      %v4896 = vmul.f32 %v4703, %v4703
      %v4897 = vmul.f32 %v4704, %v4704
      %v4898 = vmul.f32 %v4705, %v4705
      %v4899 = vmul.f32 %v4706, %v4706
      %v4900 = vmul.f32 %v4707, %v4707
      %v4901 = vmul.f32 %v4708, %v4708
      %v4902 = vmul.f32 %v4709, %v4709
      %v4903 = vmul.f32 %v4710, %v4710
      %v4904 = vmul.f32 %v4711, %v4711
      %v4905 = vmul.f32 %v4712, %v4712
      %v4906 = vmul.f32 %v4713, %v4713
      %v4907 = vadd.f32 %v4843, %v4844
      %4908 = vadd.xlane.f32.xlu0 %v4907
      %v4909 = vpop.xlane.xlu0 %4908
      %v4910 = vadd.f32 %v4845, %v4846
      %4911 = vadd.xlane.f32.xlu0 %v4910
      %v4912 = vpop.xlane.xlu0 %4911
      %v4913 = vadd.f32 %v4847, %v4848
      %4914 = vadd.xlane.f32.xlu0 %v4913
      %v4915 = vpop.xlane.xlu0 %4914
      %v4916 = vadd.f32 %v4849, %v4850
      %4917 = vadd.xlane.f32.xlu0 %v4916
      %v4918 = vpop.xlane.xlu0 %4917
      %v4919 = vadd.f32 %v4851, %v4852
      %4920 = vadd.xlane.f32.xlu0 %v4919
      %v4921 = vpop.xlane.xlu0 %4920
      %v4922 = vadd.f32 %v4853, %v4854
      %4923 = vadd.xlane.f32.xlu0 %v4922
      %v4924 = vpop.xlane.xlu0 %4923
      %v4925 = vadd.f32 %v4855, %v4856
      %4926 = vadd.xlane.f32.xlu0 %v4925
      %v4927 = vpop.xlane.xlu0 %4926
      %v4928 = vadd.f32 %v4857, %v4858
      %4929 = vadd.xlane.f32.xlu0 %v4928
      %v4930 = vpop.xlane.xlu0 %4929
      %v4931 = vadd.f32 %v4859, %v4860
      %4932 = vadd.xlane.f32.xlu0 %v4931
      %v4933 = vpop.xlane.xlu0 %4932
      %v4934 = vadd.f32 %v4861, %v4862
      %4935 = vadd.xlane.f32.xlu0 %v4934
      %v4936 = vpop.xlane.xlu0 %4935
      %v4937 = vadd.f32 %v4863, %v4864
      %4938 = vadd.xlane.f32.xlu0 %v4937
      %v4939 = vpop.xlane.xlu0 %4938
      %v4940 = vadd.f32 %v4865, %v4866
      %4941 = vadd.xlane.f32.xlu0 %v4940
      %v4942 = vpop.xlane.xlu0 %4941
      %v4943 = vadd.f32 %v4867, %v4868
      %4944 = vadd.xlane.f32.xlu0 %v4943
      %v4945 = vpop.xlane.xlu0 %4944
      %v4946 = vadd.f32 %v4869, %v4870
      %4947 = vadd.xlane.f32.xlu0 %v4946
      %v4948 = vpop.xlane.xlu0 %4947
      %v4949 = vadd.f32 %v4871, %v4872
      %4950 = vadd.xlane.f32.xlu0 %v4949
      %v4951 = vpop.xlane.xlu0 %4950
      %v4952 = vadd.f32 %v4873, %v4874
      %4953 = vadd.xlane.f32.xlu0 %v4952
      %v4954 = vpop.xlane.xlu0 %4953
      %v4955 = vadd.f32 %v4875, %v4876
      %4956 = vadd.xlane.f32.xlu0 %v4955
      %v4957 = vpop.xlane.xlu0 %4956
      %v4958 = vadd.f32 %v4877, %v4878
      %4959 = vadd.xlane.f32.xlu0 %v4958
      %v4960 = vpop.xlane.xlu0 %4959
      %v4961 = vadd.f32 %v4879, %v4880
      %4962 = vadd.xlane.f32.xlu0 %v4961
      %v4963 = vpop.xlane.xlu0 %4962
      %v4964 = vadd.f32 %v4881, %v4882
      %4965 = vadd.xlane.f32.xlu0 %v4964
      %v4966 = vpop.xlane.xlu0 %4965
      %v4967 = vadd.f32 %v4883, %v4884
      %4968 = vadd.xlane.f32.xlu0 %v4967
      %v4969 = vpop.xlane.xlu0 %4968
      %v4970 = vadd.f32 %v4885, %v4886
      %4971 = vadd.xlane.f32.xlu0 %v4970
      %v4972 = vpop.xlane.xlu0 %4971
      %v4973 = vadd.f32 %v4887, %v4888
      %4974 = vadd.xlane.f32.xlu0 %v4973
      %v4975 = vpop.xlane.xlu0 %4974
      %v4976 = vadd.f32 %v4889, %v4890
      %4977 = vadd.xlane.f32.xlu0 %v4976
      %v4978 = vpop.xlane.xlu0 %4977
      %v4979 = vadd.f32 %v4891, %v4892
      %4980 = vadd.xlane.f32.xlu0 %v4979
      %v4981 = vpop.xlane.xlu0 %4980
      %v4982 = vadd.f32 %v4893, %v4894
      %4983 = vadd.xlane.f32.xlu0 %v4982
      %v4984 = vpop.xlane.xlu0 %4983
      %v4985 = vadd.f32 %v4895, %v4896
      %4986 = vadd.xlane.f32.xlu0 %v4985
      %v4987 = vpop.xlane.xlu0 %4986
      %v4988 = vadd.f32 %v4897, %v4898
      %4989 = vadd.xlane.f32.xlu0 %v4988
      %v4990 = vpop.xlane.xlu0 %4989
      %v4991 = vadd.f32 %v4899, %v4900
      %4992 = vadd.xlane.f32.xlu0 %v4991
      %v4993 = vpop.xlane.xlu0 %4992
      %v4994 = vadd.f32 %v4901, %v4902
      %4995 = vadd.xlane.f32.xlu0 %v4994
      %v4996 = vpop.xlane.xlu0 %4995
      %v4997 = vadd.f32 %v4903, %v4904
      %4998 = vadd.xlane.f32.xlu0 %v4997
      %v4999 = vpop.xlane.xlu0 %4998
      %v5000 = vadd.f32 %v4905, %v4906
      %5001 = vadd.xlane.f32.xlu0 %v5000
      %v5002 = vpop.xlane.xlu0 %5001
      %v5003 = vmul.f32 %v4909, %v4810
      %v5004 = vmul.f32 %v4912, %v4810
      %v5005 = vmul.f32 %v4915, %v4810
      %v5006 = vmul.f32 %v4918, %v4810
      %v5007 = vmul.f32 %v4921, %v4810
      %v5008 = vmul.f32 %v4924, %v4810
      %v5009 = vmul.f32 %v4927, %v4810
      %v5010 = vmul.f32 %v4930, %v4810
      %v5011 = vmul.f32 %v4933, %v4810
      %v5012 = vmul.f32 %v4936, %v4810
      %v5013 = vmul.f32 %v4939, %v4810
      %v5014 = vmul.f32 %v4942, %v4810
      %v5015 = vmul.f32 %v4945, %v4810
      %v5016 = vmul.f32 %v4948, %v4810
      %v5017 = vmul.f32 %v4951, %v4810
      %v5018 = vmul.f32 %v4954, %v4810
      %v5019 = vmul.f32 %v4957, %v4810
      %v5020 = vmul.f32 %v4960, %v4810
      %v5021 = vmul.f32 %v4963, %v4810
      %v5022 = vmul.f32 %v4966, %v4810
      %v5023 = vmul.f32 %v4969, %v4810
      %v5024 = vmul.f32 %v4972, %v4810
      %v5025 = vmul.f32 %v4975, %v4810
      %v5026 = vmul.f32 %v4978, %v4810
      %v5027 = vmul.f32 %v4981, %v4810
      %v5028 = vmul.f32 %v4984, %v4810
      %v5029 = vmul.f32 %v4987, %v4810
      %v5030 = vmul.f32 %v4990, %v4810
      %v5031 = vmul.f32 %v4993, %v4810
      %v5032 = vmul.f32 %v4996, %v4810
      %v5033 = vmul.f32 %v4999, %v4810
      %v5034 = vmul.f32 %v5002, %v4810
      %v5035 = vmul.f32 %v4811, %v4811
      %v5036 = vmul.f32 %v4812, %v4812
      %v5037 = vmul.f32 %v4813, %v4813
      %v5038 = vmul.f32 %v4814, %v4814
      %v5039 = vmul.f32 %v4815, %v4815
      %v5040 = vmul.f32 %v4816, %v4816
      %v5041 = vmul.f32 %v4817, %v4817
      %v5042 = vmul.f32 %v4818, %v4818
      %v5043 = vmul.f32 %v4819, %v4819
      %v5044 = vmul.f32 %v4820, %v4820
      %v5045 = vmul.f32 %v4821, %v4821
      %v5046 = vmul.f32 %v4822, %v4822
      %v5047 = vmul.f32 %v4823, %v4823
      %v5048 = vmul.f32 %v4824, %v4824
      %v5049 = vmul.f32 %v4825, %v4825
      %v5050 = vmul.f32 %v4826, %v4826
      %v5051 = vmul.f32 %v4827, %v4827
      %v5052 = vmul.f32 %v4828, %v4828
      %v5053 = vmul.f32 %v4829, %v4829
      %v5054 = vmul.f32 %v4830, %v4830
      %v5055 = vmul.f32 %v4831, %v4831
      %v5056 = vmul.f32 %v4832, %v4832
      %v5057 = vmul.f32 %v4833, %v4833
      %v5058 = vmul.f32 %v4834, %v4834
      %v5059 = vmul.f32 %v4835, %v4835
      %v5060 = vmul.f32 %v4836, %v4836
      %v5061 = vmul.f32 %v4837, %v4837
      %v5062 = vmul.f32 %v4838, %v4838
      %v5063 = vmul.f32 %v4839, %v4839
      %v5064 = vmul.f32 %v4840, %v4840
      %v5065 = vmul.f32 %v4841, %v4841
      %v5066 = vmul.f32 %v4842, %v4842
      %v5067 = vsub.f32 %v5003, %v5035
      %v5068 = vsub.f32 %v5004, %v5036
      %v5069 = vsub.f32 %v5005, %v5037
      %v5070 = vsub.f32 %v5006, %v5038
      %v5071 = vsub.f32 %v5007, %v5039
      %v5072 = vsub.f32 %v5008, %v5040
      %v5073 = vsub.f32 %v5009, %v5041
      %v5074 = vsub.f32 %v5010, %v5042
      %v5075 = vsub.f32 %v5011, %v5043
      %v5076 = vsub.f32 %v5012, %v5044
      %v5077 = vsub.f32 %v5013, %v5045
      %v5078 = vsub.f32 %v5014, %v5046
      %v5079 = vsub.f32 %v5015, %v5047
      %v5080 = vsub.f32 %v5016, %v5048
      %v5081 = vsub.f32 %v5017, %v5049
      %v5082 = vsub.f32 %v5018, %v5050
      %v5083 = vsub.f32 %v5019, %v5051
      %v5084 = vsub.f32 %v5020, %v5052
      %v5085 = vsub.f32 %v5021, %v5053
      %v5086 = vsub.f32 %v5022, %v5054
      %v5087 = vsub.f32 %v5023, %v5055
      %v5088 = vsub.f32 %v5024, %v5056
      %v5089 = vsub.f32 %v5025, %v5057
      %v5090 = vsub.f32 %v5026, %v5058
      %v5091 = vsub.f32 %v5027, %v5059
      %v5092 = vsub.f32 %v5028, %v5060
      %v5093 = vsub.f32 %v5029, %v5061
      %v5094 = vsub.f32 %v5030, %v5062
      %v5095 = vsub.f32 %v5031, %v5063
      %v5096 = vsub.f32 %v5032, %v5064
      %v5097 = vsub.f32 %v5033, %v5065
      %v5098 = vsub.f32 %v5034, %v5066
      %v5099 = vmax.f32 %v5067, 0.0
      %v5100 = vmax.f32 %v5068, 0.0
      %v5101 = vmax.f32 %v5069, 0.0
      %v5102 = vmax.f32 %v5070, 0.0
      %v5103 = vmax.f32 %v5071, 0.0
      %v5104 = vmax.f32 %v5072, 0.0
      %v5105 = vmax.f32 %v5073, 0.0
      %v5106 = vmax.f32 %v5074, 0.0
      %v5107 = vmax.f32 %v5075, 0.0
      %v5108 = vmax.f32 %v5076, 0.0
      %v5109 = vmax.f32 %v5077, 0.0
      %v5110 = vmax.f32 %v5078, 0.0
      %v5111 = vmax.f32 %v5079, 0.0
      %v5112 = vmax.f32 %v5080, 0.0
      %v5113 = vmax.f32 %v5081, 0.0
      %v5114 = vmax.f32 %v5082, 0.0
      %v5115 = vmax.f32 %v5083, 0.0
      %v5116 = vmax.f32 %v5084, 0.0
      %v5117 = vmax.f32 %v5085, 0.0
      %v5118 = vmax.f32 %v5086, 0.0
      %v5119 = vmax.f32 %v5087, 0.0
      %v5120 = vmax.f32 %v5088, 0.0
      %v5121 = vmax.f32 %v5089, 0.0
      %v5122 = vmax.f32 %v5090, 0.0
      %v5123 = vmax.f32 %v5091, 0.0
      %v5124 = vmax.f32 %v5092, 0.0
      %v5125 = vmax.f32 %v5093, 0.0
      %v5126 = vmax.f32 %v5094, 0.0
      %v5127 = vmax.f32 %v5095, 0.0
      %v5128 = vmax.f32 %v5096, 0.0
      %v5129 = vmax.f32 %v5097, 0.0
      %v5130 = vmax.f32 %v5098, 0.0
      %v5131 = vsub.f32 %v4650, %v4811
      %v5132 = vsub.f32 %v4651, %v4811
      %v5133 = vsub.f32 %v4652, %v4812
      %v5134 = vsub.f32 %v4653, %v4812
      %v5135 = vsub.f32 %v4654, %v4813
      %v5136 = vsub.f32 %v4655, %v4813
      %v5137 = vsub.f32 %v4656, %v4814
      %v5138 = vsub.f32 %v4657, %v4814
      %v5139 = vsub.f32 %v4658, %v4815
      %v5140 = vsub.f32 %v4659, %v4815
      %v5141 = vsub.f32 %v4660, %v4816
      %v5142 = vsub.f32 %v4661, %v4816
      %v5143 = vsub.f32 %v4662, %v4817
      %v5144 = vsub.f32 %v4663, %v4817
      %v5145 = vsub.f32 %v4664, %v4818
      %v5146 = vsub.f32 %v4665, %v4818
      %v5147 = vsub.f32 %v4666, %v4819
      %v5148 = vsub.f32 %v4667, %v4819
      %v5149 = vsub.f32 %v4668, %v4820
      %v5150 = vsub.f32 %v4669, %v4820
      %v5151 = vsub.f32 %v4670, %v4821
      %v5152 = vsub.f32 %v4671, %v4821
      %v5153 = vsub.f32 %v4672, %v4822
      %v5154 = vsub.f32 %v4673, %v4822
      %v5155 = vsub.f32 %v4674, %v4823
      %v5156 = vsub.f32 %v4675, %v4823
      %v5157 = vsub.f32 %v4676, %v4824
      %v5158 = vsub.f32 %v4677, %v4824
      %v5159 = vsub.f32 %v4678, %v4825
      %v5160 = vsub.f32 %v4679, %v4825
      %v5161 = vsub.f32 %v4680, %v4826
      %v5162 = vsub.f32 %v4681, %v4826
      %v5163 = vsub.f32 %v4682, %v4827
      %v5164 = vsub.f32 %v4683, %v4827
      %v5165 = vsub.f32 %v4684, %v4828
      %v5166 = vsub.f32 %v4685, %v4828
      %v5167 = vsub.f32 %v4686, %v4829
      %v5168 = vsub.f32 %v4687, %v4829
      %v5169 = vsub.f32 %v4688, %v4830
      %v5170 = vsub.f32 %v4689, %v4830
      %v5171 = vsub.f32 %v4690, %v4831
      %v5172 = vsub.f32 %v4691, %v4831
      %v5173 = vsub.f32 %v4692, %v4832
      %v5174 = vsub.f32 %v4693, %v4832
      %v5175 = vsub.f32 %v4694, %v4833
      %v5176 = vsub.f32 %v4695, %v4833
      %v5177 = vsub.f32 %v4696, %v4834
      %v5178 = vsub.f32 %v4697, %v4834
      %v5179 = vsub.f32 %v4698, %v4835
      %v5180 = vsub.f32 %v4699, %v4835
      %v5181 = vsub.f32 %v4700, %v4836
      %v5182 = vsub.f32 %v4701, %v4836
      %v5183 = vsub.f32 %v4702, %v4837
      %v5184 = vsub.f32 %v4703, %v4837
      %v5185 = vsub.f32 %v4704, %v4838
      %v5186 = vsub.f32 %v4705, %v4838
      %v5187 = vsub.f32 %v4706, %v4839
      %v5188 = vsub.f32 %v4707, %v4839
      %v5189 = vsub.f32 %v4708, %v4840
      %v5190 = vsub.f32 %v4709, %v4840
      %v5191 = vsub.f32 %v4710, %v4841
      %v5192 = vsub.f32 %v4711, %v4841
      %v5193 = vsub.f32 %v4712, %v4842
      %v5194 = vsub.f32 %v4713, %v4842
      %v5195 = vadd.f32 %v5099, 1e-05
      %v5196 = vadd.f32 %v5100, 1e-05
      %v5197 = vadd.f32 %v5101, 1e-05
      %v5198 = vadd.f32 %v5102, 1e-05
      %v5199 = vadd.f32 %v5103, 1e-05
      %v5200 = vadd.f32 %v5104, 1e-05
      %v5201 = vadd.f32 %v5105, 1e-05
      %v5202 = vadd.f32 %v5106, 1e-05
      %v5203 = vadd.f32 %v5107, 1e-05
      %v5204 = vadd.f32 %v5108, 1e-05
      %v5205 = vadd.f32 %v5109, 1e-05
      %v5206 = vadd.f32 %v5110, 1e-05
      %v5207 = vadd.f32 %v5111, 1e-05
      %v5208 = vadd.f32 %v5112, 1e-05
      %v5209 = vadd.f32 %v5113, 1e-05
      %v5210 = vadd.f32 %v5114, 1e-05
      %v5211 = vadd.f32 %v5115, 1e-05
      %v5212 = vadd.f32 %v5116, 1e-05
      %v5213 = vadd.f32 %v5117, 1e-05
      %v5214 = vadd.f32 %v5118, 1e-05
      %v5215 = vadd.f32 %v5119, 1e-05
      %v5216 = vadd.f32 %v5120, 1e-05
      %v5217 = vadd.f32 %v5121, 1e-05
      %v5218 = vadd.f32 %v5122, 1e-05
      %v5219 = vadd.f32 %v5123, 1e-05
      %v5220 = vadd.f32 %v5124, 1e-05
      %v5221 = vadd.f32 %v5125, 1e-05
      %v5222 = vadd.f32 %v5126, 1e-05
      %v5223 = vadd.f32 %v5127, 1e-05
      %v5224 = vadd.f32 %v5128, 1e-05
      %v5225 = vadd.f32 %v5129, 1e-05
      %v5226 = vadd.f32 %v5130, 1e-05
      %v5227 = vrsqrt.pop %v5195
      %v5228 = vrsqrt.pop %v5196
      %v5229 = vrsqrt.pop %v5197
      %v5230 = vrsqrt.pop %v5198
      %v5231 = vrsqrt.pop %v5199
      %v5232 = vrsqrt.pop %v5200
      %v5233 = vrsqrt.pop %v5201
      %v5234 = vrsqrt.pop %v5202
      %v5235 = vrsqrt.pop %v5203
      %v5236 = vrsqrt.pop %v5204
      %v5237 = vrsqrt.pop %v5205
      %v5238 = vrsqrt.pop %v5206
      %v5239 = vrsqrt.pop %v5207
      %v5240 = vrsqrt.pop %v5208
      %v5241 = vrsqrt.pop %v5209
      %v5242 = vrsqrt.pop %v5210
      %v5243 = vrsqrt.pop %v5211
      %v5244 = vrsqrt.pop %v5212
      %v5245 = vrsqrt.pop %v5213
      %v5246 = vrsqrt.pop %v5214
      %v5247 = vrsqrt.pop %v5215
      %v5248 = vrsqrt.pop %v5216
      %v5249 = vrsqrt.pop %v5217
      %v5250 = vrsqrt.pop %v5218
      %v5251 = vrsqrt.pop %v5219
      %v5252 = vrsqrt.pop %v5220
      %v5253 = vrsqrt.pop %v5221
      %v5254 = vrsqrt.pop %v5222
      %v5255 = vrsqrt.pop %v5223
      %v5256 = vrsqrt.pop %v5224
      %v5257 = vrsqrt.pop %v5225
      %v5258 = vrsqrt.pop %v5226
      %v5259 = vmul.f32 %v5131, %v5227
      %v5260 = vmul.f32 %v5132, %v5227
      %v5261 = vmul.f32 %v5133, %v5228
      %v5262 = vmul.f32 %v5134, %v5228
      %v5263 = vmul.f32 %v5135, %v5229
      %v5264 = vmul.f32 %v5136, %v5229
      %v5265 = vmul.f32 %v5137, %v5230
      %v5266 = vmul.f32 %v5138, %v5230
      %v5267 = vmul.f32 %v5139, %v5231
      %v5268 = vmul.f32 %v5140, %v5231
      %v5269 = vmul.f32 %v5141, %v5232
      %v5270 = vmul.f32 %v5142, %v5232
      %v5271 = vmul.f32 %v5143, %v5233
      %v5272 = vmul.f32 %v5144, %v5233
      %v5273 = vmul.f32 %v5145, %v5234
      %v5274 = vmul.f32 %v5146, %v5234
      %v5275 = vmul.f32 %v5147, %v5235
      %v5276 = vmul.f32 %v5148, %v5235
      %v5277 = vmul.f32 %v5149, %v5236
      %v5278 = vmul.f32 %v5150, %v5236
      %v5279 = vmul.f32 %v5151, %v5237
      %v5280 = vmul.f32 %v5152, %v5237
      %v5281 = vmul.f32 %v5153, %v5238
      %v5282 = vmul.f32 %v5154, %v5238
      %v5283 = vmul.f32 %v5155, %v5239
      %v5284 = vmul.f32 %v5156, %v5239
      %v5285 = vmul.f32 %v5157, %v5240
      %v5286 = vmul.f32 %v5158, %v5240
      %v5287 = vmul.f32 %v5159, %v5241
      %v5288 = vmul.f32 %v5160, %v5241
      %v5289 = vmul.f32 %v5161, %v5242
      %v5290 = vmul.f32 %v5162, %v5242
      %v5291 = vmul.f32 %v5163, %v5243
      %v5292 = vmul.f32 %v5164, %v5243
      %v5293 = vmul.f32 %v5165, %v5244
      %v5294 = vmul.f32 %v5166, %v5244
      %v5295 = vmul.f32 %v5167, %v5245
      %v5296 = vmul.f32 %v5168, %v5245
      %v5297 = vmul.f32 %v5169, %v5246
      %v5298 = vmul.f32 %v5170, %v5246
      %v5299 = vmul.f32 %v5171, %v5247
      %v5300 = vmul.f32 %v5172, %v5247
      %v5301 = vmul.f32 %v5173, %v5248
      %v5302 = vmul.f32 %v5174, %v5248
      %v5303 = vmul.f32 %v5175, %v5249
      %v5304 = vmul.f32 %v5176, %v5249
      %v5305 = vmul.f32 %v5177, %v5250
      %v5306 = vmul.f32 %v5178, %v5250
      %v5307 = vmul.f32 %v5179, %v5251
      %v5308 = vmul.f32 %v5180, %v5251
      %v5309 = vmul.f32 %v5181, %v5252
      %v5310 = vmul.f32 %v5182, %v5252
      %v5311 = vmul.f32 %v5183, %v5253
      %v5312 = vmul.f32 %v5184, %v5253
      %v5313 = vmul.f32 %v5185, %v5254
      %v5314 = vmul.f32 %v5186, %v5254
      %v5315 = vmul.f32 %v5187, %v5255
      %v5316 = vmul.f32 %v5188, %v5255
      %v5317 = vmul.f32 %v5189, %v5256
      %v5318 = vmul.f32 %v5190, %v5256
      %v5319 = vmul.f32 %v5191, %v5257
      %v5320 = vmul.f32 %v5192, %v5257
      %v5321 = vmul.f32 %v5193, %v5258
      %v5322 = vmul.f32 %v5194, %v5258
      %v5323 = vld [vmem:[%s4] sm:$0x3]
      %v5325 = vlaneseq
      %v5326 = vshrl.u32 %v5325, 7
      %v5327 = vsub.s32 0, %v5326
      %v5328 = vrot.slane %v5323, %v5327
      %v5329 = vlaneseq
      %v5330 = vshrl.u32 %v5329, 7
      %v5331 = vsub.s32 1, %v5330
      %v5332 = vrot.slane %v5323, %v5331
      %v5335 = vmul.f32 %v5259, %v5328
      %v5336 = vmul.f32 %v5260, %v5332
      %v5337 = vmul.f32 %v5261, %v5328
      %v5338 = vmul.f32 %v5262, %v5332
      %v5339 = vmul.f32 %v5263, %v5328
      %v5340 = vmul.f32 %v5264, %v5332
      %v5341 = vmul.f32 %v5265, %v5328
      %v5342 = vmul.f32 %v5266, %v5332
      %v5343 = vmul.f32 %v5267, %v5328
      %v5344 = vmul.f32 %v5268, %v5332
      %v5345 = vmul.f32 %v5269, %v5328
      %v5346 = vmul.f32 %v5270, %v5332
      %v5347 = vmul.f32 %v5271, %v5328
      %v5348 = vmul.f32 %v5272, %v5332
      %v5349 = vmul.f32 %v5273, %v5328
      %v5350 = vmul.f32 %v5274, %v5332
      %v5351 = vmul.f32 %v5275, %v5328
      %v5352 = vmul.f32 %v5276, %v5332
      %v5353 = vmul.f32 %v5277, %v5328
      %v5354 = vmul.f32 %v5278, %v5332
      %v5355 = vmul.f32 %v5279, %v5328
      %v5356 = vmul.f32 %v5280, %v5332
      %v5357 = vmul.f32 %v5281, %v5328
      %v5358 = vmul.f32 %v5282, %v5332
      %v5359 = vmul.f32 %v5283, %v5328
      %v5360 = vmul.f32 %v5284, %v5332
      %v5361 = vmul.f32 %v5285, %v5328
      %v5362 = vmul.f32 %v5286, %v5332
      %v5363 = vmul.f32 %v5287, %v5328
      %v5364 = vmul.f32 %v5288, %v5332
      %v5365 = vmul.f32 %v5289, %v5328
      %v5366 = vmul.f32 %v5290, %v5332
      %v5367 = vmul.f32 %v5291, %v5328
      %v5368 = vmul.f32 %v5292, %v5332
      %v5369 = vmul.f32 %v5293, %v5328
      %v5370 = vmul.f32 %v5294, %v5332
      %v5371 = vmul.f32 %v5295, %v5328
      %v5372 = vmul.f32 %v5296, %v5332
      %v5373 = vmul.f32 %v5297, %v5328
      %v5374 = vmul.f32 %v5298, %v5332
      %v5375 = vmul.f32 %v5299, %v5328
      %v5376 = vmul.f32 %v5300, %v5332
      %v5377 = vmul.f32 %v5301, %v5328
      %v5378 = vmul.f32 %v5302, %v5332
      %v5379 = vmul.f32 %v5303, %v5328
      %v5380 = vmul.f32 %v5304, %v5332
      %v5381 = vmul.f32 %v5305, %v5328
      %v5382 = vmul.f32 %v5306, %v5332
      %v5383 = vmul.f32 %v5307, %v5328
      %v5384 = vmul.f32 %v5308, %v5332
      %v5385 = vmul.f32 %v5309, %v5328
      %v5386 = vmul.f32 %v5310, %v5332
      %v5387 = vmul.f32 %v5311, %v5328
      %v5388 = vmul.f32 %v5312, %v5332
      %v5389 = vmul.f32 %v5313, %v5328
      %v5390 = vmul.f32 %v5314, %v5332
      %v5391 = vmul.f32 %v5315, %v5328
      %v5392 = vmul.f32 %v5316, %v5332
      %v5393 = vmul.f32 %v5317, %v5328
      %v5394 = vmul.f32 %v5318, %v5332
      %v5395 = vmul.f32 %v5319, %v5328
      %v5396 = vmul.f32 %v5320, %v5332
      %v5397 = vmul.f32 %v5321, %v5328
      %v5398 = vmul.f32 %v5322, %v5332
      %v5399 = vld [vmem:[%s5] sm:$0x3]
      %v5401 = vlaneseq
      %v5402 = vshrl.u32 %v5401, 7
      %v5403 = vsub.s32 0, %v5402
      %v5404 = vrot.slane %v5399, %v5403
      %v5405 = vlaneseq
      %v5406 = vshrl.u32 %v5405, 7
      %v5407 = vsub.s32 1, %v5406
      %v5408 = vrot.slane %v5399, %v5407
      %v5411 = vadd.f32 %v5335, %v5404
      %v5412 = vadd.f32 %v5336, %v5408
      %v5413 = vadd.f32 %v5337, %v5404
      %v5414 = vadd.f32 %v5338, %v5408
      %v5415 = vadd.f32 %v5339, %v5404
      %v5416 = vadd.f32 %v5340, %v5408
      %v5417 = vadd.f32 %v5341, %v5404
      %v5418 = vadd.f32 %v5342, %v5408
      %v5419 = vadd.f32 %v5343, %v5404
      %v5420 = vadd.f32 %v5344, %v5408
      %v5421 = vadd.f32 %v5345, %v5404
      %v5422 = vadd.f32 %v5346, %v5408
      %v5423 = vadd.f32 %v5347, %v5404
      %v5424 = vadd.f32 %v5348, %v5408
      %v5425 = vadd.f32 %v5349, %v5404
      %v5426 = vadd.f32 %v5350, %v5408
      %v5427 = vadd.f32 %v5351, %v5404
      %v5428 = vadd.f32 %v5352, %v5408
      %v5429 = vadd.f32 %v5353, %v5404
      %v5430 = vadd.f32 %v5354, %v5408
      %v5431 = vadd.f32 %v5355, %v5404
      %v5432 = vadd.f32 %v5356, %v5408
      %v5433 = vadd.f32 %v5357, %v5404
      %v5434 = vadd.f32 %v5358, %v5408
      %v5435 = vadd.f32 %v5359, %v5404
      %v5436 = vadd.f32 %v5360, %v5408
      %v5437 = vadd.f32 %v5361, %v5404
      %v5438 = vadd.f32 %v5362, %v5408
      %v5439 = vadd.f32 %v5363, %v5404
      %v5440 = vadd.f32 %v5364, %v5408
      %v5441 = vadd.f32 %v5365, %v5404
      %v5442 = vadd.f32 %v5366, %v5408
      %v5443 = vadd.f32 %v5367, %v5404
      %v5444 = vadd.f32 %v5368, %v5408
      %v5445 = vadd.f32 %v5369, %v5404
      %v5446 = vadd.f32 %v5370, %v5408
      %v5447 = vadd.f32 %v5371, %v5404
      %v5448 = vadd.f32 %v5372, %v5408
      %v5449 = vadd.f32 %v5373, %v5404
      %v5450 = vadd.f32 %v5374, %v5408
      %v5451 = vadd.f32 %v5375, %v5404
      %v5452 = vadd.f32 %v5376, %v5408
      %v5453 = vadd.f32 %v5377, %v5404
      %v5454 = vadd.f32 %v5378, %v5408
      %v5455 = vadd.f32 %v5379, %v5404
      %v5456 = vadd.f32 %v5380, %v5408
      %v5457 = vadd.f32 %v5381, %v5404
      %v5458 = vadd.f32 %v5382, %v5408
      %v5459 = vadd.f32 %v5383, %v5404
      %v5460 = vadd.f32 %v5384, %v5408
      %v5461 = vadd.f32 %v5385, %v5404
      %v5462 = vadd.f32 %v5386, %v5408
      %v5463 = vadd.f32 %v5387, %v5404
      %v5464 = vadd.f32 %v5388, %v5408
      %v5465 = vadd.f32 %v5389, %v5404
      %v5466 = vadd.f32 %v5390, %v5408
      %v5467 = vadd.f32 %v5391, %v5404
      %v5468 = vadd.f32 %v5392, %v5408
      %v5469 = vadd.f32 %v5393, %v5404
      %v5470 = vadd.f32 %v5394, %v5408
      %v5471 = vadd.f32 %v5395, %v5404
      %v5472 = vadd.f32 %v5396, %v5408
      %v5473 = vadd.f32 %v5397, %v5404
      %v5474 = vadd.f32 %v5398, %v5408
      %v5475 = vmax.f32 %v5411, 0.0
      %v5476 = vmax.f32 %v5412, 0.0
      %v5477 = vmax.f32 %v5413, 0.0
      %v5478 = vmax.f32 %v5414, 0.0
      %v5479 = vmax.f32 %v5415, 0.0
      %v5480 = vmax.f32 %v5416, 0.0
      %v5481 = vmax.f32 %v5417, 0.0
      %v5482 = vmax.f32 %v5418, 0.0
      %v5483 = vmax.f32 %v5419, 0.0
      %v5484 = vmax.f32 %v5420, 0.0
      %v5485 = vmax.f32 %v5421, 0.0
      %v5486 = vmax.f32 %v5422, 0.0
      %v5487 = vmax.f32 %v5423, 0.0
      %v5488 = vmax.f32 %v5424, 0.0
      %v5489 = vmax.f32 %v5425, 0.0
      %v5490 = vmax.f32 %v5426, 0.0
      %v5491 = vmax.f32 %v5427, 0.0
      %v5492 = vmax.f32 %v5428, 0.0
      %v5493 = vmax.f32 %v5429, 0.0
      %v5494 = vmax.f32 %v5430, 0.0
      %v5495 = vmax.f32 %v5431, 0.0
      %v5496 = vmax.f32 %v5432, 0.0
      %v5497 = vmax.f32 %v5433, 0.0
      %v5498 = vmax.f32 %v5434, 0.0
      %v5499 = vmax.f32 %v5435, 0.0
      %v5500 = vmax.f32 %v5436, 0.0
      %v5501 = vmax.f32 %v5437, 0.0
      %v5502 = vmax.f32 %v5438, 0.0
      %v5503 = vmax.f32 %v5439, 0.0
      %v5504 = vmax.f32 %v5440, 0.0
      %v5505 = vmax.f32 %v5441, 0.0
      %v5506 = vmax.f32 %v5442, 0.0
      %v5507 = vmax.f32 %v5443, 0.0
      %v5508 = vmax.f32 %v5444, 0.0
      %v5509 = vmax.f32 %v5445, 0.0
      %v5510 = vmax.f32 %v5446, 0.0
      %v5511 = vmax.f32 %v5447, 0.0
      %v5512 = vmax.f32 %v5448, 0.0
      %v5513 = vmax.f32 %v5449, 0.0
      %v5514 = vmax.f32 %v5450, 0.0
      %v5515 = vmax.f32 %v5451, 0.0
      %v5516 = vmax.f32 %v5452, 0.0
      %v5517 = vmax.f32 %v5453, 0.0
      %v5518 = vmax.f32 %v5454, 0.0
      %v5519 = vmax.f32 %v5455, 0.0
      %v5520 = vmax.f32 %v5456, 0.0
      %v5521 = vmax.f32 %v5457, 0.0
      %v5522 = vmax.f32 %v5458, 0.0
      %v5523 = vmax.f32 %v5459, 0.0
      %v5524 = vmax.f32 %v5460, 0.0
      %v5525 = vmax.f32 %v5461, 0.0
      %v5526 = vmax.f32 %v5462, 0.0
      %v5527 = vmax.f32 %v5463, 0.0
      %v5528 = vmax.f32 %v5464, 0.0
      %v5529 = vmax.f32 %v5465, 0.0
      %v5530 = vmax.f32 %v5466, 0.0
      %v5531 = vmax.f32 %v5467, 0.0
      %v5532 = vmax.f32 %v5468, 0.0
      %v5533 = vmax.f32 %v5469, 0.0
      %v5534 = vmax.f32 %v5470, 0.0
      %v5535 = vmax.f32 %v5471, 0.0
      %v5536 = vmax.f32 %v5472, 0.0
      %v5537 = vmax.f32 %v5473, 0.0
      %v5538 = vmax.f32 %v5474, 0.0
      %v5539 = vld [vmem:[%s6] sm:$0xff]
      %v5540 = vld [vmem:[%s6 + $0x8] sm:$0xff]
      %v5541 = vld [vmem:[%s6 + $0x10] sm:$0xff]
      %v5542 = vld [vmem:[%s6 + $0x18] sm:$0xff]
      %v5543 = vld [vmem:[%s6 + $0x20] sm:$0xff]
      %v5544 = vld [vmem:[%s6 + $0x28] sm:$0xff]
      %v5545 = vld [vmem:[%s6 + $0x30] sm:$0xff]
      %v5546 = vld [vmem:[%s6 + $0x38] sm:$0xff]
      %v5547 = vld [vmem:[%s6 + $0x40] sm:$0xff]
      %v5548 = vld [vmem:[%s6 + $0x48] sm:$0xff]
      %v5549 = vld [vmem:[%s6 + $0x50] sm:$0xff]
      %v5550 = vld [vmem:[%s6 + $0x58] sm:$0xff]
      %v5551 = vld [vmem:[%s6 + $0x60] sm:$0xff]
      %v5552 = vld [vmem:[%s6 + $0x68] sm:$0xff]
      %v5553 = vld [vmem:[%s6 + $0x70] sm:$0xff]
      %v5554 = vld [vmem:[%s6 + $0x78] sm:$0xff]
      %v5555 = vld [vmem:[%s6 + $0x80] sm:$0xff]
      %v5556 = vld [vmem:[%s6 + $0x88] sm:$0xff]
      %v5557 = vld [vmem:[%s6 + $0x90] sm:$0xff]
      %v5558 = vld [vmem:[%s6 + $0x98] sm:$0xff]
      %v5559 = vld [vmem:[%s6 + $0xa0] sm:$0xff]
      %v5560 = vld [vmem:[%s6 + $0xa8] sm:$0xff]
      %v5561 = vld [vmem:[%s6 + $0xb0] sm:$0xff]
      %v5562 = vld [vmem:[%s6 + $0xb8] sm:$0xff]
      %v5563 = vld [vmem:[%s6 + $0xc0] sm:$0xff]
      %v5564 = vld [vmem:[%s6 + $0xc8] sm:$0xff]
      %v5565 = vld [vmem:[%s6 + $0xd0] sm:$0xff]
      %v5566 = vld [vmem:[%s6 + $0xd8] sm:$0xff]
      %v5567 = vld [vmem:[%s6 + $0xe0] sm:$0xff]
      %v5568 = vld [vmem:[%s6 + $0xe8] sm:$0xff]
      %v5569 = vld [vmem:[%s6 + $0xf0] sm:$0xff]
      %v5570 = vld [vmem:[%s6 + $0xf8] sm:$0xff]
      %v5571 = vld [vmem:[%s6 + $0x100] sm:$0xff]
      %v5572 = vld [vmem:[%s6 + $0x108] sm:$0xff]
      %v5573 = vld [vmem:[%s6 + $0x110] sm:$0xff]
      %v5574 = vld [vmem:[%s6 + $0x118] sm:$0xff]
      %v5575 = vld [vmem:[%s6 + $0x120] sm:$0xff]
      %v5576 = vld [vmem:[%s6 + $0x128] sm:$0xff]
      %v5577 = vld [vmem:[%s6 + $0x130] sm:$0xff]
      %v5578 = vld [vmem:[%s6 + $0x138] sm:$0xff]
      %v5579 = vld [vmem:[%s6 + $0x140] sm:$0xff]
      %v5580 = vld [vmem:[%s6 + $0x148] sm:$0xff]
      %v5581 = vld [vmem:[%s6 + $0x150] sm:$0xff]
      %v5582 = vld [vmem:[%s6 + $0x158] sm:$0xff]
      %v5583 = vld [vmem:[%s6 + $0x160] sm:$0xff]
      %v5584 = vld [vmem:[%s6 + $0x168] sm:$0xff]
      %v5585 = vld [vmem:[%s6 + $0x170] sm:$0xff]
      %v5586 = vld [vmem:[%s6 + $0x178] sm:$0xff]
      %v5587 = vld [vmem:[%s6 + $0x180] sm:$0xff]
      %v5588 = vld [vmem:[%s6 + $0x188] sm:$0xff]
      %v5589 = vld [vmem:[%s6 + $0x190] sm:$0xff]
      %v5590 = vld [vmem:[%s6 + $0x198] sm:$0xff]
      %v5591 = vld [vmem:[%s6 + $0x1a0] sm:$0xff]
      %v5592 = vld [vmem:[%s6 + $0x1a8] sm:$0xff]
      %v5593 = vld [vmem:[%s6 + $0x1b0] sm:$0xff]
      %v5594 = vld [vmem:[%s6 + $0x1b8] sm:$0xff]
      %v5595 = vld [vmem:[%s6 + $0x1c0] sm:$0xff]
      %v5596 = vld [vmem:[%s6 + $0x1c8] sm:$0xff]
      %v5597 = vld [vmem:[%s6 + $0x1d0] sm:$0xff]
      %v5598 = vld [vmem:[%s6 + $0x1d8] sm:$0xff]
      %v5599 = vld [vmem:[%s6 + $0x1e0] sm:$0xff]
      %v5600 = vld [vmem:[%s6 + $0x1e8] sm:$0xff]
      %v5601 = vld [vmem:[%s6 + $0x1f0] sm:$0xff]
      %v5602 = vld [vmem:[%s6 + $0x1f8] sm:$0xff]
      %v5603 = vld [vmem:[%s7] sm:$0x3]
      %v5605 = vlaneseq
      %v5606 = vshrl.u32 %v5605, 7
      %v5607 = vsub.s32 0, %v5606
      %v5608 = vrot.slane %v5603, %v5607
      %v5609 = vlaneseq
      %v5610 = vshrl.u32 %v5609, 7
      %v5611 = vsub.s32 1, %v5610
      %v5612 = vrot.slane %v5603, %v5611
      %5615 = vmatprep.subr.mxu0 %v5570
      %5616 = vmatpush1.msra.mxu0 %v5569
      %5617 = vmatprep.subr.mxu0 %v5568
      %5618 = vmatpush1.msra.mxu0 %v5567
      %5619 = vmatprep.subr.mxu0 %v5566
      %5620 = vmatpush1.msra.mxu0 %v5565
      %5621 = vmatprep.subr.mxu0 %v5564
      %5622 = vmatpush1.msra.mxu0 %v5563
      %5623 = vmatprep.subr.mxu0 %v5562
      %5624 = vmatpush1.msra.mxu0 %v5561
      %5625 = vmatprep.subr.mxu0 %v5560
      %5626 = vmatpush1.msra.mxu0 %v5559
      %5627 = vmatprep.subr.mxu0 %v5558
      %5628 = vmatpush1.msra.mxu0 %v5557
      %5629 = vmatprep.subr.mxu0 %v5556
      %5630 = vmatpush1.msra.mxu0 %v5555
      %5631 = vmatprep.subr.mxu0 %v5554
      %5632 = vmatpush1.msra.mxu0 %v5553
      %5633 = vmatprep.subr.mxu0 %v5552
      %5634 = vmatpush1.msra.mxu0 %v5551
      %5635 = vmatprep.subr.mxu0 %v5550
      %5636 = vmatpush1.msra.mxu0 %v5549
      %5637 = vmatprep.subr.mxu0 %v5548
      %5638 = vmatpush1.msra.mxu0 %v5547
      %5639 = vmatprep.subr.mxu0 %v5546
      %5640 = vmatpush1.msra.mxu0 %v5545
      %5641 = vmatprep.subr.mxu0 %v5544
      %5642 = vmatpush1.msra.mxu0 %v5543
      %5643 = vmatprep.subr.mxu0 %v5542
      %5644 = vmatpush1.msra.mxu0 %v5541
      %5645 = vmatprep.subr.mxu0 %v5540
      %5646 = vmatpush1.msra.mxu0 %v5539
      %5647 = vmatprep.subr.mxu0 %v5602
      %5648 = vmatpush2.msra.mxu0 %v5601
      %5649 = vmatprep.subr.mxu0 %v5600
      %5650 = vmatpush2.msra.mxu0 %v5599
      %5651 = vmatprep.subr.mxu0 %v5598
      %5652 = vmatpush2.msra.mxu0 %v5597
      %5653 = vmatprep.subr.mxu0 %v5596
      %5654 = vmatpush2.msra.mxu0 %v5595
      %5655 = vmatprep.subr.mxu0 %v5594
      %5656 = vmatpush2.msra.mxu0 %v5593
      %5657 = vmatprep.subr.mxu0 %v5592
      %5658 = vmatpush2.msra.mxu0 %v5591
      %5659 = vmatprep.subr.mxu0 %v5590
      %5660 = vmatpush2.msra.mxu0 %v5589
      %5661 = vmatprep.subr.mxu0 %v5588
      %5662 = vmatpush2.msra.mxu0 %v5587
      %5663 = vmatprep.subr.mxu0 %v5586
      %5664 = vmatpush2.msra.mxu0 %v5585
      %5665 = vmatprep.subr.mxu0 %v5584
      %5666 = vmatpush2.msra.mxu0 %v5583
      %5667 = vmatprep.subr.mxu0 %v5582
      %5668 = vmatpush2.msra.mxu0 %v5581
      %5669 = vmatprep.subr.mxu0 %v5580
      %5670 = vmatpush2.msra.mxu0 %v5579
      %5671 = vmatprep.subr.mxu0 %v5578
      %5672 = vmatpush2.msra.mxu0 %v5577
      %5673 = vmatprep.subr.mxu0 %v5576
      %5674 = vmatpush2.msra.mxu0 %v5575
      %5675 = vmatprep.subr.mxu0 %v5574
      %5676 = vmatpush2.msra.mxu0 %v5573
      %5677 = vmatprep.subr.mxu0 %v5572
      %5678 = vmatpush2.msra.mxu0 %v5571
      %5679 = vmatprep.mubr.f32.mxu0 %v5476
      %5680 = vmatmul.mubr.f32.gmra.mxu0 %v5475
      %v5681 = vpop.f32.mrf.mxu0
      %v5682 = vadd.f32 %v5608, %v5681
      %v5683 = vpop.f32.mrf.mxu0
      %v5684 = vadd.f32 %v5612, %v5683
      %5685 = vmatprep.mubr.f32.mxu0 %v5478
      %5686 = vmatmul.mubr.f32.gmra.mxu0 %v5477
      %v5687 = vpop.f32.mrf.mxu0
      %v5688 = vadd.f32 %v5608, %v5687
      %v5689 = vpop.f32.mrf.mxu0
      %v5690 = vadd.f32 %v5612, %v5689
      %5691 = vmatprep.mubr.f32.mxu0 %v5480
      %5692 = vmatmul.mubr.f32.gmra.mxu0 %v5479
      %v5693 = vpop.f32.mrf.mxu0
      %v5694 = vadd.f32 %v5608, %v5693
      %v5695 = vpop.f32.mrf.mxu0
      %v5696 = vadd.f32 %v5612, %v5695
      %5697 = vmatprep.mubr.f32.mxu0 %v5482
      %5698 = vmatmul.mubr.f32.gmra.mxu0 %v5481
      %v5699 = vpop.f32.mrf.mxu0
      %v5700 = vadd.f32 %v5608, %v5699
      %v5701 = vpop.f32.mrf.mxu0
      %v5702 = vadd.f32 %v5612, %v5701
      %5703 = vmatprep.mubr.f32.mxu0 %v5484
      %5704 = vmatmul.mubr.f32.gmra.mxu0 %v5483
      %v5705 = vpop.f32.mrf.mxu0
      %v5706 = vadd.f32 %v5608, %v5705
      %v5707 = vpop.f32.mrf.mxu0
      %v5708 = vadd.f32 %v5612, %v5707
      %5709 = vmatprep.mubr.f32.mxu0 %v5486
      %5710 = vmatmul.mubr.f32.gmra.mxu0 %v5485
      %v5711 = vpop.f32.mrf.mxu0
      %v5712 = vadd.f32 %v5608, %v5711
      %v5713 = vpop.f32.mrf.mxu0
      %v5714 = vadd.f32 %v5612, %v5713
      %5715 = vmatprep.mubr.f32.mxu0 %v5488
      %5716 = vmatmul.mubr.f32.gmra.mxu0 %v5487
      %v5717 = vpop.f32.mrf.mxu0
      %v5718 = vadd.f32 %v5608, %v5717
      %v5719 = vpop.f32.mrf.mxu0
      %v5720 = vadd.f32 %v5612, %v5719
      %5721 = vmatprep.mubr.f32.mxu0 %v5490
      %5722 = vmatmul.mubr.f32.gmra.mxu0 %v5489
      %v5723 = vpop.f32.mrf.mxu0
      %v5724 = vadd.f32 %v5608, %v5723
      %v5725 = vpop.f32.mrf.mxu0
      %v5726 = vadd.f32 %v5612, %v5725
      %5727 = vmatprep.mubr.f32.mxu0 %v5492
      %5728 = vmatmul.mubr.f32.gmra.mxu0 %v5491
      %v5729 = vpop.f32.mrf.mxu0
      %v5730 = vadd.f32 %v5608, %v5729
      %v5731 = vpop.f32.mrf.mxu0
      %v5732 = vadd.f32 %v5612, %v5731
      %5733 = vmatprep.mubr.f32.mxu0 %v5494
      %5734 = vmatmul.mubr.f32.gmra.mxu0 %v5493
      %v5735 = vpop.f32.mrf.mxu0
      %v5736 = vadd.f32 %v5608, %v5735
      %v5737 = vpop.f32.mrf.mxu0
      %v5738 = vadd.f32 %v5612, %v5737
      %5739 = vmatprep.mubr.f32.mxu0 %v5496
      %5740 = vmatmul.mubr.f32.gmra.mxu0 %v5495
      %v5741 = vpop.f32.mrf.mxu0
      %v5742 = vadd.f32 %v5608, %v5741
      %v5743 = vpop.f32.mrf.mxu0
      %v5744 = vadd.f32 %v5612, %v5743
      %5745 = vmatprep.mubr.f32.mxu0 %v5498
      %5746 = vmatmul.mubr.f32.gmra.mxu0 %v5497
      %v5747 = vpop.f32.mrf.mxu0
      %v5748 = vadd.f32 %v5608, %v5747
      %v5749 = vpop.f32.mrf.mxu0
      %v5750 = vadd.f32 %v5612, %v5749
      %5751 = vmatprep.mubr.f32.mxu0 %v5500
      %5752 = vmatmul.mubr.f32.gmra.mxu0 %v5499
      %v5753 = vpop.f32.mrf.mxu0
      %v5754 = vadd.f32 %v5608, %v5753
      %v5755 = vpop.f32.mrf.mxu0
      %v5756 = vadd.f32 %v5612, %v5755
      %5757 = vmatprep.mubr.f32.mxu0 %v5502
      %5758 = vmatmul.mubr.f32.gmra.mxu0 %v5501
      %v5759 = vpop.f32.mrf.mxu0
      %v5760 = vadd.f32 %v5608, %v5759
      %v5761 = vpop.f32.mrf.mxu0
      %v5762 = vadd.f32 %v5612, %v5761
      %5763 = vmatprep.mubr.f32.mxu0 %v5504
      %5764 = vmatmul.mubr.f32.gmra.mxu0 %v5503
      %v5765 = vpop.f32.mrf.mxu0
      %v5766 = vadd.f32 %v5608, %v5765
      %v5767 = vpop.f32.mrf.mxu0
      %v5768 = vadd.f32 %v5612, %v5767
      %5769 = vmatprep.mubr.f32.mxu0 %v5506
      %5770 = vmatmul.mubr.f32.gmra.mxu0 %v5505
      %v5771 = vpop.f32.mrf.mxu0
      %v5772 = vadd.f32 %v5608, %v5771
      %v5773 = vpop.f32.mrf.mxu0
      %v5774 = vadd.f32 %v5612, %v5773
      %5775 = vmatprep.mubr.f32.mxu0 %v5508
      %5776 = vmatmul.mubr.f32.gmra.mxu0 %v5507
      %v5777 = vpop.f32.mrf.mxu0
      %v5778 = vadd.f32 %v5608, %v5777
      %v5779 = vpop.f32.mrf.mxu0
      %v5780 = vadd.f32 %v5612, %v5779
      %5781 = vmatprep.mubr.f32.mxu0 %v5510
      %5782 = vmatmul.mubr.f32.gmra.mxu0 %v5509
      %v5783 = vpop.f32.mrf.mxu0
      %v5784 = vadd.f32 %v5608, %v5783
      %v5785 = vpop.f32.mrf.mxu0
      %v5786 = vadd.f32 %v5612, %v5785
      %5787 = vmatprep.mubr.f32.mxu0 %v5512
      %5788 = vmatmul.mubr.f32.gmra.mxu0 %v5511
      %v5789 = vpop.f32.mrf.mxu0
      %v5790 = vadd.f32 %v5608, %v5789
      %v5791 = vpop.f32.mrf.mxu0
      %v5792 = vadd.f32 %v5612, %v5791
      %5793 = vmatprep.mubr.f32.mxu0 %v5514
      %5794 = vmatmul.mubr.f32.gmra.mxu0 %v5513
      %v5795 = vpop.f32.mrf.mxu0
      %v5796 = vadd.f32 %v5608, %v5795
      %v5797 = vpop.f32.mrf.mxu0
      %v5798 = vadd.f32 %v5612, %v5797
      %5799 = vmatprep.mubr.f32.mxu0 %v5516
      %5800 = vmatmul.mubr.f32.gmra.mxu0 %v5515
      %v5801 = vpop.f32.mrf.mxu0
      %v5802 = vadd.f32 %v5608, %v5801
      %v5803 = vpop.f32.mrf.mxu0
      %v5804 = vadd.f32 %v5612, %v5803
      %5805 = vmatprep.mubr.f32.mxu0 %v5518
      %5806 = vmatmul.mubr.f32.gmra.mxu0 %v5517
      %v5807 = vpop.f32.mrf.mxu0
      %v5808 = vadd.f32 %v5608, %v5807
      %v5809 = vpop.f32.mrf.mxu0
      %v5810 = vadd.f32 %v5612, %v5809
      %5811 = vmatprep.mubr.f32.mxu0 %v5520
      %5812 = vmatmul.mubr.f32.gmra.mxu0 %v5519
      %v5813 = vpop.f32.mrf.mxu0
      %v5814 = vadd.f32 %v5608, %v5813
      %v5815 = vpop.f32.mrf.mxu0
      %v5816 = vadd.f32 %v5612, %v5815
      %5817 = vmatprep.mubr.f32.mxu0 %v5522
      %5818 = vmatmul.mubr.f32.gmra.mxu0 %v5521
      %v5819 = vpop.f32.mrf.mxu0
      %v5820 = vadd.f32 %v5608, %v5819
      %v5821 = vpop.f32.mrf.mxu0
      %v5822 = vadd.f32 %v5612, %v5821
      %5823 = vmatprep.mubr.f32.mxu0 %v5524
      %5824 = vmatmul.mubr.f32.gmra.mxu0 %v5523
      %v5825 = vpop.f32.mrf.mxu0
      %v5826 = vadd.f32 %v5608, %v5825
      %v5827 = vpop.f32.mrf.mxu0
      %v5828 = vadd.f32 %v5612, %v5827
      %5829 = vmatprep.mubr.f32.mxu0 %v5526
      %5830 = vmatmul.mubr.f32.gmra.mxu0 %v5525
      %v5831 = vpop.f32.mrf.mxu0
      %v5832 = vadd.f32 %v5608, %v5831
      %v5833 = vpop.f32.mrf.mxu0
      %v5834 = vadd.f32 %v5612, %v5833
      %5835 = vmatprep.mubr.f32.mxu0 %v5528
      %5836 = vmatmul.mubr.f32.gmra.mxu0 %v5527
      %v5837 = vpop.f32.mrf.mxu0
      %v5838 = vadd.f32 %v5608, %v5837
      %v5839 = vpop.f32.mrf.mxu0
      %v5840 = vadd.f32 %v5612, %v5839
      %5841 = vmatprep.mubr.f32.mxu0 %v5530
      %5842 = vmatmul.mubr.f32.gmra.mxu0 %v5529
      %v5843 = vpop.f32.mrf.mxu0
      %v5844 = vadd.f32 %v5608, %v5843
      %v5845 = vpop.f32.mrf.mxu0
      %v5846 = vadd.f32 %v5612, %v5845
      %5847 = vmatprep.mubr.f32.mxu0 %v5532
      %5848 = vmatmul.mubr.f32.gmra.mxu0 %v5531
      %v5849 = vpop.f32.mrf.mxu0
      %v5850 = vadd.f32 %v5608, %v5849
      %v5851 = vpop.f32.mrf.mxu0
      %v5852 = vadd.f32 %v5612, %v5851
      %5853 = vmatprep.mubr.f32.mxu0 %v5534
      %5854 = vmatmul.mubr.f32.gmra.mxu0 %v5533
      %v5855 = vpop.f32.mrf.mxu0
      %v5856 = vadd.f32 %v5608, %v5855
      %v5857 = vpop.f32.mrf.mxu0
      %v5858 = vadd.f32 %v5612, %v5857
      %5859 = vmatprep.mubr.f32.mxu0 %v5536
      %5860 = vmatmul.mubr.f32.gmra.mxu0 %v5535
      %v5861 = vpop.f32.mrf.mxu0
      %v5862 = vadd.f32 %v5608, %v5861
      %v5863 = vpop.f32.mrf.mxu0
      %v5864 = vadd.f32 %v5612, %v5863
      %5865 = vmatprep.mubr.f32.mxu0 %v5538
      %5866 = vmatmul.mubr.f32.gmra.mxu0 %v5537
      %v5867 = vpop.f32.mrf.mxu0
      %v5868 = vadd.f32 %v5608, %v5867
      %v5869 = vpop.f32.mrf.mxu0
      %v5870 = vadd.f32 %v5612, %v5869
      %5871 = vdwg.mxu0
      %v5872 = vmul.f32 %v3639, %v5682
      %v5873 = vmul.f32 %v3639, %v5684
      %v5874 = vmul.f32 %v3640, %v5688
      %v5875 = vmul.f32 %v3640, %v5690
      %v5876 = vmul.f32 %v3641, %v5694
      %v5877 = vmul.f32 %v3641, %v5696
      %v5878 = vmul.f32 %v3642, %v5700
      %v5879 = vmul.f32 %v3642, %v5702
      %v5880 = vmul.f32 %v3643, %v5706
      %v5881 = vmul.f32 %v3643, %v5708
      %v5882 = vmul.f32 %v3644, %v5712
      %v5883 = vmul.f32 %v3644, %v5714
      %v5884 = vmul.f32 %v3645, %v5718
      %v5885 = vmul.f32 %v3645, %v5720
      %v5886 = vmul.f32 %v3646, %v5724
      %v5887 = vmul.f32 %v3646, %v5726
      %v5888 = vmul.f32 %v3647, %v5730
      %v5889 = vmul.f32 %v3647, %v5732
      %v5890 = vmul.f32 %v3648, %v5736
      %v5891 = vmul.f32 %v3648, %v5738
      %v5892 = vmul.f32 %v3649, %v5742
      %v5893 = vmul.f32 %v3649, %v5744
      %v5894 = vmul.f32 %v3650, %v5748
      %v5895 = vmul.f32 %v3650, %v5750
      %v5896 = vmul.f32 %v3651, %v5754
      %v5897 = vmul.f32 %v3651, %v5756
      %v5898 = vmul.f32 %v3652, %v5760
      %v5899 = vmul.f32 %v3652, %v5762
      %v5900 = vmul.f32 %v3653, %v5766
      %v5901 = vmul.f32 %v3653, %v5768
      %v5902 = vmul.f32 %v3654, %v5772
      %v5903 = vmul.f32 %v3654, %v5774
      %v5904 = vmul.f32 %v3655, %v5778
      %v5905 = vmul.f32 %v3655, %v5780
      %v5906 = vmul.f32 %v3656, %v5784
      %v5907 = vmul.f32 %v3656, %v5786
      %v5908 = vmul.f32 %v3657, %v5790
      %v5909 = vmul.f32 %v3657, %v5792
      %v5910 = vmul.f32 %v3658, %v5796
      %v5911 = vmul.f32 %v3658, %v5798
      %v5912 = vmul.f32 %v3659, %v5802
      %v5913 = vmul.f32 %v3659, %v5804
      %v5914 = vmul.f32 %v3660, %v5808
      %v5915 = vmul.f32 %v3660, %v5810
      %v5916 = vmul.f32 %v3661, %v5814
      %v5917 = vmul.f32 %v3661, %v5816
      %v5918 = vmul.f32 %v3662, %v5820
      %v5919 = vmul.f32 %v3662, %v5822
      %v5920 = vmul.f32 %v3663, %v5826
      %v5921 = vmul.f32 %v3663, %v5828
      %v5922 = vmul.f32 %v3664, %v5832
      %v5923 = vmul.f32 %v3664, %v5834
      %v5924 = vmul.f32 %v3665, %v5838
      %v5925 = vmul.f32 %v3665, %v5840
      %v5926 = vmul.f32 %v3666, %v5844
      %v5927 = vmul.f32 %v3666, %v5846
      %v5928 = vmul.f32 %v3667, %v5850
      %v5929 = vmul.f32 %v3667, %v5852
      %v5930 = vmul.f32 %v3668, %v5856
      %v5931 = vmul.f32 %v3668, %v5858
      %v5932 = vmul.f32 %v3669, %v5862
      %v5933 = vmul.f32 %v3669, %v5864
      %v5934 = vmul.f32 %v3670, %v5868
      %v5935 = vmul.f32 %v3670, %v5870
      %v5936 = vpack.c.bf16 %v5874, %v5872
      %v5937 = vpack.c.bf16 %v5875, %v5873
      %v5938 = vpack.c.bf16 %v5878, %v5876
      %v5939 = vpack.c.bf16 %v5879, %v5877
      %v5940 = vpack.c.bf16 %v5882, %v5880
      %v5941 = vpack.c.bf16 %v5883, %v5881
      %v5942 = vpack.c.bf16 %v5886, %v5884
      %v5943 = vpack.c.bf16 %v5887, %v5885
      %v5944 = vpack.c.bf16 %v5890, %v5888
      %v5945 = vpack.c.bf16 %v5891, %v5889
      %v5946 = vpack.c.bf16 %v5894, %v5892
      %v5947 = vpack.c.bf16 %v5895, %v5893
      %v5948 = vpack.c.bf16 %v5898, %v5896
      %v5949 = vpack.c.bf16 %v5899, %v5897
      %v5950 = vpack.c.bf16 %v5902, %v5900
      %v5951 = vpack.c.bf16 %v5903, %v5901
      %v5952 = vpack.c.bf16 %v5906, %v5904
      %v5953 = vpack.c.bf16 %v5907, %v5905
      %v5954 = vpack.c.bf16 %v5910, %v5908
      %v5955 = vpack.c.bf16 %v5911, %v5909
      %v5956 = vpack.c.bf16 %v5914, %v5912
      %v5957 = vpack.c.bf16 %v5915, %v5913
      %v5958 = vpack.c.bf16 %v5918, %v5916
      %v5959 = vpack.c.bf16 %v5919, %v5917
      %v5960 = vpack.c.bf16 %v5922, %v5920
      %v5961 = vpack.c.bf16 %v5923, %v5921
      %v5962 = vpack.c.bf16 %v5926, %v5924
      %v5963 = vpack.c.bf16 %v5927, %v5925
      %v5964 = vpack.c.bf16 %v5930, %v5928
      %v5965 = vpack.c.bf16 %v5931, %v5929
      %v5966 = vpack.c.bf16 %v5934, %v5932
      %v5967 = vpack.c.bf16 %v5935, %v5933
      %v5968 = vunpack.c.l.bf16 %v5936
      %v5969 = vunpack.c.l.bf16 %v5937
      %v5970 = vunpack.c.h.bf16 %v5936
      %v5971 = vunpack.c.h.bf16 %v5937
      %v5972 = vunpack.c.l.bf16 %v5938
      %v5973 = vunpack.c.l.bf16 %v5939
      %v5974 = vunpack.c.h.bf16 %v5938
      %v5975 = vunpack.c.h.bf16 %v5939
      %v5976 = vunpack.c.l.bf16 %v5940
      %v5977 = vunpack.c.l.bf16 %v5941
      %v5978 = vunpack.c.h.bf16 %v5940
      %v5979 = vunpack.c.h.bf16 %v5941
      %v5980 = vunpack.c.l.bf16 %v5942
      %v5981 = vunpack.c.l.bf16 %v5943
      %v5982 = vunpack.c.h.bf16 %v5942
      %v5983 = vunpack.c.h.bf16 %v5943
      %v5984 = vunpack.c.l.bf16 %v5944
      %v5985 = vunpack.c.l.bf16 %v5945
      %v5986 = vunpack.c.h.bf16 %v5944
      %v5987 = vunpack.c.h.bf16 %v5945
      %v5988 = vunpack.c.l.bf16 %v5946
      %v5989 = vunpack.c.l.bf16 %v5947
      %v5990 = vunpack.c.h.bf16 %v5946
      %v5991 = vunpack.c.h.bf16 %v5947
      %v5992 = vunpack.c.l.bf16 %v5948
      %v5993 = vunpack.c.l.bf16 %v5949
      %v5994 = vunpack.c.h.bf16 %v5948
      %v5995 = vunpack.c.h.bf16 %v5949
      %v5996 = vunpack.c.l.bf16 %v5950
      %v5997 = vunpack.c.l.bf16 %v5951
      %v5998 = vunpack.c.h.bf16 %v5950
      %v5999 = vunpack.c.h.bf16 %v5951
      %v6000 = vunpack.c.l.bf16 %v5952
      %v6001 = vunpack.c.l.bf16 %v5953
      %v6002 = vunpack.c.h.bf16 %v5952
      %v6003 = vunpack.c.h.bf16 %v5953
      %v6004 = vunpack.c.l.bf16 %v5954
      %v6005 = vunpack.c.l.bf16 %v5955
      %v6006 = vunpack.c.h.bf16 %v5954
      %v6007 = vunpack.c.h.bf16 %v5955
      %v6008 = vunpack.c.l.bf16 %v5956
      %v6009 = vunpack.c.l.bf16 %v5957
      %v6010 = vunpack.c.h.bf16 %v5956
      %v6011 = vunpack.c.h.bf16 %v5957
      %v6012 = vunpack.c.l.bf16 %v5958
      %v6013 = vunpack.c.l.bf16 %v5959
      %v6014 = vunpack.c.h.bf16 %v5958
      %v6015 = vunpack.c.h.bf16 %v5959
      %v6016 = vunpack.c.l.bf16 %v5960
      %v6017 = vunpack.c.l.bf16 %v5961
      %v6018 = vunpack.c.h.bf16 %v5960
      %v6019 = vunpack.c.h.bf16 %v5961
      %v6020 = vunpack.c.l.bf16 %v5962
      %v6021 = vunpack.c.l.bf16 %v5963
      %v6022 = vunpack.c.h.bf16 %v5962
      %v6023 = vunpack.c.h.bf16 %v5963
      %v6024 = vunpack.c.l.bf16 %v5964
      %v6025 = vunpack.c.l.bf16 %v5965
      %v6026 = vunpack.c.h.bf16 %v5964
      %v6027 = vunpack.c.h.bf16 %v5965
      %v6028 = vunpack.c.l.bf16 %v5966
      %v6029 = vunpack.c.l.bf16 %v5967
      %v6030 = vunpack.c.h.bf16 %v5966
      %v6031 = vunpack.c.h.bf16 %v5967
      %v6032 = vsub.f32 %v5872, %v5968
      %v6033 = vsub.f32 %v5873, %v5969
      %v6034 = vsub.f32 %v5874, %v5970
      %v6035 = vsub.f32 %v5875, %v5971
      %v6036 = vsub.f32 %v5876, %v5972
      %v6037 = vsub.f32 %v5877, %v5973
      %v6038 = vsub.f32 %v5878, %v5974
      %v6039 = vsub.f32 %v5879, %v5975
      %v6040 = vsub.f32 %v5880, %v5976
      %v6041 = vsub.f32 %v5881, %v5977
      %v6042 = vsub.f32 %v5882, %v5978
      %v6043 = vsub.f32 %v5883, %v5979
      %v6044 = vsub.f32 %v5884, %v5980
      %v6045 = vsub.f32 %v5885, %v5981
      %v6046 = vsub.f32 %v5886, %v5982
      %v6047 = vsub.f32 %v5887, %v5983
      %v6048 = vsub.f32 %v5888, %v5984
      %v6049 = vsub.f32 %v5889, %v5985
      %v6050 = vsub.f32 %v5890, %v5986
      %v6051 = vsub.f32 %v5891, %v5987
      %v6052 = vsub.f32 %v5892, %v5988
      %v6053 = vsub.f32 %v5893, %v5989
      %v6054 = vsub.f32 %v5894, %v5990
      %v6055 = vsub.f32 %v5895, %v5991
      %v6056 = vsub.f32 %v5896, %v5992
      %v6057 = vsub.f32 %v5897, %v5993
      %v6058 = vsub.f32 %v5898, %v5994
      %v6059 = vsub.f32 %v5899, %v5995
      %v6060 = vsub.f32 %v5900, %v5996
      %v6061 = vsub.f32 %v5901, %v5997
      %v6062 = vsub.f32 %v5902, %v5998
      %v6063 = vsub.f32 %v5903, %v5999
      %v6064 = vsub.f32 %v5904, %v6000
      %v6065 = vsub.f32 %v5905, %v6001
      %v6066 = vsub.f32 %v5906, %v6002
      %v6067 = vsub.f32 %v5907, %v6003
      %v6068 = vsub.f32 %v5908, %v6004
      %v6069 = vsub.f32 %v5909, %v6005
      %v6070 = vsub.f32 %v5910, %v6006
      %v6071 = vsub.f32 %v5911, %v6007
      %v6072 = vsub.f32 %v5912, %v6008
      %v6073 = vsub.f32 %v5913, %v6009
      %v6074 = vsub.f32 %v5914, %v6010
      %v6075 = vsub.f32 %v5915, %v6011
      %v6076 = vsub.f32 %v5916, %v6012
      %v6077 = vsub.f32 %v5917, %v6013
      %v6078 = vsub.f32 %v5918, %v6014
      %v6079 = vsub.f32 %v5919, %v6015
      %v6080 = vsub.f32 %v5920, %v6016
      %v6081 = vsub.f32 %v5921, %v6017
      %v6082 = vsub.f32 %v5922, %v6018
      %v6083 = vsub.f32 %v5923, %v6019
      %v6084 = vsub.f32 %v5924, %v6020
      %v6085 = vsub.f32 %v5925, %v6021
      %v6086 = vsub.f32 %v5926, %v6022
      %v6087 = vsub.f32 %v5927, %v6023
      %v6088 = vsub.f32 %v5928, %v6024
      %v6089 = vsub.f32 %v5929, %v6025
      %v6090 = vsub.f32 %v5930, %v6026
      %v6091 = vsub.f32 %v5931, %v6027
      %v6092 = vsub.f32 %v5932, %v6028
      %v6093 = vsub.f32 %v5933, %v6029
      %v6094 = vsub.f32 %v5934, %v6030
      %v6095 = vsub.f32 %v5935, %v6031
      %v6096 = vpack.c.bf16 %v6034, %v6032
      %v6097 = vpack.c.bf16 %v6035, %v6033
      %v6098 = vpack.c.bf16 %v6038, %v6036
      %v6099 = vpack.c.bf16 %v6039, %v6037
      %v6100 = vpack.c.bf16 %v6042, %v6040
      %v6101 = vpack.c.bf16 %v6043, %v6041
      %v6102 = vpack.c.bf16 %v6046, %v6044
      %v6103 = vpack.c.bf16 %v6047, %v6045
      %v6104 = vpack.c.bf16 %v6050, %v6048
      %v6105 = vpack.c.bf16 %v6051, %v6049
      %v6106 = vpack.c.bf16 %v6054, %v6052
      %v6107 = vpack.c.bf16 %v6055, %v6053
      %v6108 = vpack.c.bf16 %v6058, %v6056
      %v6109 = vpack.c.bf16 %v6059, %v6057
      %v6110 = vpack.c.bf16 %v6062, %v6060
      %v6111 = vpack.c.bf16 %v6063, %v6061
      %v6112 = vpack.c.bf16 %v6066, %v6064
      %v6113 = vpack.c.bf16 %v6067, %v6065
      %v6114 = vpack.c.bf16 %v6070, %v6068
      %v6115 = vpack.c.bf16 %v6071, %v6069
      %v6116 = vpack.c.bf16 %v6074, %v6072
      %v6117 = vpack.c.bf16 %v6075, %v6073
      %v6118 = vpack.c.bf16 %v6078, %v6076
      %v6119 = vpack.c.bf16 %v6079, %v6077
      %v6120 = vpack.c.bf16 %v6082, %v6080
      %v6121 = vpack.c.bf16 %v6083, %v6081
      %v6122 = vpack.c.bf16 %v6086, %v6084
      %v6123 = vpack.c.bf16 %v6087, %v6085
      %v6124 = vpack.c.bf16 %v6090, %v6088
      %v6125 = vpack.c.bf16 %v6091, %v6089
      %v6126 = vpack.c.bf16 %v6094, %v6092
      %v6127 = vpack.c.bf16 %v6095, %v6093
      %6128 = vmatprep.subr.bf16.mxu0 %v6111
      %6129 = vmatpush1.bf16.msra.mxu0 %v6110
      %6130 = vmatprep.subr.bf16.mxu0 %v6109
      %6131 = vmatpush1.bf16.msra.mxu0 %v6108
      %6132 = vmatprep.subr.bf16.mxu0 %v6107
      %6133 = vmatpush1.bf16.msra.mxu0 %v6106
      %6134 = vmatprep.subr.bf16.mxu0 %v6105
      %6135 = vmatpush1.bf16.msra.mxu0 %v6104
      %6136 = vmatprep.subr.bf16.mxu0 %v6103
      %6137 = vmatpush1.bf16.msra.mxu0 %v6102
      %6138 = vmatprep.subr.bf16.mxu0 %v6101
      %6139 = vmatpush1.bf16.msra.mxu0 %v6100
      %6140 = vmatprep.subr.bf16.mxu0 %v6099
      %6141 = vmatpush1.bf16.msra.mxu0 %v6098
      %6142 = vmatprep.subr.bf16.mxu0 %v6097
      %6143 = vmatpush1.bf16.msra.mxu0 %v6096
      %6144 = vmatprep.subr.bf16.mxu0 %v6127
      %6145 = vmatpush2.bf16.msra.mxu0 %v6126
      %6146 = vmatprep.subr.bf16.mxu0 %v6125
      %6147 = vmatpush2.bf16.msra.mxu0 %v6124
      %6148 = vmatprep.subr.bf16.mxu0 %v6123
      %6149 = vmatpush2.bf16.msra.mxu0 %v6122
      %6150 = vmatprep.subr.bf16.mxu0 %v6121
      %6151 = vmatpush2.bf16.msra.mxu0 %v6120
      %6152 = vmatprep.subr.bf16.mxu0 %v6119
      %6153 = vmatpush2.bf16.msra.mxu0 %v6118
      %6154 = vmatprep.subr.bf16.mxu0 %v6117
      %6155 = vmatpush2.bf16.msra.mxu0 %v6116
      %6156 = vmatprep.subr.bf16.mxu0 %v6115
      %6157 = vmatpush2.bf16.msra.mxu0 %v6114
      %6158 = vmatprep.subr.bf16.mxu0 %v6113
      %6159 = vmatpush2.bf16.msra.mxu0 %v6112
      %6160 = vmatprep.mubr.bf16.mxu0 %v3480
      %6161 = vmatmul.mubr.bf16.gmra.mxu0 %v3479
      %v6162 = vpop.f32.mrf.mxu0
      %v6163 = vadd.f32 0.0, %v6162
      %v6164 = vpop.f32.mrf.mxu0
      %v6165 = vadd.f32 0.0, %v6164
      %v6166 = vpop.f32.mrf.mxu0
      %v6167 = vadd.f32 0.0, %v6166
      %v6168 = vpop.f32.mrf.mxu0
      %v6169 = vadd.f32 0.0, %v6168
      %6170 = vmatprep.mubr.bf16.mxu0 %v3482
      %6171 = vmatmul.mubr.bf16.gmra.mxu0 %v3481
      %v6172 = vpop.f32.mrf.mxu0
      %v6173 = vadd.f32 0.0, %v6172
      %v6174 = vpop.f32.mrf.mxu0
      %v6175 = vadd.f32 0.0, %v6174
      %v6176 = vpop.f32.mrf.mxu0
      %v6177 = vadd.f32 0.0, %v6176
      %v6178 = vpop.f32.mrf.mxu0
      %v6179 = vadd.f32 0.0, %v6178
      %6180 = vmatprep.mubr.bf16.mxu0 %v3484
      %6181 = vmatmul.mubr.bf16.gmra.mxu0 %v3483
      %v6182 = vpop.f32.mrf.mxu0
      %v6183 = vadd.f32 0.0, %v6182
      %v6184 = vpop.f32.mrf.mxu0
      %v6185 = vadd.f32 0.0, %v6184
      %v6186 = vpop.f32.mrf.mxu0
      %v6187 = vadd.f32 0.0, %v6186
      %v6188 = vpop.f32.mrf.mxu0
      %v6189 = vadd.f32 0.0, %v6188
      %6190 = vmatprep.mubr.bf16.mxu0 %v3486
      %6191 = vmatmul.mubr.bf16.gmra.mxu0 %v3485
      %v6192 = vpop.f32.mrf.mxu0
      %v6193 = vadd.f32 0.0, %v6192
      %v6194 = vpop.f32.mrf.mxu0
      %v6195 = vadd.f32 0.0, %v6194
      %v6196 = vpop.f32.mrf.mxu0
      %v6197 = vadd.f32 0.0, %v6196
      %v6198 = vpop.f32.mrf.mxu0
      %v6199 = vadd.f32 0.0, %v6198
      %6200 = vmatprep.mubr.bf16.mxu0 %v3488
      %6201 = vmatmul.mubr.bf16.gmra.mxu0 %v3487
      %v6202 = vpop.f32.mrf.mxu0
      %v6203 = vadd.f32 0.0, %v6202
      %v6204 = vpop.f32.mrf.mxu0
      %v6205 = vadd.f32 0.0, %v6204
      %v6206 = vpop.f32.mrf.mxu0
      %v6207 = vadd.f32 0.0, %v6206
      %v6208 = vpop.f32.mrf.mxu0
      %v6209 = vadd.f32 0.0, %v6208
      %6210 = vmatprep.mubr.bf16.mxu0 %v3490
      %6211 = vmatmul.mubr.bf16.gmra.mxu0 %v3489
      %v6212 = vpop.f32.mrf.mxu0
      %v6213 = vadd.f32 0.0, %v6212
      %v6214 = vpop.f32.mrf.mxu0
      %v6215 = vadd.f32 0.0, %v6214
      %v6216 = vpop.f32.mrf.mxu0
      %v6217 = vadd.f32 0.0, %v6216
      %v6218 = vpop.f32.mrf.mxu0
      %v6219 = vadd.f32 0.0, %v6218
      %6220 = vmatprep.mubr.bf16.mxu0 %v3492
      %6221 = vmatmul.mubr.bf16.gmra.mxu0 %v3491
      %v6222 = vpop.f32.mrf.mxu0
      %v6223 = vadd.f32 0.0, %v6222
      %v6224 = vpop.f32.mrf.mxu0
      %v6225 = vadd.f32 0.0, %v6224
      %v6226 = vpop.f32.mrf.mxu0
      %v6227 = vadd.f32 0.0, %v6226
      %v6228 = vpop.f32.mrf.mxu0
      %v6229 = vadd.f32 0.0, %v6228
      %6230 = vmatprep.mubr.bf16.mxu0 %v3494
      %6231 = vmatmul.mubr.bf16.gmra.mxu0 %v3493
      %v6232 = vpop.f32.mrf.mxu0
      %v6233 = vadd.f32 0.0, %v6232
      %v6234 = vpop.f32.mrf.mxu0
      %v6235 = vadd.f32 0.0, %v6234
      %v6236 = vpop.f32.mrf.mxu0
      %v6237 = vadd.f32 0.0, %v6236
      %v6238 = vpop.f32.mrf.mxu0
      %v6239 = vadd.f32 0.0, %v6238
      %6240 = vmatprep.mubr.bf16.mxu0 %v3496
      %6241 = vmatmul.mubr.bf16.gmra.mxu0 %v3495
      %v6242 = vpop.f32.mrf.mxu0
      %v6243 = vadd.f32 0.0, %v6242
      %v6244 = vpop.f32.mrf.mxu0
      %v6245 = vadd.f32 0.0, %v6244
      %v6246 = vpop.f32.mrf.mxu0
      %v6247 = vadd.f32 0.0, %v6246
      %v6248 = vpop.f32.mrf.mxu0
      %v6249 = vadd.f32 0.0, %v6248
      %6250 = vmatprep.mubr.bf16.mxu0 %v3498
      %6251 = vmatmul.mubr.bf16.gmra.mxu0 %v3497
      %v6252 = vpop.f32.mrf.mxu0
      %v6253 = vadd.f32 0.0, %v6252
      %v6254 = vpop.f32.mrf.mxu0
      %v6255 = vadd.f32 0.0, %v6254
      %v6256 = vpop.f32.mrf.mxu0
      %v6257 = vadd.f32 0.0, %v6256
      %v6258 = vpop.f32.mrf.mxu0
      %v6259 = vadd.f32 0.0, %v6258
      %6260 = vmatprep.mubr.bf16.mxu0 %v3500
      %6261 = vmatmul.mubr.bf16.gmra.mxu0 %v3499
      %v6262 = vpop.f32.mrf.mxu0
      %v6263 = vadd.f32 0.0, %v6262
      %v6264 = vpop.f32.mrf.mxu0
      %v6265 = vadd.f32 0.0, %v6264
      %v6266 = vpop.f32.mrf.mxu0
      %v6267 = vadd.f32 0.0, %v6266
      %v6268 = vpop.f32.mrf.mxu0
      %v6269 = vadd.f32 0.0, %v6268
      %6270 = vmatprep.mubr.bf16.mxu0 %v3502
      %6271 = vmatmul.mubr.bf16.gmra.mxu0 %v3501
      %v6272 = vpop.f32.mrf.mxu0
      %v6273 = vadd.f32 0.0, %v6272
      %v6274 = vpop.f32.mrf.mxu0
      %v6275 = vadd.f32 0.0, %v6274
      %v6276 = vpop.f32.mrf.mxu0
      %v6277 = vadd.f32 0.0, %v6276
      %v6278 = vpop.f32.mrf.mxu0
      %v6279 = vadd.f32 0.0, %v6278
      %6280 = vmatprep.mubr.bf16.mxu0 %v3504
      %6281 = vmatmul.mubr.bf16.gmra.mxu0 %v3503
      %v6282 = vpop.f32.mrf.mxu0
      %v6283 = vadd.f32 0.0, %v6282
      %v6284 = vpop.f32.mrf.mxu0
      %v6285 = vadd.f32 0.0, %v6284
      %v6286 = vpop.f32.mrf.mxu0
      %v6287 = vadd.f32 0.0, %v6286
      %v6288 = vpop.f32.mrf.mxu0
      %v6289 = vadd.f32 0.0, %v6288
      %6290 = vmatprep.mubr.bf16.mxu0 %v3506
      %6291 = vmatmul.mubr.bf16.gmra.mxu0 %v3505
      %v6292 = vpop.f32.mrf.mxu0
      %v6293 = vadd.f32 0.0, %v6292
      %v6294 = vpop.f32.mrf.mxu0
      %v6295 = vadd.f32 0.0, %v6294
      %v6296 = vpop.f32.mrf.mxu0
      %v6297 = vadd.f32 0.0, %v6296
      %v6298 = vpop.f32.mrf.mxu0
      %v6299 = vadd.f32 0.0, %v6298
      %6300 = vmatprep.mubr.bf16.mxu0 %v3508
      %6301 = vmatmul.mubr.bf16.gmra.mxu0 %v3507
      %v6302 = vpop.f32.mrf.mxu0
      %v6303 = vadd.f32 0.0, %v6302
      %v6304 = vpop.f32.mrf.mxu0
      %v6305 = vadd.f32 0.0, %v6304
      %v6306 = vpop.f32.mrf.mxu0
      %v6307 = vadd.f32 0.0, %v6306
      %v6308 = vpop.f32.mrf.mxu0
      %v6309 = vadd.f32 0.0, %v6308
      %6310 = vmatprep.mubr.bf16.mxu0 %v3510
      %6311 = vmatmul.mubr.bf16.gmra.mxu0 %v3509
      %v6312 = vpop.f32.mrf.mxu0
      %v6313 = vadd.f32 0.0, %v6312
      %v6314 = vpop.f32.mrf.mxu0
      %v6315 = vadd.f32 0.0, %v6314
      %v6316 = vpop.f32.mrf.mxu0
      %v6317 = vadd.f32 0.0, %v6316
      %v6318 = vpop.f32.mrf.mxu0
      %v6319 = vadd.f32 0.0, %v6318
      %6320 = vdwg.mxu0
      %6321 = vmatprep.subr.bf16.mxu0 %v5951
      %6322 = vmatpush1.bf16.msra.mxu0 %v5950
      %6323 = vmatprep.subr.bf16.mxu0 %v5949
      %6324 = vmatpush1.bf16.msra.mxu0 %v5948
      %6325 = vmatprep.subr.bf16.mxu0 %v5947
      %6326 = vmatpush1.bf16.msra.mxu0 %v5946
      %6327 = vmatprep.subr.bf16.mxu0 %v5945
      %6328 = vmatpush1.bf16.msra.mxu0 %v5944
      %6329 = vmatprep.subr.bf16.mxu0 %v5943
      %6330 = vmatpush1.bf16.msra.mxu0 %v5942
      %6331 = vmatprep.subr.bf16.mxu0 %v5941
      %6332 = vmatpush1.bf16.msra.mxu0 %v5940
      %6333 = vmatprep.subr.bf16.mxu0 %v5939
      %6334 = vmatpush1.bf16.msra.mxu0 %v5938
      %6335 = vmatprep.subr.bf16.mxu0 %v5937
      %6336 = vmatpush1.bf16.msra.mxu0 %v5936
      %6337 = vmatprep.subr.bf16.mxu0 %v5967
      %6338 = vmatpush2.bf16.msra.mxu0 %v5966
      %6339 = vmatprep.subr.bf16.mxu0 %v5965
      %6340 = vmatpush2.bf16.msra.mxu0 %v5964
      %6341 = vmatprep.subr.bf16.mxu0 %v5963
      %6342 = vmatpush2.bf16.msra.mxu0 %v5962
      %6343 = vmatprep.subr.bf16.mxu0 %v5961
      %6344 = vmatpush2.bf16.msra.mxu0 %v5960
      %6345 = vmatprep.subr.bf16.mxu0 %v5959
      %6346 = vmatpush2.bf16.msra.mxu0 %v5958
      %6347 = vmatprep.subr.bf16.mxu0 %v5957
      %6348 = vmatpush2.bf16.msra.mxu0 %v5956
      %6349 = vmatprep.subr.bf16.mxu0 %v5955
      %6350 = vmatpush2.bf16.msra.mxu0 %v5954
      %6351 = vmatprep.subr.bf16.mxu0 %v5953
      %6352 = vmatpush2.bf16.msra.mxu0 %v5952
      %6353 = vmatprep.mubr.bf16.mxu0 %v3480
      %6354 = vmatmul.mubr.bf16.gmra.mxu0 %v3479
      %v6355 = vpop.f32.mrf.mxu0
      %v6356 = vadd.f32 %v6163, %v6355
      %v6357 = vpop.f32.mrf.mxu0
      %v6358 = vadd.f32 %v6165, %v6357
      %v6359 = vpop.f32.mrf.mxu0
      %v6360 = vadd.f32 %v6167, %v6359
      %v6361 = vpop.f32.mrf.mxu0
      %v6362 = vadd.f32 %v6169, %v6361
      %6363 = vmatprep.mubr.bf16.mxu0 %v3482
      %6364 = vmatmul.mubr.bf16.gmra.mxu0 %v3481
      %v6365 = vpop.f32.mrf.mxu0
      %v6366 = vadd.f32 %v6173, %v6365
      %v6367 = vpop.f32.mrf.mxu0
      %v6368 = vadd.f32 %v6175, %v6367
      %v6369 = vpop.f32.mrf.mxu0
      %v6370 = vadd.f32 %v6177, %v6369
      %v6371 = vpop.f32.mrf.mxu0
      %v6372 = vadd.f32 %v6179, %v6371
      %6373 = vmatprep.mubr.bf16.mxu0 %v3484
      %6374 = vmatmul.mubr.bf16.gmra.mxu0 %v3483
      %v6375 = vpop.f32.mrf.mxu0
      %v6376 = vadd.f32 %v6183, %v6375
      %v6377 = vpop.f32.mrf.mxu0
      %v6378 = vadd.f32 %v6185, %v6377
      %v6379 = vpop.f32.mrf.mxu0
      %v6380 = vadd.f32 %v6187, %v6379
      %v6381 = vpop.f32.mrf.mxu0
      %v6382 = vadd.f32 %v6189, %v6381
      %6383 = vmatprep.mubr.bf16.mxu0 %v3486
      %6384 = vmatmul.mubr.bf16.gmra.mxu0 %v3485
      %v6385 = vpop.f32.mrf.mxu0
      %v6386 = vadd.f32 %v6193, %v6385
      %v6387 = vpop.f32.mrf.mxu0
      %v6388 = vadd.f32 %v6195, %v6387
      %v6389 = vpop.f32.mrf.mxu0
      %v6390 = vadd.f32 %v6197, %v6389
      %v6391 = vpop.f32.mrf.mxu0
      %v6392 = vadd.f32 %v6199, %v6391
      %6393 = vmatprep.mubr.bf16.mxu0 %v3488
      %6394 = vmatmul.mubr.bf16.gmra.mxu0 %v3487
      %v6395 = vpop.f32.mrf.mxu0
      %v6396 = vadd.f32 %v6203, %v6395
      %v6397 = vpop.f32.mrf.mxu0
      %v6398 = vadd.f32 %v6205, %v6397
      %v6399 = vpop.f32.mrf.mxu0
      %v6400 = vadd.f32 %v6207, %v6399
      %v6401 = vpop.f32.mrf.mxu0
      %v6402 = vadd.f32 %v6209, %v6401
      %6403 = vmatprep.mubr.bf16.mxu0 %v3490
      %6404 = vmatmul.mubr.bf16.gmra.mxu0 %v3489
      %v6405 = vpop.f32.mrf.mxu0
      %v6406 = vadd.f32 %v6213, %v6405
      %v6407 = vpop.f32.mrf.mxu0
      %v6408 = vadd.f32 %v6215, %v6407
      %v6409 = vpop.f32.mrf.mxu0
      %v6410 = vadd.f32 %v6217, %v6409
      %v6411 = vpop.f32.mrf.mxu0
      %v6412 = vadd.f32 %v6219, %v6411
      %6413 = vmatprep.mubr.bf16.mxu0 %v3492
      %6414 = vmatmul.mubr.bf16.gmra.mxu0 %v3491
      %v6415 = vpop.f32.mrf.mxu0
      %v6416 = vadd.f32 %v6223, %v6415
      %v6417 = vpop.f32.mrf.mxu0
      %v6418 = vadd.f32 %v6225, %v6417
      %v6419 = vpop.f32.mrf.mxu0
      %v6420 = vadd.f32 %v6227, %v6419
      %v6421 = vpop.f32.mrf.mxu0
      %v6422 = vadd.f32 %v6229, %v6421
      %6423 = vmatprep.mubr.bf16.mxu0 %v3494
      %6424 = vmatmul.mubr.bf16.gmra.mxu0 %v3493
      %v6425 = vpop.f32.mrf.mxu0
      %v6426 = vadd.f32 %v6233, %v6425
      %v6427 = vpop.f32.mrf.mxu0
      %v6428 = vadd.f32 %v6235, %v6427
      %v6429 = vpop.f32.mrf.mxu0
      %v6430 = vadd.f32 %v6237, %v6429
      %v6431 = vpop.f32.mrf.mxu0
      %v6432 = vadd.f32 %v6239, %v6431
      %6433 = vmatprep.mubr.bf16.mxu0 %v3496
      %6434 = vmatmul.mubr.bf16.gmra.mxu0 %v3495
      %v6435 = vpop.f32.mrf.mxu0
      %v6436 = vadd.f32 %v6243, %v6435
      %v6437 = vpop.f32.mrf.mxu0
      %v6438 = vadd.f32 %v6245, %v6437
      %v6439 = vpop.f32.mrf.mxu0
      %v6440 = vadd.f32 %v6247, %v6439
      %v6441 = vpop.f32.mrf.mxu0
      %v6442 = vadd.f32 %v6249, %v6441
      %6443 = vmatprep.mubr.bf16.mxu0 %v3498
      %6444 = vmatmul.mubr.bf16.gmra.mxu0 %v3497
      %v6445 = vpop.f32.mrf.mxu0
      %v6446 = vadd.f32 %v6253, %v6445
      %v6447 = vpop.f32.mrf.mxu0
      %v6448 = vadd.f32 %v6255, %v6447
      %v6449 = vpop.f32.mrf.mxu0
      %v6450 = vadd.f32 %v6257, %v6449
      %v6451 = vpop.f32.mrf.mxu0
      %v6452 = vadd.f32 %v6259, %v6451
      %6453 = vmatprep.mubr.bf16.mxu0 %v3500
      %6454 = vmatmul.mubr.bf16.gmra.mxu0 %v3499
      %v6455 = vpop.f32.mrf.mxu0
      %v6456 = vadd.f32 %v6263, %v6455
      %v6457 = vpop.f32.mrf.mxu0
      %v6458 = vadd.f32 %v6265, %v6457
      %v6459 = vpop.f32.mrf.mxu0
      %v6460 = vadd.f32 %v6267, %v6459
      %v6461 = vpop.f32.mrf.mxu0
      %v6462 = vadd.f32 %v6269, %v6461
      %6463 = vmatprep.mubr.bf16.mxu0 %v3502
      %6464 = vmatmul.mubr.bf16.gmra.mxu0 %v3501
      %v6465 = vpop.f32.mrf.mxu0
      %v6466 = vadd.f32 %v6273, %v6465
      %v6467 = vpop.f32.mrf.mxu0
      %v6468 = vadd.f32 %v6275, %v6467
      %v6469 = vpop.f32.mrf.mxu0
      %v6470 = vadd.f32 %v6277, %v6469
      %v6471 = vpop.f32.mrf.mxu0
      %v6472 = vadd.f32 %v6279, %v6471
      %6473 = vmatprep.mubr.bf16.mxu0 %v3504
      %6474 = vmatmul.mubr.bf16.gmra.mxu0 %v3503
      %v6475 = vpop.f32.mrf.mxu0
      %v6476 = vadd.f32 %v6283, %v6475
      %v6477 = vpop.f32.mrf.mxu0
      %v6478 = vadd.f32 %v6285, %v6477
      %v6479 = vpop.f32.mrf.mxu0
      %v6480 = vadd.f32 %v6287, %v6479
      %v6481 = vpop.f32.mrf.mxu0
      %v6482 = vadd.f32 %v6289, %v6481
      %6483 = vmatprep.mubr.bf16.mxu0 %v3506
      %6484 = vmatmul.mubr.bf16.gmra.mxu0 %v3505
      %v6485 = vpop.f32.mrf.mxu0
      %v6486 = vadd.f32 %v6293, %v6485
      %v6487 = vpop.f32.mrf.mxu0
      %v6488 = vadd.f32 %v6295, %v6487
      %v6489 = vpop.f32.mrf.mxu0
      %v6490 = vadd.f32 %v6297, %v6489
      %v6491 = vpop.f32.mrf.mxu0
      %v6492 = vadd.f32 %v6299, %v6491
      %6493 = vmatprep.mubr.bf16.mxu0 %v3508
      %6494 = vmatmul.mubr.bf16.gmra.mxu0 %v3507
      %v6495 = vpop.f32.mrf.mxu0
      %v6496 = vadd.f32 %v6303, %v6495
      %v6497 = vpop.f32.mrf.mxu0
      %v6498 = vadd.f32 %v6305, %v6497
      %v6499 = vpop.f32.mrf.mxu0
      %v6500 = vadd.f32 %v6307, %v6499
      %v6501 = vpop.f32.mrf.mxu0
      %v6502 = vadd.f32 %v6309, %v6501
      %6503 = vmatprep.mubr.bf16.mxu0 %v3510
      %6504 = vmatmul.mubr.bf16.gmra.mxu0 %v3509
      %v6505 = vpop.f32.mrf.mxu0
      %v6506 = vadd.f32 %v6313, %v6505
      %v6507 = vpop.f32.mrf.mxu0
      %v6508 = vadd.f32 %v6315, %v6507
      %v6509 = vpop.f32.mrf.mxu0
      %v6510 = vadd.f32 %v6317, %v6509
      %v6511 = vpop.f32.mrf.mxu0
      %v6512 = vadd.f32 %v6319, %v6511
      %6513 = vdwg.mxu0
      %v6514 = vadd.f32 %v6356, %v5872
      %v6515 = vadd.f32 %v6358, %v5873
      %v6516 = vadd.f32 %v6360, %v5874
      %v6517 = vadd.f32 %v6362, %v5875
      %v6518 = vadd.f32 %v6366, %v5876
      %v6519 = vadd.f32 %v6368, %v5877
      %v6520 = vadd.f32 %v6370, %v5878
      %v6521 = vadd.f32 %v6372, %v5879
      %v6522 = vadd.f32 %v6376, %v5880
      %v6523 = vadd.f32 %v6378, %v5881
      %v6524 = vadd.f32 %v6380, %v5882
      %v6525 = vadd.f32 %v6382, %v5883
      %v6526 = vadd.f32 %v6386, %v5884
      %v6527 = vadd.f32 %v6388, %v5885
      %v6528 = vadd.f32 %v6390, %v5886
      %v6529 = vadd.f32 %v6392, %v5887
      %v6530 = vadd.f32 %v6396, %v5888
      %v6531 = vadd.f32 %v6398, %v5889
      %v6532 = vadd.f32 %v6400, %v5890
      %v6533 = vadd.f32 %v6402, %v5891
      %v6534 = vadd.f32 %v6406, %v5892
      %v6535 = vadd.f32 %v6408, %v5893
      %v6536 = vadd.f32 %v6410, %v5894
      %v6537 = vadd.f32 %v6412, %v5895
      %v6538 = vadd.f32 %v6416, %v5896
      %v6539 = vadd.f32 %v6418, %v5897
      %v6540 = vadd.f32 %v6420, %v5898
      %v6541 = vadd.f32 %v6422, %v5899
      %v6542 = vadd.f32 %v6426, %v5900
      %v6543 = vadd.f32 %v6428, %v5901
      %v6544 = vadd.f32 %v6430, %v5902
      %v6545 = vadd.f32 %v6432, %v5903
      %v6546 = vadd.f32 %v6436, %v5904
      %v6547 = vadd.f32 %v6438, %v5905
      %v6548 = vadd.f32 %v6440, %v5906
      %v6549 = vadd.f32 %v6442, %v5907
      %v6550 = vadd.f32 %v6446, %v5908
      %v6551 = vadd.f32 %v6448, %v5909
      %v6552 = vadd.f32 %v6450, %v5910
      %v6553 = vadd.f32 %v6452, %v5911
      %v6554 = vadd.f32 %v6456, %v5912
      %v6555 = vadd.f32 %v6458, %v5913
      %v6556 = vadd.f32 %v6460, %v5914
      %v6557 = vadd.f32 %v6462, %v5915
      %v6558 = vadd.f32 %v6466, %v5916
      %v6559 = vadd.f32 %v6468, %v5917
      %v6560 = vadd.f32 %v6470, %v5918
      %v6561 = vadd.f32 %v6472, %v5919
      %v6562 = vadd.f32 %v6476, %v5920
      %v6563 = vadd.f32 %v6478, %v5921
      %v6564 = vadd.f32 %v6480, %v5922
      %v6565 = vadd.f32 %v6482, %v5923
      %v6566 = vadd.f32 %v6486, %v5924
      %v6567 = vadd.f32 %v6488, %v5925
      %v6568 = vadd.f32 %v6490, %v5926
      %v6569 = vadd.f32 %v6492, %v5927
      %v6570 = vadd.f32 %v6496, %v5928
      %v6571 = vadd.f32 %v6498, %v5929
      %v6572 = vadd.f32 %v6500, %v5930
      %v6573 = vadd.f32 %v6502, %v5931
      %v6574 = vadd.f32 %v6506, %v5932
      %v6575 = vadd.f32 %v6508, %v5933
      %v6576 = vadd.f32 %v6510, %v5934
      %v6577 = vadd.f32 %v6512, %v5935
      %v6578 = vmul.f32 %v3639, %v6514
      %v6579 = vmul.f32 %v3639, %v6515
      %v6580 = vmul.f32 %v3640, %v6516
      %v6581 = vmul.f32 %v3640, %v6517
      %v6582 = vmul.f32 %v3641, %v6518
      %v6583 = vmul.f32 %v3641, %v6519
      %v6584 = vmul.f32 %v3642, %v6520
      %v6585 = vmul.f32 %v3642, %v6521
      %v6586 = vmul.f32 %v3643, %v6522
      %v6587 = vmul.f32 %v3643, %v6523
      %v6588 = vmul.f32 %v3644, %v6524
      %v6589 = vmul.f32 %v3644, %v6525
      %v6590 = vmul.f32 %v3645, %v6526
      %v6591 = vmul.f32 %v3645, %v6527
      %v6592 = vmul.f32 %v3646, %v6528
      %v6593 = vmul.f32 %v3646, %v6529
      %v6594 = vmul.f32 %v3647, %v6530
      %v6595 = vmul.f32 %v3647, %v6531
      %v6596 = vmul.f32 %v3648, %v6532
      %v6597 = vmul.f32 %v3648, %v6533
      %v6598 = vmul.f32 %v3649, %v6534
      %v6599 = vmul.f32 %v3649, %v6535
      %v6600 = vmul.f32 %v3650, %v6536
      %v6601 = vmul.f32 %v3650, %v6537
      %v6602 = vmul.f32 %v3651, %v6538
      %v6603 = vmul.f32 %v3651, %v6539
      %v6604 = vmul.f32 %v3652, %v6540
      %v6605 = vmul.f32 %v3652, %v6541
      %v6606 = vmul.f32 %v3653, %v6542
      %v6607 = vmul.f32 %v3653, %v6543
      %v6608 = vmul.f32 %v3654, %v6544
      %v6609 = vmul.f32 %v3654, %v6545
      %v6610 = vmul.f32 %v3655, %v6546
      %v6611 = vmul.f32 %v3655, %v6547
      %v6612 = vmul.f32 %v3656, %v6548
      %v6613 = vmul.f32 %v3656, %v6549
      %v6614 = vmul.f32 %v3657, %v6550
      %v6615 = vmul.f32 %v3657, %v6551
      %v6616 = vmul.f32 %v3658, %v6552
      %v6617 = vmul.f32 %v3658, %v6553
      %v6618 = vmul.f32 %v3659, %v6554
      %v6619 = vmul.f32 %v3659, %v6555
      %v6620 = vmul.f32 %v3660, %v6556
      %v6621 = vmul.f32 %v3660, %v6557
      %v6622 = vmul.f32 %v3661, %v6558
      %v6623 = vmul.f32 %v3661, %v6559
      %v6624 = vmul.f32 %v3662, %v6560
      %v6625 = vmul.f32 %v3662, %v6561
      %v6626 = vmul.f32 %v3663, %v6562
      %v6627 = vmul.f32 %v3663, %v6563
      %v6628 = vmul.f32 %v3664, %v6564
      %v6629 = vmul.f32 %v3664, %v6565
      %v6630 = vmul.f32 %v3665, %v6566
      %v6631 = vmul.f32 %v3665, %v6567
      %v6632 = vmul.f32 %v3666, %v6568
      %v6633 = vmul.f32 %v3666, %v6569
      %v6634 = vmul.f32 %v3667, %v6570
      %v6635 = vmul.f32 %v3667, %v6571
      %v6636 = vmul.f32 %v3668, %v6572
      %v6637 = vmul.f32 %v3668, %v6573
      %v6638 = vmul.f32 %v3669, %v6574
      %v6639 = vmul.f32 %v3669, %v6575
      %v6640 = vmul.f32 %v3670, %v6576
      %v6641 = vmul.f32 %v3670, %v6577
      %v6642 = vadd.f32 %v6578, %v6579
      %6643 = vadd.xlane.f32.xlu0 %v6642
      %v6644 = vpop.xlane.xlu0 %6643
      %v6645 = vadd.f32 %v6580, %v6581
      %6646 = vadd.xlane.f32.xlu0 %v6645
      %v6647 = vpop.xlane.xlu0 %6646
      %v6648 = vadd.f32 %v6582, %v6583
      %6649 = vadd.xlane.f32.xlu0 %v6648
      %v6650 = vpop.xlane.xlu0 %6649
      %v6651 = vadd.f32 %v6584, %v6585
      %6652 = vadd.xlane.f32.xlu0 %v6651
      %v6653 = vpop.xlane.xlu0 %6652
      %v6654 = vadd.f32 %v6586, %v6587
      %6655 = vadd.xlane.f32.xlu0 %v6654
      %v6656 = vpop.xlane.xlu0 %6655
      %v6657 = vadd.f32 %v6588, %v6589
      %6658 = vadd.xlane.f32.xlu0 %v6657
      %v6659 = vpop.xlane.xlu0 %6658
      %v6660 = vadd.f32 %v6590, %v6591
      %6661 = vadd.xlane.f32.xlu0 %v6660
      %v6662 = vpop.xlane.xlu0 %6661
      %v6663 = vadd.f32 %v6592, %v6593
      %6664 = vadd.xlane.f32.xlu0 %v6663
      %v6665 = vpop.xlane.xlu0 %6664
      %v6666 = vadd.f32 %v6594, %v6595
      %6667 = vadd.xlane.f32.xlu0 %v6666
      %v6668 = vpop.xlane.xlu0 %6667
      %v6669 = vadd.f32 %v6596, %v6597
      %6670 = vadd.xlane.f32.xlu0 %v6669
      %v6671 = vpop.xlane.xlu0 %6670
      %v6672 = vadd.f32 %v6598, %v6599
      %6673 = vadd.xlane.f32.xlu0 %v6672
      %v6674 = vpop.xlane.xlu0 %6673
      %v6675 = vadd.f32 %v6600, %v6601
      %6676 = vadd.xlane.f32.xlu0 %v6675
      %v6677 = vpop.xlane.xlu0 %6676
      %v6678 = vadd.f32 %v6602, %v6603
      %6679 = vadd.xlane.f32.xlu0 %v6678
      %v6680 = vpop.xlane.xlu0 %6679
      %v6681 = vadd.f32 %v6604, %v6605
      %6682 = vadd.xlane.f32.xlu0 %v6681
      %v6683 = vpop.xlane.xlu0 %6682
      %v6684 = vadd.f32 %v6606, %v6607
      %6685 = vadd.xlane.f32.xlu0 %v6684
      %v6686 = vpop.xlane.xlu0 %6685
      %v6687 = vadd.f32 %v6608, %v6609
      %6688 = vadd.xlane.f32.xlu0 %v6687
      %v6689 = vpop.xlane.xlu0 %6688
      %v6690 = vadd.f32 %v6610, %v6611
      %6691 = vadd.xlane.f32.xlu0 %v6690
      %v6692 = vpop.xlane.xlu0 %6691
      %v6693 = vadd.f32 %v6612, %v6613
      %6694 = vadd.xlane.f32.xlu0 %v6693
      %v6695 = vpop.xlane.xlu0 %6694
      %v6696 = vadd.f32 %v6614, %v6615
      %6697 = vadd.xlane.f32.xlu0 %v6696
      %v6698 = vpop.xlane.xlu0 %6697
      %v6699 = vadd.f32 %v6616, %v6617
      %6700 = vadd.xlane.f32.xlu0 %v6699
      %v6701 = vpop.xlane.xlu0 %6700
      %v6702 = vadd.f32 %v6618, %v6619
      %6703 = vadd.xlane.f32.xlu0 %v6702
      %v6704 = vpop.xlane.xlu0 %6703
      %v6705 = vadd.f32 %v6620, %v6621
      %6706 = vadd.xlane.f32.xlu0 %v6705
      %v6707 = vpop.xlane.xlu0 %6706
      %v6708 = vadd.f32 %v6622, %v6623
      %6709 = vadd.xlane.f32.xlu0 %v6708
      %v6710 = vpop.xlane.xlu0 %6709
      %v6711 = vadd.f32 %v6624, %v6625
      %6712 = vadd.xlane.f32.xlu0 %v6711
      %v6713 = vpop.xlane.xlu0 %6712
      %v6714 = vadd.f32 %v6626, %v6627
      %6715 = vadd.xlane.f32.xlu0 %v6714
      %v6716 = vpop.xlane.xlu0 %6715
      %v6717 = vadd.f32 %v6628, %v6629
      %6718 = vadd.xlane.f32.xlu0 %v6717
      %v6719 = vpop.xlane.xlu0 %6718
      %v6720 = vadd.f32 %v6630, %v6631
      %6721 = vadd.xlane.f32.xlu0 %v6720
      %v6722 = vpop.xlane.xlu0 %6721
      %v6723 = vadd.f32 %v6632, %v6633
      %6724 = vadd.xlane.f32.xlu0 %v6723
      %v6725 = vpop.xlane.xlu0 %6724
      %v6726 = vadd.f32 %v6634, %v6635
      %6727 = vadd.xlane.f32.xlu0 %v6726
      %v6728 = vpop.xlane.xlu0 %6727
      %v6729 = vadd.f32 %v6636, %v6637
      %6730 = vadd.xlane.f32.xlu0 %v6729
      %v6731 = vpop.xlane.xlu0 %6730
      %v6732 = vadd.f32 %v6638, %v6639
      %6733 = vadd.xlane.f32.xlu0 %v6732
      %v6734 = vpop.xlane.xlu0 %6733
      %v6735 = vadd.f32 %v6640, %v6641
      %6736 = vadd.xlane.f32.xlu0 %v6735
      %v6737 = vpop.xlane.xlu0 %6736
      %v6738 = vmul.f32 %v6644, %v4810
      %v6739 = vmul.f32 %v6647, %v4810
      %v6740 = vmul.f32 %v6650, %v4810
      %v6741 = vmul.f32 %v6653, %v4810
      %v6742 = vmul.f32 %v6656, %v4810
      %v6743 = vmul.f32 %v6659, %v4810
      %v6744 = vmul.f32 %v6662, %v4810
      %v6745 = vmul.f32 %v6665, %v4810
      %v6746 = vmul.f32 %v6668, %v4810
      %v6747 = vmul.f32 %v6671, %v4810
      %v6748 = vmul.f32 %v6674, %v4810
      %v6749 = vmul.f32 %v6677, %v4810
      %v6750 = vmul.f32 %v6680, %v4810
      %v6751 = vmul.f32 %v6683, %v4810
      %v6752 = vmul.f32 %v6686, %v4810
      %v6753 = vmul.f32 %v6689, %v4810
      %v6754 = vmul.f32 %v6692, %v4810
      %v6755 = vmul.f32 %v6695, %v4810
      %v6756 = vmul.f32 %v6698, %v4810
      %v6757 = vmul.f32 %v6701, %v4810
      %v6758 = vmul.f32 %v6704, %v4810
      %v6759 = vmul.f32 %v6707, %v4810
      %v6760 = vmul.f32 %v6710, %v4810
      %v6761 = vmul.f32 %v6713, %v4810
      %v6762 = vmul.f32 %v6716, %v4810
      %v6763 = vmul.f32 %v6719, %v4810
      %v6764 = vmul.f32 %v6722, %v4810
      %v6765 = vmul.f32 %v6725, %v4810
      %v6766 = vmul.f32 %v6728, %v4810
      %v6767 = vmul.f32 %v6731, %v4810
      %v6768 = vmul.f32 %v6734, %v4810
      %v6769 = vmul.f32 %v6737, %v4810
      %v6770 = vmul.f32 %v6578, %v6578
      %v6771 = vmul.f32 %v6579, %v6579
      %v6772 = vmul.f32 %v6580, %v6580
      %v6773 = vmul.f32 %v6581, %v6581
      %v6774 = vmul.f32 %v6582, %v6582
      %v6775 = vmul.f32 %v6583, %v6583
      %v6776 = vmul.f32 %v6584, %v6584
      %v6777 = vmul.f32 %v6585, %v6585
      %v6778 = vmul.f32 %v6586, %v6586
      %v6779 = vmul.f32 %v6587, %v6587
      %v6780 = vmul.f32 %v6588, %v6588
      %v6781 = vmul.f32 %v6589, %v6589
      %v6782 = vmul.f32 %v6590, %v6590
      %v6783 = vmul.f32 %v6591, %v6591
      %v6784 = vmul.f32 %v6592, %v6592
      %v6785 = vmul.f32 %v6593, %v6593
      %v6786 = vmul.f32 %v6594, %v6594
      %v6787 = vmul.f32 %v6595, %v6595
      %v6788 = vmul.f32 %v6596, %v6596
      %v6789 = vmul.f32 %v6597, %v6597
      %v6790 = vmul.f32 %v6598, %v6598
      %v6791 = vmul.f32 %v6599, %v6599
      %v6792 = vmul.f32 %v6600, %v6600
      %v6793 = vmul.f32 %v6601, %v6601
      %v6794 = vmul.f32 %v6602, %v6602
      %v6795 = vmul.f32 %v6603, %v6603
      %v6796 = vmul.f32 %v6604, %v6604
      %v6797 = vmul.f32 %v6605, %v6605
      %v6798 = vmul.f32 %v6606, %v6606
      %v6799 = vmul.f32 %v6607, %v6607
      %v6800 = vmul.f32 %v6608, %v6608
      %v6801 = vmul.f32 %v6609, %v6609
      %v6802 = vmul.f32 %v6610, %v6610
      %v6803 = vmul.f32 %v6611, %v6611
      %v6804 = vmul.f32 %v6612, %v6612
      %v6805 = vmul.f32 %v6613, %v6613
      %v6806 = vmul.f32 %v6614, %v6614
      %v6807 = vmul.f32 %v6615, %v6615
      %v6808 = vmul.f32 %v6616, %v6616
      %v6809 = vmul.f32 %v6617, %v6617
      %v6810 = vmul.f32 %v6618, %v6618
      %v6811 = vmul.f32 %v6619, %v6619
      %v6812 = vmul.f32 %v6620, %v6620
      %v6813 = vmul.f32 %v6621, %v6621
      %v6814 = vmul.f32 %v6622, %v6622
      %v6815 = vmul.f32 %v6623, %v6623
      %v6816 = vmul.f32 %v6624, %v6624
      %v6817 = vmul.f32 %v6625, %v6625
      %v6818 = vmul.f32 %v6626, %v6626
      %v6819 = vmul.f32 %v6627, %v6627
      %v6820 = vmul.f32 %v6628, %v6628
      %v6821 = vmul.f32 %v6629, %v6629
      %v6822 = vmul.f32 %v6630, %v6630
      %v6823 = vmul.f32 %v6631, %v6631
      %v6824 = vmul.f32 %v6632, %v6632
      %v6825 = vmul.f32 %v6633, %v6633
      %v6826 = vmul.f32 %v6634, %v6634
      %v6827 = vmul.f32 %v6635, %v6635
      %v6828 = vmul.f32 %v6636, %v6636
      %v6829 = vmul.f32 %v6637, %v6637
      %v6830 = vmul.f32 %v6638, %v6638
      %v6831 = vmul.f32 %v6639, %v6639
      %v6832 = vmul.f32 %v6640, %v6640
      %v6833 = vmul.f32 %v6641, %v6641
      %v6834 = vadd.f32 %v6770, %v6771
      %6835 = vadd.xlane.f32.xlu0 %v6834
      %v6836 = vpop.xlane.xlu0 %6835
      %v6837 = vadd.f32 %v6772, %v6773
      %6838 = vadd.xlane.f32.xlu0 %v6837
      %v6839 = vpop.xlane.xlu0 %6838
      %v6840 = vadd.f32 %v6774, %v6775
      %6841 = vadd.xlane.f32.xlu0 %v6840
      %v6842 = vpop.xlane.xlu0 %6841
      %v6843 = vadd.f32 %v6776, %v6777
      %6844 = vadd.xlane.f32.xlu0 %v6843
      %v6845 = vpop.xlane.xlu0 %6844
      %v6846 = vadd.f32 %v6778, %v6779
      %6847 = vadd.xlane.f32.xlu0 %v6846
      %v6848 = vpop.xlane.xlu0 %6847
      %v6849 = vadd.f32 %v6780, %v6781
      %6850 = vadd.xlane.f32.xlu0 %v6849
      %v6851 = vpop.xlane.xlu0 %6850
      %v6852 = vadd.f32 %v6782, %v6783
      %6853 = vadd.xlane.f32.xlu0 %v6852
      %v6854 = vpop.xlane.xlu0 %6853
      %v6855 = vadd.f32 %v6784, %v6785
      %6856 = vadd.xlane.f32.xlu0 %v6855
      %v6857 = vpop.xlane.xlu0 %6856
      %v6858 = vadd.f32 %v6786, %v6787
      %6859 = vadd.xlane.f32.xlu0 %v6858
      %v6860 = vpop.xlane.xlu0 %6859
      %v6861 = vadd.f32 %v6788, %v6789
      %6862 = vadd.xlane.f32.xlu0 %v6861
      %v6863 = vpop.xlane.xlu0 %6862
      %v6864 = vadd.f32 %v6790, %v6791
      %6865 = vadd.xlane.f32.xlu0 %v6864
      %v6866 = vpop.xlane.xlu0 %6865
      %v6867 = vadd.f32 %v6792, %v6793
      %6868 = vadd.xlane.f32.xlu0 %v6867
      %v6869 = vpop.xlane.xlu0 %6868
      %v6870 = vadd.f32 %v6794, %v6795
      %6871 = vadd.xlane.f32.xlu0 %v6870
      %v6872 = vpop.xlane.xlu0 %6871
      %v6873 = vadd.f32 %v6796, %v6797
      %6874 = vadd.xlane.f32.xlu0 %v6873
      %v6875 = vpop.xlane.xlu0 %6874
      %v6876 = vadd.f32 %v6798, %v6799
      %6877 = vadd.xlane.f32.xlu0 %v6876
      %v6878 = vpop.xlane.xlu0 %6877
      %v6879 = vadd.f32 %v6800, %v6801
      %6880 = vadd.xlane.f32.xlu0 %v6879
      %v6881 = vpop.xlane.xlu0 %6880
      %v6882 = vadd.f32 %v6802, %v6803
      %6883 = vadd.xlane.f32.xlu0 %v6882
      %v6884 = vpop.xlane.xlu0 %6883
      %v6885 = vadd.f32 %v6804, %v6805
      %6886 = vadd.xlane.f32.xlu0 %v6885
      %v6887 = vpop.xlane.xlu0 %6886
      %v6888 = vadd.f32 %v6806, %v6807
      %6889 = vadd.xlane.f32.xlu0 %v6888
      %v6890 = vpop.xlane.xlu0 %6889
      %v6891 = vadd.f32 %v6808, %v6809
      %6892 = vadd.xlane.f32.xlu0 %v6891
      %v6893 = vpop.xlane.xlu0 %6892
      %v6894 = vadd.f32 %v6810, %v6811
      %6895 = vadd.xlane.f32.xlu0 %v6894
      %v6896 = vpop.xlane.xlu0 %6895
      %v6897 = vadd.f32 %v6812, %v6813
      %6898 = vadd.xlane.f32.xlu0 %v6897
      %v6899 = vpop.xlane.xlu0 %6898
      %v6900 = vadd.f32 %v6814, %v6815
      %6901 = vadd.xlane.f32.xlu0 %v6900
      %v6902 = vpop.xlane.xlu0 %6901
      %v6903 = vadd.f32 %v6816, %v6817
      %6904 = vadd.xlane.f32.xlu0 %v6903
      %v6905 = vpop.xlane.xlu0 %6904
      %v6906 = vadd.f32 %v6818, %v6819
      %6907 = vadd.xlane.f32.xlu0 %v6906
      %v6908 = vpop.xlane.xlu0 %6907
      %v6909 = vadd.f32 %v6820, %v6821
      %6910 = vadd.xlane.f32.xlu0 %v6909
      %v6911 = vpop.xlane.xlu0 %6910
      %v6912 = vadd.f32 %v6822, %v6823
      %6913 = vadd.xlane.f32.xlu0 %v6912
      %v6914 = vpop.xlane.xlu0 %6913
      %v6915 = vadd.f32 %v6824, %v6825
      %6916 = vadd.xlane.f32.xlu0 %v6915
      %v6917 = vpop.xlane.xlu0 %6916
      %v6918 = vadd.f32 %v6826, %v6827
      %6919 = vadd.xlane.f32.xlu0 %v6918
      %v6920 = vpop.xlane.xlu0 %6919
      %v6921 = vadd.f32 %v6828, %v6829
      %6922 = vadd.xlane.f32.xlu0 %v6921
      %v6923 = vpop.xlane.xlu0 %6922
      %v6924 = vadd.f32 %v6830, %v6831
      %6925 = vadd.xlane.f32.xlu0 %v6924
      %v6926 = vpop.xlane.xlu0 %6925
      %v6927 = vadd.f32 %v6832, %v6833
      %6928 = vadd.xlane.f32.xlu0 %v6927
      %v6929 = vpop.xlane.xlu0 %6928
      %v6930 = vmul.f32 %v6836, %v4810
      %v6931 = vmul.f32 %v6839, %v4810
      %v6932 = vmul.f32 %v6842, %v4810
      %v6933 = vmul.f32 %v6845, %v4810
      %v6934 = vmul.f32 %v6848, %v4810
      %v6935 = vmul.f32 %v6851, %v4810
      %v6936 = vmul.f32 %v6854, %v4810
      %v6937 = vmul.f32 %v6857, %v4810
      %v6938 = vmul.f32 %v6860, %v4810
      %v6939 = vmul.f32 %v6863, %v4810
      %v6940 = vmul.f32 %v6866, %v4810
      %v6941 = vmul.f32 %v6869, %v4810
      %v6942 = vmul.f32 %v6872, %v4810
      %v6943 = vmul.f32 %v6875, %v4810
      %v6944 = vmul.f32 %v6878, %v4810
      %v6945 = vmul.f32 %v6881, %v4810
      %v6946 = vmul.f32 %v6884, %v4810
      %v6947 = vmul.f32 %v6887, %v4810
      %v6948 = vmul.f32 %v6890, %v4810
      %v6949 = vmul.f32 %v6893, %v4810
      %v6950 = vmul.f32 %v6896, %v4810
      %v6951 = vmul.f32 %v6899, %v4810
      %v6952 = vmul.f32 %v6902, %v4810
      %v6953 = vmul.f32 %v6905, %v4810
      %v6954 = vmul.f32 %v6908, %v4810
      %v6955 = vmul.f32 %v6911, %v4810
      %v6956 = vmul.f32 %v6914, %v4810
      %v6957 = vmul.f32 %v6917, %v4810
      %v6958 = vmul.f32 %v6920, %v4810
      %v6959 = vmul.f32 %v6923, %v4810
      %v6960 = vmul.f32 %v6926, %v4810
      %v6961 = vmul.f32 %v6929, %v4810
      %v6962 = vmul.f32 %v6738, %v6738
      %v6963 = vmul.f32 %v6739, %v6739
      %v6964 = vmul.f32 %v6740, %v6740
      %v6965 = vmul.f32 %v6741, %v6741
      %v6966 = vmul.f32 %v6742, %v6742
      %v6967 = vmul.f32 %v6743, %v6743
      %v6968 = vmul.f32 %v6744, %v6744
      %v6969 = vmul.f32 %v6745, %v6745
      %v6970 = vmul.f32 %v6746, %v6746
      %v6971 = vmul.f32 %v6747, %v6747
      %v6972 = vmul.f32 %v6748, %v6748
      %v6973 = vmul.f32 %v6749, %v6749
      %v6974 = vmul.f32 %v6750, %v6750
      %v6975 = vmul.f32 %v6751, %v6751
      %v6976 = vmul.f32 %v6752, %v6752
      %v6977 = vmul.f32 %v6753, %v6753
      %v6978 = vmul.f32 %v6754, %v6754
      %v6979 = vmul.f32 %v6755, %v6755
      %v6980 = vmul.f32 %v6756, %v6756
      %v6981 = vmul.f32 %v6757, %v6757
      %v6982 = vmul.f32 %v6758, %v6758
      %v6983 = vmul.f32 %v6759, %v6759
      %v6984 = vmul.f32 %v6760, %v6760
      %v6985 = vmul.f32 %v6761, %v6761
      %v6986 = vmul.f32 %v6762, %v6762
      %v6987 = vmul.f32 %v6763, %v6763
      %v6988 = vmul.f32 %v6764, %v6764
      %v6989 = vmul.f32 %v6765, %v6765
      %v6990 = vmul.f32 %v6766, %v6766
      %v6991 = vmul.f32 %v6767, %v6767
      %v6992 = vmul.f32 %v6768, %v6768
      %v6993 = vmul.f32 %v6769, %v6769
      %v6994 = vsub.f32 %v6930, %v6962
      %v6995 = vsub.f32 %v6931, %v6963
      %v6996 = vsub.f32 %v6932, %v6964
      %v6997 = vsub.f32 %v6933, %v6965
      %v6998 = vsub.f32 %v6934, %v6966
      %v6999 = vsub.f32 %v6935, %v6967
      %v7000 = vsub.f32 %v6936, %v6968
      %v7001 = vsub.f32 %v6937, %v6969
      %v7002 = vsub.f32 %v6938, %v6970
      %v7003 = vsub.f32 %v6939, %v6971
      %v7004 = vsub.f32 %v6940, %v6972
      %v7005 = vsub.f32 %v6941, %v6973
      %v7006 = vsub.f32 %v6942, %v6974
      %v7007 = vsub.f32 %v6943, %v6975
      %v7008 = vsub.f32 %v6944, %v6976
      %v7009 = vsub.f32 %v6945, %v6977
      %v7010 = vsub.f32 %v6946, %v6978
      %v7011 = vsub.f32 %v6947, %v6979
      %v7012 = vsub.f32 %v6948, %v6980
      %v7013 = vsub.f32 %v6949, %v6981
      %v7014 = vsub.f32 %v6950, %v6982
      %v7015 = vsub.f32 %v6951, %v6983
      %v7016 = vsub.f32 %v6952, %v6984
      %v7017 = vsub.f32 %v6953, %v6985
      %v7018 = vsub.f32 %v6954, %v6986
      %v7019 = vsub.f32 %v6955, %v6987
      %v7020 = vsub.f32 %v6956, %v6988
      %v7021 = vsub.f32 %v6957, %v6989
      %v7022 = vsub.f32 %v6958, %v6990
      %v7023 = vsub.f32 %v6959, %v6991
      %v7024 = vsub.f32 %v6960, %v6992
      %v7025 = vsub.f32 %v6961, %v6993
      %v7026 = vmax.f32 %v6994, 0.0
      %v7027 = vmax.f32 %v6995, 0.0
      %v7028 = vmax.f32 %v6996, 0.0
      %v7029 = vmax.f32 %v6997, 0.0
      %v7030 = vmax.f32 %v6998, 0.0
      %v7031 = vmax.f32 %v6999, 0.0
      %v7032 = vmax.f32 %v7000, 0.0
      %v7033 = vmax.f32 %v7001, 0.0
      %v7034 = vmax.f32 %v7002, 0.0
      %v7035 = vmax.f32 %v7003, 0.0
      %v7036 = vmax.f32 %v7004, 0.0
      %v7037 = vmax.f32 %v7005, 0.0
      %v7038 = vmax.f32 %v7006, 0.0
      %v7039 = vmax.f32 %v7007, 0.0
      %v7040 = vmax.f32 %v7008, 0.0
      %v7041 = vmax.f32 %v7009, 0.0
      %v7042 = vmax.f32 %v7010, 0.0
      %v7043 = vmax.f32 %v7011, 0.0
      %v7044 = vmax.f32 %v7012, 0.0
      %v7045 = vmax.f32 %v7013, 0.0
      %v7046 = vmax.f32 %v7014, 0.0
      %v7047 = vmax.f32 %v7015, 0.0
      %v7048 = vmax.f32 %v7016, 0.0
      %v7049 = vmax.f32 %v7017, 0.0
      %v7050 = vmax.f32 %v7018, 0.0
      %v7051 = vmax.f32 %v7019, 0.0
      %v7052 = vmax.f32 %v7020, 0.0
      %v7053 = vmax.f32 %v7021, 0.0
      %v7054 = vmax.f32 %v7022, 0.0
      %v7055 = vmax.f32 %v7023, 0.0
      %v7056 = vmax.f32 %v7024, 0.0
      %v7057 = vmax.f32 %v7025, 0.0
      %v7058 = vsub.f32 %v6578, %v6738
      %v7059 = vsub.f32 %v6579, %v6738
      %v7060 = vsub.f32 %v6580, %v6739
      %v7061 = vsub.f32 %v6581, %v6739
      %v7062 = vsub.f32 %v6582, %v6740
      %v7063 = vsub.f32 %v6583, %v6740
      %v7064 = vsub.f32 %v6584, %v6741
      %v7065 = vsub.f32 %v6585, %v6741
      %v7066 = vsub.f32 %v6586, %v6742
      %v7067 = vsub.f32 %v6587, %v6742
      %v7068 = vsub.f32 %v6588, %v6743
      %v7069 = vsub.f32 %v6589, %v6743
      %v7070 = vsub.f32 %v6590, %v6744
      %v7071 = vsub.f32 %v6591, %v6744
      %v7072 = vsub.f32 %v6592, %v6745
      %v7073 = vsub.f32 %v6593, %v6745
      %v7074 = vsub.f32 %v6594, %v6746
      %v7075 = vsub.f32 %v6595, %v6746
      %v7076 = vsub.f32 %v6596, %v6747
      %v7077 = vsub.f32 %v6597, %v6747
      %v7078 = vsub.f32 %v6598, %v6748
      %v7079 = vsub.f32 %v6599, %v6748
      %v7080 = vsub.f32 %v6600, %v6749
      %v7081 = vsub.f32 %v6601, %v6749
      %v7082 = vsub.f32 %v6602, %v6750
      %v7083 = vsub.f32 %v6603, %v6750
      %v7084 = vsub.f32 %v6604, %v6751
      %v7085 = vsub.f32 %v6605, %v6751
      %v7086 = vsub.f32 %v6606, %v6752
      %v7087 = vsub.f32 %v6607, %v6752
      %v7088 = vsub.f32 %v6608, %v6753
      %v7089 = vsub.f32 %v6609, %v6753
      %v7090 = vsub.f32 %v6610, %v6754
      %v7091 = vsub.f32 %v6611, %v6754
      %v7092 = vsub.f32 %v6612, %v6755
      %v7093 = vsub.f32 %v6613, %v6755
      %v7094 = vsub.f32 %v6614, %v6756
      %v7095 = vsub.f32 %v6615, %v6756
      %v7096 = vsub.f32 %v6616, %v6757
      %v7097 = vsub.f32 %v6617, %v6757
      %v7098 = vsub.f32 %v6618, %v6758
      %v7099 = vsub.f32 %v6619, %v6758
      %v7100 = vsub.f32 %v6620, %v6759
      %v7101 = vsub.f32 %v6621, %v6759
      %v7102 = vsub.f32 %v6622, %v6760
      %v7103 = vsub.f32 %v6623, %v6760
      %v7104 = vsub.f32 %v6624, %v6761
      %v7105 = vsub.f32 %v6625, %v6761
      %v7106 = vsub.f32 %v6626, %v6762
      %v7107 = vsub.f32 %v6627, %v6762
      %v7108 = vsub.f32 %v6628, %v6763
      %v7109 = vsub.f32 %v6629, %v6763
      %v7110 = vsub.f32 %v6630, %v6764
      %v7111 = vsub.f32 %v6631, %v6764
      %v7112 = vsub.f32 %v6632, %v6765
      %v7113 = vsub.f32 %v6633, %v6765
      %v7114 = vsub.f32 %v6634, %v6766
      %v7115 = vsub.f32 %v6635, %v6766
      %v7116 = vsub.f32 %v6636, %v6767
      %v7117 = vsub.f32 %v6637, %v6767
      %v7118 = vsub.f32 %v6638, %v6768
      %v7119 = vsub.f32 %v6639, %v6768
      %v7120 = vsub.f32 %v6640, %v6769
      %v7121 = vsub.f32 %v6641, %v6769
      %v7122 = vadd.f32 %v7026, 1e-05
      %v7123 = vadd.f32 %v7027, 1e-05
      %v7124 = vadd.f32 %v7028, 1e-05
      %v7125 = vadd.f32 %v7029, 1e-05
      %v7126 = vadd.f32 %v7030, 1e-05
      %v7127 = vadd.f32 %v7031, 1e-05
      %v7128 = vadd.f32 %v7032, 1e-05
      %v7129 = vadd.f32 %v7033, 1e-05
      %v7130 = vadd.f32 %v7034, 1e-05
      %v7131 = vadd.f32 %v7035, 1e-05
      %v7132 = vadd.f32 %v7036, 1e-05
      %v7133 = vadd.f32 %v7037, 1e-05
      %v7134 = vadd.f32 %v7038, 1e-05
      %v7135 = vadd.f32 %v7039, 1e-05
      %v7136 = vadd.f32 %v7040, 1e-05
      %v7137 = vadd.f32 %v7041, 1e-05
      %v7138 = vadd.f32 %v7042, 1e-05
      %v7139 = vadd.f32 %v7043, 1e-05
      %v7140 = vadd.f32 %v7044, 1e-05
      %v7141 = vadd.f32 %v7045, 1e-05
      %v7142 = vadd.f32 %v7046, 1e-05
      %v7143 = vadd.f32 %v7047, 1e-05
      %v7144 = vadd.f32 %v7048, 1e-05
      %v7145 = vadd.f32 %v7049, 1e-05
      %v7146 = vadd.f32 %v7050, 1e-05
      %v7147 = vadd.f32 %v7051, 1e-05
      %v7148 = vadd.f32 %v7052, 1e-05
      %v7149 = vadd.f32 %v7053, 1e-05
      %v7150 = vadd.f32 %v7054, 1e-05
      %v7151 = vadd.f32 %v7055, 1e-05
      %v7152 = vadd.f32 %v7056, 1e-05
      %v7153 = vadd.f32 %v7057, 1e-05
      %v7154 = vrsqrt.pop %v7122
      %v7155 = vrsqrt.pop %v7123
      %v7156 = vrsqrt.pop %v7124
      %v7157 = vrsqrt.pop %v7125
      %v7158 = vrsqrt.pop %v7126
      %v7159 = vrsqrt.pop %v7127
      %v7160 = vrsqrt.pop %v7128
      %v7161 = vrsqrt.pop %v7129
      %v7162 = vrsqrt.pop %v7130
      %v7163 = vrsqrt.pop %v7131
      %v7164 = vrsqrt.pop %v7132
      %v7165 = vrsqrt.pop %v7133
      %v7166 = vrsqrt.pop %v7134
      %v7167 = vrsqrt.pop %v7135
      %v7168 = vrsqrt.pop %v7136
      %v7169 = vrsqrt.pop %v7137
      %v7170 = vrsqrt.pop %v7138
      %v7171 = vrsqrt.pop %v7139
      %v7172 = vrsqrt.pop %v7140
      %v7173 = vrsqrt.pop %v7141
      %v7174 = vrsqrt.pop %v7142
      %v7175 = vrsqrt.pop %v7143
      %v7176 = vrsqrt.pop %v7144
      %v7177 = vrsqrt.pop %v7145
      %v7178 = vrsqrt.pop %v7146
      %v7179 = vrsqrt.pop %v7147
      %v7180 = vrsqrt.pop %v7148
      %v7181 = vrsqrt.pop %v7149
      %v7182 = vrsqrt.pop %v7150
      %v7183 = vrsqrt.pop %v7151
      %v7184 = vrsqrt.pop %v7152
      %v7185 = vrsqrt.pop %v7153
      %v7186 = vmul.f32 %v7058, %v7154
      %v7187 = vmul.f32 %v7059, %v7154
      %v7188 = vmul.f32 %v7060, %v7155
      %v7189 = vmul.f32 %v7061, %v7155
      %v7190 = vmul.f32 %v7062, %v7156
      %v7191 = vmul.f32 %v7063, %v7156
      %v7192 = vmul.f32 %v7064, %v7157
      %v7193 = vmul.f32 %v7065, %v7157
      %v7194 = vmul.f32 %v7066, %v7158
      %v7195 = vmul.f32 %v7067, %v7158
      %v7196 = vmul.f32 %v7068, %v7159
      %v7197 = vmul.f32 %v7069, %v7159
      %v7198 = vmul.f32 %v7070, %v7160
      %v7199 = vmul.f32 %v7071, %v7160
      %v7200 = vmul.f32 %v7072, %v7161
      %v7201 = vmul.f32 %v7073, %v7161
      %v7202 = vmul.f32 %v7074, %v7162
      %v7203 = vmul.f32 %v7075, %v7162
      %v7204 = vmul.f32 %v7076, %v7163
      %v7205 = vmul.f32 %v7077, %v7163
      %v7206 = vmul.f32 %v7078, %v7164
      %v7207 = vmul.f32 %v7079, %v7164
      %v7208 = vmul.f32 %v7080, %v7165
      %v7209 = vmul.f32 %v7081, %v7165
      %v7210 = vmul.f32 %v7082, %v7166
      %v7211 = vmul.f32 %v7083, %v7166
      %v7212 = vmul.f32 %v7084, %v7167
      %v7213 = vmul.f32 %v7085, %v7167
      %v7214 = vmul.f32 %v7086, %v7168
      %v7215 = vmul.f32 %v7087, %v7168
      %v7216 = vmul.f32 %v7088, %v7169
      %v7217 = vmul.f32 %v7089, %v7169
      %v7218 = vmul.f32 %v7090, %v7170
      %v7219 = vmul.f32 %v7091, %v7170
      %v7220 = vmul.f32 %v7092, %v7171
      %v7221 = vmul.f32 %v7093, %v7171
      %v7222 = vmul.f32 %v7094, %v7172
      %v7223 = vmul.f32 %v7095, %v7172
      %v7224 = vmul.f32 %v7096, %v7173
      %v7225 = vmul.f32 %v7097, %v7173
      %v7226 = vmul.f32 %v7098, %v7174
      %v7227 = vmul.f32 %v7099, %v7174
      %v7228 = vmul.f32 %v7100, %v7175
      %v7229 = vmul.f32 %v7101, %v7175
      %v7230 = vmul.f32 %v7102, %v7176
      %v7231 = vmul.f32 %v7103, %v7176
      %v7232 = vmul.f32 %v7104, %v7177
      %v7233 = vmul.f32 %v7105, %v7177
      %v7234 = vmul.f32 %v7106, %v7178
      %v7235 = vmul.f32 %v7107, %v7178
      %v7236 = vmul.f32 %v7108, %v7179
      %v7237 = vmul.f32 %v7109, %v7179
      %v7238 = vmul.f32 %v7110, %v7180
      %v7239 = vmul.f32 %v7111, %v7180
      %v7240 = vmul.f32 %v7112, %v7181
      %v7241 = vmul.f32 %v7113, %v7181
      %v7242 = vmul.f32 %v7114, %v7182
      %v7243 = vmul.f32 %v7115, %v7182
      %v7244 = vmul.f32 %v7116, %v7183
      %v7245 = vmul.f32 %v7117, %v7183
      %v7246 = vmul.f32 %v7118, %v7184
      %v7247 = vmul.f32 %v7119, %v7184
      %v7248 = vmul.f32 %v7120, %v7185
      %v7249 = vmul.f32 %v7121, %v7185
      %v7250 = vld [vmem:[%s8] sm:$0x3]
      %v7252 = vlaneseq
      %v7253 = vshrl.u32 %v7252, 7
      %v7254 = vsub.s32 0, %v7253
      %v7255 = vrot.slane %v7250, %v7254
      %v7256 = vlaneseq
      %v7257 = vshrl.u32 %v7256, 7
      %v7258 = vsub.s32 1, %v7257
      %v7259 = vrot.slane %v7250, %v7258
      %v7262 = vmul.f32 %v7186, %v7255
      %v7263 = vmul.f32 %v7187, %v7259
      %v7264 = vmul.f32 %v7188, %v7255
      %v7265 = vmul.f32 %v7189, %v7259
      %v7266 = vmul.f32 %v7190, %v7255
      %v7267 = vmul.f32 %v7191, %v7259
      %v7268 = vmul.f32 %v7192, %v7255
      %v7269 = vmul.f32 %v7193, %v7259
      %v7270 = vmul.f32 %v7194, %v7255
      %v7271 = vmul.f32 %v7195, %v7259
      %v7272 = vmul.f32 %v7196, %v7255
      %v7273 = vmul.f32 %v7197, %v7259
      %v7274 = vmul.f32 %v7198, %v7255
      %v7275 = vmul.f32 %v7199, %v7259
      %v7276 = vmul.f32 %v7200, %v7255
      %v7277 = vmul.f32 %v7201, %v7259
      %v7278 = vmul.f32 %v7202, %v7255
      %v7279 = vmul.f32 %v7203, %v7259
      %v7280 = vmul.f32 %v7204, %v7255
      %v7281 = vmul.f32 %v7205, %v7259
      %v7282 = vmul.f32 %v7206, %v7255
      %v7283 = vmul.f32 %v7207, %v7259
      %v7284 = vmul.f32 %v7208, %v7255
      %v7285 = vmul.f32 %v7209, %v7259
      %v7286 = vmul.f32 %v7210, %v7255
      %v7287 = vmul.f32 %v7211, %v7259
      %v7288 = vmul.f32 %v7212, %v7255
      %v7289 = vmul.f32 %v7213, %v7259
      %v7290 = vmul.f32 %v7214, %v7255
      %v7291 = vmul.f32 %v7215, %v7259
      %v7292 = vmul.f32 %v7216, %v7255
      %v7293 = vmul.f32 %v7217, %v7259
      %v7294 = vmul.f32 %v7218, %v7255
      %v7295 = vmul.f32 %v7219, %v7259
      %v7296 = vmul.f32 %v7220, %v7255
      %v7297 = vmul.f32 %v7221, %v7259
      %v7298 = vmul.f32 %v7222, %v7255
      %v7299 = vmul.f32 %v7223, %v7259
      %v7300 = vmul.f32 %v7224, %v7255
      %v7301 = vmul.f32 %v7225, %v7259
      %v7302 = vmul.f32 %v7226, %v7255
      %v7303 = vmul.f32 %v7227, %v7259
      %v7304 = vmul.f32 %v7228, %v7255
      %v7305 = vmul.f32 %v7229, %v7259
      %v7306 = vmul.f32 %v7230, %v7255
      %v7307 = vmul.f32 %v7231, %v7259
      %v7308 = vmul.f32 %v7232, %v7255
      %v7309 = vmul.f32 %v7233, %v7259
      %v7310 = vmul.f32 %v7234, %v7255
      %v7311 = vmul.f32 %v7235, %v7259
      %v7312 = vmul.f32 %v7236, %v7255
      %v7313 = vmul.f32 %v7237, %v7259
      %v7314 = vmul.f32 %v7238, %v7255
      %v7315 = vmul.f32 %v7239, %v7259
      %v7316 = vmul.f32 %v7240, %v7255
      %v7317 = vmul.f32 %v7241, %v7259
      %v7318 = vmul.f32 %v7242, %v7255
      %v7319 = vmul.f32 %v7243, %v7259
      %v7320 = vmul.f32 %v7244, %v7255
      %v7321 = vmul.f32 %v7245, %v7259
      %v7322 = vmul.f32 %v7246, %v7255
      %v7323 = vmul.f32 %v7247, %v7259
      %v7324 = vmul.f32 %v7248, %v7255
      %v7325 = vmul.f32 %v7249, %v7259
      %v7326 = vld [vmem:[%s9] sm:$0x3]
      %v7328 = vlaneseq
      %v7329 = vshrl.u32 %v7328, 7
      %v7330 = vsub.s32 0, %v7329
      %v7331 = vrot.slane %v7326, %v7330
      %v7332 = vlaneseq
      %v7333 = vshrl.u32 %v7332, 7
      %v7334 = vsub.s32 1, %v7333
      %v7335 = vrot.slane %v7326, %v7334
      %v7338 = vadd.f32 %v7262, %v7331
      %v7339 = vadd.f32 %v7263, %v7335
      %v7340 = vadd.f32 %v7264, %v7331
      %v7341 = vadd.f32 %v7265, %v7335
      %v7342 = vadd.f32 %v7266, %v7331
      %v7343 = vadd.f32 %v7267, %v7335
      %v7344 = vadd.f32 %v7268, %v7331
      %v7345 = vadd.f32 %v7269, %v7335
      %v7346 = vadd.f32 %v7270, %v7331
      %v7347 = vadd.f32 %v7271, %v7335
      %v7348 = vadd.f32 %v7272, %v7331
      %v7349 = vadd.f32 %v7273, %v7335
      %v7350 = vadd.f32 %v7274, %v7331
      %v7351 = vadd.f32 %v7275, %v7335
      %v7352 = vadd.f32 %v7276, %v7331
      %v7353 = vadd.f32 %v7277, %v7335
      %v7354 = vadd.f32 %v7278, %v7331
      %v7355 = vadd.f32 %v7279, %v7335
      %v7356 = vadd.f32 %v7280, %v7331
      %v7357 = vadd.f32 %v7281, %v7335
      %v7358 = vadd.f32 %v7282, %v7331
      %v7359 = vadd.f32 %v7283, %v7335
      %v7360 = vadd.f32 %v7284, %v7331
      %v7361 = vadd.f32 %v7285, %v7335
      %v7362 = vadd.f32 %v7286, %v7331
      %v7363 = vadd.f32 %v7287, %v7335
      %v7364 = vadd.f32 %v7288, %v7331
      %v7365 = vadd.f32 %v7289, %v7335
      %v7366 = vadd.f32 %v7290, %v7331
      %v7367 = vadd.f32 %v7291, %v7335
      %v7368 = vadd.f32 %v7292, %v7331
      %v7369 = vadd.f32 %v7293, %v7335
      %v7370 = vadd.f32 %v7294, %v7331
      %v7371 = vadd.f32 %v7295, %v7335
      %v7372 = vadd.f32 %v7296, %v7331
      %v7373 = vadd.f32 %v7297, %v7335
      %v7374 = vadd.f32 %v7298, %v7331
      %v7375 = vadd.f32 %v7299, %v7335
      %v7376 = vadd.f32 %v7300, %v7331
      %v7377 = vadd.f32 %v7301, %v7335
      %v7378 = vadd.f32 %v7302, %v7331
      %v7379 = vadd.f32 %v7303, %v7335
      %v7380 = vadd.f32 %v7304, %v7331
      %v7381 = vadd.f32 %v7305, %v7335
      %v7382 = vadd.f32 %v7306, %v7331
      %v7383 = vadd.f32 %v7307, %v7335
      %v7384 = vadd.f32 %v7308, %v7331
      %v7385 = vadd.f32 %v7309, %v7335
      %v7386 = vadd.f32 %v7310, %v7331
      %v7387 = vadd.f32 %v7311, %v7335
      %v7388 = vadd.f32 %v7312, %v7331
      %v7389 = vadd.f32 %v7313, %v7335
      %v7390 = vadd.f32 %v7314, %v7331
      %v7391 = vadd.f32 %v7315, %v7335
      %v7392 = vadd.f32 %v7316, %v7331
      %v7393 = vadd.f32 %v7317, %v7335
      %v7394 = vadd.f32 %v7318, %v7331
      %v7395 = vadd.f32 %v7319, %v7335
      %v7396 = vadd.f32 %v7320, %v7331
      %v7397 = vadd.f32 %v7321, %v7335
      %v7398 = vadd.f32 %v7322, %v7331
      %v7399 = vadd.f32 %v7323, %v7335
      %v7400 = vadd.f32 %v7324, %v7331
      %v7401 = vadd.f32 %v7325, %v7335
      %v7402 = vmax.f32 %v7338, 0.0
      %v7403 = vmax.f32 %v7339, 0.0
      %v7404 = vmax.f32 %v7340, 0.0
      %v7405 = vmax.f32 %v7341, 0.0
      %v7406 = vmax.f32 %v7342, 0.0
      %v7407 = vmax.f32 %v7343, 0.0
      %v7408 = vmax.f32 %v7344, 0.0
      %v7409 = vmax.f32 %v7345, 0.0
      %v7410 = vmax.f32 %v7346, 0.0
      %v7411 = vmax.f32 %v7347, 0.0
      %v7412 = vmax.f32 %v7348, 0.0
      %v7413 = vmax.f32 %v7349, 0.0
      %v7414 = vmax.f32 %v7350, 0.0
      %v7415 = vmax.f32 %v7351, 0.0
      %v7416 = vmax.f32 %v7352, 0.0
      %v7417 = vmax.f32 %v7353, 0.0
      %v7418 = vmax.f32 %v7354, 0.0
      %v7419 = vmax.f32 %v7355, 0.0
      %v7420 = vmax.f32 %v7356, 0.0
      %v7421 = vmax.f32 %v7357, 0.0
      %v7422 = vmax.f32 %v7358, 0.0
      %v7423 = vmax.f32 %v7359, 0.0
      %v7424 = vmax.f32 %v7360, 0.0
      %v7425 = vmax.f32 %v7361, 0.0
      %v7426 = vmax.f32 %v7362, 0.0
      %v7427 = vmax.f32 %v7363, 0.0
      %v7428 = vmax.f32 %v7364, 0.0
      %v7429 = vmax.f32 %v7365, 0.0
      %v7430 = vmax.f32 %v7366, 0.0
      %v7431 = vmax.f32 %v7367, 0.0
      %v7432 = vmax.f32 %v7368, 0.0
      %v7433 = vmax.f32 %v7369, 0.0
      %v7434 = vmax.f32 %v7370, 0.0
      %v7435 = vmax.f32 %v7371, 0.0
      %v7436 = vmax.f32 %v7372, 0.0
      %v7437 = vmax.f32 %v7373, 0.0
      %v7438 = vmax.f32 %v7374, 0.0
      %v7439 = vmax.f32 %v7375, 0.0
      %v7440 = vmax.f32 %v7376, 0.0
      %v7441 = vmax.f32 %v7377, 0.0
      %v7442 = vmax.f32 %v7378, 0.0
      %v7443 = vmax.f32 %v7379, 0.0
      %v7444 = vmax.f32 %v7380, 0.0
      %v7445 = vmax.f32 %v7381, 0.0
      %v7446 = vmax.f32 %v7382, 0.0
      %v7447 = vmax.f32 %v7383, 0.0
      %v7448 = vmax.f32 %v7384, 0.0
      %v7449 = vmax.f32 %v7385, 0.0
      %v7450 = vmax.f32 %v7386, 0.0
      %v7451 = vmax.f32 %v7387, 0.0
      %v7452 = vmax.f32 %v7388, 0.0
      %v7453 = vmax.f32 %v7389, 0.0
      %v7454 = vmax.f32 %v7390, 0.0
      %v7455 = vmax.f32 %v7391, 0.0
      %v7456 = vmax.f32 %v7392, 0.0
      %v7457 = vmax.f32 %v7393, 0.0
      %v7458 = vmax.f32 %v7394, 0.0
      %v7459 = vmax.f32 %v7395, 0.0
      %v7460 = vmax.f32 %v7396, 0.0
      %v7461 = vmax.f32 %v7397, 0.0
      %v7462 = vmax.f32 %v7398, 0.0
      %v7463 = vmax.f32 %v7399, 0.0
      %v7464 = vmax.f32 %v7400, 0.0
      %v7465 = vmax.f32 %v7401, 0.0
      %v7466 = vld [vmem:[%s10] sm:$0xff]
      %v7467 = vld [vmem:[%s10 + $0x8] sm:$0xff]
      %v7468 = vld [vmem:[%s10 + $0x10] sm:$0xff]
      %v7469 = vld [vmem:[%s10 + $0x18] sm:$0xff]
      %v7470 = vld [vmem:[%s10 + $0x20] sm:$0xff]
      %v7471 = vld [vmem:[%s10 + $0x28] sm:$0xff]
      %v7472 = vld [vmem:[%s10 + $0x30] sm:$0xff]
      %v7473 = vld [vmem:[%s10 + $0x38] sm:$0xff]
      %v7474 = vld [vmem:[%s10 + $0x40] sm:$0xff]
      %v7475 = vld [vmem:[%s10 + $0x48] sm:$0xff]
      %v7476 = vld [vmem:[%s10 + $0x50] sm:$0xff]
      %v7477 = vld [vmem:[%s10 + $0x58] sm:$0xff]
      %v7478 = vld [vmem:[%s10 + $0x60] sm:$0xff]
      %v7479 = vld [vmem:[%s10 + $0x68] sm:$0xff]
      %v7480 = vld [vmem:[%s10 + $0x70] sm:$0xff]
      %v7481 = vld [vmem:[%s10 + $0x78] sm:$0xff]
      %v7482 = vld [vmem:[%s10 + $0x80] sm:$0xff]
      %v7483 = vld [vmem:[%s10 + $0x88] sm:$0xff]
      %v7484 = vld [vmem:[%s10 + $0x90] sm:$0xff]
      %v7485 = vld [vmem:[%s10 + $0x98] sm:$0xff]
      %v7486 = vld [vmem:[%s10 + $0xa0] sm:$0xff]
      %v7487 = vld [vmem:[%s10 + $0xa8] sm:$0xff]
      %v7488 = vld [vmem:[%s10 + $0xb0] sm:$0xff]
      %v7489 = vld [vmem:[%s10 + $0xb8] sm:$0xff]
      %v7490 = vld [vmem:[%s10 + $0xc0] sm:$0xff]
      %v7491 = vld [vmem:[%s10 + $0xc8] sm:$0xff]
      %v7492 = vld [vmem:[%s10 + $0xd0] sm:$0xff]
      %v7493 = vld [vmem:[%s10 + $0xd8] sm:$0xff]
      %v7494 = vld [vmem:[%s10 + $0xe0] sm:$0xff]
      %v7495 = vld [vmem:[%s10 + $0xe8] sm:$0xff]
      %v7496 = vld [vmem:[%s10 + $0xf0] sm:$0xff]
      %v7497 = vld [vmem:[%s10 + $0xf8] sm:$0xff]
      %v7498 = vld [vmem:[%s11] sm:$0x1]
      %v7500 = vlaneseq
      %v7501 = vshrl.u32 %v7500, 7
      %v7502 = vsub.s32 0, %v7501
      %v7503 = vrot.slane %v7498, %v7502
      %7505 = vmatprep.subr.mxu0 0.0
      %7506 = vmatpush1.msra.mxu0 %v7481
      %7507 = vmatprep.subr.mxu0 0.0
      %7508 = vmatpush1.msra.mxu0 %v7480
      %7509 = vmatprep.subr.mxu0 0.0
      %7510 = vmatpush1.msra.mxu0 %v7479
      %7511 = vmatprep.subr.mxu0 0.0
      %7512 = vmatpush1.msra.mxu0 %v7478
      %7513 = vmatprep.subr.mxu0 0.0
      %7514 = vmatpush1.msra.mxu0 %v7477
      %7515 = vmatprep.subr.mxu0 0.0
      %7516 = vmatpush1.msra.mxu0 %v7476
      %7517 = vmatprep.subr.mxu0 0.0
      %7518 = vmatpush1.msra.mxu0 %v7475
      %7519 = vmatprep.subr.mxu0 0.0
      %7520 = vmatpush1.msra.mxu0 %v7474
      %7521 = vmatprep.subr.mxu0 0.0
      %7522 = vmatpush1.msra.mxu0 %v7473
      %7523 = vmatprep.subr.mxu0 0.0
      %7524 = vmatpush1.msra.mxu0 %v7472
      %7525 = vmatprep.subr.mxu0 0.0
      %7526 = vmatpush1.msra.mxu0 %v7471
      %7527 = vmatprep.subr.mxu0 0.0
      %7528 = vmatpush1.msra.mxu0 %v7470
      %7529 = vmatprep.subr.mxu0 0.0
      %7530 = vmatpush1.msra.mxu0 %v7469
      %7531 = vmatprep.subr.mxu0 0.0
      %7532 = vmatpush1.msra.mxu0 %v7468
      %7533 = vmatprep.subr.mxu0 0.0
      %7534 = vmatpush1.msra.mxu0 %v7467
      %7535 = vmatprep.subr.mxu0 0.0
      %7536 = vmatpush1.msra.mxu0 %v7466
      %7537 = vmatprep.subr.mxu0 0.0
      %7538 = vmatpush2.msra.mxu0 %v7497
      %7539 = vmatprep.subr.mxu0 0.0
      %7540 = vmatpush2.msra.mxu0 %v7496
      %7541 = vmatprep.subr.mxu0 0.0
      %7542 = vmatpush2.msra.mxu0 %v7495
      %7543 = vmatprep.subr.mxu0 0.0
      %7544 = vmatpush2.msra.mxu0 %v7494
      %7545 = vmatprep.subr.mxu0 0.0
      %7546 = vmatpush2.msra.mxu0 %v7493
      %7547 = vmatprep.subr.mxu0 0.0
      %7548 = vmatpush2.msra.mxu0 %v7492
      %7549 = vmatprep.subr.mxu0 0.0
      %7550 = vmatpush2.msra.mxu0 %v7491
      %7551 = vmatprep.subr.mxu0 0.0
      %7552 = vmatpush2.msra.mxu0 %v7490
      %7553 = vmatprep.subr.mxu0 0.0
      %7554 = vmatpush2.msra.mxu0 %v7489
      %7555 = vmatprep.subr.mxu0 0.0
      %7556 = vmatpush2.msra.mxu0 %v7488
      %7557 = vmatprep.subr.mxu0 0.0
      %7558 = vmatpush2.msra.mxu0 %v7487
      %7559 = vmatprep.subr.mxu0 0.0
      %7560 = vmatpush2.msra.mxu0 %v7486
      %7561 = vmatprep.subr.mxu0 0.0
      %7562 = vmatpush2.msra.mxu0 %v7485
      %7563 = vmatprep.subr.mxu0 0.0
      %7564 = vmatpush2.msra.mxu0 %v7484
      %7565 = vmatprep.subr.mxu0 0.0
      %7566 = vmatpush2.msra.mxu0 %v7483
      %7567 = vmatprep.subr.mxu0 0.0
      %7568 = vmatpush2.msra.mxu0 %v7482
      %7569 = vmatprep.mubr.f32.mxu0 %v7403
      %7570 = vmatmul.mubr.f32.gmra.mxu0 %v7402
      %v7571 = vpop.f32.mrf.mxu0
      %v7572 = vadd.f32 %v7503, %v7571
      %v7573 = vpop.f32.mrf.mxu0
      %7574 = vmatprep.mubr.f32.mxu0 %v7405
      %7575 = vmatmul.mubr.f32.gmra.mxu0 %v7404
      %v7576 = vpop.f32.mrf.mxu0
      %v7577 = vadd.f32 %v7503, %v7576
      %v7578 = vpop.f32.mrf.mxu0
      %7579 = vmatprep.mubr.f32.mxu0 %v7407
      %7580 = vmatmul.mubr.f32.gmra.mxu0 %v7406
      %v7581 = vpop.f32.mrf.mxu0
      %v7582 = vadd.f32 %v7503, %v7581
      %v7583 = vpop.f32.mrf.mxu0
      %7584 = vmatprep.mubr.f32.mxu0 %v7409
      %7585 = vmatmul.mubr.f32.gmra.mxu0 %v7408
      %v7586 = vpop.f32.mrf.mxu0
      %v7587 = vadd.f32 %v7503, %v7586
      %v7588 = vpop.f32.mrf.mxu0
      %7589 = vmatprep.mubr.f32.mxu0 %v7411
      %7590 = vmatmul.mubr.f32.gmra.mxu0 %v7410
      %v7591 = vpop.f32.mrf.mxu0
      %v7592 = vadd.f32 %v7503, %v7591
      %v7593 = vpop.f32.mrf.mxu0
      %7594 = vmatprep.mubr.f32.mxu0 %v7413
      %7595 = vmatmul.mubr.f32.gmra.mxu0 %v7412
      %v7596 = vpop.f32.mrf.mxu0
      %v7597 = vadd.f32 %v7503, %v7596
      %v7598 = vpop.f32.mrf.mxu0
      %7599 = vmatprep.mubr.f32.mxu0 %v7415
      %7600 = vmatmul.mubr.f32.gmra.mxu0 %v7414
      %v7601 = vpop.f32.mrf.mxu0
      %v7602 = vadd.f32 %v7503, %v7601
      %v7603 = vpop.f32.mrf.mxu0
      %7604 = vmatprep.mubr.f32.mxu0 %v7417
      %7605 = vmatmul.mubr.f32.gmra.mxu0 %v7416
      %v7606 = vpop.f32.mrf.mxu0
      %v7607 = vadd.f32 %v7503, %v7606
      %v7608 = vpop.f32.mrf.mxu0
      %7609 = vmatprep.mubr.f32.mxu0 %v7419
      %7610 = vmatmul.mubr.f32.gmra.mxu0 %v7418
      %v7611 = vpop.f32.mrf.mxu0
      %v7612 = vadd.f32 %v7503, %v7611
      %v7613 = vpop.f32.mrf.mxu0
      %7614 = vmatprep.mubr.f32.mxu0 %v7421
      %7615 = vmatmul.mubr.f32.gmra.mxu0 %v7420
      %v7616 = vpop.f32.mrf.mxu0
      %v7617 = vadd.f32 %v7503, %v7616
      %v7618 = vpop.f32.mrf.mxu0
      %7619 = vmatprep.mubr.f32.mxu0 %v7423
      %7620 = vmatmul.mubr.f32.gmra.mxu0 %v7422
      %v7621 = vpop.f32.mrf.mxu0
      %v7622 = vadd.f32 %v7503, %v7621
      %v7623 = vpop.f32.mrf.mxu0
      %7624 = vmatprep.mubr.f32.mxu0 %v7425
      %7625 = vmatmul.mubr.f32.gmra.mxu0 %v7424
      %v7626 = vpop.f32.mrf.mxu0
      %v7627 = vadd.f32 %v7503, %v7626
      %v7628 = vpop.f32.mrf.mxu0
      %7629 = vmatprep.mubr.f32.mxu0 %v7427
      %7630 = vmatmul.mubr.f32.gmra.mxu0 %v7426
      %v7631 = vpop.f32.mrf.mxu0
      %v7632 = vadd.f32 %v7503, %v7631
      %v7633 = vpop.f32.mrf.mxu0
      %7634 = vmatprep.mubr.f32.mxu0 %v7429
      %7635 = vmatmul.mubr.f32.gmra.mxu0 %v7428
      %v7636 = vpop.f32.mrf.mxu0
      %v7637 = vadd.f32 %v7503, %v7636
      %v7638 = vpop.f32.mrf.mxu0
      %7639 = vmatprep.mubr.f32.mxu0 %v7431
      %7640 = vmatmul.mubr.f32.gmra.mxu0 %v7430
      %v7641 = vpop.f32.mrf.mxu0
      %v7642 = vadd.f32 %v7503, %v7641
      %v7643 = vpop.f32.mrf.mxu0
      %7644 = vmatprep.mubr.f32.mxu0 %v7433
      %7645 = vmatmul.mubr.f32.gmra.mxu0 %v7432
      %v7646 = vpop.f32.mrf.mxu0
      %v7647 = vadd.f32 %v7503, %v7646
      %v7648 = vpop.f32.mrf.mxu0
      %7649 = vmatprep.mubr.f32.mxu0 %v7435
      %7650 = vmatmul.mubr.f32.gmra.mxu0 %v7434
      %v7651 = vpop.f32.mrf.mxu0
      %v7652 = vadd.f32 %v7503, %v7651
      %v7653 = vpop.f32.mrf.mxu0
      %7654 = vmatprep.mubr.f32.mxu0 %v7437
      %7655 = vmatmul.mubr.f32.gmra.mxu0 %v7436
      %v7656 = vpop.f32.mrf.mxu0
      %v7657 = vadd.f32 %v7503, %v7656
      %v7658 = vpop.f32.mrf.mxu0
      %7659 = vmatprep.mubr.f32.mxu0 %v7439
      %7660 = vmatmul.mubr.f32.gmra.mxu0 %v7438
      %v7661 = vpop.f32.mrf.mxu0
      %v7662 = vadd.f32 %v7503, %v7661
      %v7663 = vpop.f32.mrf.mxu0
      %7664 = vmatprep.mubr.f32.mxu0 %v7441
      %7665 = vmatmul.mubr.f32.gmra.mxu0 %v7440
      %v7666 = vpop.f32.mrf.mxu0
      %v7667 = vadd.f32 %v7503, %v7666
      %v7668 = vpop.f32.mrf.mxu0
      %7669 = vmatprep.mubr.f32.mxu0 %v7443
      %7670 = vmatmul.mubr.f32.gmra.mxu0 %v7442
      %v7671 = vpop.f32.mrf.mxu0
      %v7672 = vadd.f32 %v7503, %v7671
      %v7673 = vpop.f32.mrf.mxu0
      %7674 = vmatprep.mubr.f32.mxu0 %v7445
      %7675 = vmatmul.mubr.f32.gmra.mxu0 %v7444
      %v7676 = vpop.f32.mrf.mxu0
      %v7677 = vadd.f32 %v7503, %v7676
      %v7678 = vpop.f32.mrf.mxu0
      %7679 = vmatprep.mubr.f32.mxu0 %v7447
      %7680 = vmatmul.mubr.f32.gmra.mxu0 %v7446
      %v7681 = vpop.f32.mrf.mxu0
      %v7682 = vadd.f32 %v7503, %v7681
      %v7683 = vpop.f32.mrf.mxu0
      %7684 = vmatprep.mubr.f32.mxu0 %v7449
      %7685 = vmatmul.mubr.f32.gmra.mxu0 %v7448
      %v7686 = vpop.f32.mrf.mxu0
      %v7687 = vadd.f32 %v7503, %v7686
      %v7688 = vpop.f32.mrf.mxu0
      %7689 = vmatprep.mubr.f32.mxu0 %v7451
      %7690 = vmatmul.mubr.f32.gmra.mxu0 %v7450
      %v7691 = vpop.f32.mrf.mxu0
      %v7692 = vadd.f32 %v7503, %v7691
      %v7693 = vpop.f32.mrf.mxu0
      %7694 = vmatprep.mubr.f32.mxu0 %v7453
      %7695 = vmatmul.mubr.f32.gmra.mxu0 %v7452
      %v7696 = vpop.f32.mrf.mxu0
      %v7697 = vadd.f32 %v7503, %v7696
      %v7698 = vpop.f32.mrf.mxu0
      %7699 = vmatprep.mubr.f32.mxu0 %v7455
      %7700 = vmatmul.mubr.f32.gmra.mxu0 %v7454
      %v7701 = vpop.f32.mrf.mxu0
      %v7702 = vadd.f32 %v7503, %v7701
      %v7703 = vpop.f32.mrf.mxu0
      %7704 = vmatprep.mubr.f32.mxu0 %v7457
      %7705 = vmatmul.mubr.f32.gmra.mxu0 %v7456
      %v7706 = vpop.f32.mrf.mxu0
      %v7707 = vadd.f32 %v7503, %v7706
      %v7708 = vpop.f32.mrf.mxu0
      %7709 = vmatprep.mubr.f32.mxu0 %v7459
      %7710 = vmatmul.mubr.f32.gmra.mxu0 %v7458
      %v7711 = vpop.f32.mrf.mxu0
      %v7712 = vadd.f32 %v7503, %v7711
      %v7713 = vpop.f32.mrf.mxu0
      %7714 = vmatprep.mubr.f32.mxu0 %v7461
      %7715 = vmatmul.mubr.f32.gmra.mxu0 %v7460
      %v7716 = vpop.f32.mrf.mxu0
      %v7717 = vadd.f32 %v7503, %v7716
      %v7718 = vpop.f32.mrf.mxu0
      %7719 = vmatprep.mubr.f32.mxu0 %v7463
      %7720 = vmatmul.mubr.f32.gmra.mxu0 %v7462
      %v7721 = vpop.f32.mrf.mxu0
      %v7722 = vadd.f32 %v7503, %v7721
      %v7723 = vpop.f32.mrf.mxu0
      %7724 = vmatprep.mubr.f32.mxu0 %v7465
      %7725 = vmatmul.mubr.f32.gmra.mxu0 %v7464
      %v7726 = vpop.f32.mrf.mxu0
      %v7727 = vadd.f32 %v7503, %v7726
      %v7728 = vpop.f32.mrf.mxu0
      %7729 = vdwg.mxu0
      %v7730 = vmul.f32 %v3639, %v7572
      %v7731 = vmul.f32 %v3640, %v7577
      %v7732 = vmul.f32 %v3641, %v7582
      %v7733 = vmul.f32 %v3642, %v7587
      %v7734 = vmul.f32 %v3643, %v7592
      %v7735 = vmul.f32 %v3644, %v7597
      %v7736 = vmul.f32 %v3645, %v7602
      %v7737 = vmul.f32 %v3646, %v7607
      %v7738 = vmul.f32 %v3647, %v7612
      %v7739 = vmul.f32 %v3648, %v7617
      %v7740 = vmul.f32 %v3649, %v7622
      %v7741 = vmul.f32 %v3650, %v7627
      %v7742 = vmul.f32 %v3651, %v7632
      %v7743 = vmul.f32 %v3652, %v7637
      %v7744 = vmul.f32 %v3653, %v7642
      %v7745 = vmul.f32 %v3654, %v7647
      %v7746 = vmul.f32 %v3655, %v7652
      %v7747 = vmul.f32 %v3656, %v7657
      %v7748 = vmul.f32 %v3657, %v7662
      %v7749 = vmul.f32 %v3658, %v7667
      %v7750 = vmul.f32 %v3659, %v7672
      %v7751 = vmul.f32 %v3660, %v7677
      %v7752 = vmul.f32 %v3661, %v7682
      %v7753 = vmul.f32 %v3662, %v7687
      %v7754 = vmul.f32 %v3663, %v7692
      %v7755 = vmul.f32 %v3664, %v7697
      %v7756 = vmul.f32 %v3665, %v7702
      %v7757 = vmul.f32 %v3666, %v7707
      %v7758 = vmul.f32 %v3667, %v7712
      %v7759 = vmul.f32 %v3668, %v7717
      %v7760 = vmul.f32 %v3669, %v7722
      %v7761 = vmul.f32 %v3670, %v7727
      %v7762 = vpack.c.bf16 %v7731, %v7730
      %v7763 = vpack.c.bf16 %v7733, %v7732
      %v7764 = vpack.c.bf16 %v7735, %v7734
      %v7765 = vpack.c.bf16 %v7737, %v7736
      %v7766 = vpack.c.bf16 %v7739, %v7738
      %v7767 = vpack.c.bf16 %v7741, %v7740
      %v7768 = vpack.c.bf16 %v7743, %v7742
      %v7769 = vpack.c.bf16 %v7745, %v7744
      %v7770 = vpack.c.bf16 %v7747, %v7746
      %v7771 = vpack.c.bf16 %v7749, %v7748
      %v7772 = vpack.c.bf16 %v7751, %v7750
      %v7773 = vpack.c.bf16 %v7753, %v7752
      %v7774 = vpack.c.bf16 %v7755, %v7754
      %v7775 = vpack.c.bf16 %v7757, %v7756
      %v7776 = vpack.c.bf16 %v7759, %v7758
      %v7777 = vpack.c.bf16 %v7761, %v7760
      %v7778 = vunpack.c.l.bf16 %v7762
      %v7779 = vunpack.c.h.bf16 %v7762
      %v7780 = vunpack.c.l.bf16 %v7763
      %v7781 = vunpack.c.h.bf16 %v7763
      %v7782 = vunpack.c.l.bf16 %v7764
      %v7783 = vunpack.c.h.bf16 %v7764
      %v7784 = vunpack.c.l.bf16 %v7765
      %v7785 = vunpack.c.h.bf16 %v7765
      %v7786 = vunpack.c.l.bf16 %v7766
      %v7787 = vunpack.c.h.bf16 %v7766
      %v7788 = vunpack.c.l.bf16 %v7767
      %v7789 = vunpack.c.h.bf16 %v7767
      %v7790 = vunpack.c.l.bf16 %v7768
      %v7791 = vunpack.c.h.bf16 %v7768
      %v7792 = vunpack.c.l.bf16 %v7769
      %v7793 = vunpack.c.h.bf16 %v7769
      %v7794 = vunpack.c.l.bf16 %v7770
      %v7795 = vunpack.c.h.bf16 %v7770
      %v7796 = vunpack.c.l.bf16 %v7771
      %v7797 = vunpack.c.h.bf16 %v7771
      %v7798 = vunpack.c.l.bf16 %v7772
      %v7799 = vunpack.c.h.bf16 %v7772
      %v7800 = vunpack.c.l.bf16 %v7773
      %v7801 = vunpack.c.h.bf16 %v7773
      %v7802 = vunpack.c.l.bf16 %v7774
      %v7803 = vunpack.c.h.bf16 %v7774
      %v7804 = vunpack.c.l.bf16 %v7775
      %v7805 = vunpack.c.h.bf16 %v7775
      %v7806 = vunpack.c.l.bf16 %v7776
      %v7807 = vunpack.c.h.bf16 %v7776
      %v7808 = vunpack.c.l.bf16 %v7777
      %v7809 = vunpack.c.h.bf16 %v7777
      %v7810 = vsub.f32 %v7730, %v7778
      %v7811 = vsub.f32 %v7731, %v7779
      %v7812 = vsub.f32 %v7732, %v7780
      %v7813 = vsub.f32 %v7733, %v7781
      %v7814 = vsub.f32 %v7734, %v7782
      %v7815 = vsub.f32 %v7735, %v7783
      %v7816 = vsub.f32 %v7736, %v7784
      %v7817 = vsub.f32 %v7737, %v7785
      %v7818 = vsub.f32 %v7738, %v7786
      %v7819 = vsub.f32 %v7739, %v7787
      %v7820 = vsub.f32 %v7740, %v7788
      %v7821 = vsub.f32 %v7741, %v7789
      %v7822 = vsub.f32 %v7742, %v7790
      %v7823 = vsub.f32 %v7743, %v7791
      %v7824 = vsub.f32 %v7744, %v7792
      %v7825 = vsub.f32 %v7745, %v7793
      %v7826 = vsub.f32 %v7746, %v7794
      %v7827 = vsub.f32 %v7747, %v7795
      %v7828 = vsub.f32 %v7748, %v7796
      %v7829 = vsub.f32 %v7749, %v7797
      %v7830 = vsub.f32 %v7750, %v7798
      %v7831 = vsub.f32 %v7751, %v7799
      %v7832 = vsub.f32 %v7752, %v7800
      %v7833 = vsub.f32 %v7753, %v7801
      %v7834 = vsub.f32 %v7754, %v7802
      %v7835 = vsub.f32 %v7755, %v7803
      %v7836 = vsub.f32 %v7756, %v7804
      %v7837 = vsub.f32 %v7757, %v7805
      %v7838 = vsub.f32 %v7758, %v7806
      %v7839 = vsub.f32 %v7759, %v7807
      %v7840 = vsub.f32 %v7760, %v7808
      %v7841 = vsub.f32 %v7761, %v7809
      %v7842 = vpack.c.bf16 %v7811, %v7810
      %v7843 = vpack.c.bf16 %v7813, %v7812
      %v7844 = vpack.c.bf16 %v7815, %v7814
      %v7845 = vpack.c.bf16 %v7817, %v7816
      %v7846 = vpack.c.bf16 %v7819, %v7818
      %v7847 = vpack.c.bf16 %v7821, %v7820
      %v7848 = vpack.c.bf16 %v7823, %v7822
      %v7849 = vpack.c.bf16 %v7825, %v7824
      %v7850 = vpack.c.bf16 %v7827, %v7826
      %v7851 = vpack.c.bf16 %v7829, %v7828
      %v7852 = vpack.c.bf16 %v7831, %v7830
      %v7853 = vpack.c.bf16 %v7833, %v7832
      %v7854 = vpack.c.bf16 %v7835, %v7834
      %v7855 = vpack.c.bf16 %v7837, %v7836
      %v7856 = vpack.c.bf16 %v7839, %v7838
      %v7857 = vpack.c.bf16 %v7841, %v7840
      %7858 = vmatprep.subr.bf16.mxu0 0
      %7859 = vmatpush1.bf16.msra.mxu0 %v7849
      %7860 = vmatprep.subr.bf16.mxu0 0
      %7861 = vmatpush1.bf16.msra.mxu0 %v7848
      %7862 = vmatprep.subr.bf16.mxu0 0
      %7863 = vmatpush1.bf16.msra.mxu0 %v7847
      %7864 = vmatprep.subr.bf16.mxu0 0
      %7865 = vmatpush1.bf16.msra.mxu0 %v7846
      %7866 = vmatprep.subr.bf16.mxu0 0
      %7867 = vmatpush1.bf16.msra.mxu0 %v7845
      %7868 = vmatprep.subr.bf16.mxu0 0
      %7869 = vmatpush1.bf16.msra.mxu0 %v7844
      %7870 = vmatprep.subr.bf16.mxu0 0
      %7871 = vmatpush1.bf16.msra.mxu0 %v7843
      %7872 = vmatprep.subr.bf16.mxu0 0
      %7873 = vmatpush1.bf16.msra.mxu0 %v7842
      %7874 = vmatprep.subr.bf16.mxu0 0
      %7875 = vmatpush2.bf16.msra.mxu0 %v7857
      %7876 = vmatprep.subr.bf16.mxu0 0
      %7877 = vmatpush2.bf16.msra.mxu0 %v7856
      %7878 = vmatprep.subr.bf16.mxu0 0
      %7879 = vmatpush2.bf16.msra.mxu0 %v7855
      %7880 = vmatprep.subr.bf16.mxu0 0
      %7881 = vmatpush2.bf16.msra.mxu0 %v7854
      %7882 = vmatprep.subr.bf16.mxu0 0
      %7883 = vmatpush2.bf16.msra.mxu0 %v7853
      %7884 = vmatprep.subr.bf16.mxu0 0
      %7885 = vmatpush2.bf16.msra.mxu0 %v7852
      %7886 = vmatprep.subr.bf16.mxu0 0
      %7887 = vmatpush2.bf16.msra.mxu0 %v7851
      %7888 = vmatprep.subr.bf16.mxu0 0
      %7889 = vmatpush2.bf16.msra.mxu0 %v7850
      %7890 = vmatprep.mubr.bf16.mxu0 %v3480
      %7891 = vmatmul.mubr.bf16.gmra.mxu0 %v3479
      %v7892 = vpop.f32.mrf.mxu0
      %v7893 = vadd.f32 0.0, %v7892
      %v7894 = vpop.f32.mrf.mxu0
      %v7895 = vpop.f32.mrf.mxu0
      %v7896 = vadd.f32 0.0, %v7895
      %v7897 = vpop.f32.mrf.mxu0
      %7898 = vmatprep.mubr.bf16.mxu0 %v3482
      %7899 = vmatmul.mubr.bf16.gmra.mxu0 %v3481
      %v7900 = vpop.f32.mrf.mxu0
      %v7901 = vadd.f32 0.0, %v7900
      %v7902 = vpop.f32.mrf.mxu0
      %v7903 = vpop.f32.mrf.mxu0
      %v7904 = vadd.f32 0.0, %v7903
      %v7905 = vpop.f32.mrf.mxu0
      %7906 = vmatprep.mubr.bf16.mxu0 %v3484
      %7907 = vmatmul.mubr.bf16.gmra.mxu0 %v3483
      %v7908 = vpop.f32.mrf.mxu0
      %v7909 = vadd.f32 0.0, %v7908
      %v7910 = vpop.f32.mrf.mxu0
      %v7911 = vpop.f32.mrf.mxu0
      %v7912 = vadd.f32 0.0, %v7911
      %v7913 = vpop.f32.mrf.mxu0
      %7914 = vmatprep.mubr.bf16.mxu0 %v3486
      %7915 = vmatmul.mubr.bf16.gmra.mxu0 %v3485
      %v7916 = vpop.f32.mrf.mxu0
      %v7917 = vadd.f32 0.0, %v7916
      %v7918 = vpop.f32.mrf.mxu0
      %v7919 = vpop.f32.mrf.mxu0
      %v7920 = vadd.f32 0.0, %v7919
      %v7921 = vpop.f32.mrf.mxu0
      %7922 = vmatprep.mubr.bf16.mxu0 %v3488
      %7923 = vmatmul.mubr.bf16.gmra.mxu0 %v3487
      %v7924 = vpop.f32.mrf.mxu0
      %v7925 = vadd.f32 0.0, %v7924
      %v7926 = vpop.f32.mrf.mxu0
      %v7927 = vpop.f32.mrf.mxu0
      %v7928 = vadd.f32 0.0, %v7927
      %v7929 = vpop.f32.mrf.mxu0
      %7930 = vmatprep.mubr.bf16.mxu0 %v3490
      %7931 = vmatmul.mubr.bf16.gmra.mxu0 %v3489
      %v7932 = vpop.f32.mrf.mxu0
      %v7933 = vadd.f32 0.0, %v7932
      %v7934 = vpop.f32.mrf.mxu0
      %v7935 = vpop.f32.mrf.mxu0
      %v7936 = vadd.f32 0.0, %v7935
      %v7937 = vpop.f32.mrf.mxu0
      %7938 = vmatprep.mubr.bf16.mxu0 %v3492
      %7939 = vmatmul.mubr.bf16.gmra.mxu0 %v3491
      %v7940 = vpop.f32.mrf.mxu0
      %v7941 = vadd.f32 0.0, %v7940
      %v7942 = vpop.f32.mrf.mxu0
      %v7943 = vpop.f32.mrf.mxu0
      %v7944 = vadd.f32 0.0, %v7943
      %v7945 = vpop.f32.mrf.mxu0
      %7946 = vmatprep.mubr.bf16.mxu0 %v3494
      %7947 = vmatmul.mubr.bf16.gmra.mxu0 %v3493
      %v7948 = vpop.f32.mrf.mxu0
      %v7949 = vadd.f32 0.0, %v7948
      %v7950 = vpop.f32.mrf.mxu0
      %v7951 = vpop.f32.mrf.mxu0
      %v7952 = vadd.f32 0.0, %v7951
      %v7953 = vpop.f32.mrf.mxu0
      %7954 = vmatprep.mubr.bf16.mxu0 %v3496
      %7955 = vmatmul.mubr.bf16.gmra.mxu0 %v3495
      %v7956 = vpop.f32.mrf.mxu0
      %v7957 = vadd.f32 0.0, %v7956
      %v7958 = vpop.f32.mrf.mxu0
      %v7959 = vpop.f32.mrf.mxu0
      %v7960 = vadd.f32 0.0, %v7959
      %v7961 = vpop.f32.mrf.mxu0
      %7962 = vmatprep.mubr.bf16.mxu0 %v3498
      %7963 = vmatmul.mubr.bf16.gmra.mxu0 %v3497
      %v7964 = vpop.f32.mrf.mxu0
      %v7965 = vadd.f32 0.0, %v7964
      %v7966 = vpop.f32.mrf.mxu0
      %v7967 = vpop.f32.mrf.mxu0
      %v7968 = vadd.f32 0.0, %v7967
      %v7969 = vpop.f32.mrf.mxu0
      %7970 = vmatprep.mubr.bf16.mxu0 %v3500
      %7971 = vmatmul.mubr.bf16.gmra.mxu0 %v3499
      %v7972 = vpop.f32.mrf.mxu0
      %v7973 = vadd.f32 0.0, %v7972
      %v7974 = vpop.f32.mrf.mxu0
      %v7975 = vpop.f32.mrf.mxu0
      %v7976 = vadd.f32 0.0, %v7975
      %v7977 = vpop.f32.mrf.mxu0
      %7978 = vmatprep.mubr.bf16.mxu0 %v3502
      %7979 = vmatmul.mubr.bf16.gmra.mxu0 %v3501
      %v7980 = vpop.f32.mrf.mxu0
      %v7981 = vadd.f32 0.0, %v7980
      %v7982 = vpop.f32.mrf.mxu0
      %v7983 = vpop.f32.mrf.mxu0
      %v7984 = vadd.f32 0.0, %v7983
      %v7985 = vpop.f32.mrf.mxu0
      %7986 = vmatprep.mubr.bf16.mxu0 %v3504
      %7987 = vmatmul.mubr.bf16.gmra.mxu0 %v3503
      %v7988 = vpop.f32.mrf.mxu0
      %v7989 = vadd.f32 0.0, %v7988
      %v7990 = vpop.f32.mrf.mxu0
      %v7991 = vpop.f32.mrf.mxu0
      %v7992 = vadd.f32 0.0, %v7991
      %v7993 = vpop.f32.mrf.mxu0
      %7994 = vmatprep.mubr.bf16.mxu0 %v3506
      %7995 = vmatmul.mubr.bf16.gmra.mxu0 %v3505
      %v7996 = vpop.f32.mrf.mxu0
      %v7997 = vadd.f32 0.0, %v7996
      %v7998 = vpop.f32.mrf.mxu0
      %v7999 = vpop.f32.mrf.mxu0
      %v8000 = vadd.f32 0.0, %v7999
      %v8001 = vpop.f32.mrf.mxu0
      %8002 = vmatprep.mubr.bf16.mxu0 %v3508
      %8003 = vmatmul.mubr.bf16.gmra.mxu0 %v3507
      %v8004 = vpop.f32.mrf.mxu0
      %v8005 = vadd.f32 0.0, %v8004
      %v8006 = vpop.f32.mrf.mxu0
      %v8007 = vpop.f32.mrf.mxu0
      %v8008 = vadd.f32 0.0, %v8007
      %v8009 = vpop.f32.mrf.mxu0
      %8010 = vmatprep.mubr.bf16.mxu0 %v3510
      %8011 = vmatmul.mubr.bf16.gmra.mxu0 %v3509
      %v8012 = vpop.f32.mrf.mxu0
      %v8013 = vadd.f32 0.0, %v8012
      %v8014 = vpop.f32.mrf.mxu0
      %v8015 = vpop.f32.mrf.mxu0
      %v8016 = vadd.f32 0.0, %v8015
      %v8017 = vpop.f32.mrf.mxu0
      %8018 = vdwg.mxu0
      %8019 = vmatprep.subr.bf16.mxu0 0
      %8020 = vmatpush1.bf16.msra.mxu0 %v7769
      %8021 = vmatprep.subr.bf16.mxu0 0
      %8022 = vmatpush1.bf16.msra.mxu0 %v7768
      %8023 = vmatprep.subr.bf16.mxu0 0
      %8024 = vmatpush1.bf16.msra.mxu0 %v7767
      %8025 = vmatprep.subr.bf16.mxu0 0
      %8026 = vmatpush1.bf16.msra.mxu0 %v7766
      %8027 = vmatprep.subr.bf16.mxu0 0
      %8028 = vmatpush1.bf16.msra.mxu0 %v7765
      %8029 = vmatprep.subr.bf16.mxu0 0
      %8030 = vmatpush1.bf16.msra.mxu0 %v7764
      %8031 = vmatprep.subr.bf16.mxu0 0
      %8032 = vmatpush1.bf16.msra.mxu0 %v7763
      %8033 = vmatprep.subr.bf16.mxu0 0
      %8034 = vmatpush1.bf16.msra.mxu0 %v7762
      %8035 = vmatprep.subr.bf16.mxu0 0
      %8036 = vmatpush2.bf16.msra.mxu0 %v7777
      %8037 = vmatprep.subr.bf16.mxu0 0
      %8038 = vmatpush2.bf16.msra.mxu0 %v7776
      %8039 = vmatprep.subr.bf16.mxu0 0
      %8040 = vmatpush2.bf16.msra.mxu0 %v7775
      %8041 = vmatprep.subr.bf16.mxu0 0
      %8042 = vmatpush2.bf16.msra.mxu0 %v7774
      %8043 = vmatprep.subr.bf16.mxu0 0
      %8044 = vmatpush2.bf16.msra.mxu0 %v7773
      %8045 = vmatprep.subr.bf16.mxu0 0
      %8046 = vmatpush2.bf16.msra.mxu0 %v7772
      %8047 = vmatprep.subr.bf16.mxu0 0
      %8048 = vmatpush2.bf16.msra.mxu0 %v7771
      %8049 = vmatprep.subr.bf16.mxu0 0
      %8050 = vmatpush2.bf16.msra.mxu0 %v7770
      %8051 = vmatprep.mubr.bf16.mxu0 %v3480
      %8052 = vmatmul.mubr.bf16.gmra.mxu0 %v3479
      %v8053 = vpop.f32.mrf.mxu0
      %v8054 = vadd.f32 %v7893, %v8053
      %v8055 = vpop.f32.mrf.mxu0
      %v8056 = vpop.f32.mrf.mxu0
      %v8057 = vadd.f32 %v7896, %v8056
      %v8058 = vpop.f32.mrf.mxu0
      %8059 = vmatprep.mubr.bf16.mxu0 %v3482
      %8060 = vmatmul.mubr.bf16.gmra.mxu0 %v3481
      %v8061 = vpop.f32.mrf.mxu0
      %v8062 = vadd.f32 %v7901, %v8061
      %v8063 = vpop.f32.mrf.mxu0
      %v8064 = vpop.f32.mrf.mxu0
      %v8065 = vadd.f32 %v7904, %v8064
      %v8066 = vpop.f32.mrf.mxu0
      %8067 = vmatprep.mubr.bf16.mxu0 %v3484
      %8068 = vmatmul.mubr.bf16.gmra.mxu0 %v3483
      %v8069 = vpop.f32.mrf.mxu0
      %v8070 = vadd.f32 %v7909, %v8069
      %v8071 = vpop.f32.mrf.mxu0
      %v8072 = vpop.f32.mrf.mxu0
      %v8073 = vadd.f32 %v7912, %v8072
      %v8074 = vpop.f32.mrf.mxu0
      %8075 = vmatprep.mubr.bf16.mxu0 %v3486
      %8076 = vmatmul.mubr.bf16.gmra.mxu0 %v3485
      %v8077 = vpop.f32.mrf.mxu0
      %v8078 = vadd.f32 %v7917, %v8077
      %v8079 = vpop.f32.mrf.mxu0
      %v8080 = vpop.f32.mrf.mxu0
      %v8081 = vadd.f32 %v7920, %v8080
      %v8082 = vpop.f32.mrf.mxu0
      %8083 = vmatprep.mubr.bf16.mxu0 %v3488
      %8084 = vmatmul.mubr.bf16.gmra.mxu0 %v3487
      %v8085 = vpop.f32.mrf.mxu0
      %v8086 = vadd.f32 %v7925, %v8085
      %v8087 = vpop.f32.mrf.mxu0
      %v8088 = vpop.f32.mrf.mxu0
      %v8089 = vadd.f32 %v7928, %v8088
      %v8090 = vpop.f32.mrf.mxu0
      %8091 = vmatprep.mubr.bf16.mxu0 %v3490
      %8092 = vmatmul.mubr.bf16.gmra.mxu0 %v3489
      %v8093 = vpop.f32.mrf.mxu0
      %v8094 = vadd.f32 %v7933, %v8093
      %v8095 = vpop.f32.mrf.mxu0
      %v8096 = vpop.f32.mrf.mxu0
      %v8097 = vadd.f32 %v7936, %v8096
      %v8098 = vpop.f32.mrf.mxu0
      %8099 = vmatprep.mubr.bf16.mxu0 %v3492
      %8100 = vmatmul.mubr.bf16.gmra.mxu0 %v3491
      %v8101 = vpop.f32.mrf.mxu0
      %v8102 = vadd.f32 %v7941, %v8101
      %v8103 = vpop.f32.mrf.mxu0
      %v8104 = vpop.f32.mrf.mxu0
      %v8105 = vadd.f32 %v7944, %v8104
      %v8106 = vpop.f32.mrf.mxu0
      %8107 = vmatprep.mubr.bf16.mxu0 %v3494
      %8108 = vmatmul.mubr.bf16.gmra.mxu0 %v3493
      %v8109 = vpop.f32.mrf.mxu0
      %v8110 = vadd.f32 %v7949, %v8109
      %v8111 = vpop.f32.mrf.mxu0
      %v8112 = vpop.f32.mrf.mxu0
      %v8113 = vadd.f32 %v7952, %v8112
      %v8114 = vpop.f32.mrf.mxu0
      %8115 = vmatprep.mubr.bf16.mxu0 %v3496
      %8116 = vmatmul.mubr.bf16.gmra.mxu0 %v3495
      %v8117 = vpop.f32.mrf.mxu0
      %v8118 = vadd.f32 %v7957, %v8117
      %v8119 = vpop.f32.mrf.mxu0
      %v8120 = vpop.f32.mrf.mxu0
      %v8121 = vadd.f32 %v7960, %v8120
      %v8122 = vpop.f32.mrf.mxu0
      %8123 = vmatprep.mubr.bf16.mxu0 %v3498
      %8124 = vmatmul.mubr.bf16.gmra.mxu0 %v3497
      %v8125 = vpop.f32.mrf.mxu0
      %v8126 = vadd.f32 %v7965, %v8125
      %v8127 = vpop.f32.mrf.mxu0
      %v8128 = vpop.f32.mrf.mxu0
      %v8129 = vadd.f32 %v7968, %v8128
      %v8130 = vpop.f32.mrf.mxu0
      %8131 = vmatprep.mubr.bf16.mxu0 %v3500
      %8132 = vmatmul.mubr.bf16.gmra.mxu0 %v3499
      %v8133 = vpop.f32.mrf.mxu0
      %v8134 = vadd.f32 %v7973, %v8133
      %v8135 = vpop.f32.mrf.mxu0
      %v8136 = vpop.f32.mrf.mxu0
      %v8137 = vadd.f32 %v7976, %v8136
      %v8138 = vpop.f32.mrf.mxu0
      %8139 = vmatprep.mubr.bf16.mxu0 %v3502
      %8140 = vmatmul.mubr.bf16.gmra.mxu0 %v3501
      %v8141 = vpop.f32.mrf.mxu0
      %v8142 = vadd.f32 %v7981, %v8141
      %v8143 = vpop.f32.mrf.mxu0
      %v8144 = vpop.f32.mrf.mxu0
      %v8145 = vadd.f32 %v7984, %v8144
      %v8146 = vpop.f32.mrf.mxu0
      %8147 = vmatprep.mubr.bf16.mxu0 %v3504
      %8148 = vmatmul.mubr.bf16.gmra.mxu0 %v3503
      %v8149 = vpop.f32.mrf.mxu0
      %v8150 = vadd.f32 %v7989, %v8149
      %v8151 = vpop.f32.mrf.mxu0
      %v8152 = vpop.f32.mrf.mxu0
      %v8153 = vadd.f32 %v7992, %v8152
      %v8154 = vpop.f32.mrf.mxu0
      %8155 = vmatprep.mubr.bf16.mxu0 %v3506
      %8156 = vmatmul.mubr.bf16.gmra.mxu0 %v3505
      %v8157 = vpop.f32.mrf.mxu0
      %v8158 = vadd.f32 %v7997, %v8157
      %v8159 = vpop.f32.mrf.mxu0
      %v8160 = vpop.f32.mrf.mxu0
      %v8161 = vadd.f32 %v8000, %v8160
      %v8162 = vpop.f32.mrf.mxu0
      %8163 = vmatprep.mubr.bf16.mxu0 %v3508
      %8164 = vmatmul.mubr.bf16.gmra.mxu0 %v3507
      %v8165 = vpop.f32.mrf.mxu0
      %v8166 = vadd.f32 %v8005, %v8165
      %v8167 = vpop.f32.mrf.mxu0
      %v8168 = vpop.f32.mrf.mxu0
      %v8169 = vadd.f32 %v8008, %v8168
      %v8170 = vpop.f32.mrf.mxu0
      %8171 = vmatprep.mubr.bf16.mxu0 %v3510
      %8172 = vmatmul.mubr.bf16.gmra.mxu0 %v3509
      %v8173 = vpop.f32.mrf.mxu0
      %v8174 = vadd.f32 %v8013, %v8173
      %v8175 = vpop.f32.mrf.mxu0
      %v8176 = vpop.f32.mrf.mxu0
      %v8177 = vadd.f32 %v8016, %v8176
      %v8178 = vpop.f32.mrf.mxu0
      %8179 = vdwg.mxu0
      %v8180 = vadd.f32 %v8054, %v7730
      %v8181 = vadd.f32 %v8057, %v7731
      %v8182 = vadd.f32 %v8062, %v7732
      %v8183 = vadd.f32 %v8065, %v7733
      %v8184 = vadd.f32 %v8070, %v7734
      %v8185 = vadd.f32 %v8073, %v7735
      %v8186 = vadd.f32 %v8078, %v7736
      %v8187 = vadd.f32 %v8081, %v7737
      %v8188 = vadd.f32 %v8086, %v7738
      %v8189 = vadd.f32 %v8089, %v7739
      %v8190 = vadd.f32 %v8094, %v7740
      %v8191 = vadd.f32 %v8097, %v7741
      %v8192 = vadd.f32 %v8102, %v7742
      %v8193 = vadd.f32 %v8105, %v7743
      %v8194 = vadd.f32 %v8110, %v7744
      %v8195 = vadd.f32 %v8113, %v7745
      %v8196 = vadd.f32 %v8118, %v7746
      %v8197 = vadd.f32 %v8121, %v7747
      %v8198 = vadd.f32 %v8126, %v7748
      %v8199 = vadd.f32 %v8129, %v7749
      %v8200 = vadd.f32 %v8134, %v7750
      %v8201 = vadd.f32 %v8137, %v7751
      %v8202 = vadd.f32 %v8142, %v7752
      %v8203 = vadd.f32 %v8145, %v7753
      %v8204 = vadd.f32 %v8150, %v7754
      %v8205 = vadd.f32 %v8153, %v7755
      %v8206 = vadd.f32 %v8158, %v7756
      %v8207 = vadd.f32 %v8161, %v7757
      %v8208 = vadd.f32 %v8166, %v7758
      %v8209 = vadd.f32 %v8169, %v7759
      %v8210 = vadd.f32 %v8174, %v7760
      %v8211 = vadd.f32 %v8177, %v7761
      %v8212 = vmul.f32 %v3639, %v8180
      %v8213 = vmul.f32 %v3640, %v8181
      %v8214 = vmul.f32 %v3641, %v8182
      %v8215 = vmul.f32 %v3642, %v8183
      %v8216 = vmul.f32 %v3643, %v8184
      %v8217 = vmul.f32 %v3644, %v8185
      %v8218 = vmul.f32 %v3645, %v8186
      %v8219 = vmul.f32 %v3646, %v8187
      %v8220 = vmul.f32 %v3647, %v8188
      %v8221 = vmul.f32 %v3648, %v8189
      %v8222 = vmul.f32 %v3649, %v8190
      %v8223 = vmul.f32 %v3650, %v8191
      %v8224 = vmul.f32 %v3651, %v8192
      %v8225 = vmul.f32 %v3652, %v8193
      %v8226 = vmul.f32 %v3653, %v8194
      %v8227 = vmul.f32 %v3654, %v8195
      %v8228 = vmul.f32 %v3655, %v8196
      %v8229 = vmul.f32 %v3656, %v8197
      %v8230 = vmul.f32 %v3657, %v8198
      %v8231 = vmul.f32 %v3658, %v8199
      %v8232 = vmul.f32 %v3659, %v8200
      %v8233 = vmul.f32 %v3660, %v8201
      %v8234 = vmul.f32 %v3661, %v8202
      %v8235 = vmul.f32 %v3662, %v8203
      %v8236 = vmul.f32 %v3663, %v8204
      %v8237 = vmul.f32 %v3664, %v8205
      %v8238 = vmul.f32 %v3665, %v8206
      %v8239 = vmul.f32 %v3666, %v8207
      %v8240 = vmul.f32 %v3667, %v8208
      %v8241 = vmul.f32 %v3668, %v8209
      %v8242 = vmul.f32 %v3669, %v8210
      %v8243 = vmul.f32 %v3670, %v8211
      %8244 = vst [vmem:[%s388] sm:$0xff] %v8212
      %8245 = vst [vmem:[%s388 + $0x8] sm:$0xff] %v8213
      %8246 = vst [vmem:[%s388 + $0x10] sm:$0xff] %v8214
      %8247 = vst [vmem:[%s388 + $0x18] sm:$0xff] %v8215
      %8248 = vst [vmem:[%s388 + $0x20] sm:$0xff] %v8216
      %8249 = vst [vmem:[%s388 + $0x28] sm:$0xff] %v8217
      %8250 = vst [vmem:[%s388 + $0x30] sm:$0xff] %v8218
      %8251 = vst [vmem:[%s388 + $0x38] sm:$0xff] %v8219
      %8252 = vst [vmem:[%s388 + $0x40] sm:$0xff] %v8220
      %8253 = vst [vmem:[%s388 + $0x48] sm:$0xff] %v8221
      %8254 = vst [vmem:[%s388 + $0x50] sm:$0xff] %v8222
      %8255 = vst [vmem:[%s388 + $0x58] sm:$0xff] %v8223
      %8256 = vst [vmem:[%s388 + $0x60] sm:$0xff] %v8224
      %8257 = vst [vmem:[%s388 + $0x68] sm:$0xff] %v8225
      %8258 = vst [vmem:[%s388 + $0x70] sm:$0xff] %v8226
      %8259 = vst [vmem:[%s388 + $0x78] sm:$0xff] %v8227
      %8260 = vst [vmem:[%s388 + $0x80] sm:$0xff] %v8228
      %8261 = vst [vmem:[%s388 + $0x88] sm:$0xff] %v8229
      %8262 = vst [vmem:[%s388 + $0x90] sm:$0xff] %v8230
      %8263 = vst [vmem:[%s388 + $0x98] sm:$0xff] %v8231
      %8264 = vst [vmem:[%s388 + $0xa0] sm:$0xff] %v8232
      %8265 = vst [vmem:[%s388 + $0xa8] sm:$0xff] %v8233
      %8266 = vst [vmem:[%s388 + $0xb0] sm:$0xff] %v8234
      %8267 = vst [vmem:[%s388 + $0xb8] sm:$0xff] %v8235
      %8268 = vst [vmem:[%s388 + $0xc0] sm:$0xff] %v8236
      %8269 = vst [vmem:[%s388 + $0xc8] sm:$0xff] %v8237
      %8270 = vst [vmem:[%s388 + $0xd0] sm:$0xff] %v8238
      %8271 = vst [vmem:[%s388 + $0xd8] sm:$0xff] %v8239
      %8272 = vst [vmem:[%s388 + $0xe0] sm:$0xff] %v8240
      %8273 = vst [vmem:[%s388 + $0xe8] sm:$0xff] %v8241
      %8274 = vst [vmem:[%s388 + $0xf0] sm:$0xff] %v8242
      %8275 = vst [vmem:[%s388 + $0xf8] sm:$0xff] %v8243
      %v8276 = vadd.f32 %v8212, %v390
      %v8277 = vadd.f32 %v8213, %v391
      %v8278 = vadd.f32 %v8214, %v392
      %v8279 = vadd.f32 %v8215, %v393
      %v8280 = vadd.f32 %v8216, %v394
      %v8281 = vadd.f32 %v8217, %v395
      %v8282 = vadd.f32 %v8218, %v396
      %v8283 = vadd.f32 %v8219, %v397
      %v8284 = vadd.f32 %v8220, %v398
      %v8285 = vadd.f32 %v8221, %v399
      %v8286 = vadd.f32 %v8222, %v400
      %v8287 = vadd.f32 %v8223, %v401
      %v8288 = vadd.f32 %v8224, %v402
      %v8289 = vadd.f32 %v8225, %v403
      %v8290 = vadd.f32 %v8226, %v404
      %v8291 = vadd.f32 %v8227, %v405
      %v8292 = vadd.f32 %v8228, %v406
      %v8293 = vadd.f32 %v8229, %v407
      %v8294 = vadd.f32 %v8230, %v408
      %v8295 = vadd.f32 %v8231, %v409
      %v8296 = vadd.f32 %v8232, %v410
      %v8297 = vadd.f32 %v8233, %v411
      %v8298 = vadd.f32 %v8234, %v412
      %v8299 = vadd.f32 %v8235, %v413
      %v8300 = vadd.f32 %v8236, %v414
      %v8301 = vadd.f32 %v8237, %v415
      %v8302 = vadd.f32 %v8238, %v416
      %v8303 = vadd.f32 %v8239, %v417
      %v8304 = vadd.f32 %v8240, %v418
      %v8305 = vadd.f32 %v8241, %v419
      %v8306 = vadd.f32 %v8242, %v420
      %v8307 = vadd.f32 %v8243, %v421
      %8308 = vst.msk [vmem:[%s388] sm:$0xff] %vm454, %v8276
      %8309 = vst.msk [vmem:[%s388 + $0x8] sm:$0xff] %vm454, %v8277
      %8310 = vst.msk [vmem:[%s388 + $0x10] sm:$0xff] %vm454, %v8278
      %8311 = vst.msk [vmem:[%s388 + $0x18] sm:$0xff] %vm454, %v8279
      %8312 = vst.msk [vmem:[%s388 + $0x20] sm:$0xff] %vm454, %v8280
      %8313 = vst.msk [vmem:[%s388 + $0x28] sm:$0xff] %vm454, %v8281
      %8314 = vst.msk [vmem:[%s388 + $0x30] sm:$0xff] %vm454, %v8282
      %8315 = vst.msk [vmem:[%s388 + $0x38] sm:$0xff] %vm454, %v8283
      %8316 = vst.msk [vmem:[%s388 + $0x40] sm:$0xff] %vm454, %v8284
      %8317 = vst.msk [vmem:[%s388 + $0x48] sm:$0xff] %vm454, %v8285
      %8318 = vst.msk [vmem:[%s388 + $0x50] sm:$0xff] %vm454, %v8286
      %8319 = vst.msk [vmem:[%s388 + $0x58] sm:$0xff] %vm454, %v8287
      %8320 = vst.msk [vmem:[%s388 + $0x60] sm:$0xff] %vm454, %v8288
      %8321 = vst.msk [vmem:[%s388 + $0x68] sm:$0xff] %vm454, %v8289
      %8322 = vst.msk [vmem:[%s388 + $0x70] sm:$0xff] %vm454, %v8290
      %8323 = vst.msk [vmem:[%s388 + $0x78] sm:$0xff] %vm454, %v8291
      %8324 = vst.msk [vmem:[%s388 + $0x80] sm:$0xff] %vm454, %v8292
      %8325 = vst.msk [vmem:[%s388 + $0x88] sm:$0xff] %vm454, %v8293
      %8326 = vst.msk [vmem:[%s388 + $0x90] sm:$0xff] %vm454, %v8294
      %8327 = vst.msk [vmem:[%s388 + $0x98] sm:$0xff] %vm454, %v8295
      %8328 = vst.msk [vmem:[%s388 + $0xa0] sm:$0xff] %vm454, %v8296
      %8329 = vst.msk [vmem:[%s388 + $0xa8] sm:$0xff] %vm454, %v8297
      %8330 = vst.msk [vmem:[%s388 + $0xb0] sm:$0xff] %vm454, %v8298
      %8331 = vst.msk [vmem:[%s388 + $0xb8] sm:$0xff] %vm454, %v8299
      %8332 = vst.msk [vmem:[%s388 + $0xc0] sm:$0xff] %vm454, %v8300
      %8333 = vst.msk [vmem:[%s388 + $0xc8] sm:$0xff] %vm454, %v8301
      %8334 = vst.msk [vmem:[%s388 + $0xd0] sm:$0xff] %vm454, %v8302
      %8335 = vst.msk [vmem:[%s388 + $0xd8] sm:$0xff] %vm454, %v8303
      %8336 = vst.msk [vmem:[%s388 + $0xe0] sm:$0xff] %vm454, %v8304
      %8337 = vst.msk [vmem:[%s388 + $0xe8] sm:$0xff] %vm454, %v8305
      %8338 = vst.msk [vmem:[%s388 + $0xf0] sm:$0xff] %vm454, %v8306
      %8339 = vst.msk [vmem:[%s388 + $0xf8] sm:$0xff] %vm454, %v8307
      %p8340 = scmp.lt.s32.totalorder %s24, 1
      %s8341 = scalar_select %p8340, %s24, 1
      %s8342 = smul.addr %s8341, 32
      %s8343 = smul.addr %s8342, 8
      %s8344 = scalar_lea.vmem %s12, %s8343
      // Predicated region
      $region65: #{custom_multiscale_forward.3} parent=63 // pred_check
        %p8345 = pneg %p278
      $region66: #{custom_multiscale_forward.3} parent=63 // pred_check_branch
        %8347 = sbr.rel (%p8345) target = $region68
      $region67: #{custom_multiscale_forward.3} parent=63 // pred_region
        _
      $region68: #{custom_multiscale_forward.3} parent=63 // pred_fallthru
        _
    $region64: #{custom_multiscale_forward.3} parent=5 // pred_fallthru
      _
    %p8348 = scmp.le.s32.totalorder 2, %s19
    // Predicated region
    $region69: #{custom_multiscale_forward.3} parent=5 // pred_check
      %p8349 = pneg %p8348
    $region70: #{custom_multiscale_forward.3} parent=5 // pred_check_branch
      %8351 = sbr.rel (%p8349) target = $region72
    $region71: #{custom_multiscale_forward.3} parent=5 // pred_region
      %s8352 = ssub.s32 %s19, 2
      // Predicated region
      $region73: #{custom_multiscale_forward.3} parent=71 // pred_check
        %p8353 = pneg %p284
      $region74: #{custom_multiscale_forward.3} parent=71 // pred_check_branch
        %8355 = sbr.rel (%p8353) target = $region76
      $region75: #{custom_multiscale_forward.3} parent=71 // pred_region
        %p8356 = scmp.lt.s32.totalorder %s25, 1
        %s8357 = scalar_select %p8356, %s25, 1
        %s8358 = smul.addr %s8357, 32
        %s8359 = smul.addr %s8358, 8
        %s8360 = scalar_lea.vmem %s12, %s8359
      $region76: #{custom_multiscale_forward.3} parent=71 // pred_fallthru
        _
    $region72: #{custom_multiscale_forward.3} parent=5 // pred_fallthru
      _
  $region6: #{custom_multiscale_forward.3} parent=0 // loop_footer
    %s23 = sadd.s32 1, %s19
  $region7: #{custom_multiscale_forward.3} parent=0 // loop_footer_branch
    %18 = sbr.rel target = $region3
  $region8: #{custom_multiscale_forward.3} parent=0 // loop_exit
    _

</llo_original>
